<compile_context>
chip_gen: v5e
topology: v5e:2x2
jax: 0.10.0
libtpu: 0.0.40
codegen_flags: <defaults>
</compile_context>

<pallas_src>
import functools

import jax
import jax.numpy as jnp
from jax import lax
from jax.experimental import pallas as pl
from jax.experimental.pallas import tpu as pltpu  # noqa: F401


# ---------------------------------------------------------------------------
# One fused kernel per input group: runs 3 MultiheadAttention modules sharing q,k,v
# ---------------------------------------------------------------------------
def _mha_group_kernel(q_ref, k_ref, v_ref,
                      wq_ref, wk_ref, wv_ref, wo_ref, misc_ref,
                      out0_ref, w0_ref, out1_ref, w1_ref, out2_ref, w2_ref,
                      *, heads, add_bias_kv, add_zero_attn, batch_first):
    f32 = jnp.float32
    out_refs = ((out0_ref, w0_ref), (out1_ref, w1_ref), (out2_ref, w2_ref))

    q_all = q_ref[...]
    k_all = k_ref[...]
    v_all = v_ref[...]

    if batch_first:
        N, Lq, E = q_all.shape
        q_bs = [q_all[n] for n in range(N)]
        k_bs = [k_all[n] for n in range(N)]
        v_bs = [v_all[n] for n in range(N)]
    else:
        Lq, N, E = q_all.shape
        q_bs = [q_all[:, n, :] for n in range(N)]
        k_bs = [k_all[:, n, :] for n in range(N)]
        v_bs = [v_all[:, n, :] for n in range(N)]

    def mm_nt(a, b):   # (M, K) x (P, K) -> (M, P)
        return lax.dot_general(a, b, (((1,), (1,)), ((), ())),
                               preferred_element_type=f32)

    def mm_nn(a, b):   # (M, K) x (K, P) -> (M, P)
        return lax.dot_general(a, b, (((1,), (0,)), ((), ())),
                               preferred_element_type=f32)

    col = lax.broadcasted_iota(jnp.int32, (1, E), 1)

    for m in range(3):
        H = heads[m]
        Dh = E // H

        wq = wq_ref[m]          # (E, E), pre-scaled by 1/sqrt(Dh)
        wk = wk_ref[m]
        wv = wv_ref[m]
        wo = wo_ref[m]
        misc = misc_ref[m]      # (8, E): rows = bq*s, bk, bv, bo, bias_k, bias_v, 0, 0
        bq = misc[0:1, :]
        bk = misc[1:2, :]
        bv = misc[2:3, :]
        bo = misc[3:4, :]
        bias_k = misc[4:5, :]
        bias_v = misc[5:6, :]

        # per-head column masks (1, E): a handful of VPU compares on a lane iota
        hmask = [((col >= h * Dh) & (col < (h + 1) * Dh)).astype(f32)
                 for h in range(H)]

        outs_b = []
        attnw_b = []
        for n in range(N):
            q2d, k2d, v2d = q_bs[n], k_bs[n], v_bs[n]

            qp = mm_nt(q2d, wq) + bq        # (Lq, E), scaling already folded in
            kp = mm_nt(k2d, wk) + bk        # (S0, E)
            vp = mm_nt(v2d, wv) + bv        # (S0, E)
            if add_bias_kv[m]:
                kp = jnp.concatenate([kp, bias_k], axis=0)
                vp = jnp.concatenate([vp, bias_v], axis=0)
            if add_zero_attn[m]:
                zero_row = jnp.zeros((1, E), f32)
                kp = jnp.concatenate([kp, zero_row], axis=0)
                vp = jnp.concatenate([vp, zero_row], axis=0)
            S = kp.shape[0]

            # Pack all heads along sublanes: row h*Lq + l holds q_l masked to
            # head h's columns, so ONE matmul produces every head's score block.
            q_big = jnp.concatenate([qp * hmask[h] for h in range(H)], axis=0)

            scores = mm_nt(q_big, kp)                       # (H*Lq, S)
            mrow = jnp.max(scores, axis=-1, keepdims=True)
            p = jnp.exp(scores - mrow)
            denom = jnp.sum(p, axis=-1, keepdims=True)
            w = p / denom                                   # exact per-head softmax

            o_flat = mm_nn(w, vp)                           # (H*Lq, E)

            # Collapse the packed head rows: mask each head's sublane block to its
            # own column range and sum (aligned static slices, trivial VPU work).
            o = jnp.zeros((Lq, E), f32)
            wsum = jnp.zeros((Lq, S), f32)
            for h in range(H):
                blk = slice(h * Lq, (h + 1) * Lq)
                o = o + o_flat[blk, :] * hmask[h]
                wsum = wsum + w[blk, :]

            outs_b.append(mm_nt(o, wo) + bo)                # (Lq, E)
            attnw_b.append(wsum * (1.0 / H))                # (Lq, S), head-averaged

        o_ref, w_ref = out_refs[m]
        if batch_first:
            o_ref[...] = jnp.stack(outs_b, axis=0)          # (N, Lq, E)
        else:
            o_ref[...] = jnp.stack(outs_b, axis=1)          # (Lq, N, E) seq-first
        w_ref[...] = jnp.stack(attnw_b, axis=0)             # (N, Lq, S)


# ---------------------------------------------------------------------------
# Wrapper: ONE pallas_call per group of three modules sharing (q, k, v)
# ---------------------------------------------------------------------------
def fused_mha_group(q, k, v, plist, heads, *, batch_first):
    f32 = jnp.float32
    q = q.astype(f32)
    k = k.astype(f32)
    v = v.astype(f32)
    if batch_first:
        N, Lq, E = q.shape
        S0 = k.shape[1]
    else:
        Lq, N, E = q.shape
        S0 = k.shape[0]

    add_bias_kv = tuple(p["bias_k"] is not None for p in plist)
    add_zero_attn = tuple(bool(p["add_zero_attn"]) for p in plist)

    Wq, Wk, Wv, Wo, Misc = [], [], [], [], []
    zero_vec = jnp.zeros((E,), f32)
    for p, H in zip(plist, heads):
        scale = float(E // H) ** -0.5
        wq, wk, wv = jnp.split(p["in_proj_weight"].astype(f32), 3, axis=0)
        bq, bk, bv = jnp.split(p["in_proj_bias"].astype(f32), 3, axis=0)
        Wq.append(wq * scale)                 # fold 1/sqrt(Dh) into q projection
        Wk.append(wk)
        Wv.append(wv)
        Wo.append(p["out_proj_weight"].astype(f32))
        bias_k = p["bias_k"].astype(f32) if p["bias_k"] is not None else zero_vec
        bias_v = p["bias_v"].astype(f32) if p["bias_v"] is not None else zero_vec
        Misc.append(jnp.stack(
            [bq * scale, bk, bv, p["out_proj_bias"].astype(f32),
             bias_k, bias_v, zero_vec, zero_vec], axis=0))
    Wq = jnp.stack(Wq)
    Wk = jnp.stack(Wk)
    Wv = jnp.stack(Wv)
    Wo = jnp.stack(Wo)
    Misc = jnp.stack(Misc)

    out_shapes = []
    for i in range(3):
        S = S0 + (1 if add_bias_kv[i] else 0) + (1 if add_zero_attn[i] else 0)
        o_shape = (N, Lq, E) if batch_first else (Lq, N, E)
        out_shapes.append(jax.ShapeDtypeStruct(o_shape, f32))
        out_shapes.append(jax.ShapeDtypeStruct((N, Lq, S), f32))

    kernel = functools.partial(
        _mha_group_kernel,
        heads=tuple(heads),
        add_bias_kv=add_bias_kv,
        add_zero_attn=add_zero_attn,
        batch_first=batch_first,
    )

    # Grid-less call: every operand is a full-array VMEM ref (working set is tiny).
    return pl.pallas_call(kernel, out_shape=tuple(out_shapes))(
        q, k, v, Wq, Wk, Wv, Wo, Misc)


# ---------------------------------------------------------------------------
# Deterministic synthetic parameter init (shapes match nn.MultiheadAttention)
# ---------------------------------------------------------------------------
def init_mha_params(key, embed_dim, *, bias, add_bias_kv, add_zero_attn):
    ks = jax.random.split(key, 6)
    E = embed_dim
    p = {}
    p["in_proj_weight"] = 0.1 * jax.random.normal(ks[0], (3 * E, E), jnp.float32)
    p["in_proj_bias"] = (0.1 * jax.random.normal(ks[1], (3 * E,), jnp.float32)
                         if bias else jnp.zeros((3 * E,), jnp.float32))
    p["out_proj_weight"] = 0.1 * jax.random.normal(ks[2], (E, E), jnp.float32)
    p["out_proj_bias"] = (0.1 * jax.random.normal(ks[3], (E,), jnp.float32)
                          if bias else jnp.zeros((E,), jnp.float32))
    p["bias_k"] = 0.1 * jax.random.normal(ks[4], (E,), jnp.float32) if add_bias_kv else None
    p["bias_v"] = 0.1 * jax.random.normal(ks[5], (E,), jnp.float32) if add_bias_kv else None
    p["add_zero_attn"] = add_zero_attn
    return p


# ---------------------------------------------------------------------------
# Model forward (mirrors Model.forward): two fused pallas_calls, no XLA transposes
# ---------------------------------------------------------------------------
def model_forward(params, xq, xk, xv, yq, yk, yv):
    x0, x0w, x1, x1w, x2, x2w = fused_mha_group(
        xq, xk, xv, [params["a00"], params["a01"], params["a02"]],
        heads=(4, 8, 16), batch_first=False)
    y0, y0w, y1, y1w, y2, y2w = fused_mha_group(
        yq, yk, yv, [params["a10"], params["a11"], params["a12"]],
        heads=(4, 8, 10), batch_first=True)
    return (x0, x0w, x1, x1w, x2, x2w, y0, y0w, y1, y1w, y2, y2w)


if __name__ == "__main__":
    key = jax.random.PRNGKey(0)
    kxq, kxk, kxv, kyq, kyk, kyv, kp = jax.random.split(key, 7)

    N = 2        # batch
    Lq = 8       # target (query) sequence length
    Lkv = 6      # source (key/value) sequence length

    # x-group: seq-first (L, N, 64);  y-group: batch-first (N, L, 40)
    xq = jax.random.normal(kxq, (Lq, N, 64), jnp.float32)
    xk = jax.random.normal(kxk, (Lkv, N, 64), jnp.float32)
    xv = jax.random.normal(kxv, (Lkv, N, 64), jnp.float32)
    yq = jax.random.normal(kyq, (N, Lq, 40), jnp.float32)
    yk = jax.random.normal(kyk, (N, Lkv, 40), jnp.float32)
    yv = jax.random.normal(kyv, (N, Lkv, 40), jnp.float32)

    pkeys = jax.random.split(kp, 6)
    params = {
        "a00": init_mha_params(pkeys[0], 64, bias=True,  add_bias_kv=False, add_zero_attn=False),
        "a01": init_mha_params(pkeys[1], 64, bias=False, add_bias_kv=False, add_zero_attn=False),
        "a02": init_mha_params(pkeys[2], 64, bias=True,  add_bias_kv=True,  add_zero_attn=True),
        "a10": init_mha_params(pkeys[3], 40, bias=True,  add_bias_kv=False, add_zero_attn=False),
        "a11": init_mha_params(pkeys[4], 40, bias=False, add_bias_kv=False, add_zero_attn=False),
        "a12": init_mha_params(pkeys[5], 40, bias=True,  add_bias_kv=True,  add_zero_attn=True),
    }

    # Close params over a jitted callable so weight scaling / stacking constant-folds.
    fwd = jax.jit(lambda a, b, c, d, e, f: model_forward(params, a, b, c, d, e, f))

    outs = fwd(xq, xk, xv, yq, yk, yv)
    jax.block_until_ready(outs)

    # shape sanity (matches nn.MultiheadAttention outputs)
    assert outs[0].shape == (Lq, N, 64) and outs[1].shape == (N, Lq, Lkv)
    assert outs[2].shape == (Lq, N, 64) and outs[3].shape == (N, Lq, Lkv)
    assert outs[4].shape == (Lq, N, 64) and outs[5].shape == (N, Lq, Lkv + 2)
    assert outs[6].shape == (N, Lq, 40) and outs[7].shape == (N, Lq, Lkv)
    assert outs[8].shape == (N, Lq, 40) and outs[9].shape == (N, Lq, Lkv)
    assert outs[10].shape == (N, Lq, 40) and outs[11].shape == (N, Lq, Lkv + 2)

    # numeric sanity: head-averaged attention weights must sum to 1 per row
    assert bool(jnp.allclose(outs[1].sum(-1), 1.0, atol=1e-3))
    assert bool(jnp.allclose(outs[11].sum(-1), 1.0, atol=1e-3))
    assert all(bool(jnp.isfinite(o).all()) for o in outs)

    print("KERNEL_OK")
</pallas_src>

<mosaic_0001>
module attributes {stable_mosaic.version = 11 : i64} {
  func.func @_mha_group_kernel(%arg0: memref<2x8x40xf32, #tpu.memory_space<vmem>>, %arg1: memref<2x6x40xf32, #tpu.memory_space<vmem>>, %arg2: memref<2x6x40xf32, #tpu.memory_space<vmem>>, %arg3: memref<3x40x40xf32, #tpu.memory_space<vmem>>, %arg4: memref<3x40x40xf32, #tpu.memory_space<vmem>>, %arg5: memref<3x40x40xf32, #tpu.memory_space<vmem>>, %arg6: memref<3x40x40xf32, #tpu.memory_space<vmem>>, %arg7: memref<3x8x40xf32, #tpu.memory_space<vmem>>, %arg8: memref<2x8x40xf32, #tpu.memory_space<vmem>>, %arg9: memref<2x8x6xf32, #tpu.memory_space<vmem>>, %arg10: memref<2x8x40xf32, #tpu.memory_space<vmem>>, %arg11: memref<2x8x6xf32, #tpu.memory_space<vmem>>, %arg12: memref<2x8x40xf32, #tpu.memory_space<vmem>>, %arg13: memref<2x8x8xf32, #tpu.memory_space<vmem>>) attributes {dimension_semantics = [], scalar_prefetch = 0 : i64, scratch_operands = 0 : i64, tpu.core_type = #tpu.core_type<tc>} {
    %c0 = arith.constant 0 : index
    %c0_0 = arith.constant 0 : index
    %c0_1 = arith.constant 0 : index
    %0 = vector.load %arg0[%c0, %c0_0, %c0_1] : memref<2x8x40xf32, #tpu.memory_space<vmem>>, vector<2x8x40xf32>
    %c0_2 = arith.constant 0 : index
    %c0_3 = arith.constant 0 : index
    %c0_4 = arith.constant 0 : index
    %1 = vector.load %arg1[%c0_2, %c0_3, %c0_4] : memref<2x6x40xf32, #tpu.memory_space<vmem>>, vector<2x6x40xf32>
    %c0_5 = arith.constant 0 : index
    %c0_6 = arith.constant 0 : index
    %c0_7 = arith.constant 0 : index
    %2 = vector.load %arg2[%c0_5, %c0_6, %c0_7] : memref<2x6x40xf32, #tpu.memory_space<vmem>>, vector<2x6x40xf32>
    %3 = vector.extract_strided_slice %0 {offsets = [0, 0, 0], sizes = [1, 8, 40], strides = [1, 1, 1]} : vector<2x8x40xf32> to vector<1x8x40xf32>
    %4 = vector.shape_cast %3 : vector<1x8x40xf32> to vector<8x40xf32>
    %5 = vector.extract_strided_slice %0 {offsets = [1, 0, 0], sizes = [1, 8, 40], strides = [1, 1, 1]} : vector<2x8x40xf32> to vector<1x8x40xf32>
    %6 = vector.shape_cast %5 : vector<1x8x40xf32> to vector<8x40xf32>
    %7 = vector.extract_strided_slice %1 {offsets = [0, 0, 0], sizes = [1, 6, 40], strides = [1, 1, 1]} : vector<2x6x40xf32> to vector<1x6x40xf32>
    %8 = vector.shape_cast %7 : vector<1x6x40xf32> to vector<6x40xf32>
    %9 = vector.extract_strided_slice %1 {offsets = [1, 0, 0], sizes = [1, 6, 40], strides = [1, 1, 1]} : vector<2x6x40xf32> to vector<1x6x40xf32>
    %10 = vector.shape_cast %9 : vector<1x6x40xf32> to vector<6x40xf32>
    %11 = vector.extract_strided_slice %2 {offsets = [0, 0, 0], sizes = [1, 6, 40], strides = [1, 1, 1]} : vector<2x6x40xf32> to vector<1x6x40xf32>
    %12 = vector.shape_cast %11 : vector<1x6x40xf32> to vector<6x40xf32>
    %13 = vector.extract_strided_slice %2 {offsets = [1, 0, 0], sizes = [1, 6, 40], strides = [1, 1, 1]} : vector<2x6x40xf32> to vector<1x6x40xf32>
    %14 = vector.shape_cast %13 : vector<1x6x40xf32> to vector<6x40xf32>
    %15 = tpu.iota {dimensions = array<i32: 1>} : vector<1x40xi32>
    %c0_8 = arith.constant 0 : index
    %c0_9 = arith.constant 0 : index
    %c0_10 = arith.constant 0 : index
    %16 = vector.load %arg3[%c0_8, %c0_9, %c0_10] : memref<3x40x40xf32, #tpu.memory_space<vmem>>, vector<1x40x40xf32>
    %17 = vector.shape_cast %16 : vector<1x40x40xf32> to vector<40x40xf32>
    %c0_11 = arith.constant 0 : index
    %c0_12 = arith.constant 0 : index
    %c0_13 = arith.constant 0 : index
    %18 = vector.load %arg4[%c0_11, %c0_12, %c0_13] : memref<3x40x40xf32, #tpu.memory_space<vmem>>, vector<1x40x40xf32>
    %19 = vector.shape_cast %18 : vector<1x40x40xf32> to vector<40x40xf32>
    %c0_14 = arith.constant 0 : index
    %c0_15 = arith.constant 0 : index
    %c0_16 = arith.constant 0 : index
    %20 = vector.load %arg5[%c0_14, %c0_15, %c0_16] : memref<3x40x40xf32, #tpu.memory_space<vmem>>, vector<1x40x40xf32>
    %21 = vector.shape_cast %20 : vector<1x40x40xf32> to vector<40x40xf32>
    %c0_17 = arith.constant 0 : index
    %c0_18 = arith.constant 0 : index
    %c0_19 = arith.constant 0 : index
    %22 = vector.load %arg6[%c0_17, %c0_18, %c0_19] : memref<3x40x40xf32, #tpu.memory_space<vmem>>, vector<1x40x40xf32>
    %23 = vector.shape_cast %22 : vector<1x40x40xf32> to vector<40x40xf32>
    %c0_20 = arith.constant 0 : index
    %c0_21 = arith.constant 0 : index
    %c0_22 = arith.constant 0 : index
    %24 = vector.load %arg7[%c0_20, %c0_21, %c0_22] : memref<3x8x40xf32, #tpu.memory_space<vmem>>, vector<1x8x40xf32>
    %25 = vector.shape_cast %24 : vector<1x8x40xf32> to vector<8x40xf32>
    %26 = vector.extract_strided_slice %25 {offsets = [0, 0], sizes = [1, 40], strides = [1, 1]} : vector<8x40xf32> to vector<1x40xf32>
    %27 = vector.extract_strided_slice %25 {offsets = [1, 0], sizes = [1, 40], strides = [1, 1]} : vector<8x40xf32> to vector<1x40xf32>
    %28 = vector.extract_strided_slice %25 {offsets = [2, 0], sizes = [1, 40], strides = [1, 1]} : vector<8x40xf32> to vector<1x40xf32>
    %29 = vector.extract_strided_slice %25 {offsets = [3, 0], sizes = [1, 40], strides = [1, 1]} : vector<8x40xf32> to vector<1x40xf32>
    %c0_i32 = arith.constant 0 : i32
    %30 = vector.broadcast %c0_i32 : i32 to vector<1x40xi32>
    %31 = arith.cmpi sge, %15, %30 : vector<1x40xi32>
    %c10_i32 = arith.constant 10 : i32
    %32 = vector.broadcast %c10_i32 : i32 to vector<1x40xi32>
    %33 = arith.cmpi slt, %15, %32 : vector<1x40xi32>
    %34 = arith.andi %31, %33 : vector<1x40xi1>
    %35 = arith.extui %34 : vector<1x40xi1> to vector<1x40xi32>
    %36 = arith.sitofp %35 : vector<1x40xi32> to vector<1x40xf32>
    %c10_i32_23 = arith.constant 10 : i32
    %37 = vector.broadcast %c10_i32_23 : i32 to vector<1x40xi32>
    %38 = arith.cmpi sge, %15, %37 : vector<1x40xi32>
    %c20_i32 = arith.constant 20 : i32
    %39 = vector.broadcast %c20_i32 : i32 to vector<1x40xi32>
    %40 = arith.cmpi slt, %15, %39 : vector<1x40xi32>
    %41 = arith.andi %38, %40 : vector<1x40xi1>
    %42 = arith.extui %41 : vector<1x40xi1> to vector<1x40xi32>
    %43 = arith.sitofp %42 : vector<1x40xi32> to vector<1x40xf32>
    %c20_i32_24 = arith.constant 20 : i32
    %44 = vector.broadcast %c20_i32_24 : i32 to vector<1x40xi32>
    %45 = arith.cmpi sge, %15, %44 : vector<1x40xi32>
    %c30_i32 = arith.constant 30 : i32
    %46 = vector.broadcast %c30_i32 : i32 to vector<1x40xi32>
    %47 = arith.cmpi slt, %15, %46 : vector<1x40xi32>
    %48 = arith.andi %45, %47 : vector<1x40xi1>
    %49 = arith.extui %48 : vector<1x40xi1> to vector<1x40xi32>
    %50 = arith.sitofp %49 : vector<1x40xi32> to vector<1x40xf32>
    %c30_i32_25 = arith.constant 30 : i32
    %51 = vector.broadcast %c30_i32_25 : i32 to vector<1x40xi32>
    %52 = arith.cmpi sge, %15, %51 : vector<1x40xi32>
    %c40_i32 = arith.constant 40 : i32
    %53 = vector.broadcast %c40_i32 : i32 to vector<1x40xi32>
    %54 = arith.cmpi slt, %15, %53 : vector<1x40xi32>
    %55 = arith.andi %52, %54 : vector<1x40xi1>
    %56 = arith.extui %55 : vector<1x40xi1> to vector<1x40xi32>
    %57 = arith.sitofp %56 : vector<1x40xi32> to vector<1x40xf32>
    %cst = arith.constant dense<0.000000e+00> : vector<8x40xf32>
    %58 = tpu.matmul %4, %17, %cst {dimension_numbers = #tpu.dot_dimension_numbers<[1], [1], [0], [0], [0, 0, 1, 0], [], []>} : vector<8x40xf32>, vector<40x40xf32>, vector<8x40xf32> -> vector<8x40xf32>
    %59 = vector.broadcast %26 : vector<1x40xf32> to vector<8x40xf32>
    %60 = arith.addf %58, %59 : vector<8x40xf32>
    %cst_26 = arith.constant dense<0.000000e+00> : vector<6x40xf32>
    %61 = tpu.matmul %8, %19, %cst_26 {dimension_numbers = #tpu.dot_dimension_numbers<[1], [1], [0], [0], [0, 0, 1, 0], [], []>} : vector<6x40xf32>, vector<40x40xf32>, vector<6x40xf32> -> vector<6x40xf32>
    %62 = vector.broadcast %27 : vector<1x40xf32> to vector<6x40xf32>
    %63 = arith.addf %61, %62 : vector<6x40xf32>
    %cst_27 = arith.constant dense<0.000000e+00> : vector<6x40xf32>
    %64 = tpu.matmul %12, %21, %cst_27 {dimension_numbers = #tpu.dot_dimension_numbers<[1], [1], [0], [0], [0, 0, 1, 0], [], []>} : vector<6x40xf32>, vector<40x40xf32>, vector<6x40xf32> -> vector<6x40xf32>
    %65 = vector.broadcast %28 : vector<1x40xf32> to vector<6x40xf32>
    %66 = arith.addf %64, %65 : vector<6x40xf32>
    %67 = vector.broadcast %36 : vector<1x40xf32> to vector<8x40xf32>
    %68 = arith.mulf %60, %67 : vector<8x40xf32>
    %69 = vector.broadcast %43 : vector<1x40xf32> to vector<8x40xf32>
    %70 = arith.mulf %60, %69 : vector<8x40xf32>
    %71 = vector.broadcast %50 : vector<1x40xf32> to vector<8x40xf32>
    %72 = arith.mulf %60, %71 : vector<8x40xf32>
    %73 = vector.broadcast %57 : vector<1x40xf32> to vector<8x40xf32>
    %74 = arith.mulf %60, %73 : vector<8x40xf32>
    %75 = tpu.concatenate %68, %70, %72, %74 in 0 : vector<8x40xf32>, vector<8x40xf32>, vector<8x40xf32>, vector<8x40xf32> -> vector<32x40xf32>
    %cst_28 = arith.constant dense<0.000000e+00> : vector<32x6xf32>
    %76 = tpu.matmul %75, %63, %cst_28 {dimension_numbers = #tpu.dot_dimension_numbers<[1], [1], [0], [0], [0, 0, 1, 0], [], []>} : vector<32x40xf32>, vector<6x40xf32>, vector<32x6xf32> -> vector<32x6xf32>
    %cst_29 = arith.constant dense<0xFF800000> : vector<32xf32>
    %77 = vector.multi_reduction <maximumf>, %76, %cst_29 [1] : vector<32x6xf32> to vector<32xf32>
    %78 = vector.shape_cast %77 : vector<32xf32> to vector<32x1xf32>
    %79 = vector.broadcast %78 : vector<32x1xf32> to vector<32x6xf32>
    %80 = arith.subf %76, %79 : vector<32x6xf32>
    %81 = math.exp %80 : vector<32x6xf32>
    %cst_30 = arith.constant dense<0.000000e+00> : vector<32xf32>
    %82 = vector.multi_reduction <add>, %81, %cst_30 [1] : vector<32x6xf32> to vector<32xf32>
    %83 = vector.shape_cast %82 : vector<32xf32> to vector<32x1xf32>
    %84 = vector.broadcast %83 : vector<32x1xf32> to vector<32x6xf32>
    %85 = arith.divf %81, %84 : vector<32x6xf32>
    %cst_31 = arith.constant dense<0.000000e+00> : vector<32x40xf32>
    %86 = tpu.matmul %85, %66, %cst_31 {dimension_numbers = #tpu.dot_dimension_numbers<[1], [0], [0], [1], [0, 0, 1, 1], [], []>} : vector<32x6xf32>, vector<6x40xf32>, vector<32x40xf32> -> vector<32x40xf32>
    %cst_32 = arith.constant 0.000000e+00 : f32
    %87 = vector.broadcast %cst_32 : f32 to vector<8x40xf32>
    %cst_33 = arith.constant 0.000000e+00 : f32
    %88 = vector.broadcast %cst_33 : f32 to vector<8x6xf32>
    %89 = vector.extract_strided_slice %86 {offsets = [0, 0], sizes = [8, 40], strides = [1, 1]} : vector<32x40xf32> to vector<8x40xf32>
    %90 = vector.broadcast %36 : vector<1x40xf32> to vector<8x40xf32>
    %91 = arith.mulf %89, %90 : vector<8x40xf32>
    %92 = arith.addf %87, %91 : vector<8x40xf32>
    %93 = vector.extract_strided_slice %85 {offsets = [0, 0], sizes = [8, 6], strides = [1, 1]} : vector<32x6xf32> to vector<8x6xf32>
    %94 = arith.addf %88, %93 : vector<8x6xf32>
    %95 = vector.extract_strided_slice %86 {offsets = [8, 0], sizes = [8, 40], strides = [1, 1]} : vector<32x40xf32> to vector<8x40xf32>
    %96 = vector.broadcast %43 : vector<1x40xf32> to vector<8x40xf32>
    %97 = arith.mulf %95, %96 : vector<8x40xf32>
    %98 = arith.addf %92, %97 : vector<8x40xf32>
    %99 = vector.extract_strided_slice %85 {offsets = [8, 0], sizes = [8, 6], strides = [1, 1]} : vector<32x6xf32> to vector<8x6xf32>
    %100 = arith.addf %94, %99 : vector<8x6xf32>
    %101 = vector.extract_strided_slice %86 {offsets = [16, 0], sizes = [8, 40], strides = [1, 1]} : vector<32x40xf32> to vector<8x40xf32>
    %102 = vector.broadcast %50 : vector<1x40xf32> to vector<8x40xf32>
    %103 = arith.mulf %101, %102 : vector<8x40xf32>
    %104 = arith.addf %98, %103 : vector<8x40xf32>
    %105 = vector.extract_strided_slice %85 {offsets = [16, 0], sizes = [8, 6], strides = [1, 1]} : vector<32x6xf32> to vector<8x6xf32>
    %106 = arith.addf %100, %105 : vector<8x6xf32>
    %107 = vector.extract_strided_slice %86 {offsets = [24, 0], sizes = [8, 40], strides = [1, 1]} : vector<32x40xf32> to vector<8x40xf32>
    %108 = vector.broadcast %57 : vector<1x40xf32> to vector<8x40xf32>
    %109 = arith.mulf %107, %108 : vector<8x40xf32>
    %110 = arith.addf %104, %109 : vector<8x40xf32>
    %111 = vector.extract_strided_slice %85 {offsets = [24, 0], sizes = [8, 6], strides = [1, 1]} : vector<32x6xf32> to vector<8x6xf32>
    %112 = arith.addf %106, %111 : vector<8x6xf32>
    %cst_34 = arith.constant dense<0.000000e+00> : vector<8x40xf32>
    %113 = tpu.matmul %110, %23, %cst_34 {dimension_numbers = #tpu.dot_dimension_numbers<[1], [1], [0], [0], [0, 0, 1, 0], [], []>} : vector<8x40xf32>, vector<40x40xf32>, vector<8x40xf32> -> vector<8x40xf32>
    %114 = vector.broadcast %29 : vector<1x40xf32> to vector<8x40xf32>
    %115 = arith.addf %113, %114 : vector<8x40xf32>
    %cst_35 = arith.constant 2.500000e-01 : f32
    %116 = vector.broadcast %cst_35 : f32 to vector<8x6xf32>
    %117 = arith.mulf %112, %116 : vector<8x6xf32>
    %cst_36 = arith.constant dense<0.000000e+00> : vector<8x40xf32>
    %118 = tpu.matmul %6, %17, %cst_36 {dimension_numbers = #tpu.dot_dimension_numbers<[1], [1], [0], [0], [0, 0, 1, 0], [], []>} : vector<8x40xf32>, vector<40x40xf32>, vector<8x40xf32> -> vector<8x40xf32>
    %119 = vector.broadcast %26 : vector<1x40xf32> to vector<8x40xf32>
    %120 = arith.addf %118, %119 : vector<8x40xf32>
    %cst_37 = arith.constant dense<0.000000e+00> : vector<6x40xf32>
    %121 = tpu.matmul %10, %19, %cst_37 {dimension_numbers = #tpu.dot_dimension_numbers<[1], [1], [0], [0], [0, 0, 1, 0], [], []>} : vector<6x40xf32>, vector<40x40xf32>, vector<6x40xf32> -> vector<6x40xf32>
    %122 = vector.broadcast %27 : vector<1x40xf32> to vector<6x40xf32>
    %123 = arith.addf %121, %122 : vector<6x40xf32>
    %cst_38 = arith.constant dense<0.000000e+00> : vector<6x40xf32>
    %124 = tpu.matmul %14, %21, %cst_38 {dimension_numbers = #tpu.dot_dimension_numbers<[1], [1], [0], [0], [0, 0, 1, 0], [], []>} : vector<6x40xf32>, vector<40x40xf32>, vector<6x40xf32> -> vector<6x40xf32>
    %125 = vector.broadcast %28 : vector<1x40xf32> to vector<6x40xf32>
    %126 = arith.addf %124, %125 : vector<6x40xf32>
    %127 = vector.broadcast %36 : vector<1x40xf32> to vector<8x40xf32>
    %128 = arith.mulf %120, %127 : vector<8x40xf32>
    %129 = vector.broadcast %43 : vector<1x40xf32> to vector<8x40xf32>
    %130 = arith.mulf %120, %129 : vector<8x40xf32>
    %131 = vector.broadcast %50 : vector<1x40xf32> to vector<8x40xf32>
    %132 = arith.mulf %120, %131 : vector<8x40xf32>
    %133 = vector.broadcast %57 : vector<1x40xf32> to vector<8x40xf32>
    %134 = arith.mulf %120, %133 : vector<8x40xf32>
    %135 = tpu.concatenate %128, %130, %132, %134 in 0 : vector<8x40xf32>, vector<8x40xf32>, vector<8x40xf32>, vector<8x40xf32> -> vector<32x40xf32>
    %cst_39 = arith.constant dense<0.000000e+00> : vector<32x6xf32>
    %136 = tpu.matmul %135, %123, %cst_39 {dimension_numbers = #tpu.dot_dimension_numbers<[1], [1], [0], [0], [0, 0, 1, 0], [], []>} : vector<32x40xf32>, vector<6x40xf32>, vector<32x6xf32> -> vector<32x6xf32>
    %cst_40 = arith.constant dense<0xFF800000> : vector<32xf32>
    %137 = vector.multi_reduction <maximumf>, %136, %cst_40 [1] : vector<32x6xf32> to vector<32xf32>
    %138 = vector.shape_cast %137 : vector<32xf32> to vector<32x1xf32>
    %139 = vector.broadcast %138 : vector<32x1xf32> to vector<32x6xf32>
    %140 = arith.subf %136, %139 : vector<32x6xf32>
    %141 = math.exp %140 : vector<32x6xf32>
    %cst_41 = arith.constant dense<0.000000e+00> : vector<32xf32>
    %142 = vector.multi_reduction <add>, %141, %cst_41 [1] : vector<32x6xf32> to vector<32xf32>
    %143 = vector.shape_cast %142 : vector<32xf32> to vector<32x1xf32>
    %144 = vector.broadcast %143 : vector<32x1xf32> to vector<32x6xf32>
    %145 = arith.divf %141, %144 : vector<32x6xf32>
    %cst_42 = arith.constant dense<0.000000e+00> : vector<32x40xf32>
    %146 = tpu.matmul %145, %126, %cst_42 {dimension_numbers = #tpu.dot_dimension_numbers<[1], [0], [0], [1], [0, 0, 1, 1], [], []>} : vector<32x6xf32>, vector<6x40xf32>, vector<32x40xf32> -> vector<32x40xf32>
    %cst_43 = arith.constant 0.000000e+00 : f32
    %147 = vector.broadcast %cst_43 : f32 to vector<8x40xf32>
    %cst_44 = arith.constant 0.000000e+00 : f32
    %148 = vector.broadcast %cst_44 : f32 to vector<8x6xf32>
    %149 = vector.extract_strided_slice %146 {offsets = [0, 0], sizes = [8, 40], strides = [1, 1]} : vector<32x40xf32> to vector<8x40xf32>
    %150 = vector.broadcast %36 : vector<1x40xf32> to vector<8x40xf32>
    %151 = arith.mulf %149, %150 : vector<8x40xf32>
    %152 = arith.addf %147, %151 : vector<8x40xf32>
    %153 = vector.extract_strided_slice %145 {offsets = [0, 0], sizes = [8, 6], strides = [1, 1]} : vector<32x6xf32> to vector<8x6xf32>
    %154 = arith.addf %148, %153 : vector<8x6xf32>
    %155 = vector.extract_strided_slice %146 {offsets = [8, 0], sizes = [8, 40], strides = [1, 1]} : vector<32x40xf32> to vector<8x40xf32>
    %156 = vector.broadcast %43 : vector<1x40xf32> to vector<8x40xf32>
    %157 = arith.mulf %155, %156 : vector<8x40xf32>
    %158 = arith.addf %152, %157 : vector<8x40xf32>
    %159 = vector.extract_strided_slice %145 {offsets = [8, 0], sizes = [8, 6], strides = [1, 1]} : vector<32x6xf32> to vector<8x6xf32>
    %160 = arith.addf %154, %159 : vector<8x6xf32>
    %161 = vector.extract_strided_slice %146 {offsets = [16, 0], sizes = [8, 40], strides = [1, 1]} : vector<32x40xf32> to vector<8x40xf32>
    %162 = vector.broadcast %50 : vector<1x40xf32> to vector<8x40xf32>
    %163 = arith.mulf %161, %162 : vector<8x40xf32>
    %164 = arith.addf %158, %163 : vector<8x40xf32>
    %165 = vector.extract_strided_slice %145 {offsets = [16, 0], sizes = [8, 6], strides = [1, 1]} : vector<32x6xf32> to vector<8x6xf32>
    %166 = arith.addf %160, %165 : vector<8x6xf32>
    %167 = vector.extract_strided_slice %146 {offsets = [24, 0], sizes = [8, 40], strides = [1, 1]} : vector<32x40xf32> to vector<8x40xf32>
    %168 = vector.broadcast %57 : vector<1x40xf32> to vector<8x40xf32>
    %169 = arith.mulf %167, %168 : vector<8x40xf32>
    %170 = arith.addf %164, %169 : vector<8x40xf32>
    %171 = vector.extract_strided_slice %145 {offsets = [24, 0], sizes = [8, 6], strides = [1, 1]} : vector<32x6xf32> to vector<8x6xf32>
    %172 = arith.addf %166, %171 : vector<8x6xf32>
    %cst_45 = arith.constant dense<0.000000e+00> : vector<8x40xf32>
    %173 = tpu.matmul %170, %23, %cst_45 {dimension_numbers = #tpu.dot_dimension_numbers<[1], [1], [0], [0], [0, 0, 1, 0], [], []>} : vector<8x40xf32>, vector<40x40xf32>, vector<8x40xf32> -> vector<8x40xf32>
    %174 = vector.broadcast %29 : vector<1x40xf32> to vector<8x40xf32>
    %175 = arith.addf %173, %174 : vector<8x40xf32>
    %cst_46 = arith.constant 2.500000e-01 : f32
    %176 = vector.broadcast %cst_46 : f32 to vector<8x6xf32>
    %177 = arith.mulf %172, %176 : vector<8x6xf32>
    %178 = vector.shape_cast %115 : vector<8x40xf32> to vector<1x8x40xf32>
    %179 = vector.shape_cast %175 : vector<8x40xf32> to vector<1x8x40xf32>
    %180 = tpu.concatenate %178, %179 in 0 : vector<1x8x40xf32>, vector<1x8x40xf32> -> vector<2x8x40xf32>
    %c0_47 = arith.constant 0 : index
    %c0_48 = arith.constant 0 : index
    %c0_49 = arith.constant 0 : index
    %181 = vector.load %arg8[%c0_47, %c0_48, %c0_49] : memref<2x8x40xf32, #tpu.memory_space<vmem>>, vector<2x8x40xf32>
    tpu.vector_store %arg8[%c0_47, %c0_48, %c0_49], %180 {strides = array<i32>} : memref<2x8x40xf32, #tpu.memory_space<vmem>>, vector<2x8x40xf32>,
    %182 = vector.shape_cast %117 : vector<8x6xf32> to vector<1x8x6xf32>
    %183 = vector.shape_cast %177 : vector<8x6xf32> to vector<1x8x6xf32>
    %184 = tpu.concatenate %182, %183 in 0 : vector<1x8x6xf32>, vector<1x8x6xf32> -> vector<2x8x6xf32>
    %c0_50 = arith.constant 0 : index
    %c0_51 = arith.constant 0 : index
    %c0_52 = arith.constant 0 : index
    %185 = vector.load %arg9[%c0_50, %c0_51, %c0_52] : memref<2x8x6xf32, #tpu.memory_space<vmem>>, vector<2x8x6xf32>
    tpu.vector_store %arg9[%c0_50, %c0_51, %c0_52], %184 {strides = array<i32>} : memref<2x8x6xf32, #tpu.memory_space<vmem>>, vector<2x8x6xf32>,
    %c1 = arith.constant 1 : index
    %c0_53 = arith.constant 0 : index
    %c0_54 = arith.constant 0 : index
    %186 = vector.load %arg3[%c1, %c0_53, %c0_54] : memref<3x40x40xf32, #tpu.memory_space<vmem>>, vector<1x40x40xf32>
    %187 = vector.shape_cast %186 : vector<1x40x40xf32> to vector<40x40xf32>
    %c1_55 = arith.constant 1 : index
    %c0_56 = arith.constant 0 : index
    %c0_57 = arith.constant 0 : index
    %188 = vector.load %arg4[%c1_55, %c0_56, %c0_57] : memref<3x40x40xf32, #tpu.memory_space<vmem>>, vector<1x40x40xf32>
    %189 = vector.shape_cast %188 : vector<1x40x40xf32> to vector<40x40xf32>
    %c1_58 = arith.constant 1 : index
    %c0_59 = arith.constant 0 : index
    %c0_60 = arith.constant 0 : index
    %190 = vector.load %arg5[%c1_58, %c0_59, %c0_60] : memref<3x40x40xf32, #tpu.memory_space<vmem>>, vector<1x40x40xf32>
    %191 = vector.shape_cast %190 : vector<1x40x40xf32> to vector<40x40xf32>
    %c1_61 = arith.constant 1 : index
    %c0_62 = arith.constant 0 : index
    %c0_63 = arith.constant 0 : index
    %192 = vector.load %arg6[%c1_61, %c0_62, %c0_63] : memref<3x40x40xf32, #tpu.memory_space<vmem>>, vector<1x40x40xf32>
    %193 = vector.shape_cast %192 : vector<1x40x40xf32> to vector<40x40xf32>
    %c1_64 = arith.constant 1 : index
    %c0_65 = arith.constant 0 : index
    %c0_66 = arith.constant 0 : index
    %194 = vector.load %arg7[%c1_64, %c0_65, %c0_66] : memref<3x8x40xf32, #tpu.memory_space<vmem>>, vector<1x8x40xf32>
    %195 = vector.shape_cast %194 : vector<1x8x40xf32> to vector<8x40xf32>
    %196 = vector.extract_strided_slice %195 {offsets = [0, 0], sizes = [1, 40], strides = [1, 1]} : vector<8x40xf32> to vector<1x40xf32>
    %197 = vector.extract_strided_slice %195 {offsets = [1, 0], sizes = [1, 40], strides = [1, 1]} : vector<8x40xf32> to vector<1x40xf32>
    %198 = vector.extract_strided_slice %195 {offsets = [2, 0], sizes = [1, 40], strides = [1, 1]} : vector<8x40xf32> to vector<1x40xf32>
    %199 = vector.extract_strided_slice %195 {offsets = [3, 0], sizes = [1, 40], strides = [1, 1]} : vector<8x40xf32> to vector<1x40xf32>
    %c0_i32_67 = arith.constant 0 : i32
    %200 = vector.broadcast %c0_i32_67 : i32 to vector<1x40xi32>
    %201 = arith.cmpi sge, %15, %200 : vector<1x40xi32>
    %c5_i32 = arith.constant 5 : i32
    %202 = vector.broadcast %c5_i32 : i32 to vector<1x40xi32>
    %203 = arith.cmpi slt, %15, %202 : vector<1x40xi32>
    %204 = arith.andi %201, %203 : vector<1x40xi1>
    %205 = arith.extui %204 : vector<1x40xi1> to vector<1x40xi32>
    %206 = arith.sitofp %205 : vector<1x40xi32> to vector<1x40xf32>
    %c5_i32_68 = arith.constant 5 : i32
    %207 = vector.broadcast %c5_i32_68 : i32 to vector<1x40xi32>
    %208 = arith.cmpi sge, %15, %207 : vector<1x40xi32>
    %c10_i32_69 = arith.constant 10 : i32
    %209 = vector.broadcast %c10_i32_69 : i32 to vector<1x40xi32>
    %210 = arith.cmpi slt, %15, %209 : vector<1x40xi32>
    %211 = arith.andi %208, %210 : vector<1x40xi1>
    %212 = arith.extui %211 : vector<1x40xi1> to vector<1x40xi32>
    %213 = arith.sitofp %212 : vector<1x40xi32> to vector<1x40xf32>
    %c10_i32_70 = arith.constant 10 : i32
    %214 = vector.broadcast %c10_i32_70 : i32 to vector<1x40xi32>
    %215 = arith.cmpi sge, %15, %214 : vector<1x40xi32>
    %c15_i32 = arith.constant 15 : i32
    %216 = vector.broadcast %c15_i32 : i32 to vector<1x40xi32>
    %217 = arith.cmpi slt, %15, %216 : vector<1x40xi32>
    %218 = arith.andi %215, %217 : vector<1x40xi1>
    %219 = arith.extui %218 : vector<1x40xi1> to vector<1x40xi32>
    %220 = arith.sitofp %219 : vector<1x40xi32> to vector<1x40xf32>
    %c15_i32_71 = arith.constant 15 : i32
    %221 = vector.broadcast %c15_i32_71 : i32 to vector<1x40xi32>
    %222 = arith.cmpi sge, %15, %221 : vector<1x40xi32>
    %c20_i32_72 = arith.constant 20 : i32
    %223 = vector.broadcast %c20_i32_72 : i32 to vector<1x40xi32>
    %224 = arith.cmpi slt, %15, %223 : vector<1x40xi32>
    %225 = arith.andi %222, %224 : vector<1x40xi1>
    %226 = arith.extui %225 : vector<1x40xi1> to vector<1x40xi32>
    %227 = arith.sitofp %226 : vector<1x40xi32> to vector<1x40xf32>
    %c20_i32_73 = arith.constant 20 : i32
    %228 = vector.broadcast %c20_i32_73 : i32 to vector<1x40xi32>
    %229 = arith.cmpi sge, %15, %228 : vector<1x40xi32>
    %c25_i32 = arith.constant 25 : i32
    %230 = vector.broadcast %c25_i32 : i32 to vector<1x40xi32>
    %231 = arith.cmpi slt, %15, %230 : vector<1x40xi32>
    %232 = arith.andi %229, %231 : vector<1x40xi1>
    %233 = arith.extui %232 : vector<1x40xi1> to vector<1x40xi32>
    %234 = arith.sitofp %233 : vector<1x40xi32> to vector<1x40xf32>
    %c25_i32_74 = arith.constant 25 : i32
    %235 = vector.broadcast %c25_i32_74 : i32 to vector<1x40xi32>
    %236 = arith.cmpi sge, %15, %235 : vector<1x40xi32>
    %c30_i32_75 = arith.constant 30 : i32
    %237 = vector.broadcast %c30_i32_75 : i32 to vector<1x40xi32>
    %238 = arith.cmpi slt, %15, %237 : vector<1x40xi32>
    %239 = arith.andi %236, %238 : vector<1x40xi1>
    %240 = arith.extui %239 : vector<1x40xi1> to vector<1x40xi32>
    %241 = arith.sitofp %240 : vector<1x40xi32> to vector<1x40xf32>
    %c30_i32_76 = arith.constant 30 : i32
    %242 = vector.broadcast %c30_i32_76 : i32 to vector<1x40xi32>
    %243 = arith.cmpi sge, %15, %242 : vector<1x40xi32>
    %c35_i32 = arith.constant 35 : i32
    %244 = vector.broadcast %c35_i32 : i32 to vector<1x40xi32>
    %245 = arith.cmpi slt, %15, %244 : vector<1x40xi32>
    %246 = arith.andi %243, %245 : vector<1x40xi1>
    %247 = arith.extui %246 : vector<1x40xi1> to vector<1x40xi32>
    %248 = arith.sitofp %247 : vector<1x40xi32> to vector<1x40xf32>
    %c35_i32_77 = arith.constant 35 : i32
    %249 = vector.broadcast %c35_i32_77 : i32 to vector<1x40xi32>
    %250 = arith.cmpi sge, %15, %249 : vector<1x40xi32>
    %c40_i32_78 = arith.constant 40 : i32
    %251 = vector.broadcast %c40_i32_78 : i32 to vector<1x40xi32>
    %252 = arith.cmpi slt, %15, %251 : vector<1x40xi32>
    %253 = arith.andi %250, %252 : vector<1x40xi1>
    %254 = arith.extui %253 : vector<1x40xi1> to vector<1x40xi32>
    %255 = arith.sitofp %254 : vector<1x40xi32> to vector<1x40xf32>
    %cst_79 = arith.constant dense<0.000000e+00> : vector<8x40xf32>
    %256 = tpu.matmul %4, %187, %cst_79 {dimension_numbers = #tpu.dot_dimension_numbers<[1], [1], [0], [0], [0, 0, 1, 0], [], []>} : vector<8x40xf32>, vector<40x40xf32>, vector<8x40xf32> -> vector<8x40xf32>
    %257 = vector.broadcast %196 : vector<1x40xf32> to vector<8x40xf32>
    %258 = arith.addf %256, %257 : vector<8x40xf32>
    %cst_80 = arith.constant dense<0.000000e+00> : vector<6x40xf32>
    %259 = tpu.matmul %8, %189, %cst_80 {dimension_numbers = #tpu.dot_dimension_numbers<[1], [1], [0], [0], [0, 0, 1, 0], [], []>} : vector<6x40xf32>, vector<40x40xf32>, vector<6x40xf32> -> vector<6x40xf32>
    %260 = vector.broadcast %197 : vector<1x40xf32> to vector<6x40xf32>
    %261 = arith.addf %259, %260 : vector<6x40xf32>
    %cst_81 = arith.constant dense<0.000000e+00> : vector<6x40xf32>
    %262 = tpu.matmul %12, %191, %cst_81 {dimension_numbers = #tpu.dot_dimension_numbers<[1], [1], [0], [0], [0, 0, 1, 0], [], []>} : vector<6x40xf32>, vector<40x40xf32>, vector<6x40xf32> -> vector<6x40xf32>
    %263 = vector.broadcast %198 : vector<1x40xf32> to vector<6x40xf32>
    %264 = arith.addf %262, %263 : vector<6x40xf32>
    %265 = vector.broadcast %206 : vector<1x40xf32> to vector<8x40xf32>
    %266 = arith.mulf %258, %265 : vector<8x40xf32>
    %267 = vector.broadcast %213 : vector<1x40xf32> to vector<8x40xf32>
    %268 = arith.mulf %258, %267 : vector<8x40xf32>
    %269 = vector.broadcast %220 : vector<1x40xf32> to vector<8x40xf32>
    %270 = arith.mulf %258, %269 : vector<8x40xf32>
    %271 = vector.broadcast %227 : vector<1x40xf32> to vector<8x40xf32>
    %272 = arith.mulf %258, %271 : vector<8x40xf32>
    %273 = vector.broadcast %234 : vector<1x40xf32> to vector<8x40xf32>
    %274 = arith.mulf %258, %273 : vector<8x40xf32>
    %275 = vector.broadcast %241 : vector<1x40xf32> to vector<8x40xf32>
    %276 = arith.mulf %258, %275 : vector<8x40xf32>
    %277 = vector.broadcast %248 : vector<1x40xf32> to vector<8x40xf32>
    %278 = arith.mulf %258, %277 : vector<8x40xf32>
    %279 = vector.broadcast %255 : vector<1x40xf32> to vector<8x40xf32>
    %280 = arith.mulf %258, %279 : vector<8x40xf32>
    %281 = tpu.concatenate %266, %268, %270, %272, %274, %276, %278, %280 in 0 : vector<8x40xf32>, vector<8x40xf32>, vector<8x40xf32>, vector<8x40xf32>, vector<8x40xf32>, vector<8x40xf32>, vector<8x40xf32>, vector<8x40xf32> -> vector<64x40xf32>
    %cst_82 = arith.constant dense<0.000000e+00> : vector<64x6xf32>
    %282 = tpu.matmul %281, %261, %cst_82 {dimension_numbers = #tpu.dot_dimension_numbers<[1], [1], [0], [0], [0, 0, 1, 0], [], []>} : vector<64x40xf32>, vector<6x40xf32>, vector<64x6xf32> -> vector<64x6xf32>
    %cst_83 = arith.constant dense<0xFF800000> : vector<64xf32>
    %283 = vector.multi_reduction <maximumf>, %282, %cst_83 [1] : vector<64x6xf32> to vector<64xf32>
    %284 = vector.shape_cast %283 : vector<64xf32> to vector<64x1xf32>
    %285 = vector.broadcast %284 : vector<64x1xf32> to vector<64x6xf32>
    %286 = arith.subf %282, %285 : vector<64x6xf32>
    %287 = math.exp %286 : vector<64x6xf32>
    %cst_84 = arith.constant dense<0.000000e+00> : vector<64xf32>
    %288 = vector.multi_reduction <add>, %287, %cst_84 [1] : vector<64x6xf32> to vector<64xf32>
    %289 = vector.shape_cast %288 : vector<64xf32> to vector<64x1xf32>
    %290 = vector.broadcast %289 : vector<64x1xf32> to vector<64x6xf32>
    %291 = arith.divf %287, %290 : vector<64x6xf32>
    %cst_85 = arith.constant dense<0.000000e+00> : vector<64x40xf32>
    %292 = tpu.matmul %291, %264, %cst_85 {dimension_numbers = #tpu.dot_dimension_numbers<[1], [0], [0], [1], [0, 0, 1, 1], [], []>} : vector<64x6xf32>, vector<6x40xf32>, vector<64x40xf32> -> vector<64x40xf32>
    %cst_86 = arith.constant 0.000000e+00 : f32
    %293 = vector.broadcast %cst_86 : f32 to vector<8x40xf32>
    %cst_87 = arith.constant 0.000000e+00 : f32
    %294 = vector.broadcast %cst_87 : f32 to vector<8x6xf32>
    %295 = vector.extract_strided_slice %292 {offsets = [0, 0], sizes = [8, 40], strides = [1, 1]} : vector<64x40xf32> to vector<8x40xf32>
    %296 = vector.broadcast %206 : vector<1x40xf32> to vector<8x40xf32>
    %297 = arith.mulf %295, %296 : vector<8x40xf32>
    %298 = arith.addf %293, %297 : vector<8x40xf32>
    %299 = vector.extract_strided_slice %291 {offsets = [0, 0], sizes = [8, 6], strides = [1, 1]} : vector<64x6xf32> to vector<8x6xf32>
    %300 = arith.addf %294, %299 : vector<8x6xf32>
    %301 = vector.extract_strided_slice %292 {offsets = [8, 0], sizes = [8, 40], strides = [1, 1]} : vector<64x40xf32> to vector<8x40xf32>
    %302 = vector.broadcast %213 : vector<1x40xf32> to vector<8x40xf32>
    %303 = arith.mulf %301, %302 : vector<8x40xf32>
    %304 = arith.addf %298, %303 : vector<8x40xf32>
    %305 = vector.extract_strided_slice %291 {offsets = [8, 0], sizes = [8, 6], strides = [1, 1]} : vector<64x6xf32> to vector<8x6xf32>
    %306 = arith.addf %300, %305 : vector<8x6xf32>
    %307 = vector.extract_strided_slice %292 {offsets = [16, 0], sizes = [8, 40], strides = [1, 1]} : vector<64x40xf32> to vector<8x40xf32>
    %308 = vector.broadcast %220 : vector<1x40xf32> to vector<8x40xf32>
    %309 = arith.mulf %307, %308 : vector<8x40xf32>
    %310 = arith.addf %304, %309 : vector<8x40xf32>
    %311 = vector.extract_strided_slice %291 {offsets = [16, 0], sizes = [8, 6], strides = [1, 1]} : vector<64x6xf32> to vector<8x6xf32>
    %312 = arith.addf %306, %311 : vector<8x6xf32>
    %313 = vector.extract_strided_slice %292 {offsets = [24, 0], sizes = [8, 40], strides = [1, 1]} : vector<64x40xf32> to vector<8x40xf32>
    %314 = vector.broadcast %227 : vector<1x40xf32> to vector<8x40xf32>
    %315 = arith.mulf %313, %314 : vector<8x40xf32>
    %316 = arith.addf %310, %315 : vector<8x40xf32>
    %317 = vector.extract_strided_slice %291 {offsets = [24, 0], sizes = [8, 6], strides = [1, 1]} : vector<64x6xf32> to vector<8x6xf32>
    %318 = arith.addf %312, %317 : vector<8x6xf32>
    %319 = vector.extract_strided_slice %292 {offsets = [32, 0], sizes = [8, 40], strides = [1, 1]} : vector<64x40xf32> to vector<8x40xf32>
    %320 = vector.broadcast %234 : vector<1x40xf32> to vector<8x40xf32>
    %321 = arith.mulf %319, %320 : vector<8x40xf32>
    %322 = arith.addf %316, %321 : vector<8x40xf32>
    %323 = vector.extract_strided_slice %291 {offsets = [32, 0], sizes = [8, 6], strides = [1, 1]} : vector<64x6xf32> to vector<8x6xf32>
    %324 = arith.addf %318, %323 : vector<8x6xf32>
    %325 = vector.extract_strided_slice %292 {offsets = [40, 0], sizes = [8, 40], strides = [1, 1]} : vector<64x40xf32> to vector<8x40xf32>
    %326 = vector.broadcast %241 : vector<1x40xf32> to vector<8x40xf32>
    %327 = arith.mulf %325, %326 : vector<8x40xf32>
    %328 = arith.addf %322, %327 : vector<8x40xf32>
    %329 = vector.extract_strided_slice %291 {offsets = [40, 0], sizes = [8, 6], strides = [1, 1]} : vector<64x6xf32> to vector<8x6xf32>
    %330 = arith.addf %324, %329 : vector<8x6xf32>
    %331 = vector.extract_strided_slice %292 {offsets = [48, 0], sizes = [8, 40], strides = [1, 1]} : vector<64x40xf32> to vector<8x40xf32>
    %332 = vector.broadcast %248 : vector<1x40xf32> to vector<8x40xf32>
    %333 = arith.mulf %331, %332 : vector<8x40xf32>
    %334 = arith.addf %328, %333 : vector<8x40xf32>
    %335 = vector.extract_strided_slice %291 {offsets = [48, 0], sizes = [8, 6], strides = [1, 1]} : vector<64x6xf32> to vector<8x6xf32>
    %336 = arith.addf %330, %335 : vector<8x6xf32>
    %337 = vector.extract_strided_slice %292 {offsets = [56, 0], sizes = [8, 40], strides = [1, 1]} : vector<64x40xf32> to vector<8x40xf32>
    %338 = vector.broadcast %255 : vector<1x40xf32> to vector<8x40xf32>
    %339 = arith.mulf %337, %338 : vector<8x40xf32>
    %340 = arith.addf %334, %339 : vector<8x40xf32>
    %341 = vector.extract_strided_slice %291 {offsets = [56, 0], sizes = [8, 6], strides = [1, 1]} : vector<64x6xf32> to vector<8x6xf32>
    %342 = arith.addf %336, %341 : vector<8x6xf32>
    %cst_88 = arith.constant dense<0.000000e+00> : vector<8x40xf32>
    %343 = tpu.matmul %340, %193, %cst_88 {dimension_numbers = #tpu.dot_dimension_numbers<[1], [1], [0], [0], [0, 0, 1, 0], [], []>} : vector<8x40xf32>, vector<40x40xf32>, vector<8x40xf32> -> vector<8x40xf32>
    %344 = vector.broadcast %199 : vector<1x40xf32> to vector<8x40xf32>
    %345 = arith.addf %343, %344 : vector<8x40xf32>
    %cst_89 = arith.constant 1.250000e-01 : f32
    %346 = vector.broadcast %cst_89 : f32 to vector<8x6xf32>
    %347 = arith.mulf %342, %346 : vector<8x6xf32>
    %cst_90 = arith.constant dense<0.000000e+00> : vector<8x40xf32>
    %348 = tpu.matmul %6, %187, %cst_90 {dimension_numbers = #tpu.dot_dimension_numbers<[1], [1], [0], [0], [0, 0, 1, 0], [], []>} : vector<8x40xf32>, vector<40x40xf32>, vector<8x40xf32> -> vector<8x40xf32>
    %349 = vector.broadcast %196 : vector<1x40xf32> to vector<8x40xf32>
    %350 = arith.addf %348, %349 : vector<8x40xf32>
    %cst_91 = arith.constant dense<0.000000e+00> : vector<6x40xf32>
    %351 = tpu.matmul %10, %189, %cst_91 {dimension_numbers = #tpu.dot_dimension_numbers<[1], [1], [0], [0], [0, 0, 1, 0], [], []>} : vector<6x40xf32>, vector<40x40xf32>, vector<6x40xf32> -> vector<6x40xf32>
    %352 = vector.broadcast %197 : vector<1x40xf32> to vector<6x40xf32>
    %353 = arith.addf %351, %352 : vector<6x40xf32>
    %cst_92 = arith.constant dense<0.000000e+00> : vector<6x40xf32>
    %354 = tpu.matmul %14, %191, %cst_92 {dimension_numbers = #tpu.dot_dimension_numbers<[1], [1], [0], [0], [0, 0, 1, 0], [], []>} : vector<6x40xf32>, vector<40x40xf32>, vector<6x40xf32> -> vector<6x40xf32>
    %355 = vector.broadcast %198 : vector<1x40xf32> to vector<6x40xf32>
    %356 = arith.addf %354, %355 : vector<6x40xf32>
    %357 = vector.broadcast %206 : vector<1x40xf32> to vector<8x40xf32>
    %358 = arith.mulf %350, %357 : vector<8x40xf32>
    %359 = vector.broadcast %213 : vector<1x40xf32> to vector<8x40xf32>
    %360 = arith.mulf %350, %359 : vector<8x40xf32>
    %361 = vector.broadcast %220 : vector<1x40xf32> to vector<8x40xf32>
    %362 = arith.mulf %350, %361 : vector<8x40xf32>
    %363 = vector.broadcast %227 : vector<1x40xf32> to vector<8x40xf32>
    %364 = arith.mulf %350, %363 : vector<8x40xf32>
    %365 = vector.broadcast %234 : vector<1x40xf32> to vector<8x40xf32>
    %366 = arith.mulf %350, %365 : vector<8x40xf32>
    %367 = vector.broadcast %241 : vector<1x40xf32> to vector<8x40xf32>
    %368 = arith.mulf %350, %367 : vector<8x40xf32>
    %369 = vector.broadcast %248 : vector<1x40xf32> to vector<8x40xf32>
    %370 = arith.mulf %350, %369 : vector<8x40xf32>
    %371 = vector.broadcast %255 : vector<1x40xf32> to vector<8x40xf32>
    %372 = arith.mulf %350, %371 : vector<8x40xf32>
    %373 = tpu.concatenate %358, %360, %362, %364, %366, %368, %370, %372 in 0 : vector<8x40xf32>, vector<8x40xf32>, vector<8x40xf32>, vector<8x40xf32>, vector<8x40xf32>, vector<8x40xf32>, vector<8x40xf32>, vector<8x40xf32> -> vector<64x40xf32>
    %cst_93 = arith.constant dense<0.000000e+00> : vector<64x6xf32>
    %374 = tpu.matmul %373, %353, %cst_93 {dimension_numbers = #tpu.dot_dimension_numbers<[1], [1], [0], [0], [0, 0, 1, 0], [], []>} : vector<64x40xf32>, vector<6x40xf32>, vector<64x6xf32> -> vector<64x6xf32>
    %cst_94 = arith.constant dense<0xFF800000> : vector<64xf32>
    %375 = vector.multi_reduction <maximumf>, %374, %cst_94 [1] : vector<64x6xf32> to vector<64xf32>
    %376 = vector.shape_cast %375 : vector<64xf32> to vector<64x1xf32>
    %377 = vector.broadcast %376 : vector<64x1xf32> to vector<64x6xf32>
    %378 = arith.subf %374, %377 : vector<64x6xf32>
    %379 = math.exp %378 : vector<64x6xf32>
    %cst_95 = arith.constant dense<0.000000e+00> : vector<64xf32>
    %380 = vector.multi_reduction <add>, %379, %cst_95 [1] : vector<64x6xf32> to vector<64xf32>
    %381 = vector.shape_cast %380 : vector<64xf32> to vector<64x1xf32>
    %382 = vector.broadcast %381 : vector<64x1xf32> to vector<64x6xf32>
    %383 = arith.divf %379, %382 : vector<64x6xf32>
    %cst_96 = arith.constant dense<0.000000e+00> : vector<64x40xf32>
    %384 = tpu.matmul %383, %356, %cst_96 {dimension_numbers = #tpu.dot_dimension_numbers<[1], [0], [0], [1], [0, 0, 1, 1], [], []>} : vector<64x6xf32>, vector<6x40xf32>, vector<64x40xf32> -> vector<64x40xf32>
    %cst_97 = arith.constant 0.000000e+00 : f32
    %385 = vector.broadcast %cst_97 : f32 to vector<8x40xf32>
    %cst_98 = arith.constant 0.000000e+00 : f32
    %386 = vector.broadcast %cst_98 : f32 to vector<8x6xf32>
    %387 = vector.extract_strided_slice %384 {offsets = [0, 0], sizes = [8, 40], strides = [1, 1]} : vector<64x40xf32> to vector<8x40xf32>
    %388 = vector.broadcast %206 : vector<1x40xf32> to vector<8x40xf32>
    %389 = arith.mulf %387, %388 : vector<8x40xf32>
    %390 = arith.addf %385, %389 : vector<8x40xf32>
    %391 = vector.extract_strided_slice %383 {offsets = [0, 0], sizes = [8, 6], strides = [1, 1]} : vector<64x6xf32> to vector<8x6xf32>
    %392 = arith.addf %386, %391 : vector<8x6xf32>
    %393 = vector.extract_strided_slice %384 {offsets = [8, 0], sizes = [8, 40], strides = [1, 1]} : vector<64x40xf32> to vector<8x40xf32>
    %394 = vector.broadcast %213 : vector<1x40xf32> to vector<8x40xf32>
    %395 = arith.mulf %393, %394 : vector<8x40xf32>
    %396 = arith.addf %390, %395 : vector<8x40xf32>
    %397 = vector.extract_strided_slice %383 {offsets = [8, 0], sizes = [8, 6], strides = [1, 1]} : vector<64x6xf32> to vector<8x6xf32>
    %398 = arith.addf %392, %397 : vector<8x6xf32>
    %399 = vector.extract_strided_slice %384 {offsets = [16, 0], sizes = [8, 40], strides = [1, 1]} : vector<64x40xf32> to vector<8x40xf32>
    %400 = vector.broadcast %220 : vector<1x40xf32> to vector<8x40xf32>
    %401 = arith.mulf %399, %400 : vector<8x40xf32>
    %402 = arith.addf %396, %401 : vector<8x40xf32>
    %403 = vector.extract_strided_slice %383 {offsets = [16, 0], sizes = [8, 6], strides = [1, 1]} : vector<64x6xf32> to vector<8x6xf32>
    %404 = arith.addf %398, %403 : vector<8x6xf32>
    %405 = vector.extract_strided_slice %384 {offsets = [24, 0], sizes = [8, 40], strides = [1, 1]} : vector<64x40xf32> to vector<8x40xf32>
    %406 = vector.broadcast %227 : vector<1x40xf32> to vector<8x40xf32>
    %407 = arith.mulf %405, %406 : vector<8x40xf32>
    %408 = arith.addf %402, %407 : vector<8x40xf32>
    %409 = vector.extract_strided_slice %383 {offsets = [24, 0], sizes = [8, 6], strides = [1, 1]} : vector<64x6xf32> to vector<8x6xf32>
    %410 = arith.addf %404, %409 : vector<8x6xf32>
    %411 = vector.extract_strided_slice %384 {offsets = [32, 0], sizes = [8, 40], strides = [1, 1]} : vector<64x40xf32> to vector<8x40xf32>
    %412 = vector.broadcast %234 : vector<1x40xf32> to vector<8x40xf32>
    %413 = arith.mulf %411, %412 : vector<8x40xf32>
    %414 = arith.addf %408, %413 : vector<8x40xf32>
    %415 = vector.extract_strided_slice %383 {offsets = [32, 0], sizes = [8, 6], strides = [1, 1]} : vector<64x6xf32> to vector<8x6xf32>
    %416 = arith.addf %410, %415 : vector<8x6xf32>
    %417 = vector.extract_strided_slice %384 {offsets = [40, 0], sizes = [8, 40], strides = [1, 1]} : vector<64x40xf32> to vector<8x40xf32>
    %418 = vector.broadcast %241 : vector<1x40xf32> to vector<8x40xf32>
    %419 = arith.mulf %417, %418 : vector<8x40xf32>
    %420 = arith.addf %414, %419 : vector<8x40xf32>
    %421 = vector.extract_strided_slice %383 {offsets = [40, 0], sizes = [8, 6], strides = [1, 1]} : vector<64x6xf32> to vector<8x6xf32>
    %422 = arith.addf %416, %421 : vector<8x6xf32>
    %423 = vector.extract_strided_slice %384 {offsets = [48, 0], sizes = [8, 40], strides = [1, 1]} : vector<64x40xf32> to vector<8x40xf32>
    %424 = vector.broadcast %248 : vector<1x40xf32> to vector<8x40xf32>
    %425 = arith.mulf %423, %424 : vector<8x40xf32>
    %426 = arith.addf %420, %425 : vector<8x40xf32>
    %427 = vector.extract_strided_slice %383 {offsets = [48, 0], sizes = [8, 6], strides = [1, 1]} : vector<64x6xf32> to vector<8x6xf32>
    %428 = arith.addf %422, %427 : vector<8x6xf32>
    %429 = vector.extract_strided_slice %384 {offsets = [56, 0], sizes = [8, 40], strides = [1, 1]} : vector<64x40xf32> to vector<8x40xf32>
    %430 = vector.broadcast %255 : vector<1x40xf32> to vector<8x40xf32>
    %431 = arith.mulf %429, %430 : vector<8x40xf32>
    %432 = arith.addf %426, %431 : vector<8x40xf32>
    %433 = vector.extract_strided_slice %383 {offsets = [56, 0], sizes = [8, 6], strides = [1, 1]} : vector<64x6xf32> to vector<8x6xf32>
    %434 = arith.addf %428, %433 : vector<8x6xf32>
    %cst_99 = arith.constant dense<0.000000e+00> : vector<8x40xf32>
    %435 = tpu.matmul %432, %193, %cst_99 {dimension_numbers = #tpu.dot_dimension_numbers<[1], [1], [0], [0], [0, 0, 1, 0], [], []>} : vector<8x40xf32>, vector<40x40xf32>, vector<8x40xf32> -> vector<8x40xf32>
    %436 = vector.broadcast %199 : vector<1x40xf32> to vector<8x40xf32>
    %437 = arith.addf %435, %436 : vector<8x40xf32>
    %cst_100 = arith.constant 1.250000e-01 : f32
    %438 = vector.broadcast %cst_100 : f32 to vector<8x6xf32>
    %439 = arith.mulf %434, %438 : vector<8x6xf32>
    %440 = vector.shape_cast %345 : vector<8x40xf32> to vector<1x8x40xf32>
    %441 = vector.shape_cast %437 : vector<8x40xf32> to vector<1x8x40xf32>
    %442 = tpu.concatenate %440, %441 in 0 : vector<1x8x40xf32>, vector<1x8x40xf32> -> vector<2x8x40xf32>
    %c0_101 = arith.constant 0 : index
    %c0_102 = arith.constant 0 : index
    %c0_103 = arith.constant 0 : index
    %443 = vector.load %arg10[%c0_101, %c0_102, %c0_103] : memref<2x8x40xf32, #tpu.memory_space<vmem>>, vector<2x8x40xf32>
    tpu.vector_store %arg10[%c0_101, %c0_102, %c0_103], %442 {strides = array<i32>} : memref<2x8x40xf32, #tpu.memory_space<vmem>>, vector<2x8x40xf32>,
    %444 = vector.shape_cast %347 : vector<8x6xf32> to vector<1x8x6xf32>
    %445 = vector.shape_cast %439 : vector<8x6xf32> to vector<1x8x6xf32>
    %446 = tpu.concatenate %444, %445 in 0 : vector<1x8x6xf32>, vector<1x8x6xf32> -> vector<2x8x6xf32>
    %c0_104 = arith.constant 0 : index
    %c0_105 = arith.constant 0 : index
    %c0_106 = arith.constant 0 : index
    %447 = vector.load %arg11[%c0_104, %c0_105, %c0_106] : memref<2x8x6xf32, #tpu.memory_space<vmem>>, vector<2x8x6xf32>
    tpu.vector_store %arg11[%c0_104, %c0_105, %c0_106], %446 {strides = array<i32>} : memref<2x8x6xf32, #tpu.memory_space<vmem>>, vector<2x8x6xf32>,
    %c2 = arith.constant 2 : index
    %c0_107 = arith.constant 0 : index
    %c0_108 = arith.constant 0 : index
    %448 = vector.load %arg3[%c2, %c0_107, %c0_108] : memref<3x40x40xf32, #tpu.memory_space<vmem>>, vector<1x40x40xf32>
    %449 = vector.shape_cast %448 : vector<1x40x40xf32> to vector<40x40xf32>
    %c2_109 = arith.constant 2 : index
    %c0_110 = arith.constant 0 : index
    %c0_111 = arith.constant 0 : index
    %450 = vector.load %arg4[%c2_109, %c0_110, %c0_111] : memref<3x40x40xf32, #tpu.memory_space<vmem>>, vector<1x40x40xf32>
    %451 = vector.shape_cast %450 : vector<1x40x40xf32> to vector<40x40xf32>
    %c2_112 = arith.constant 2 : index
    %c0_113 = arith.constant 0 : index
    %c0_114 = arith.constant 0 : index
    %452 = vector.load %arg5[%c2_112, %c0_113, %c0_114] : memref<3x40x40xf32, #tpu.memory_space<vmem>>, vector<1x40x40xf32>
    %453 = vector.shape_cast %452 : vector<1x40x40xf32> to vector<40x40xf32>
    %c2_115 = arith.constant 2 : index
    %c0_116 = arith.constant 0 : index
    %c0_117 = arith.constant 0 : index
    %454 = vector.load %arg6[%c2_115, %c0_116, %c0_117] : memref<3x40x40xf32, #tpu.memory_space<vmem>>, vector<1x40x40xf32>
    %455 = vector.shape_cast %454 : vector<1x40x40xf32> to vector<40x40xf32>
    %c2_118 = arith.constant 2 : index
    %c0_119 = arith.constant 0 : index
    %c0_120 = arith.constant 0 : index
    %456 = vector.load %arg7[%c2_118, %c0_119, %c0_120] : memref<3x8x40xf32, #tpu.memory_space<vmem>>, vector<1x8x40xf32>
    %457 = vector.shape_cast %456 : vector<1x8x40xf32> to vector<8x40xf32>
    %458 = vector.extract_strided_slice %457 {offsets = [0, 0], sizes = [1, 40], strides = [1, 1]} : vector<8x40xf32> to vector<1x40xf32>
    %459 = vector.extract_strided_slice %457 {offsets = [1, 0], sizes = [1, 40], strides = [1, 1]} : vector<8x40xf32> to vector<1x40xf32>
    %460 = vector.extract_strided_slice %457 {offsets = [2, 0], sizes = [1, 40], strides = [1, 1]} : vector<8x40xf32> to vector<1x40xf32>
    %461 = vector.extract_strided_slice %457 {offsets = [3, 0], sizes = [1, 40], strides = [1, 1]} : vector<8x40xf32> to vector<1x40xf32>
    %462 = vector.extract_strided_slice %457 {offsets = [4, 0], sizes = [1, 40], strides = [1, 1]} : vector<8x40xf32> to vector<1x40xf32>
    %463 = vector.extract_strided_slice %457 {offsets = [5, 0], sizes = [1, 40], strides = [1, 1]} : vector<8x40xf32> to vector<1x40xf32>
    %c0_i32_121 = arith.constant 0 : i32
    %464 = vector.broadcast %c0_i32_121 : i32 to vector<1x40xi32>
    %465 = arith.cmpi sge, %15, %464 : vector<1x40xi32>
    %c4_i32 = arith.constant 4 : i32
    %466 = vector.broadcast %c4_i32 : i32 to vector<1x40xi32>
    %467 = arith.cmpi slt, %15, %466 : vector<1x40xi32>
    %468 = arith.andi %465, %467 : vector<1x40xi1>
    %469 = arith.extui %468 : vector<1x40xi1> to vector<1x40xi32>
    %470 = arith.sitofp %469 : vector<1x40xi32> to vector<1x40xf32>
    %c4_i32_122 = arith.constant 4 : i32
    %471 = vector.broadcast %c4_i32_122 : i32 to vector<1x40xi32>
    %472 = arith.cmpi sge, %15, %471 : vector<1x40xi32>
    %c8_i32 = arith.constant 8 : i32
    %473 = vector.broadcast %c8_i32 : i32 to vector<1x40xi32>
    %474 = arith.cmpi slt, %15, %473 : vector<1x40xi32>
    %475 = arith.andi %472, %474 : vector<1x40xi1>
    %476 = arith.extui %475 : vector<1x40xi1> to vector<1x40xi32>
    %477 = arith.sitofp %476 : vector<1x40xi32> to vector<1x40xf32>
    %c8_i32_123 = arith.constant 8 : i32
    %478 = vector.broadcast %c8_i32_123 : i32 to vector<1x40xi32>
    %479 = arith.cmpi sge, %15, %478 : vector<1x40xi32>
    %c12_i32 = arith.constant 12 : i32
    %480 = vector.broadcast %c12_i32 : i32 to vector<1x40xi32>
    %481 = arith.cmpi slt, %15, %480 : vector<1x40xi32>
    %482 = arith.andi %479, %481 : vector<1x40xi1>
    %483 = arith.extui %482 : vector<1x40xi1> to vector<1x40xi32>
    %484 = arith.sitofp %483 : vector<1x40xi32> to vector<1x40xf32>
    %c12_i32_124 = arith.constant 12 : i32
    %485 = vector.broadcast %c12_i32_124 : i32 to vector<1x40xi32>
    %486 = arith.cmpi sge, %15, %485 : vector<1x40xi32>
    %c16_i32 = arith.constant 16 : i32
    %487 = vector.broadcast %c16_i32 : i32 to vector<1x40xi32>
    %488 = arith.cmpi slt, %15, %487 : vector<1x40xi32>
    %489 = arith.andi %486, %488 : vector<1x40xi1>
    %490 = arith.extui %489 : vector<1x40xi1> to vector<1x40xi32>
    %491 = arith.sitofp %490 : vector<1x40xi32> to vector<1x40xf32>
    %c16_i32_125 = arith.constant 16 : i32
    %492 = vector.broadcast %c16_i32_125 : i32 to vector<1x40xi32>
    %493 = arith.cmpi sge, %15, %492 : vector<1x40xi32>
    %c20_i32_126 = arith.constant 20 : i32
    %494 = vector.broadcast %c20_i32_126 : i32 to vector<1x40xi32>
    %495 = arith.cmpi slt, %15, %494 : vector<1x40xi32>
    %496 = arith.andi %493, %495 : vector<1x40xi1>
    %497 = arith.extui %496 : vector<1x40xi1> to vector<1x40xi32>
    %498 = arith.sitofp %497 : vector<1x40xi32> to vector<1x40xf32>
    %c20_i32_127 = arith.constant 20 : i32
    %499 = vector.broadcast %c20_i32_127 : i32 to vector<1x40xi32>
    %500 = arith.cmpi sge, %15, %499 : vector<1x40xi32>
    %c24_i32 = arith.constant 24 : i32
    %501 = vector.broadcast %c24_i32 : i32 to vector<1x40xi32>
    %502 = arith.cmpi slt, %15, %501 : vector<1x40xi32>
    %503 = arith.andi %500, %502 : vector<1x40xi1>
    %504 = arith.extui %503 : vector<1x40xi1> to vector<1x40xi32>
    %505 = arith.sitofp %504 : vector<1x40xi32> to vector<1x40xf32>
    %c24_i32_128 = arith.constant 24 : i32
    %506 = vector.broadcast %c24_i32_128 : i32 to vector<1x40xi32>
    %507 = arith.cmpi sge, %15, %506 : vector<1x40xi32>
    %c28_i32 = arith.constant 28 : i32
    %508 = vector.broadcast %c28_i32 : i32 to vector<1x40xi32>
    %509 = arith.cmpi slt, %15, %508 : vector<1x40xi32>
    %510 = arith.andi %507, %509 : vector<1x40xi1>
    %511 = arith.extui %510 : vector<1x40xi1> to vector<1x40xi32>
    %512 = arith.sitofp %511 : vector<1x40xi32> to vector<1x40xf32>
    %c28_i32_129 = arith.constant 28 : i32
    %513 = vector.broadcast %c28_i32_129 : i32 to vector<1x40xi32>
    %514 = arith.cmpi sge, %15, %513 : vector<1x40xi32>
    %c32_i32 = arith.constant 32 : i32
    %515 = vector.broadcast %c32_i32 : i32 to vector<1x40xi32>
    %516 = arith.cmpi slt, %15, %515 : vector<1x40xi32>
    %517 = arith.andi %514, %516 : vector<1x40xi1>
    %518 = arith.extui %517 : vector<1x40xi1> to vector<1x40xi32>
    %519 = arith.sitofp %518 : vector<1x40xi32> to vector<1x40xf32>
    %c32_i32_130 = arith.constant 32 : i32
    %520 = vector.broadcast %c32_i32_130 : i32 to vector<1x40xi32>
    %521 = arith.cmpi sge, %15, %520 : vector<1x40xi32>
    %c36_i32 = arith.constant 36 : i32
    %522 = vector.broadcast %c36_i32 : i32 to vector<1x40xi32>
    %523 = arith.cmpi slt, %15, %522 : vector<1x40xi32>
    %524 = arith.andi %521, %523 : vector<1x40xi1>
    %525 = arith.extui %524 : vector<1x40xi1> to vector<1x40xi32>
    %526 = arith.sitofp %525 : vector<1x40xi32> to vector<1x40xf32>
    %c36_i32_131 = arith.constant 36 : i32
    %527 = vector.broadcast %c36_i32_131 : i32 to vector<1x40xi32>
    %528 = arith.cmpi sge, %15, %527 : vector<1x40xi32>
    %c40_i32_132 = arith.constant 40 : i32
    %529 = vector.broadcast %c40_i32_132 : i32 to vector<1x40xi32>
    %530 = arith.cmpi slt, %15, %529 : vector<1x40xi32>
    %531 = arith.andi %528, %530 : vector<1x40xi1>
    %532 = arith.extui %531 : vector<1x40xi1> to vector<1x40xi32>
    %533 = arith.sitofp %532 : vector<1x40xi32> to vector<1x40xf32>
    %cst_133 = arith.constant dense<0.000000e+00> : vector<8x40xf32>
    %534 = tpu.matmul %4, %449, %cst_133 {dimension_numbers = #tpu.dot_dimension_numbers<[1], [1], [0], [0], [0, 0, 1, 0], [], []>} : vector<8x40xf32>, vector<40x40xf32>, vector<8x40xf32> -> vector<8x40xf32>
    %535 = vector.broadcast %458 : vector<1x40xf32> to vector<8x40xf32>
    %536 = arith.addf %534, %535 : vector<8x40xf32>
    %cst_134 = arith.constant dense<0.000000e+00> : vector<6x40xf32>
    %537 = tpu.matmul %8, %451, %cst_134 {dimension_numbers = #tpu.dot_dimension_numbers<[1], [1], [0], [0], [0, 0, 1, 0], [], []>} : vector<6x40xf32>, vector<40x40xf32>, vector<6x40xf32> -> vector<6x40xf32>
    %538 = vector.broadcast %459 : vector<1x40xf32> to vector<6x40xf32>
    %539 = arith.addf %537, %538 : vector<6x40xf32>
    %cst_135 = arith.constant dense<0.000000e+00> : vector<6x40xf32>
    %540 = tpu.matmul %12, %453, %cst_135 {dimension_numbers = #tpu.dot_dimension_numbers<[1], [1], [0], [0], [0, 0, 1, 0], [], []>} : vector<6x40xf32>, vector<40x40xf32>, vector<6x40xf32> -> vector<6x40xf32>
    %541 = vector.broadcast %460 : vector<1x40xf32> to vector<6x40xf32>
    %542 = arith.addf %540, %541 : vector<6x40xf32>
    %543 = tpu.concatenate %539, %462 in 0 : vector<6x40xf32>, vector<1x40xf32> -> vector<7x40xf32>
    %544 = tpu.concatenate %542, %463 in 0 : vector<6x40xf32>, vector<1x40xf32> -> vector<7x40xf32>
    %cst_136 = arith.constant 0.000000e+00 : f32
    %545 = vector.broadcast %cst_136 : f32 to vector<1x40xf32>
    %546 = tpu.concatenate %543, %545 in 0 : vector<7x40xf32>, vector<1x40xf32> -> vector<8x40xf32>
    %547 = tpu.concatenate %544, %545 in 0 : vector<7x40xf32>, vector<1x40xf32> -> vector<8x40xf32>
    %548 = vector.broadcast %470 : vector<1x40xf32> to vector<8x40xf32>
    %549 = arith.mulf %536, %548 : vector<8x40xf32>
    %550 = vector.broadcast %477 : vector<1x40xf32> to vector<8x40xf32>
    %551 = arith.mulf %536, %550 : vector<8x40xf32>
    %552 = vector.broadcast %484 : vector<1x40xf32> to vector<8x40xf32>
    %553 = arith.mulf %536, %552 : vector<8x40xf32>
    %554 = vector.broadcast %491 : vector<1x40xf32> to vector<8x40xf32>
    %555 = arith.mulf %536, %554 : vector<8x40xf32>
    %556 = vector.broadcast %498 : vector<1x40xf32> to vector<8x40xf32>
    %557 = arith.mulf %536, %556 : vector<8x40xf32>
    %558 = vector.broadcast %505 : vector<1x40xf32> to vector<8x40xf32>
    %559 = arith.mulf %536, %558 : vector<8x40xf32>
    %560 = vector.broadcast %512 : vector<1x40xf32> to vector<8x40xf32>
    %561 = arith.mulf %536, %560 : vector<8x40xf32>
    %562 = vector.broadcast %519 : vector<1x40xf32> to vector<8x40xf32>
    %563 = arith.mulf %536, %562 : vector<8x40xf32>
    %564 = vector.broadcast %526 : vector<1x40xf32> to vector<8x40xf32>
    %565 = arith.mulf %536, %564 : vector<8x40xf32>
    %566 = vector.broadcast %533 : vector<1x40xf32> to vector<8x40xf32>
    %567 = arith.mulf %536, %566 : vector<8x40xf32>
    %568 = tpu.concatenate %549, %551, %553, %555, %557, %559, %561, %563, %565, %567 in 0 : vector<8x40xf32>, vector<8x40xf32>, vector<8x40xf32>, vector<8x40xf32>, vector<8x40xf32>, vector<8x40xf32>, vector<8x40xf32>, vector<8x40xf32>, vector<8x40xf32>, vector<8x40xf32> -> vector<80x40xf32>
    %cst_137 = arith.constant dense<0.000000e+00> : vector<80x8xf32>
    %569 = tpu.matmul %568, %546, %cst_137 {dimension_numbers = #tpu.dot_dimension_numbers<[1], [1], [0], [0], [0, 0, 1, 0], [], []>} : vector<80x40xf32>, vector<8x40xf32>, vector<80x8xf32> -> vector<80x8xf32>
    %cst_138 = arith.constant dense<0xFF800000> : vector<80xf32>
    %570 = vector.multi_reduction <maximumf>, %569, %cst_138 [1] : vector<80x8xf32> to vector<80xf32>
    %571 = vector.shape_cast %570 : vector<80xf32> to vector<80x1xf32>
    %572 = vector.broadcast %571 : vector<80x1xf32> to vector<80x8xf32>
    %573 = arith.subf %569, %572 : vector<80x8xf32>
    %574 = math.exp %573 : vector<80x8xf32>
    %cst_139 = arith.constant dense<0.000000e+00> : vector<80xf32>
    %575 = vector.multi_reduction <add>, %574, %cst_139 [1] : vector<80x8xf32> to vector<80xf32>
    %576 = vector.shape_cast %575 : vector<80xf32> to vector<80x1xf32>
    %577 = vector.broadcast %576 : vector<80x1xf32> to vector<80x8xf32>
    %578 = arith.divf %574, %577 : vector<80x8xf32>
    %cst_140 = arith.constant dense<0.000000e+00> : vector<80x40xf32>
    %579 = tpu.matmul %578, %547, %cst_140 {dimension_numbers = #tpu.dot_dimension_numbers<[1], [0], [0], [1], [0, 0, 1, 1], [], []>} : vector<80x8xf32>, vector<8x40xf32>, vector<80x40xf32> -> vector<80x40xf32>
    %cst_141 = arith.constant 0.000000e+00 : f32
    %580 = vector.broadcast %cst_141 : f32 to vector<8x40xf32>
    %cst_142 = arith.constant 0.000000e+00 : f32
    %581 = vector.broadcast %cst_142 : f32 to vector<8x8xf32>
    %582 = vector.extract_strided_slice %579 {offsets = [0, 0], sizes = [8, 40], strides = [1, 1]} : vector<80x40xf32> to vector<8x40xf32>
    %583 = vector.broadcast %470 : vector<1x40xf32> to vector<8x40xf32>
    %584 = arith.mulf %582, %583 : vector<8x40xf32>
    %585 = arith.addf %580, %584 : vector<8x40xf32>
    %586 = vector.extract_strided_slice %578 {offsets = [0, 0], sizes = [8, 8], strides = [1, 1]} : vector<80x8xf32> to vector<8x8xf32>
    %587 = arith.addf %581, %586 : vector<8x8xf32>
    %588 = vector.extract_strided_slice %579 {offsets = [8, 0], sizes = [8, 40], strides = [1, 1]} : vector<80x40xf32> to vector<8x40xf32>
    %589 = vector.broadcast %477 : vector<1x40xf32> to vector<8x40xf32>
    %590 = arith.mulf %588, %589 : vector<8x40xf32>
    %591 = arith.addf %585, %590 : vector<8x40xf32>
    %592 = vector.extract_strided_slice %578 {offsets = [8, 0], sizes = [8, 8], strides = [1, 1]} : vector<80x8xf32> to vector<8x8xf32>
    %593 = arith.addf %587, %592 : vector<8x8xf32>
    %594 = vector.extract_strided_slice %579 {offsets = [16, 0], sizes = [8, 40], strides = [1, 1]} : vector<80x40xf32> to vector<8x40xf32>
    %595 = vector.broadcast %484 : vector<1x40xf32> to vector<8x40xf32>
    %596 = arith.mulf %594, %595 : vector<8x40xf32>
    %597 = arith.addf %591, %596 : vector<8x40xf32>
    %598 = vector.extract_strided_slice %578 {offsets = [16, 0], sizes = [8, 8], strides = [1, 1]} : vector<80x8xf32> to vector<8x8xf32>
    %599 = arith.addf %593, %598 : vector<8x8xf32>
    %600 = vector.extract_strided_slice %579 {offsets = [24, 0], sizes = [8, 40], strides = [1, 1]} : vector<80x40xf32> to vector<8x40xf32>
    %601 = vector.broadcast %491 : vector<1x40xf32> to vector<8x40xf32>
    %602 = arith.mulf %600, %601 : vector<8x40xf32>
    %603 = arith.addf %597, %602 : vector<8x40xf32>
    %604 = vector.extract_strided_slice %578 {offsets = [24, 0], sizes = [8, 8], strides = [1, 1]} : vector<80x8xf32> to vector<8x8xf32>
    %605 = arith.addf %599, %604 : vector<8x8xf32>
    %606 = vector.extract_strided_slice %579 {offsets = [32, 0], sizes = [8, 40], strides = [1, 1]} : vector<80x40xf32> to vector<8x40xf32>
    %607 = vector.broadcast %498 : vector<1x40xf32> to vector<8x40xf32>
    %608 = arith.mulf %606, %607 : vector<8x40xf32>
    %609 = arith.addf %603, %608 : vector<8x40xf32>
    %610 = vector.extract_strided_slice %578 {offsets = [32, 0], sizes = [8, 8], strides = [1, 1]} : vector<80x8xf32> to vector<8x8xf32>
    %611 = arith.addf %605, %610 : vector<8x8xf32>
    %612 = vector.extract_strided_slice %579 {offsets = [40, 0], sizes = [8, 40], strides = [1, 1]} : vector<80x40xf32> to vector<8x40xf32>
    %613 = vector.broadcast %505 : vector<1x40xf32> to vector<8x40xf32>
    %614 = arith.mulf %612, %613 : vector<8x40xf32>
    %615 = arith.addf %609, %614 : vector<8x40xf32>
    %616 = vector.extract_strided_slice %578 {offsets = [40, 0], sizes = [8, 8], strides = [1, 1]} : vector<80x8xf32> to vector<8x8xf32>
    %617 = arith.addf %611, %616 : vector<8x8xf32>
    %618 = vector.extract_strided_slice %579 {offsets = [48, 0], sizes = [8, 40], strides = [1, 1]} : vector<80x40xf32> to vector<8x40xf32>
    %619 = vector.broadcast %512 : vector<1x40xf32> to vector<8x40xf32>
    %620 = arith.mulf %618, %619 : vector<8x40xf32>
    %621 = arith.addf %615, %620 : vector<8x40xf32>
    %622 = vector.extract_strided_slice %578 {offsets = [48, 0], sizes = [8, 8], strides = [1, 1]} : vector<80x8xf32> to vector<8x8xf32>
    %623 = arith.addf %617, %622 : vector<8x8xf32>
    %624 = vector.extract_strided_slice %579 {offsets = [56, 0], sizes = [8, 40], strides = [1, 1]} : vector<80x40xf32> to vector<8x40xf32>
    %625 = vector.broadcast %519 : vector<1x40xf32> to vector<8x40xf32>
    %626 = arith.mulf %624, %625 : vector<8x40xf32>
    %627 = arith.addf %621, %626 : vector<8x40xf32>
    %628 = vector.extract_strided_slice %578 {offsets = [56, 0], sizes = [8, 8], strides = [1, 1]} : vector<80x8xf32> to vector<8x8xf32>
    %629 = arith.addf %623, %628 : vector<8x8xf32>
    %630 = vector.extract_strided_slice %579 {offsets = [64, 0], sizes = [8, 40], strides = [1, 1]} : vector<80x40xf32> to vector<8x40xf32>
    %631 = vector.broadcast %526 : vector<1x40xf32> to vector<8x40xf32>
    %632 = arith.mulf %630, %631 : vector<8x40xf32>
    %633 = arith.addf %627, %632 : vector<8x40xf32>
    %634 = vector.extract_strided_slice %578 {offsets = [64, 0], sizes = [8, 8], strides = [1, 1]} : vector<80x8xf32> to vector<8x8xf32>
    %635 = arith.addf %629, %634 : vector<8x8xf32>
    %636 = vector.extract_strided_slice %579 {offsets = [72, 0], sizes = [8, 40], strides = [1, 1]} : vector<80x40xf32> to vector<8x40xf32>
    %637 = vector.broadcast %533 : vector<1x40xf32> to vector<8x40xf32>
    %638 = arith.mulf %636, %637 : vector<8x40xf32>
    %639 = arith.addf %633, %638 : vector<8x40xf32>
    %640 = vector.extract_strided_slice %578 {offsets = [72, 0], sizes = [8, 8], strides = [1, 1]} : vector<80x8xf32> to vector<8x8xf32>
    %641 = arith.addf %635, %640 : vector<8x8xf32>
    %cst_143 = arith.constant dense<0.000000e+00> : vector<8x40xf32>
    %642 = tpu.matmul %639, %455, %cst_143 {dimension_numbers = #tpu.dot_dimension_numbers<[1], [1], [0], [0], [0, 0, 1, 0], [], []>} : vector<8x40xf32>, vector<40x40xf32>, vector<8x40xf32> -> vector<8x40xf32>
    %643 = vector.broadcast %461 : vector<1x40xf32> to vector<8x40xf32>
    %644 = arith.addf %642, %643 : vector<8x40xf32>
    %cst_144 = arith.constant 1.000000e-01 : f32
    %645 = vector.broadcast %cst_144 : f32 to vector<8x8xf32>
    %646 = arith.mulf %641, %645 : vector<8x8xf32>
    %cst_145 = arith.constant dense<0.000000e+00> : vector<8x40xf32>
    %647 = tpu.matmul %6, %449, %cst_145 {dimension_numbers = #tpu.dot_dimension_numbers<[1], [1], [0], [0], [0, 0, 1, 0], [], []>} : vector<8x40xf32>, vector<40x40xf32>, vector<8x40xf32> -> vector<8x40xf32>
    %648 = vector.broadcast %458 : vector<1x40xf32> to vector<8x40xf32>
    %649 = arith.addf %647, %648 : vector<8x40xf32>
    %cst_146 = arith.constant dense<0.000000e+00> : vector<6x40xf32>
    %650 = tpu.matmul %10, %451, %cst_146 {dimension_numbers = #tpu.dot_dimension_numbers<[1], [1], [0], [0], [0, 0, 1, 0], [], []>} : vector<6x40xf32>, vector<40x40xf32>, vector<6x40xf32> -> vector<6x40xf32>
    %651 = vector.broadcast %459 : vector<1x40xf32> to vector<6x40xf32>
    %652 = arith.addf %650, %651 : vector<6x40xf32>
    %cst_147 = arith.constant dense<0.000000e+00> : vector<6x40xf32>
    %653 = tpu.matmul %14, %453, %cst_147 {dimension_numbers = #tpu.dot_dimension_numbers<[1], [1], [0], [0], [0, 0, 1, 0], [], []>} : vector<6x40xf32>, vector<40x40xf32>, vector<6x40xf32> -> vector<6x40xf32>
    %654 = vector.broadcast %460 : vector<1x40xf32> to vector<6x40xf32>
    %655 = arith.addf %653, %654 : vector<6x40xf32>
    %656 = tpu.concatenate %652, %462 in 0 : vector<6x40xf32>, vector<1x40xf32> -> vector<7x40xf32>
    %657 = tpu.concatenate %655, %463 in 0 : vector<6x40xf32>, vector<1x40xf32> -> vector<7x40xf32>
    %cst_148 = arith.constant 0.000000e+00 : f32
    %658 = vector.broadcast %cst_148 : f32 to vector<1x40xf32>
    %659 = tpu.concatenate %656, %658 in 0 : vector<7x40xf32>, vector<1x40xf32> -> vector<8x40xf32>
    %660 = tpu.concatenate %657, %658 in 0 : vector<7x40xf32>, vector<1x40xf32> -> vector<8x40xf32>
    %661 = vector.broadcast %470 : vector<1x40xf32> to vector<8x40xf32>
    %662 = arith.mulf %649, %661 : vector<8x40xf32>
    %663 = vector.broadcast %477 : vector<1x40xf32> to vector<8x40xf32>
    %664 = arith.mulf %649, %663 : vector<8x40xf32>
    %665 = vector.broadcast %484 : vector<1x40xf32> to vector<8x40xf32>
    %666 = arith.mulf %649, %665 : vector<8x40xf32>
    %667 = vector.broadcast %491 : vector<1x40xf32> to vector<8x40xf32>
    %668 = arith.mulf %649, %667 : vector<8x40xf32>
    %669 = vector.broadcast %498 : vector<1x40xf32> to vector<8x40xf32>
    %670 = arith.mulf %649, %669 : vector<8x40xf32>
    %671 = vector.broadcast %505 : vector<1x40xf32> to vector<8x40xf32>
    %672 = arith.mulf %649, %671 : vector<8x40xf32>
    %673 = vector.broadcast %512 : vector<1x40xf32> to vector<8x40xf32>
    %674 = arith.mulf %649, %673 : vector<8x40xf32>
    %675 = vector.broadcast %519 : vector<1x40xf32> to vector<8x40xf32>
    %676 = arith.mulf %649, %675 : vector<8x40xf32>
    %677 = vector.broadcast %526 : vector<1x40xf32> to vector<8x40xf32>
    %678 = arith.mulf %649, %677 : vector<8x40xf32>
    %679 = vector.broadcast %533 : vector<1x40xf32> to vector<8x40xf32>
    %680 = arith.mulf %649, %679 : vector<8x40xf32>
    %681 = tpu.concatenate %662, %664, %666, %668, %670, %672, %674, %676, %678, %680 in 0 : vector<8x40xf32>, vector<8x40xf32>, vector<8x40xf32>, vector<8x40xf32>, vector<8x40xf32>, vector<8x40xf32>, vector<8x40xf32>, vector<8x40xf32>, vector<8x40xf32>, vector<8x40xf32> -> vector<80x40xf32>
    %cst_149 = arith.constant dense<0.000000e+00> : vector<80x8xf32>
    %682 = tpu.matmul %681, %659, %cst_149 {dimension_numbers = #tpu.dot_dimension_numbers<[1], [1], [0], [0], [0, 0, 1, 0], [], []>} : vector<80x40xf32>, vector<8x40xf32>, vector<80x8xf32> -> vector<80x8xf32>
    %cst_150 = arith.constant dense<0xFF800000> : vector<80xf32>
    %683 = vector.multi_reduction <maximumf>, %682, %cst_150 [1] : vector<80x8xf32> to vector<80xf32>
    %684 = vector.shape_cast %683 : vector<80xf32> to vector<80x1xf32>
    %685 = vector.broadcast %684 : vector<80x1xf32> to vector<80x8xf32>
    %686 = arith.subf %682, %685 : vector<80x8xf32>
    %687 = math.exp %686 : vector<80x8xf32>
    %cst_151 = arith.constant dense<0.000000e+00> : vector<80xf32>
    %688 = vector.multi_reduction <add>, %687, %cst_151 [1] : vector<80x8xf32> to vector<80xf32>
    %689 = vector.shape_cast %688 : vector<80xf32> to vector<80x1xf32>
    %690 = vector.broadcast %689 : vector<80x1xf32> to vector<80x8xf32>
    %691 = arith.divf %687, %690 : vector<80x8xf32>
    %cst_152 = arith.constant dense<0.000000e+00> : vector<80x40xf32>
    %692 = tpu.matmul %691, %660, %cst_152 {dimension_numbers = #tpu.dot_dimension_numbers<[1], [0], [0], [1], [0, 0, 1, 1], [], []>} : vector<80x8xf32>, vector<8x40xf32>, vector<80x40xf32> -> vector<80x40xf32>
    %cst_153 = arith.constant 0.000000e+00 : f32
    %693 = vector.broadcast %cst_153 : f32 to vector<8x40xf32>
    %cst_154 = arith.constant 0.000000e+00 : f32
    %694 = vector.broadcast %cst_154 : f32 to vector<8x8xf32>
    %695 = vector.extract_strided_slice %692 {offsets = [0, 0], sizes = [8, 40], strides = [1, 1]} : vector<80x40xf32> to vector<8x40xf32>
    %696 = vector.broadcast %470 : vector<1x40xf32> to vector<8x40xf32>
    %697 = arith.mulf %695, %696 : vector<8x40xf32>
    %698 = arith.addf %693, %697 : vector<8x40xf32>
    %699 = vector.extract_strided_slice %691 {offsets = [0, 0], sizes = [8, 8], strides = [1, 1]} : vector<80x8xf32> to vector<8x8xf32>
    %700 = arith.addf %694, %699 : vector<8x8xf32>
    %701 = vector.extract_strided_slice %692 {offsets = [8, 0], sizes = [8, 40], strides = [1, 1]} : vector<80x40xf32> to vector<8x40xf32>
    %702 = vector.broadcast %477 : vector<1x40xf32> to vector<8x40xf32>
    %703 = arith.mulf %701, %702 : vector<8x40xf32>
    %704 = arith.addf %698, %703 : vector<8x40xf32>
    %705 = vector.extract_strided_slice %691 {offsets = [8, 0], sizes = [8, 8], strides = [1, 1]} : vector<80x8xf32> to vector<8x8xf32>
    %706 = arith.addf %700, %705 : vector<8x8xf32>
    %707 = vector.extract_strided_slice %692 {offsets = [16, 0], sizes = [8, 40], strides = [1, 1]} : vector<80x40xf32> to vector<8x40xf32>
    %708 = vector.broadcast %484 : vector<1x40xf32> to vector<8x40xf32>
    %709 = arith.mulf %707, %708 : vector<8x40xf32>
    %710 = arith.addf %704, %709 : vector<8x40xf32>
    %711 = vector.extract_strided_slice %691 {offsets = [16, 0], sizes = [8, 8], strides = [1, 1]} : vector<80x8xf32> to vector<8x8xf32>
    %712 = arith.addf %706, %711 : vector<8x8xf32>
    %713 = vector.extract_strided_slice %692 {offsets = [24, 0], sizes = [8, 40], strides = [1, 1]} : vector<80x40xf32> to vector<8x40xf32>
    %714 = vector.broadcast %491 : vector<1x40xf32> to vector<8x40xf32>
    %715 = arith.mulf %713, %714 : vector<8x40xf32>
    %716 = arith.addf %710, %715 : vector<8x40xf32>
    %717 = vector.extract_strided_slice %691 {offsets = [24, 0], sizes = [8, 8], strides = [1, 1]} : vector<80x8xf32> to vector<8x8xf32>
    %718 = arith.addf %712, %717 : vector<8x8xf32>
    %719 = vector.extract_strided_slice %692 {offsets = [32, 0], sizes = [8, 40], strides = [1, 1]} : vector<80x40xf32> to vector<8x40xf32>
    %720 = vector.broadcast %498 : vector<1x40xf32> to vector<8x40xf32>
    %721 = arith.mulf %719, %720 : vector<8x40xf32>
    %722 = arith.addf %716, %721 : vector<8x40xf32>
    %723 = vector.extract_strided_slice %691 {offsets = [32, 0], sizes = [8, 8], strides = [1, 1]} : vector<80x8xf32> to vector<8x8xf32>
    %724 = arith.addf %718, %723 : vector<8x8xf32>
    %725 = vector.extract_strided_slice %692 {offsets = [40, 0], sizes = [8, 40], strides = [1, 1]} : vector<80x40xf32> to vector<8x40xf32>
    %726 = vector.broadcast %505 : vector<1x40xf32> to vector<8x40xf32>
    %727 = arith.mulf %725, %726 : vector<8x40xf32>
    %728 = arith.addf %722, %727 : vector<8x40xf32>
    %729 = vector.extract_strided_slice %691 {offsets = [40, 0], sizes = [8, 8], strides = [1, 1]} : vector<80x8xf32> to vector<8x8xf32>
    %730 = arith.addf %724, %729 : vector<8x8xf32>
    %731 = vector.extract_strided_slice %692 {offsets = [48, 0], sizes = [8, 40], strides = [1, 1]} : vector<80x40xf32> to vector<8x40xf32>
    %732 = vector.broadcast %512 : vector<1x40xf32> to vector<8x40xf32>
    %733 = arith.mulf %731, %732 : vector<8x40xf32>
    %734 = arith.addf %728, %733 : vector<8x40xf32>
    %735 = vector.extract_strided_slice %691 {offsets = [48, 0], sizes = [8, 8], strides = [1, 1]} : vector<80x8xf32> to vector<8x8xf32>
    %736 = arith.addf %730, %735 : vector<8x8xf32>
    %737 = vector.extract_strided_slice %692 {offsets = [56, 0], sizes = [8, 40], strides = [1, 1]} : vector<80x40xf32> to vector<8x40xf32>
    %738 = vector.broadcast %519 : vector<1x40xf32> to vector<8x40xf32>
    %739 = arith.mulf %737, %738 : vector<8x40xf32>
    %740 = arith.addf %734, %739 : vector<8x40xf32>
    %741 = vector.extract_strided_slice %691 {offsets = [56, 0], sizes = [8, 8], strides = [1, 1]} : vector<80x8xf32> to vector<8x8xf32>
    %742 = arith.addf %736, %741 : vector<8x8xf32>
    %743 = vector.extract_strided_slice %692 {offsets = [64, 0], sizes = [8, 40], strides = [1, 1]} : vector<80x40xf32> to vector<8x40xf32>
    %744 = vector.broadcast %526 : vector<1x40xf32> to vector<8x40xf32>
    %745 = arith.mulf %743, %744 : vector<8x40xf32>
    %746 = arith.addf %740, %745 : vector<8x40xf32>
    %747 = vector.extract_strided_slice %691 {offsets = [64, 0], sizes = [8, 8], strides = [1, 1]} : vector<80x8xf32> to vector<8x8xf32>
    %748 = arith.addf %742, %747 : vector<8x8xf32>
    %749 = vector.extract_strided_slice %692 {offsets = [72, 0], sizes = [8, 40], strides = [1, 1]} : vector<80x40xf32> to vector<8x40xf32>
    %750 = vector.broadcast %533 : vector<1x40xf32> to vector<8x40xf32>
    %751 = arith.mulf %749, %750 : vector<8x40xf32>
    %752 = arith.addf %746, %751 : vector<8x40xf32>
    %753 = vector.extract_strided_slice %691 {offsets = [72, 0], sizes = [8, 8], strides = [1, 1]} : vector<80x8xf32> to vector<8x8xf32>
    %754 = arith.addf %748, %753 : vector<8x8xf32>
    %cst_155 = arith.constant dense<0.000000e+00> : vector<8x40xf32>
    %755 = tpu.matmul %752, %455, %cst_155 {dimension_numbers = #tpu.dot_dimension_numbers<[1], [1], [0], [0], [0, 0, 1, 0], [], []>} : vector<8x40xf32>, vector<40x40xf32>, vector<8x40xf32> -> vector<8x40xf32>
    %756 = vector.broadcast %461 : vector<1x40xf32> to vector<8x40xf32>
    %757 = arith.addf %755, %756 : vector<8x40xf32>
    %cst_156 = arith.constant 1.000000e-01 : f32
    %758 = vector.broadcast %cst_156 : f32 to vector<8x8xf32>
    %759 = arith.mulf %754, %758 : vector<8x8xf32>
    %760 = vector.shape_cast %644 : vector<8x40xf32> to vector<1x8x40xf32>
    %761 = vector.shape_cast %757 : vector<8x40xf32> to vector<1x8x40xf32>
    %762 = tpu.concatenate %760, %761 in 0 : vector<1x8x40xf32>, vector<1x8x40xf32> -> vector<2x8x40xf32>
    %c0_157 = arith.constant 0 : index
    %c0_158 = arith.constant 0 : index
    %c0_159 = arith.constant 0 : index
    %763 = vector.load %arg12[%c0_157, %c0_158, %c0_159] : memref<2x8x40xf32, #tpu.memory_space<vmem>>, vector<2x8x40xf32>
    tpu.vector_store %arg12[%c0_157, %c0_158, %c0_159], %762 {strides = array<i32>} : memref<2x8x40xf32, #tpu.memory_space<vmem>>, vector<2x8x40xf32>,
    %764 = vector.shape_cast %646 : vector<8x8xf32> to vector<1x8x8xf32>
    %765 = vector.shape_cast %759 : vector<8x8xf32> to vector<1x8x8xf32>
    %766 = tpu.concatenate %764, %765 in 0 : vector<1x8x8xf32>, vector<1x8x8xf32> -> vector<2x8x8xf32>
    %c0_160 = arith.constant 0 : index
    %c0_161 = arith.constant 0 : index
    %c0_162 = arith.constant 0 : index
    %767 = vector.load %arg13[%c0_160, %c0_161, %c0_162] : memref<2x8x8xf32, #tpu.memory_space<vmem>>, vector<2x8x8xf32>
    tpu.vector_store %arg13[%c0_160, %c0_161, %c0_162], %766 {strides = array<i32>} : memref<2x8x8xf32, #tpu.memory_space<vmem>>, vector<2x8x8xf32>,
    return
  }
}

module attributes {stable_mosaic.version = 11 : i64} {
  func.func @_mha_group_kernel(%arg0: memref<8x2x64xf32, #tpu.memory_space<vmem>>, %arg1: memref<6x2x64xf32, #tpu.memory_space<vmem>>, %arg2: memref<6x2x64xf32, #tpu.memory_space<vmem>>, %arg3: memref<3x64x64xf32, #tpu.memory_space<vmem>>, %arg4: memref<3x64x64xf32, #tpu.memory_space<vmem>>, %arg5: memref<3x64x64xf32, #tpu.memory_space<vmem>>, %arg6: memref<3x64x64xf32, #tpu.memory_space<vmem>>, %arg7: memref<3x8x64xf32, #tpu.memory_space<vmem>>, %arg8: memref<8x2x64xf32, #tpu.memory_space<vmem>>, %arg9: memref<2x8x6xf32, #tpu.memory_space<vmem>>, %arg10: memref<8x2x64xf32, #tpu.memory_space<vmem>>, %arg11: memref<2x8x6xf32, #tpu.memory_space<vmem>>, %arg12: memref<8x2x64xf32, #tpu.memory_space<vmem>>, %arg13: memref<2x8x8xf32, #tpu.memory_space<vmem>>) attributes {dimension_semantics = [], scalar_prefetch = 0 : i64, scratch_operands = 0 : i64, tpu.core_type = #tpu.core_type<tc>} {
    %c0 = arith.constant 0 : index
    %c0_0 = arith.constant 0 : index
    %c0_1 = arith.constant 0 : index
    %0 = vector.load %arg0[%c0, %c0_0, %c0_1] : memref<8x2x64xf32, #tpu.memory_space<vmem>>, vector<8x2x64xf32>
    %c0_2 = arith.constant 0 : index
    %c0_3 = arith.constant 0 : index
    %c0_4 = arith.constant 0 : index
    %1 = vector.load %arg1[%c0_2, %c0_3, %c0_4] : memref<6x2x64xf32, #tpu.memory_space<vmem>>, vector<6x2x64xf32>
    %c0_5 = arith.constant 0 : index
    %c0_6 = arith.constant 0 : index
    %c0_7 = arith.constant 0 : index
    %2 = vector.load %arg2[%c0_5, %c0_6, %c0_7] : memref<6x2x64xf32, #tpu.memory_space<vmem>>, vector<6x2x64xf32>
    %3 = vector.extract_strided_slice %0 {offsets = [0, 0, 0], sizes = [8, 1, 64], strides = [1, 1, 1]} : vector<8x2x64xf32> to vector<8x1x64xf32>
    %4 = vector.shape_cast %3 : vector<8x1x64xf32> to vector<8x64xf32>
    %5 = vector.extract_strided_slice %0 {offsets = [0, 1, 0], sizes = [8, 1, 64], strides = [1, 1, 1]} : vector<8x2x64xf32> to vector<8x1x64xf32>
    %6 = vector.shape_cast %5 : vector<8x1x64xf32> to vector<8x64xf32>
    %7 = vector.extract_strided_slice %1 {offsets = [0, 0, 0], sizes = [6, 1, 64], strides = [1, 1, 1]} : vector<6x2x64xf32> to vector<6x1x64xf32>
    %8 = vector.shape_cast %7 : vector<6x1x64xf32> to vector<6x64xf32>
    %9 = vector.extract_strided_slice %1 {offsets = [0, 1, 0], sizes = [6, 1, 64], strides = [1, 1, 1]} : vector<6x2x64xf32> to vector<6x1x64xf32>
    %10 = vector.shape_cast %9 : vector<6x1x64xf32> to vector<6x64xf32>
    %11 = vector.extract_strided_slice %2 {offsets = [0, 0, 0], sizes = [6, 1, 64], strides = [1, 1, 1]} : vector<6x2x64xf32> to vector<6x1x64xf32>
    %12 = vector.shape_cast %11 : vector<6x1x64xf32> to vector<6x64xf32>
    %13 = vector.extract_strided_slice %2 {offsets = [0, 1, 0], sizes = [6, 1, 64], strides = [1, 1, 1]} : vector<6x2x64xf32> to vector<6x1x64xf32>
    %14 = vector.shape_cast %13 : vector<6x1x64xf32> to vector<6x64xf32>
    %15 = tpu.iota {dimensions = array<i32: 1>} : vector<1x64xi32>
    %c0_8 = arith.constant 0 : index
    %c0_9 = arith.constant 0 : index
    %c0_10 = arith.constant 0 : index
    %16 = vector.load %arg3[%c0_8, %c0_9, %c0_10] : memref<3x64x64xf32, #tpu.memory_space<vmem>>, vector<1x64x64xf32>
    %17 = vector.shape_cast %16 : vector<1x64x64xf32> to vector<64x64xf32>
    %c0_11 = arith.constant 0 : index
    %c0_12 = arith.constant 0 : index
    %c0_13 = arith.constant 0 : index
    %18 = vector.load %arg4[%c0_11, %c0_12, %c0_13] : memref<3x64x64xf32, #tpu.memory_space<vmem>>, vector<1x64x64xf32>
    %19 = vector.shape_cast %18 : vector<1x64x64xf32> to vector<64x64xf32>
    %c0_14 = arith.constant 0 : index
    %c0_15 = arith.constant 0 : index
    %c0_16 = arith.constant 0 : index
    %20 = vector.load %arg5[%c0_14, %c0_15, %c0_16] : memref<3x64x64xf32, #tpu.memory_space<vmem>>, vector<1x64x64xf32>
    %21 = vector.shape_cast %20 : vector<1x64x64xf32> to vector<64x64xf32>
    %c0_17 = arith.constant 0 : index
    %c0_18 = arith.constant 0 : index
    %c0_19 = arith.constant 0 : index
    %22 = vector.load %arg6[%c0_17, %c0_18, %c0_19] : memref<3x64x64xf32, #tpu.memory_space<vmem>>, vector<1x64x64xf32>
    %23 = vector.shape_cast %22 : vector<1x64x64xf32> to vector<64x64xf32>
    %c0_20 = arith.constant 0 : index
    %c0_21 = arith.constant 0 : index
    %c0_22 = arith.constant 0 : index
    %24 = vector.load %arg7[%c0_20, %c0_21, %c0_22] : memref<3x8x64xf32, #tpu.memory_space<vmem>>, vector<1x8x64xf32>
    %25 = vector.shape_cast %24 : vector<1x8x64xf32> to vector<8x64xf32>
    %26 = vector.extract_strided_slice %25 {offsets = [0, 0], sizes = [1, 64], strides = [1, 1]} : vector<8x64xf32> to vector<1x64xf32>
    %27 = vector.extract_strided_slice %25 {offsets = [1, 0], sizes = [1, 64], strides = [1, 1]} : vector<8x64xf32> to vector<1x64xf32>
    %28 = vector.extract_strided_slice %25 {offsets = [2, 0], sizes = [1, 64], strides = [1, 1]} : vector<8x64xf32> to vector<1x64xf32>
    %29 = vector.extract_strided_slice %25 {offsets = [3, 0], sizes = [1, 64], strides = [1, 1]} : vector<8x64xf32> to vector<1x64xf32>
    %c0_i32 = arith.constant 0 : i32
    %30 = vector.broadcast %c0_i32 : i32 to vector<1x64xi32>
    %31 = arith.cmpi sge, %15, %30 : vector<1x64xi32>
    %c16_i32 = arith.constant 16 : i32
    %32 = vector.broadcast %c16_i32 : i32 to vector<1x64xi32>
    %33 = arith.cmpi slt, %15, %32 : vector<1x64xi32>
    %34 = arith.andi %31, %33 : vector<1x64xi1>
    %35 = arith.extui %34 : vector<1x64xi1> to vector<1x64xi32>
    %36 = arith.sitofp %35 : vector<1x64xi32> to vector<1x64xf32>
    %c16_i32_23 = arith.constant 16 : i32
    %37 = vector.broadcast %c16_i32_23 : i32 to vector<1x64xi32>
    %38 = arith.cmpi sge, %15, %37 : vector<1x64xi32>
    %c32_i32 = arith.constant 32 : i32
    %39 = vector.broadcast %c32_i32 : i32 to vector<1x64xi32>
    %40 = arith.cmpi slt, %15, %39 : vector<1x64xi32>
    %41 = arith.andi %38, %40 : vector<1x64xi1>
    %42 = arith.extui %41 : vector<1x64xi1> to vector<1x64xi32>
    %43 = arith.sitofp %42 : vector<1x64xi32> to vector<1x64xf32>
    %c32_i32_24 = arith.constant 32 : i32
    %44 = vector.broadcast %c32_i32_24 : i32 to vector<1x64xi32>
    %45 = arith.cmpi sge, %15, %44 : vector<1x64xi32>
    %c48_i32 = arith.constant 48 : i32
    %46 = vector.broadcast %c48_i32 : i32 to vector<1x64xi32>
    %47 = arith.cmpi slt, %15, %46 : vector<1x64xi32>
    %48 = arith.andi %45, %47 : vector<1x64xi1>
    %49 = arith.extui %48 : vector<1x64xi1> to vector<1x64xi32>
    %50 = arith.sitofp %49 : vector<1x64xi32> to vector<1x64xf32>
    %c48_i32_25 = arith.constant 48 : i32
    %51 = vector.broadcast %c48_i32_25 : i32 to vector<1x64xi32>
    %52 = arith.cmpi sge, %15, %51 : vector<1x64xi32>
    %c64_i32 = arith.constant 64 : i32
    %53 = vector.broadcast %c64_i32 : i32 to vector<1x64xi32>
    %54 = arith.cmpi slt, %15, %53 : vector<1x64xi32>
    %55 = arith.andi %52, %54 : vector<1x64xi1>
    %56 = arith.extui %55 : vector<1x64xi1> to vector<1x64xi32>
    %57 = arith.sitofp %56 : vector<1x64xi32> to vector<1x64xf32>
    %cst = arith.constant dense<0.000000e+00> : vector<8x64xf32>
    %58 = tpu.matmul %4, %17, %cst {dimension_numbers = #tpu.dot_dimension_numbers<[1], [1], [0], [0], [0, 0, 1, 0], [], []>} : vector<8x64xf32>, vector<64x64xf32>, vector<8x64xf32> -> vector<8x64xf32>
    %59 = vector.broadcast %26 : vector<1x64xf32> to vector<8x64xf32>
    %60 = arith.addf %58, %59 : vector<8x64xf32>
    %cst_26 = arith.constant dense<0.000000e+00> : vector<6x64xf32>
    %61 = tpu.matmul %8, %19, %cst_26 {dimension_numbers = #tpu.dot_dimension_numbers<[1], [1], [0], [0], [0, 0, 1, 0], [], []>} : vector<6x64xf32>, vector<64x64xf32>, vector<6x64xf32> -> vector<6x64xf32>
    %62 = vector.broadcast %27 : vector<1x64xf32> to vector<6x64xf32>
    %63 = arith.addf %61, %62 : vector<6x64xf32>
    %cst_27 = arith.constant dense<0.000000e+00> : vector<6x64xf32>
    %64 = tpu.matmul %12, %21, %cst_27 {dimension_numbers = #tpu.dot_dimension_numbers<[1], [1], [0], [0], [0, 0, 1, 0], [], []>} : vector<6x64xf32>, vector<64x64xf32>, vector<6x64xf32> -> vector<6x64xf32>
    %65 = vector.broadcast %28 : vector<1x64xf32> to vector<6x64xf32>
    %66 = arith.addf %64, %65 : vector<6x64xf32>
    %67 = vector.broadcast %36 : vector<1x64xf32> to vector<8x64xf32>
    %68 = arith.mulf %60, %67 : vector<8x64xf32>
    %69 = vector.broadcast %43 : vector<1x64xf32> to vector<8x64xf32>
    %70 = arith.mulf %60, %69 : vector<8x64xf32>
    %71 = vector.broadcast %50 : vector<1x64xf32> to vector<8x64xf32>
    %72 = arith.mulf %60, %71 : vector<8x64xf32>
    %73 = vector.broadcast %57 : vector<1x64xf32> to vector<8x64xf32>
    %74 = arith.mulf %60, %73 : vector<8x64xf32>
    %75 = tpu.concatenate %68, %70, %72, %74 in 0 : vector<8x64xf32>, vector<8x64xf32>, vector<8x64xf32>, vector<8x64xf32> -> vector<32x64xf32>
    %cst_28 = arith.constant dense<0.000000e+00> : vector<32x6xf32>
    %76 = tpu.matmul %75, %63, %cst_28 {dimension_numbers = #tpu.dot_dimension_numbers<[1], [1], [0], [0], [0, 0, 1, 0], [], []>} : vector<32x64xf32>, vector<6x64xf32>, vector<32x6xf32> -> vector<32x6xf32>
    %cst_29 = arith.constant dense<0xFF800000> : vector<32xf32>
    %77 = vector.multi_reduction <maximumf>, %76, %cst_29 [1] : vector<32x6xf32> to vector<32xf32>
    %78 = vector.shape_cast %77 : vector<32xf32> to vector<32x1xf32>
    %79 = vector.broadcast %78 : vector<32x1xf32> to vector<32x6xf32>
    %80 = arith.subf %76, %79 : vector<32x6xf32>
    %81 = math.exp %80 : vector<32x6xf32>
    %cst_30 = arith.constant dense<0.000000e+00> : vector<32xf32>
    %82 = vector.multi_reduction <add>, %81, %cst_30 [1] : vector<32x6xf32> to vector<32xf32>
    %83 = vector.shape_cast %82 : vector<32xf32> to vector<32x1xf32>
    %84 = vector.broadcast %83 : vector<32x1xf32> to vector<32x6xf32>
    %85 = arith.divf %81, %84 : vector<32x6xf32>
    %cst_31 = arith.constant dense<0.000000e+00> : vector<32x64xf32>
    %86 = tpu.matmul %85, %66, %cst_31 {dimension_numbers = #tpu.dot_dimension_numbers<[1], [0], [0], [1], [0, 0, 1, 1], [], []>} : vector<32x6xf32>, vector<6x64xf32>, vector<32x64xf32> -> vector<32x64xf32>
    %cst_32 = arith.constant 0.000000e+00 : f32
    %87 = vector.broadcast %cst_32 : f32 to vector<8x64xf32>
    %cst_33 = arith.constant 0.000000e+00 : f32
    %88 = vector.broadcast %cst_33 : f32 to vector<8x6xf32>
    %89 = vector.extract_strided_slice %86 {offsets = [0, 0], sizes = [8, 64], strides = [1, 1]} : vector<32x64xf32> to vector<8x64xf32>
    %90 = vector.broadcast %36 : vector<1x64xf32> to vector<8x64xf32>
    %91 = arith.mulf %89, %90 : vector<8x64xf32>
    %92 = arith.addf %87, %91 : vector<8x64xf32>
    %93 = vector.extract_strided_slice %85 {offsets = [0, 0], sizes = [8, 6], strides = [1, 1]} : vector<32x6xf32> to vector<8x6xf32>
    %94 = arith.addf %88, %93 : vector<8x6xf32>
    %95 = vector.extract_strided_slice %86 {offsets = [8, 0], sizes = [8, 64], strides = [1, 1]} : vector<32x64xf32> to vector<8x64xf32>
    %96 = vector.broadcast %43 : vector<1x64xf32> to vector<8x64xf32>
    %97 = arith.mulf %95, %96 : vector<8x64xf32>
    %98 = arith.addf %92, %97 : vector<8x64xf32>
    %99 = vector.extract_strided_slice %85 {offsets = [8, 0], sizes = [8, 6], strides = [1, 1]} : vector<32x6xf32> to vector<8x6xf32>
    %100 = arith.addf %94, %99 : vector<8x6xf32>
    %101 = vector.extract_strided_slice %86 {offsets = [16, 0], sizes = [8, 64], strides = [1, 1]} : vector<32x64xf32> to vector<8x64xf32>
    %102 = vector.broadcast %50 : vector<1x64xf32> to vector<8x64xf32>
    %103 = arith.mulf %101, %102 : vector<8x64xf32>
    %104 = arith.addf %98, %103 : vector<8x64xf32>
    %105 = vector.extract_strided_slice %85 {offsets = [16, 0], sizes = [8, 6], strides = [1, 1]} : vector<32x6xf32> to vector<8x6xf32>
    %106 = arith.addf %100, %105 : vector<8x6xf32>
    %107 = vector.extract_strided_slice %86 {offsets = [24, 0], sizes = [8, 64], strides = [1, 1]} : vector<32x64xf32> to vector<8x64xf32>
    %108 = vector.broadcast %57 : vector<1x64xf32> to vector<8x64xf32>
    %109 = arith.mulf %107, %108 : vector<8x64xf32>
    %110 = arith.addf %104, %109 : vector<8x64xf32>
    %111 = vector.extract_strided_slice %85 {offsets = [24, 0], sizes = [8, 6], strides = [1, 1]} : vector<32x6xf32> to vector<8x6xf32>
    %112 = arith.addf %106, %111 : vector<8x6xf32>
    %cst_34 = arith.constant dense<0.000000e+00> : vector<8x64xf32>
    %113 = tpu.matmul %110, %23, %cst_34 {dimension_numbers = #tpu.dot_dimension_numbers<[1], [1], [0], [0], [0, 0, 1, 0], [], []>} : vector<8x64xf32>, vector<64x64xf32>, vector<8x64xf32> -> vector<8x64xf32>
    %114 = vector.broadcast %29 : vector<1x64xf32> to vector<8x64xf32>
    %115 = arith.addf %113, %114 : vector<8x64xf32>
    %cst_35 = arith.constant 2.500000e-01 : f32
    %116 = vector.broadcast %cst_35 : f32 to vector<8x6xf32>
    %117 = arith.mulf %112, %116 : vector<8x6xf32>
    %cst_36 = arith.constant dense<0.000000e+00> : vector<8x64xf32>
    %118 = tpu.matmul %6, %17, %cst_36 {dimension_numbers = #tpu.dot_dimension_numbers<[1], [1], [0], [0], [0, 0, 1, 0], [], []>} : vector<8x64xf32>, vector<64x64xf32>, vector<8x64xf32> -> vector<8x64xf32>
    %119 = vector.broadcast %26 : vector<1x64xf32> to vector<8x64xf32>
    %120 = arith.addf %118, %119 : vector<8x64xf32>
    %cst_37 = arith.constant dense<0.000000e+00> : vector<6x64xf32>
    %121 = tpu.matmul %10, %19, %cst_37 {dimension_numbers = #tpu.dot_dimension_numbers<[1], [1], [0], [0], [0, 0, 1, 0], [], []>} : vector<6x64xf32>, vector<64x64xf32>, vector<6x64xf32> -> vector<6x64xf32>
    %122 = vector.broadcast %27 : vector<1x64xf32> to vector<6x64xf32>
    %123 = arith.addf %121, %122 : vector<6x64xf32>
    %cst_38 = arith.constant dense<0.000000e+00> : vector<6x64xf32>
    %124 = tpu.matmul %14, %21, %cst_38 {dimension_numbers = #tpu.dot_dimension_numbers<[1], [1], [0], [0], [0, 0, 1, 0], [], []>} : vector<6x64xf32>, vector<64x64xf32>, vector<6x64xf32> -> vector<6x64xf32>
    %125 = vector.broadcast %28 : vector<1x64xf32> to vector<6x64xf32>
    %126 = arith.addf %124, %125 : vector<6x64xf32>
    %127 = vector.broadcast %36 : vector<1x64xf32> to vector<8x64xf32>
    %128 = arith.mulf %120, %127 : vector<8x64xf32>
    %129 = vector.broadcast %43 : vector<1x64xf32> to vector<8x64xf32>
    %130 = arith.mulf %120, %129 : vector<8x64xf32>
    %131 = vector.broadcast %50 : vector<1x64xf32> to vector<8x64xf32>
    %132 = arith.mulf %120, %131 : vector<8x64xf32>
    %133 = vector.broadcast %57 : vector<1x64xf32> to vector<8x64xf32>
    %134 = arith.mulf %120, %133 : vector<8x64xf32>
    %135 = tpu.concatenate %128, %130, %132, %134 in 0 : vector<8x64xf32>, vector<8x64xf32>, vector<8x64xf32>, vector<8x64xf32> -> vector<32x64xf32>
    %cst_39 = arith.constant dense<0.000000e+00> : vector<32x6xf32>
    %136 = tpu.matmul %135, %123, %cst_39 {dimension_numbers = #tpu.dot_dimension_numbers<[1], [1], [0], [0], [0, 0, 1, 0], [], []>} : vector<32x64xf32>, vector<6x64xf32>, vector<32x6xf32> -> vector<32x6xf32>
    %cst_40 = arith.constant dense<0xFF800000> : vector<32xf32>
    %137 = vector.multi_reduction <maximumf>, %136, %cst_40 [1] : vector<32x6xf32> to vector<32xf32>
    %138 = vector.shape_cast %137 : vector<32xf32> to vector<32x1xf32>
    %139 = vector.broadcast %138 : vector<32x1xf32> to vector<32x6xf32>
    %140 = arith.subf %136, %139 : vector<32x6xf32>
    %141 = math.exp %140 : vector<32x6xf32>
    %cst_41 = arith.constant dense<0.000000e+00> : vector<32xf32>
    %142 = vector.multi_reduction <add>, %141, %cst_41 [1] : vector<32x6xf32> to vector<32xf32>
    %143 = vector.shape_cast %142 : vector<32xf32> to vector<32x1xf32>
    %144 = vector.broadcast %143 : vector<32x1xf32> to vector<32x6xf32>
    %145 = arith.divf %141, %144 : vector<32x6xf32>
    %cst_42 = arith.constant dense<0.000000e+00> : vector<32x64xf32>
    %146 = tpu.matmul %145, %126, %cst_42 {dimension_numbers = #tpu.dot_dimension_numbers<[1], [0], [0], [1], [0, 0, 1, 1], [], []>} : vector<32x6xf32>, vector<6x64xf32>, vector<32x64xf32> -> vector<32x64xf32>
    %cst_43 = arith.constant 0.000000e+00 : f32
    %147 = vector.broadcast %cst_43 : f32 to vector<8x64xf32>
    %cst_44 = arith.constant 0.000000e+00 : f32
    %148 = vector.broadcast %cst_44 : f32 to vector<8x6xf32>
    %149 = vector.extract_strided_slice %146 {offsets = [0, 0], sizes = [8, 64], strides = [1, 1]} : vector<32x64xf32> to vector<8x64xf32>
    %150 = vector.broadcast %36 : vector<1x64xf32> to vector<8x64xf32>
    %151 = arith.mulf %149, %150 : vector<8x64xf32>
    %152 = arith.addf %147, %151 : vector<8x64xf32>
    %153 = vector.extract_strided_slice %145 {offsets = [0, 0], sizes = [8, 6], strides = [1, 1]} : vector<32x6xf32> to vector<8x6xf32>
    %154 = arith.addf %148, %153 : vector<8x6xf32>
    %155 = vector.extract_strided_slice %146 {offsets = [8, 0], sizes = [8, 64], strides = [1, 1]} : vector<32x64xf32> to vector<8x64xf32>
    %156 = vector.broadcast %43 : vector<1x64xf32> to vector<8x64xf32>
    %157 = arith.mulf %155, %156 : vector<8x64xf32>
    %158 = arith.addf %152, %157 : vector<8x64xf32>
    %159 = vector.extract_strided_slice %145 {offsets = [8, 0], sizes = [8, 6], strides = [1, 1]} : vector<32x6xf32> to vector<8x6xf32>
    %160 = arith.addf %154, %159 : vector<8x6xf32>
    %161 = vector.extract_strided_slice %146 {offsets = [16, 0], sizes = [8, 64], strides = [1, 1]} : vector<32x64xf32> to vector<8x64xf32>
    %162 = vector.broadcast %50 : vector<1x64xf32> to vector<8x64xf32>
    %163 = arith.mulf %161, %162 : vector<8x64xf32>
    %164 = arith.addf %158, %163 : vector<8x64xf32>
    %165 = vector.extract_strided_slice %145 {offsets = [16, 0], sizes = [8, 6], strides = [1, 1]} : vector<32x6xf32> to vector<8x6xf32>
    %166 = arith.addf %160, %165 : vector<8x6xf32>
    %167 = vector.extract_strided_slice %146 {offsets = [24, 0], sizes = [8, 64], strides = [1, 1]} : vector<32x64xf32> to vector<8x64xf32>
    %168 = vector.broadcast %57 : vector<1x64xf32> to vector<8x64xf32>
    %169 = arith.mulf %167, %168 : vector<8x64xf32>
    %170 = arith.addf %164, %169 : vector<8x64xf32>
    %171 = vector.extract_strided_slice %145 {offsets = [24, 0], sizes = [8, 6], strides = [1, 1]} : vector<32x6xf32> to vector<8x6xf32>
    %172 = arith.addf %166, %171 : vector<8x6xf32>
    %cst_45 = arith.constant dense<0.000000e+00> : vector<8x64xf32>
    %173 = tpu.matmul %170, %23, %cst_45 {dimension_numbers = #tpu.dot_dimension_numbers<[1], [1], [0], [0], [0, 0, 1, 0], [], []>} : vector<8x64xf32>, vector<64x64xf32>, vector<8x64xf32> -> vector<8x64xf32>
    %174 = vector.broadcast %29 : vector<1x64xf32> to vector<8x64xf32>
    %175 = arith.addf %173, %174 : vector<8x64xf32>
    %cst_46 = arith.constant 2.500000e-01 : f32
    %176 = vector.broadcast %cst_46 : f32 to vector<8x6xf32>
    %177 = arith.mulf %172, %176 : vector<8x6xf32>
    %178 = vector.shape_cast %115 : vector<8x64xf32> to vector<8x1x64xf32>
    %179 = vector.shape_cast %175 : vector<8x64xf32> to vector<8x1x64xf32>
    %180 = tpu.concatenate %178, %179 in 1 : vector<8x1x64xf32>, vector<8x1x64xf32> -> vector<8x2x64xf32>
    %c0_47 = arith.constant 0 : index
    %c0_48 = arith.constant 0 : index
    %c0_49 = arith.constant 0 : index
    %181 = vector.load %arg8[%c0_47, %c0_48, %c0_49] : memref<8x2x64xf32, #tpu.memory_space<vmem>>, vector<8x2x64xf32>
    tpu.vector_store %arg8[%c0_47, %c0_48, %c0_49], %180 {strides = array<i32>} : memref<8x2x64xf32, #tpu.memory_space<vmem>>, vector<8x2x64xf32>,
    %182 = vector.shape_cast %117 : vector<8x6xf32> to vector<1x8x6xf32>
    %183 = vector.shape_cast %177 : vector<8x6xf32> to vector<1x8x6xf32>
    %184 = tpu.concatenate %182, %183 in 0 : vector<1x8x6xf32>, vector<1x8x6xf32> -> vector<2x8x6xf32>
    %c0_50 = arith.constant 0 : index
    %c0_51 = arith.constant 0 : index
    %c0_52 = arith.constant 0 : index
    %185 = vector.load %arg9[%c0_50, %c0_51, %c0_52] : memref<2x8x6xf32, #tpu.memory_space<vmem>>, vector<2x8x6xf32>
    tpu.vector_store %arg9[%c0_50, %c0_51, %c0_52], %184 {strides = array<i32>} : memref<2x8x6xf32, #tpu.memory_space<vmem>>, vector<2x8x6xf32>,
    %c1 = arith.constant 1 : index
    %c0_53 = arith.constant 0 : index
    %c0_54 = arith.constant 0 : index
    %186 = vector.load %arg3[%c1, %c0_53, %c0_54] : memref<3x64x64xf32, #tpu.memory_space<vmem>>, vector<1x64x64xf32>
    %187 = vector.shape_cast %186 : vector<1x64x64xf32> to vector<64x64xf32>
    %c1_55 = arith.constant 1 : index
    %c0_56 = arith.constant 0 : index
    %c0_57 = arith.constant 0 : index
    %188 = vector.load %arg4[%c1_55, %c0_56, %c0_57] : memref<3x64x64xf32, #tpu.memory_space<vmem>>, vector<1x64x64xf32>
    %189 = vector.shape_cast %188 : vector<1x64x64xf32> to vector<64x64xf32>
    %c1_58 = arith.constant 1 : index
    %c0_59 = arith.constant 0 : index
    %c0_60 = arith.constant 0 : index
    %190 = vector.load %arg5[%c1_58, %c0_59, %c0_60] : memref<3x64x64xf32, #tpu.memory_space<vmem>>, vector<1x64x64xf32>
    %191 = vector.shape_cast %190 : vector<1x64x64xf32> to vector<64x64xf32>
    %c1_61 = arith.constant 1 : index
    %c0_62 = arith.constant 0 : index
    %c0_63 = arith.constant 0 : index
    %192 = vector.load %arg6[%c1_61, %c0_62, %c0_63] : memref<3x64x64xf32, #tpu.memory_space<vmem>>, vector<1x64x64xf32>
    %193 = vector.shape_cast %192 : vector<1x64x64xf32> to vector<64x64xf32>
    %c1_64 = arith.constant 1 : index
    %c0_65 = arith.constant 0 : index
    %c0_66 = arith.constant 0 : index
    %194 = vector.load %arg7[%c1_64, %c0_65, %c0_66] : memref<3x8x64xf32, #tpu.memory_space<vmem>>, vector<1x8x64xf32>
    %195 = vector.shape_cast %194 : vector<1x8x64xf32> to vector<8x64xf32>
    %196 = vector.extract_strided_slice %195 {offsets = [0, 0], sizes = [1, 64], strides = [1, 1]} : vector<8x64xf32> to vector<1x64xf32>
    %197 = vector.extract_strided_slice %195 {offsets = [1, 0], sizes = [1, 64], strides = [1, 1]} : vector<8x64xf32> to vector<1x64xf32>
    %198 = vector.extract_strided_slice %195 {offsets = [2, 0], sizes = [1, 64], strides = [1, 1]} : vector<8x64xf32> to vector<1x64xf32>
    %199 = vector.extract_strided_slice %195 {offsets = [3, 0], sizes = [1, 64], strides = [1, 1]} : vector<8x64xf32> to vector<1x64xf32>
    %c0_i32_67 = arith.constant 0 : i32
    %200 = vector.broadcast %c0_i32_67 : i32 to vector<1x64xi32>
    %201 = arith.cmpi sge, %15, %200 : vector<1x64xi32>
    %c8_i32 = arith.constant 8 : i32
    %202 = vector.broadcast %c8_i32 : i32 to vector<1x64xi32>
    %203 = arith.cmpi slt, %15, %202 : vector<1x64xi32>
    %204 = arith.andi %201, %203 : vector<1x64xi1>
    %205 = arith.extui %204 : vector<1x64xi1> to vector<1x64xi32>
    %206 = arith.sitofp %205 : vector<1x64xi32> to vector<1x64xf32>
    %c8_i32_68 = arith.constant 8 : i32
    %207 = vector.broadcast %c8_i32_68 : i32 to vector<1x64xi32>
    %208 = arith.cmpi sge, %15, %207 : vector<1x64xi32>
    %c16_i32_69 = arith.constant 16 : i32
    %209 = vector.broadcast %c16_i32_69 : i32 to vector<1x64xi32>
    %210 = arith.cmpi slt, %15, %209 : vector<1x64xi32>
    %211 = arith.andi %208, %210 : vector<1x64xi1>
    %212 = arith.extui %211 : vector<1x64xi1> to vector<1x64xi32>
    %213 = arith.sitofp %212 : vector<1x64xi32> to vector<1x64xf32>
    %c16_i32_70 = arith.constant 16 : i32
    %214 = vector.broadcast %c16_i32_70 : i32 to vector<1x64xi32>
    %215 = arith.cmpi sge, %15, %214 : vector<1x64xi32>
    %c24_i32 = arith.constant 24 : i32
    %216 = vector.broadcast %c24_i32 : i32 to vector<1x64xi32>
    %217 = arith.cmpi slt, %15, %216 : vector<1x64xi32>
    %218 = arith.andi %215, %217 : vector<1x64xi1>
    %219 = arith.extui %218 : vector<1x64xi1> to vector<1x64xi32>
    %220 = arith.sitofp %219 : vector<1x64xi32> to vector<1x64xf32>
    %c24_i32_71 = arith.constant 24 : i32
    %221 = vector.broadcast %c24_i32_71 : i32 to vector<1x64xi32>
    %222 = arith.cmpi sge, %15, %221 : vector<1x64xi32>
    %c32_i32_72 = arith.constant 32 : i32
    %223 = vector.broadcast %c32_i32_72 : i32 to vector<1x64xi32>
    %224 = arith.cmpi slt, %15, %223 : vector<1x64xi32>
    %225 = arith.andi %222, %224 : vector<1x64xi1>
    %226 = arith.extui %225 : vector<1x64xi1> to vector<1x64xi32>
    %227 = arith.sitofp %226 : vector<1x64xi32> to vector<1x64xf32>
    %c32_i32_73 = arith.constant 32 : i32
    %228 = vector.broadcast %c32_i32_73 : i32 to vector<1x64xi32>
    %229 = arith.cmpi sge, %15, %228 : vector<1x64xi32>
    %c40_i32 = arith.constant 40 : i32
    %230 = vector.broadcast %c40_i32 : i32 to vector<1x64xi32>
    %231 = arith.cmpi slt, %15, %230 : vector<1x64xi32>
    %232 = arith.andi %229, %231 : vector<1x64xi1>
    %233 = arith.extui %232 : vector<1x64xi1> to vector<1x64xi32>
    %234 = arith.sitofp %233 : vector<1x64xi32> to vector<1x64xf32>
    %c40_i32_74 = arith.constant 40 : i32
    %235 = vector.broadcast %c40_i32_74 : i32 to vector<1x64xi32>
    %236 = arith.cmpi sge, %15, %235 : vector<1x64xi32>
    %c48_i32_75 = arith.constant 48 : i32
    %237 = vector.broadcast %c48_i32_75 : i32 to vector<1x64xi32>
    %238 = arith.cmpi slt, %15, %237 : vector<1x64xi32>
    %239 = arith.andi %236, %238 : vector<1x64xi1>
    %240 = arith.extui %239 : vector<1x64xi1> to vector<1x64xi32>
    %241 = arith.sitofp %240 : vector<1x64xi32> to vector<1x64xf32>
    %c48_i32_76 = arith.constant 48 : i32
    %242 = vector.broadcast %c48_i32_76 : i32 to vector<1x64xi32>
    %243 = arith.cmpi sge, %15, %242 : vector<1x64xi32>
    %c56_i32 = arith.constant 56 : i32
    %244 = vector.broadcast %c56_i32 : i32 to vector<1x64xi32>
    %245 = arith.cmpi slt, %15, %244 : vector<1x64xi32>
    %246 = arith.andi %243, %245 : vector<1x64xi1>
    %247 = arith.extui %246 : vector<1x64xi1> to vector<1x64xi32>
    %248 = arith.sitofp %247 : vector<1x64xi32> to vector<1x64xf32>
    %c56_i32_77 = arith.constant 56 : i32
    %249 = vector.broadcast %c56_i32_77 : i32 to vector<1x64xi32>
    %250 = arith.cmpi sge, %15, %249 : vector<1x64xi32>
    %c64_i32_78 = arith.constant 64 : i32
    %251 = vector.broadcast %c64_i32_78 : i32 to vector<1x64xi32>
    %252 = arith.cmpi slt, %15, %251 : vector<1x64xi32>
    %253 = arith.andi %250, %252 : vector<1x64xi1>
    %254 = arith.extui %253 : vector<1x64xi1> to vector<1x64xi32>
    %255 = arith.sitofp %254 : vector<1x64xi32> to vector<1x64xf32>
    %cst_79 = arith.constant dense<0.000000e+00> : vector<8x64xf32>
    %256 = tpu.matmul %4, %187, %cst_79 {dimension_numbers = #tpu.dot_dimension_numbers<[1], [1], [0], [0], [0, 0, 1, 0], [], []>} : vector<8x64xf32>, vector<64x64xf32>, vector<8x64xf32> -> vector<8x64xf32>
    %257 = vector.broadcast %196 : vector<1x64xf32> to vector<8x64xf32>
    %258 = arith.addf %256, %257 : vector<8x64xf32>
    %cst_80 = arith.constant dense<0.000000e+00> : vector<6x64xf32>
    %259 = tpu.matmul %8, %189, %cst_80 {dimension_numbers = #tpu.dot_dimension_numbers<[1], [1], [0], [0], [0, 0, 1, 0], [], []>} : vector<6x64xf32>, vector<64x64xf32>, vector<6x64xf32> -> vector<6x64xf32>
    %260 = vector.broadcast %197 : vector<1x64xf32> to vector<6x64xf32>
    %261 = arith.addf %259, %260 : vector<6x64xf32>
    %cst_81 = arith.constant dense<0.000000e+00> : vector<6x64xf32>
    %262 = tpu.matmul %12, %191, %cst_81 {dimension_numbers = #tpu.dot_dimension_numbers<[1], [1], [0], [0], [0, 0, 1, 0], [], []>} : vector<6x64xf32>, vector<64x64xf32>, vector<6x64xf32> -> vector<6x64xf32>
    %263 = vector.broadcast %198 : vector<1x64xf32> to vector<6x64xf32>
    %264 = arith.addf %262, %263 : vector<6x64xf32>
    %265 = vector.broadcast %206 : vector<1x64xf32> to vector<8x64xf32>
    %266 = arith.mulf %258, %265 : vector<8x64xf32>
    %267 = vector.broadcast %213 : vector<1x64xf32> to vector<8x64xf32>
    %268 = arith.mulf %258, %267 : vector<8x64xf32>
    %269 = vector.broadcast %220 : vector<1x64xf32> to vector<8x64xf32>
    %270 = arith.mulf %258, %269 : vector<8x64xf32>
    %271 = vector.broadcast %227 : vector<1x64xf32> to vector<8x64xf32>
    %272 = arith.mulf %258, %271 : vector<8x64xf32>
    %273 = vector.broadcast %234 : vector<1x64xf32> to vector<8x64xf32>
    %274 = arith.mulf %258, %273 : vector<8x64xf32>
    %275 = vector.broadcast %241 : vector<1x64xf32> to vector<8x64xf32>
    %276 = arith.mulf %258, %275 : vector<8x64xf32>
    %277 = vector.broadcast %248 : vector<1x64xf32> to vector<8x64xf32>
    %278 = arith.mulf %258, %277 : vector<8x64xf32>
    %279 = vector.broadcast %255 : vector<1x64xf32> to vector<8x64xf32>
    %280 = arith.mulf %258, %279 : vector<8x64xf32>
    %281 = tpu.concatenate %266, %268, %270, %272, %274, %276, %278, %280 in 0 : vector<8x64xf32>, vector<8x64xf32>, vector<8x64xf32>, vector<8x64xf32>, vector<8x64xf32>, vector<8x64xf32>, vector<8x64xf32>, vector<8x64xf32> -> vector<64x64xf32>
    %cst_82 = arith.constant dense<0.000000e+00> : vector<64x6xf32>
    %282 = tpu.matmul %281, %261, %cst_82 {dimension_numbers = #tpu.dot_dimension_numbers<[1], [1], [0], [0], [0, 0, 1, 0], [], []>} : vector<64x64xf32>, vector<6x64xf32>, vector<64x6xf32> -> vector<64x6xf32>
    %cst_83 = arith.constant dense<0xFF800000> : vector<64xf32>
    %283 = vector.multi_reduction <maximumf>, %282, %cst_83 [1] : vector<64x6xf32> to vector<64xf32>
    %284 = vector.shape_cast %283 : vector<64xf32> to vector<64x1xf32>
    %285 = vector.broadcast %284 : vector<64x1xf32> to vector<64x6xf32>
    %286 = arith.subf %282, %285 : vector<64x6xf32>
    %287 = math.exp %286 : vector<64x6xf32>
    %cst_84 = arith.constant dense<0.000000e+00> : vector<64xf32>
    %288 = vector.multi_reduction <add>, %287, %cst_84 [1] : vector<64x6xf32> to vector<64xf32>
    %289 = vector.shape_cast %288 : vector<64xf32> to vector<64x1xf32>
    %290 = vector.broadcast %289 : vector<64x1xf32> to vector<64x6xf32>
    %291 = arith.divf %287, %290 : vector<64x6xf32>
    %cst_85 = arith.constant dense<0.000000e+00> : vector<64x64xf32>
    %292 = tpu.matmul %291, %264, %cst_85 {dimension_numbers = #tpu.dot_dimension_numbers<[1], [0], [0], [1], [0, 0, 1, 1], [], []>} : vector<64x6xf32>, vector<6x64xf32>, vector<64x64xf32> -> vector<64x64xf32>
    %cst_86 = arith.constant 0.000000e+00 : f32
    %293 = vector.broadcast %cst_86 : f32 to vector<8x64xf32>
    %cst_87 = arith.constant 0.000000e+00 : f32
    %294 = vector.broadcast %cst_87 : f32 to vector<8x6xf32>
    %295 = vector.extract_strided_slice %292 {offsets = [0, 0], sizes = [8, 64], strides = [1, 1]} : vector<64x64xf32> to vector<8x64xf32>
    %296 = vector.broadcast %206 : vector<1x64xf32> to vector<8x64xf32>
    %297 = arith.mulf %295, %296 : vector<8x64xf32>
    %298 = arith.addf %293, %297 : vector<8x64xf32>
    %299 = vector.extract_strided_slice %291 {offsets = [0, 0], sizes = [8, 6], strides = [1, 1]} : vector<64x6xf32> to vector<8x6xf32>
    %300 = arith.addf %294, %299 : vector<8x6xf32>
    %301 = vector.extract_strided_slice %292 {offsets = [8, 0], sizes = [8, 64], strides = [1, 1]} : vector<64x64xf32> to vector<8x64xf32>
    %302 = vector.broadcast %213 : vector<1x64xf32> to vector<8x64xf32>
    %303 = arith.mulf %301, %302 : vector<8x64xf32>
    %304 = arith.addf %298, %303 : vector<8x64xf32>
    %305 = vector.extract_strided_slice %291 {offsets = [8, 0], sizes = [8, 6], strides = [1, 1]} : vector<64x6xf32> to vector<8x6xf32>
    %306 = arith.addf %300, %305 : vector<8x6xf32>
    %307 = vector.extract_strided_slice %292 {offsets = [16, 0], sizes = [8, 64], strides = [1, 1]} : vector<64x64xf32> to vector<8x64xf32>
    %308 = vector.broadcast %220 : vector<1x64xf32> to vector<8x64xf32>
    %309 = arith.mulf %307, %308 : vector<8x64xf32>
    %310 = arith.addf %304, %309 : vector<8x64xf32>
    %311 = vector.extract_strided_slice %291 {offsets = [16, 0], sizes = [8, 6], strides = [1, 1]} : vector<64x6xf32> to vector<8x6xf32>
    %312 = arith.addf %306, %311 : vector<8x6xf32>
    %313 = vector.extract_strided_slice %292 {offsets = [24, 0], sizes = [8, 64], strides = [1, 1]} : vector<64x64xf32> to vector<8x64xf32>
    %314 = vector.broadcast %227 : vector<1x64xf32> to vector<8x64xf32>
    %315 = arith.mulf %313, %314 : vector<8x64xf32>
    %316 = arith.addf %310, %315 : vector<8x64xf32>
    %317 = vector.extract_strided_slice %291 {offsets = [24, 0], sizes = [8, 6], strides = [1, 1]} : vector<64x6xf32> to vector<8x6xf32>
    %318 = arith.addf %312, %317 : vector<8x6xf32>
    %319 = vector.extract_strided_slice %292 {offsets = [32, 0], sizes = [8, 64], strides = [1, 1]} : vector<64x64xf32> to vector<8x64xf32>
    %320 = vector.broadcast %234 : vector<1x64xf32> to vector<8x64xf32>
    %321 = arith.mulf %319, %320 : vector<8x64xf32>
    %322 = arith.addf %316, %321 : vector<8x64xf32>
    %323 = vector.extract_strided_slice %291 {offsets = [32, 0], sizes = [8, 6], strides = [1, 1]} : vector<64x6xf32> to vector<8x6xf32>
    %324 = arith.addf %318, %323 : vector<8x6xf32>
    %325 = vector.extract_strided_slice %292 {offsets = [40, 0], sizes = [8, 64], strides = [1, 1]} : vector<64x64xf32> to vector<8x64xf32>
    %326 = vector.broadcast %241 : vector<1x64xf32> to vector<8x64xf32>
    %327 = arith.mulf %325, %326 : vector<8x64xf32>
    %328 = arith.addf %322, %327 : vector<8x64xf32>
    %329 = vector.extract_strided_slice %291 {offsets = [40, 0], sizes = [8, 6], strides = [1, 1]} : vector<64x6xf32> to vector<8x6xf32>
    %330 = arith.addf %324, %329 : vector<8x6xf32>
    %331 = vector.extract_strided_slice %292 {offsets = [48, 0], sizes = [8, 64], strides = [1, 1]} : vector<64x64xf32> to vector<8x64xf32>
    %332 = vector.broadcast %248 : vector<1x64xf32> to vector<8x64xf32>
    %333 = arith.mulf %331, %332 : vector<8x64xf32>
    %334 = arith.addf %328, %333 : vector<8x64xf32>
    %335 = vector.extract_strided_slice %291 {offsets = [48, 0], sizes = [8, 6], strides = [1, 1]} : vector<64x6xf32> to vector<8x6xf32>
    %336 = arith.addf %330, %335 : vector<8x6xf32>
    %337 = vector.extract_strided_slice %292 {offsets = [56, 0], sizes = [8, 64], strides = [1, 1]} : vector<64x64xf32> to vector<8x64xf32>
    %338 = vector.broadcast %255 : vector<1x64xf32> to vector<8x64xf32>
    %339 = arith.mulf %337, %338 : vector<8x64xf32>
    %340 = arith.addf %334, %339 : vector<8x64xf32>
    %341 = vector.extract_strided_slice %291 {offsets = [56, 0], sizes = [8, 6], strides = [1, 1]} : vector<64x6xf32> to vector<8x6xf32>
    %342 = arith.addf %336, %341 : vector<8x6xf32>
    %cst_88 = arith.constant dense<0.000000e+00> : vector<8x64xf32>
    %343 = tpu.matmul %340, %193, %cst_88 {dimension_numbers = #tpu.dot_dimension_numbers<[1], [1], [0], [0], [0, 0, 1, 0], [], []>} : vector<8x64xf32>, vector<64x64xf32>, vector<8x64xf32> -> vector<8x64xf32>
    %344 = vector.broadcast %199 : vector<1x64xf32> to vector<8x64xf32>
    %345 = arith.addf %343, %344 : vector<8x64xf32>
    %cst_89 = arith.constant 1.250000e-01 : f32
    %346 = vector.broadcast %cst_89 : f32 to vector<8x6xf32>
    %347 = arith.mulf %342, %346 : vector<8x6xf32>
    %cst_90 = arith.constant dense<0.000000e+00> : vector<8x64xf32>
    %348 = tpu.matmul %6, %187, %cst_90 {dimension_numbers = #tpu.dot_dimension_numbers<[1], [1], [0], [0], [0, 0, 1, 0], [], []>} : vector<8x64xf32>, vector<64x64xf32>, vector<8x64xf32> -> vector<8x64xf32>
    %349 = vector.broadcast %196 : vector<1x64xf32> to vector<8x64xf32>
    %350 = arith.addf %348, %349 : vector<8x64xf32>
    %cst_91 = arith.constant dense<0.000000e+00> : vector<6x64xf32>
    %351 = tpu.matmul %10, %189, %cst_91 {dimension_numbers = #tpu.dot_dimension_numbers<[1], [1], [0], [0], [0, 0, 1, 0], [], []>} : vector<6x64xf32>, vector<64x64xf32>, vector<6x64xf32> -> vector<6x64xf32>
    %352 = vector.broadcast %197 : vector<1x64xf32> to vector<6x64xf32>
    %353 = arith.addf %351, %352 : vector<6x64xf32>
    %cst_92 = arith.constant dense<0.000000e+00> : vector<6x64xf32>
    %354 = tpu.matmul %14, %191, %cst_92 {dimension_numbers = #tpu.dot_dimension_numbers<[1], [1], [0], [0], [0, 0, 1, 0], [], []>} : vector<6x64xf32>, vector<64x64xf32>, vector<6x64xf32> -> vector<6x64xf32>
    %355 = vector.broadcast %198 : vector<1x64xf32> to vector<6x64xf32>
    %356 = arith.addf %354, %355 : vector<6x64xf32>
    %357 = vector.broadcast %206 : vector<1x64xf32> to vector<8x64xf32>
    %358 = arith.mulf %350, %357 : vector<8x64xf32>
    %359 = vector.broadcast %213 : vector<1x64xf32> to vector<8x64xf32>
    %360 = arith.mulf %350, %359 : vector<8x64xf32>
    %361 = vector.broadcast %220 : vector<1x64xf32> to vector<8x64xf32>
    %362 = arith.mulf %350, %361 : vector<8x64xf32>
    %363 = vector.broadcast %227 : vector<1x64xf32> to vector<8x64xf32>
    %364 = arith.mulf %350, %363 : vector<8x64xf32>
    %365 = vector.broadcast %234 : vector<1x64xf32> to vector<8x64xf32>
    %366 = arith.mulf %350, %365 : vector<8x64xf32>
    %367 = vector.broadcast %241 : vector<1x64xf32> to vector<8x64xf32>
    %368 = arith.mulf %350, %367 : vector<8x64xf32>
    %369 = vector.broadcast %248 : vector<1x64xf32> to vector<8x64xf32>
    %370 = arith.mulf %350, %369 : vector<8x64xf32>
    %371 = vector.broadcast %255 : vector<1x64xf32> to vector<8x64xf32>
    %372 = arith.mulf %350, %371 : vector<8x64xf32>
    %373 = tpu.concatenate %358, %360, %362, %364, %366, %368, %370, %372 in 0 : vector<8x64xf32>, vector<8x64xf32>, vector<8x64xf32>, vector<8x64xf32>, vector<8x64xf32>, vector<8x64xf32>, vector<8x64xf32>, vector<8x64xf32> -> vector<64x64xf32>
    %cst_93 = arith.constant dense<0.000000e+00> : vector<64x6xf32>
    %374 = tpu.matmul %373, %353, %cst_93 {dimension_numbers = #tpu.dot_dimension_numbers<[1], [1], [0], [0], [0, 0, 1, 0], [], []>} : vector<64x64xf32>, vector<6x64xf32>, vector<64x6xf32> -> vector<64x6xf32>
    %cst_94 = arith.constant dense<0xFF800000> : vector<64xf32>
    %375 = vector.multi_reduction <maximumf>, %374, %cst_94 [1] : vector<64x6xf32> to vector<64xf32>
    %376 = vector.shape_cast %375 : vector<64xf32> to vector<64x1xf32>
    %377 = vector.broadcast %376 : vector<64x1xf32> to vector<64x6xf32>
    %378 = arith.subf %374, %377 : vector<64x6xf32>
    %379 = math.exp %378 : vector<64x6xf32>
    %cst_95 = arith.constant dense<0.000000e+00> : vector<64xf32>
    %380 = vector.multi_reduction <add>, %379, %cst_95 [1] : vector<64x6xf32> to vector<64xf32>
    %381 = vector.shape_cast %380 : vector<64xf32> to vector<64x1xf32>
    %382 = vector.broadcast %381 : vector<64x1xf32> to vector<64x6xf32>
    %383 = arith.divf %379, %382 : vector<64x6xf32>
    %cst_96 = arith.constant dense<0.000000e+00> : vector<64x64xf32>
    %384 = tpu.matmul %383, %356, %cst_96 {dimension_numbers = #tpu.dot_dimension_numbers<[1], [0], [0], [1], [0, 0, 1, 1], [], []>} : vector<64x6xf32>, vector<6x64xf32>, vector<64x64xf32> -> vector<64x64xf32>
    %cst_97 = arith.constant 0.000000e+00 : f32
    %385 = vector.broadcast %cst_97 : f32 to vector<8x64xf32>
    %cst_98 = arith.constant 0.000000e+00 : f32
    %386 = vector.broadcast %cst_98 : f32 to vector<8x6xf32>
    %387 = vector.extract_strided_slice %384 {offsets = [0, 0], sizes = [8, 64], strides = [1, 1]} : vector<64x64xf32> to vector<8x64xf32>
    %388 = vector.broadcast %206 : vector<1x64xf32> to vector<8x64xf32>
    %389 = arith.mulf %387, %388 : vector<8x64xf32>
    %390 = arith.addf %385, %389 : vector<8x64xf32>
    %391 = vector.extract_strided_slice %383 {offsets = [0, 0], sizes = [8, 6], strides = [1, 1]} : vector<64x6xf32> to vector<8x6xf32>
    %392 = arith.addf %386, %391 : vector<8x6xf32>
    %393 = vector.extract_strided_slice %384 {offsets = [8, 0], sizes = [8, 64], strides = [1, 1]} : vector<64x64xf32> to vector<8x64xf32>
    %394 = vector.broadcast %213 : vector<1x64xf32> to vector<8x64xf32>
    %395 = arith.mulf %393, %394 : vector<8x64xf32>
    %396 = arith.addf %390, %395 : vector<8x64xf32>
    %397 = vector.extract_strided_slice %383 {offsets = [8, 0], sizes = [8, 6], strides = [1, 1]} : vector<64x6xf32> to vector<8x6xf32>
    %398 = arith.addf %392, %397 : vector<8x6xf32>
    %399 = vector.extract_strided_slice %384 {offsets = [16, 0], sizes = [8, 64], strides = [1, 1]} : vector<64x64xf32> to vector<8x64xf32>
    %400 = vector.broadcast %220 : vector<1x64xf32> to vector<8x64xf32>
    %401 = arith.mulf %399, %400 : vector<8x64xf32>
    %402 = arith.addf %396, %401 : vector<8x64xf32>
    %403 = vector.extract_strided_slice %383 {offsets = [16, 0], sizes = [8, 6], strides = [1, 1]} : vector<64x6xf32> to vector<8x6xf32>
    %404 = arith.addf %398, %403 : vector<8x6xf32>
    %405 = vector.extract_strided_slice %384 {offsets = [24, 0], sizes = [8, 64], strides = [1, 1]} : vector<64x64xf32> to vector<8x64xf32>
    %406 = vector.broadcast %227 : vector<1x64xf32> to vector<8x64xf32>
    %407 = arith.mulf %405, %406 : vector<8x64xf32>
    %408 = arith.addf %402, %407 : vector<8x64xf32>
    %409 = vector.extract_strided_slice %383 {offsets = [24, 0], sizes = [8, 6], strides = [1, 1]} : vector<64x6xf32> to vector<8x6xf32>
    %410 = arith.addf %404, %409 : vector<8x6xf32>
    %411 = vector.extract_strided_slice %384 {offsets = [32, 0], sizes = [8, 64], strides = [1, 1]} : vector<64x64xf32> to vector<8x64xf32>
    %412 = vector.broadcast %234 : vector<1x64xf32> to vector<8x64xf32>
    %413 = arith.mulf %411, %412 : vector<8x64xf32>
    %414 = arith.addf %408, %413 : vector<8x64xf32>
    %415 = vector.extract_strided_slice %383 {offsets = [32, 0], sizes = [8, 6], strides = [1, 1]} : vector<64x6xf32> to vector<8x6xf32>
    %416 = arith.addf %410, %415 : vector<8x6xf32>
    %417 = vector.extract_strided_slice %384 {offsets = [40, 0], sizes = [8, 64], strides = [1, 1]} : vector<64x64xf32> to vector<8x64xf32>
    %418 = vector.broadcast %241 : vector<1x64xf32> to vector<8x64xf32>
    %419 = arith.mulf %417, %418 : vector<8x64xf32>
    %420 = arith.addf %414, %419 : vector<8x64xf32>
    %421 = vector.extract_strided_slice %383 {offsets = [40, 0], sizes = [8, 6], strides = [1, 1]} : vector<64x6xf32> to vector<8x6xf32>
    %422 = arith.addf %416, %421 : vector<8x6xf32>
    %423 = vector.extract_strided_slice %384 {offsets = [48, 0], sizes = [8, 64], strides = [1, 1]} : vector<64x64xf32> to vector<8x64xf32>
    %424 = vector.broadcast %248 : vector<1x64xf32> to vector<8x64xf32>
    %425 = arith.mulf %423, %424 : vector<8x64xf32>
    %426 = arith.addf %420, %425 : vector<8x64xf32>
    %427 = vector.extract_strided_slice %383 {offsets = [48, 0], sizes = [8, 6], strides = [1, 1]} : vector<64x6xf32> to vector<8x6xf32>
    %428 = arith.addf %422, %427 : vector<8x6xf32>
    %429 = vector.extract_strided_slice %384 {offsets = [56, 0], sizes = [8, 64], strides = [1, 1]} : vector<64x64xf32> to vector<8x64xf32>
    %430 = vector.broadcast %255 : vector<1x64xf32> to vector<8x64xf32>
    %431 = arith.mulf %429, %430 : vector<8x64xf32>
    %432 = arith.addf %426, %431 : vector<8x64xf32>
    %433 = vector.extract_strided_slice %383 {offsets = [56, 0], sizes = [8, 6], strides = [1, 1]} : vector<64x6xf32> to vector<8x6xf32>
    %434 = arith.addf %428, %433 : vector<8x6xf32>
    %cst_99 = arith.constant dense<0.000000e+00> : vector<8x64xf32>
    %435 = tpu.matmul %432, %193, %cst_99 {dimension_numbers = #tpu.dot_dimension_numbers<[1], [1], [0], [0], [0, 0, 1, 0], [], []>} : vector<8x64xf32>, vector<64x64xf32>, vector<8x64xf32> -> vector<8x64xf32>
    %436 = vector.broadcast %199 : vector<1x64xf32> to vector<8x64xf32>
    %437 = arith.addf %435, %436 : vector<8x64xf32>
    %cst_100 = arith.constant 1.250000e-01 : f32
    %438 = vector.broadcast %cst_100 : f32 to vector<8x6xf32>
    %439 = arith.mulf %434, %438 : vector<8x6xf32>
    %440 = vector.shape_cast %345 : vector<8x64xf32> to vector<8x1x64xf32>
    %441 = vector.shape_cast %437 : vector<8x64xf32> to vector<8x1x64xf32>
    %442 = tpu.concatenate %440, %441 in 1 : vector<8x1x64xf32>, vector<8x1x64xf32> -> vector<8x2x64xf32>
    %c0_101 = arith.constant 0 : index
    %c0_102 = arith.constant 0 : index
    %c0_103 = arith.constant 0 : index
    %443 = vector.load %arg10[%c0_101, %c0_102, %c0_103] : memref<8x2x64xf32, #tpu.memory_space<vmem>>, vector<8x2x64xf32>
    tpu.vector_store %arg10[%c0_101, %c0_102, %c0_103], %442 {strides = array<i32>} : memref<8x2x64xf32, #tpu.memory_space<vmem>>, vector<8x2x64xf32>,
    %444 = vector.shape_cast %347 : vector<8x6xf32> to vector<1x8x6xf32>
    %445 = vector.shape_cast %439 : vector<8x6xf32> to vector<1x8x6xf32>
    %446 = tpu.concatenate %444, %445 in 0 : vector<1x8x6xf32>, vector<1x8x6xf32> -> vector<2x8x6xf32>
    %c0_104 = arith.constant 0 : index
    %c0_105 = arith.constant 0 : index
    %c0_106 = arith.constant 0 : index
    %447 = vector.load %arg11[%c0_104, %c0_105, %c0_106] : memref<2x8x6xf32, #tpu.memory_space<vmem>>, vector<2x8x6xf32>
    tpu.vector_store %arg11[%c0_104, %c0_105, %c0_106], %446 {strides = array<i32>} : memref<2x8x6xf32, #tpu.memory_space<vmem>>, vector<2x8x6xf32>,
    %c2 = arith.constant 2 : index
    %c0_107 = arith.constant 0 : index
    %c0_108 = arith.constant 0 : index
    %448 = vector.load %arg3[%c2, %c0_107, %c0_108] : memref<3x64x64xf32, #tpu.memory_space<vmem>>, vector<1x64x64xf32>
    %449 = vector.shape_cast %448 : vector<1x64x64xf32> to vector<64x64xf32>
    %c2_109 = arith.constant 2 : index
    %c0_110 = arith.constant 0 : index
    %c0_111 = arith.constant 0 : index
    %450 = vector.load %arg4[%c2_109, %c0_110, %c0_111] : memref<3x64x64xf32, #tpu.memory_space<vmem>>, vector<1x64x64xf32>
    %451 = vector.shape_cast %450 : vector<1x64x64xf32> to vector<64x64xf32>
    %c2_112 = arith.constant 2 : index
    %c0_113 = arith.constant 0 : index
    %c0_114 = arith.constant 0 : index
    %452 = vector.load %arg5[%c2_112, %c0_113, %c0_114] : memref<3x64x64xf32, #tpu.memory_space<vmem>>, vector<1x64x64xf32>
    %453 = vector.shape_cast %452 : vector<1x64x64xf32> to vector<64x64xf32>
    %c2_115 = arith.constant 2 : index
    %c0_116 = arith.constant 0 : index
    %c0_117 = arith.constant 0 : index
    %454 = vector.load %arg6[%c2_115, %c0_116, %c0_117] : memref<3x64x64xf32, #tpu.memory_space<vmem>>, vector<1x64x64xf32>
    %455 = vector.shape_cast %454 : vector<1x64x64xf32> to vector<64x64xf32>
    %c2_118 = arith.constant 2 : index
    %c0_119 = arith.constant 0 : index
    %c0_120 = arith.constant 0 : index
    %456 = vector.load %arg7[%c2_118, %c0_119, %c0_120] : memref<3x8x64xf32, #tpu.memory_space<vmem>>, vector<1x8x64xf32>
    %457 = vector.shape_cast %456 : vector<1x8x64xf32> to vector<8x64xf32>
    %458 = vector.extract_strided_slice %457 {offsets = [0, 0], sizes = [1, 64], strides = [1, 1]} : vector<8x64xf32> to vector<1x64xf32>
    %459 = vector.extract_strided_slice %457 {offsets = [1, 0], sizes = [1, 64], strides = [1, 1]} : vector<8x64xf32> to vector<1x64xf32>
    %460 = vector.extract_strided_slice %457 {offsets = [2, 0], sizes = [1, 64], strides = [1, 1]} : vector<8x64xf32> to vector<1x64xf32>
    %461 = vector.extract_strided_slice %457 {offsets = [3, 0], sizes = [1, 64], strides = [1, 1]} : vector<8x64xf32> to vector<1x64xf32>
    %462 = vector.extract_strided_slice %457 {offsets = [4, 0], sizes = [1, 64], strides = [1, 1]} : vector<8x64xf32> to vector<1x64xf32>
    %463 = vector.extract_strided_slice %457 {offsets = [5, 0], sizes = [1, 64], strides = [1, 1]} : vector<8x64xf32> to vector<1x64xf32>
    %c0_i32_121 = arith.constant 0 : i32
    %464 = vector.broadcast %c0_i32_121 : i32 to vector<1x64xi32>
    %465 = arith.cmpi sge, %15, %464 : vector<1x64xi32>
    %c4_i32 = arith.constant 4 : i32
    %466 = vector.broadcast %c4_i32 : i32 to vector<1x64xi32>
    %467 = arith.cmpi slt, %15, %466 : vector<1x64xi32>
    %468 = arith.andi %465, %467 : vector<1x64xi1>
    %469 = arith.extui %468 : vector<1x64xi1> to vector<1x64xi32>
    %470 = arith.sitofp %469 : vector<1x64xi32> to vector<1x64xf32>
    %c4_i32_122 = arith.constant 4 : i32
    %471 = vector.broadcast %c4_i32_122 : i32 to vector<1x64xi32>
    %472 = arith.cmpi sge, %15, %471 : vector<1x64xi32>
    %c8_i32_123 = arith.constant 8 : i32
    %473 = vector.broadcast %c8_i32_123 : i32 to vector<1x64xi32>
    %474 = arith.cmpi slt, %15, %473 : vector<1x64xi32>
    %475 = arith.andi %472, %474 : vector<1x64xi1>
    %476 = arith.extui %475 : vector<1x64xi1> to vector<1x64xi32>
    %477 = arith.sitofp %476 : vector<1x64xi32> to vector<1x64xf32>
    %c8_i32_124 = arith.constant 8 : i32
    %478 = vector.broadcast %c8_i32_124 : i32 to vector<1x64xi32>
    %479 = arith.cmpi sge, %15, %478 : vector<1x64xi32>
    %c12_i32 = arith.constant 12 : i32
    %480 = vector.broadcast %c12_i32 : i32 to vector<1x64xi32>
    %481 = arith.cmpi slt, %15, %480 : vector<1x64xi32>
    %482 = arith.andi %479, %481 : vector<1x64xi1>
    %483 = arith.extui %482 : vector<1x64xi1> to vector<1x64xi32>
    %484 = arith.sitofp %483 : vector<1x64xi32> to vector<1x64xf32>
    %c12_i32_125 = arith.constant 12 : i32
    %485 = vector.broadcast %c12_i32_125 : i32 to vector<1x64xi32>
    %486 = arith.cmpi sge, %15, %485 : vector<1x64xi32>
    %c16_i32_126 = arith.constant 16 : i32
    %487 = vector.broadcast %c16_i32_126 : i32 to vector<1x64xi32>
    %488 = arith.cmpi slt, %15, %487 : vector<1x64xi32>
    %489 = arith.andi %486, %488 : vector<1x64xi1>
    %490 = arith.extui %489 : vector<1x64xi1> to vector<1x64xi32>
    %491 = arith.sitofp %490 : vector<1x64xi32> to vector<1x64xf32>
    %c16_i32_127 = arith.constant 16 : i32
    %492 = vector.broadcast %c16_i32_127 : i32 to vector<1x64xi32>
    %493 = arith.cmpi sge, %15, %492 : vector<1x64xi32>
    %c20_i32 = arith.constant 20 : i32
    %494 = vector.broadcast %c20_i32 : i32 to vector<1x64xi32>
    %495 = arith.cmpi slt, %15, %494 : vector<1x64xi32>
    %496 = arith.andi %493, %495 : vector<1x64xi1>
    %497 = arith.extui %496 : vector<1x64xi1> to vector<1x64xi32>
    %498 = arith.sitofp %497 : vector<1x64xi32> to vector<1x64xf32>
    %c20_i32_128 = arith.constant 20 : i32
    %499 = vector.broadcast %c20_i32_128 : i32 to vector<1x64xi32>
    %500 = arith.cmpi sge, %15, %499 : vector<1x64xi32>
    %c24_i32_129 = arith.constant 24 : i32
    %501 = vector.broadcast %c24_i32_129 : i32 to vector<1x64xi32>
    %502 = arith.cmpi slt, %15, %501 : vector<1x64xi32>
    %503 = arith.andi %500, %502 : vector<1x64xi1>
    %504 = arith.extui %503 : vector<1x64xi1> to vector<1x64xi32>
    %505 = arith.sitofp %504 : vector<1x64xi32> to vector<1x64xf32>
    %c24_i32_130 = arith.constant 24 : i32
    %506 = vector.broadcast %c24_i32_130 : i32 to vector<1x64xi32>
    %507 = arith.cmpi sge, %15, %506 : vector<1x64xi32>
    %c28_i32 = arith.constant 28 : i32
    %508 = vector.broadcast %c28_i32 : i32 to vector<1x64xi32>
    %509 = arith.cmpi slt, %15, %508 : vector<1x64xi32>
    %510 = arith.andi %507, %509 : vector<1x64xi1>
    %511 = arith.extui %510 : vector<1x64xi1> to vector<1x64xi32>
    %512 = arith.sitofp %511 : vector<1x64xi32> to vector<1x64xf32>
    %c28_i32_131 = arith.constant 28 : i32
    %513 = vector.broadcast %c28_i32_131 : i32 to vector<1x64xi32>
    %514 = arith.cmpi sge, %15, %513 : vector<1x64xi32>
    %c32_i32_132 = arith.constant 32 : i32
    %515 = vector.broadcast %c32_i32_132 : i32 to vector<1x64xi32>
    %516 = arith.cmpi slt, %15, %515 : vector<1x64xi32>
    %517 = arith.andi %514, %516 : vector<1x64xi1>
    %518 = arith.extui %517 : vector<1x64xi1> to vector<1x64xi32>
    %519 = arith.sitofp %518 : vector<1x64xi32> to vector<1x64xf32>
    %c32_i32_133 = arith.constant 32 : i32
    %520 = vector.broadcast %c32_i32_133 : i32 to vector<1x64xi32>
    %521 = arith.cmpi sge, %15, %520 : vector<1x64xi32>
    %c36_i32 = arith.constant 36 : i32
    %522 = vector.broadcast %c36_i32 : i32 to vector<1x64xi32>
    %523 = arith.cmpi slt, %15, %522 : vector<1x64xi32>
    %524 = arith.andi %521, %523 : vector<1x64xi1>
    %525 = arith.extui %524 : vector<1x64xi1> to vector<1x64xi32>
    %526 = arith.sitofp %525 : vector<1x64xi32> to vector<1x64xf32>
    %c36_i32_134 = arith.constant 36 : i32
    %527 = vector.broadcast %c36_i32_134 : i32 to vector<1x64xi32>
    %528 = arith.cmpi sge, %15, %527 : vector<1x64xi32>
    %c40_i32_135 = arith.constant 40 : i32
    %529 = vector.broadcast %c40_i32_135 : i32 to vector<1x64xi32>
    %530 = arith.cmpi slt, %15, %529 : vector<1x64xi32>
    %531 = arith.andi %528, %530 : vector<1x64xi1>
    %532 = arith.extui %531 : vector<1x64xi1> to vector<1x64xi32>
    %533 = arith.sitofp %532 : vector<1x64xi32> to vector<1x64xf32>
    %c40_i32_136 = arith.constant 40 : i32
    %534 = vector.broadcast %c40_i32_136 : i32 to vector<1x64xi32>
    %535 = arith.cmpi sge, %15, %534 : vector<1x64xi32>
    %c44_i32 = arith.constant 44 : i32
    %536 = vector.broadcast %c44_i32 : i32 to vector<1x64xi32>
    %537 = arith.cmpi slt, %15, %536 : vector<1x64xi32>
    %538 = arith.andi %535, %537 : vector<1x64xi1>
    %539 = arith.extui %538 : vector<1x64xi1> to vector<1x64xi32>
    %540 = arith.sitofp %539 : vector<1x64xi32> to vector<1x64xf32>
    %c44_i32_137 = arith.constant 44 : i32
    %541 = vector.broadcast %c44_i32_137 : i32 to vector<1x64xi32>
    %542 = arith.cmpi sge, %15, %541 : vector<1x64xi32>
    %c48_i32_138 = arith.constant 48 : i32
    %543 = vector.broadcast %c48_i32_138 : i32 to vector<1x64xi32>
    %544 = arith.cmpi slt, %15, %543 : vector<1x64xi32>
    %545 = arith.andi %542, %544 : vector<1x64xi1>
    %546 = arith.extui %545 : vector<1x64xi1> to vector<1x64xi32>
    %547 = arith.sitofp %546 : vector<1x64xi32> to vector<1x64xf32>
    %c48_i32_139 = arith.constant 48 : i32
    %548 = vector.broadcast %c48_i32_139 : i32 to vector<1x64xi32>
    %549 = arith.cmpi sge, %15, %548 : vector<1x64xi32>
    %c52_i32 = arith.constant 52 : i32
    %550 = vector.broadcast %c52_i32 : i32 to vector<1x64xi32>
    %551 = arith.cmpi slt, %15, %550 : vector<1x64xi32>
    %552 = arith.andi %549, %551 : vector<1x64xi1>
    %553 = arith.extui %552 : vector<1x64xi1> to vector<1x64xi32>
    %554 = arith.sitofp %553 : vector<1x64xi32> to vector<1x64xf32>
    %c52_i32_140 = arith.constant 52 : i32
    %555 = vector.broadcast %c52_i32_140 : i32 to vector<1x64xi32>
    %556 = arith.cmpi sge, %15, %555 : vector<1x64xi32>
    %c56_i32_141 = arith.constant 56 : i32
    %557 = vector.broadcast %c56_i32_141 : i32 to vector<1x64xi32>
    %558 = arith.cmpi slt, %15, %557 : vector<1x64xi32>
    %559 = arith.andi %556, %558 : vector<1x64xi1>
    %560 = arith.extui %559 : vector<1x64xi1> to vector<1x64xi32>
    %561 = arith.sitofp %560 : vector<1x64xi32> to vector<1x64xf32>
    %c56_i32_142 = arith.constant 56 : i32
    %562 = vector.broadcast %c56_i32_142 : i32 to vector<1x64xi32>
    %563 = arith.cmpi sge, %15, %562 : vector<1x64xi32>
    %c60_i32 = arith.constant 60 : i32
    %564 = vector.broadcast %c60_i32 : i32 to vector<1x64xi32>
    %565 = arith.cmpi slt, %15, %564 : vector<1x64xi32>
    %566 = arith.andi %563, %565 : vector<1x64xi1>
    %567 = arith.extui %566 : vector<1x64xi1> to vector<1x64xi32>
    %568 = arith.sitofp %567 : vector<1x64xi32> to vector<1x64xf32>
    %c60_i32_143 = arith.constant 60 : i32
    %569 = vector.broadcast %c60_i32_143 : i32 to vector<1x64xi32>
    %570 = arith.cmpi sge, %15, %569 : vector<1x64xi32>
    %c64_i32_144 = arith.constant 64 : i32
    %571 = vector.broadcast %c64_i32_144 : i32 to vector<1x64xi32>
    %572 = arith.cmpi slt, %15, %571 : vector<1x64xi32>
    %573 = arith.andi %570, %572 : vector<1x64xi1>
    %574 = arith.extui %573 : vector<1x64xi1> to vector<1x64xi32>
    %575 = arith.sitofp %574 : vector<1x64xi32> to vector<1x64xf32>
    %cst_145 = arith.constant dense<0.000000e+00> : vector<8x64xf32>
    %576 = tpu.matmul %4, %449, %cst_145 {dimension_numbers = #tpu.dot_dimension_numbers<[1], [1], [0], [0], [0, 0, 1, 0], [], []>} : vector<8x64xf32>, vector<64x64xf32>, vector<8x64xf32> -> vector<8x64xf32>
    %577 = vector.broadcast %458 : vector<1x64xf32> to vector<8x64xf32>
    %578 = arith.addf %576, %577 : vector<8x64xf32>
    %cst_146 = arith.constant dense<0.000000e+00> : vector<6x64xf32>
    %579 = tpu.matmul %8, %451, %cst_146 {dimension_numbers = #tpu.dot_dimension_numbers<[1], [1], [0], [0], [0, 0, 1, 0], [], []>} : vector<6x64xf32>, vector<64x64xf32>, vector<6x64xf32> -> vector<6x64xf32>
    %580 = vector.broadcast %459 : vector<1x64xf32> to vector<6x64xf32>
    %581 = arith.addf %579, %580 : vector<6x64xf32>
    %cst_147 = arith.constant dense<0.000000e+00> : vector<6x64xf32>
    %582 = tpu.matmul %12, %453, %cst_147 {dimension_numbers = #tpu.dot_dimension_numbers<[1], [1], [0], [0], [0, 0, 1, 0], [], []>} : vector<6x64xf32>, vector<64x64xf32>, vector<6x64xf32> -> vector<6x64xf32>
    %583 = vector.broadcast %460 : vector<1x64xf32> to vector<6x64xf32>
    %584 = arith.addf %582, %583 : vector<6x64xf32>
    %585 = tpu.concatenate %581, %462 in 0 : vector<6x64xf32>, vector<1x64xf32> -> vector<7x64xf32>
    %586 = tpu.concatenate %584, %463 in 0 : vector<6x64xf32>, vector<1x64xf32> -> vector<7x64xf32>
    %cst_148 = arith.constant 0.000000e+00 : f32
    %587 = vector.broadcast %cst_148 : f32 to vector<1x64xf32>
    %588 = tpu.concatenate %585, %587 in 0 : vector<7x64xf32>, vector<1x64xf32> -> vector<8x64xf32>
    %589 = tpu.concatenate %586, %587 in 0 : vector<7x64xf32>, vector<1x64xf32> -> vector<8x64xf32>
    %590 = vector.broadcast %470 : vector<1x64xf32> to vector<8x64xf32>
    %591 = arith.mulf %578, %590 : vector<8x64xf32>
    %592 = vector.broadcast %477 : vector<1x64xf32> to vector<8x64xf32>
    %593 = arith.mulf %578, %592 : vector<8x64xf32>
    %594 = vector.broadcast %484 : vector<1x64xf32> to vector<8x64xf32>
    %595 = arith.mulf %578, %594 : vector<8x64xf32>
    %596 = vector.broadcast %491 : vector<1x64xf32> to vector<8x64xf32>
    %597 = arith.mulf %578, %596 : vector<8x64xf32>
    %598 = vector.broadcast %498 : vector<1x64xf32> to vector<8x64xf32>
    %599 = arith.mulf %578, %598 : vector<8x64xf32>
    %600 = vector.broadcast %505 : vector<1x64xf32> to vector<8x64xf32>
    %601 = arith.mulf %578, %600 : vector<8x64xf32>
    %602 = vector.broadcast %512 : vector<1x64xf32> to vector<8x64xf32>
    %603 = arith.mulf %578, %602 : vector<8x64xf32>
    %604 = vector.broadcast %519 : vector<1x64xf32> to vector<8x64xf32>
    %605 = arith.mulf %578, %604 : vector<8x64xf32>
    %606 = vector.broadcast %526 : vector<1x64xf32> to vector<8x64xf32>
    %607 = arith.mulf %578, %606 : vector<8x64xf32>
    %608 = vector.broadcast %533 : vector<1x64xf32> to vector<8x64xf32>
    %609 = arith.mulf %578, %608 : vector<8x64xf32>
    %610 = vector.broadcast %540 : vector<1x64xf32> to vector<8x64xf32>
    %611 = arith.mulf %578, %610 : vector<8x64xf32>
    %612 = vector.broadcast %547 : vector<1x64xf32> to vector<8x64xf32>
    %613 = arith.mulf %578, %612 : vector<8x64xf32>
    %614 = vector.broadcast %554 : vector<1x64xf32> to vector<8x64xf32>
    %615 = arith.mulf %578, %614 : vector<8x64xf32>
    %616 = vector.broadcast %561 : vector<1x64xf32> to vector<8x64xf32>
    %617 = arith.mulf %578, %616 : vector<8x64xf32>
    %618 = vector.broadcast %568 : vector<1x64xf32> to vector<8x64xf32>
    %619 = arith.mulf %578, %618 : vector<8x64xf32>
    %620 = vector.broadcast %575 : vector<1x64xf32> to vector<8x64xf32>
    %621 = arith.mulf %578, %620 : vector<8x64xf32>
    %622 = tpu.concatenate %591, %593, %595, %597, %599, %601, %603, %605, %607, %609, %611, %613, %615, %617, %619, %621 in 0 : vector<8x64xf32>, vector<8x64xf32>, vector<8x64xf32>, vector<8x64xf32>, vector<8x64xf32>, vector<8x64xf32>, vector<8x64xf32>, vector<8x64xf32>, vector<8x64xf32>, vector<8x64xf32>, vector<8x64xf32>, vector<8x64xf32>, vector<8x64xf32>, vector<8x64xf32>, vector<8x64xf32>, vector<8x64xf32> -> vector<128x64xf32>
    %cst_149 = arith.constant dense<0.000000e+00> : vector<128x8xf32>
    %623 = tpu.matmul %622, %588, %cst_149 {dimension_numbers = #tpu.dot_dimension_numbers<[1], [1], [0], [0], [0, 0, 1, 0], [], []>} : vector<128x64xf32>, vector<8x64xf32>, vector<128x8xf32> -> vector<128x8xf32>
    %cst_150 = arith.constant dense<0xFF800000> : vector<128xf32>
    %624 = vector.multi_reduction <maximumf>, %623, %cst_150 [1] : vector<128x8xf32> to vector<128xf32>
    %625 = vector.shape_cast %624 : vector<128xf32> to vector<128x1xf32>
    %626 = vector.broadcast %625 : vector<128x1xf32> to vector<128x8xf32>
    %627 = arith.subf %623, %626 : vector<128x8xf32>
    %628 = math.exp %627 : vector<128x8xf32>
    %cst_151 = arith.constant dense<0.000000e+00> : vector<128xf32>
    %629 = vector.multi_reduction <add>, %628, %cst_151 [1] : vector<128x8xf32> to vector<128xf32>
    %630 = vector.shape_cast %629 : vector<128xf32> to vector<128x1xf32>
    %631 = vector.broadcast %630 : vector<128x1xf32> to vector<128x8xf32>
    %632 = arith.divf %628, %631 : vector<128x8xf32>
    %cst_152 = arith.constant dense<0.000000e+00> : vector<128x64xf32>
    %633 = tpu.matmul %632, %589, %cst_152 {dimension_numbers = #tpu.dot_dimension_numbers<[1], [0], [0], [1], [0, 0, 1, 1], [], []>} : vector<128x8xf32>, vector<8x64xf32>, vector<128x64xf32> -> vector<128x64xf32>
    %cst_153 = arith.constant 0.000000e+00 : f32
    %634 = vector.broadcast %cst_153 : f32 to vector<8x64xf32>
    %cst_154 = arith.constant 0.000000e+00 : f32
    %635 = vector.broadcast %cst_154 : f32 to vector<8x8xf32>
    %636 = vector.extract_strided_slice %633 {offsets = [0, 0], sizes = [8, 64], strides = [1, 1]} : vector<128x64xf32> to vector<8x64xf32>
    %637 = vector.broadcast %470 : vector<1x64xf32> to vector<8x64xf32>
    %638 = arith.mulf %636, %637 : vector<8x64xf32>
    %639 = arith.addf %634, %638 : vector<8x64xf32>
    %640 = vector.extract_strided_slice %632 {offsets = [0, 0], sizes = [8, 8], strides = [1, 1]} : vector<128x8xf32> to vector<8x8xf32>
    %641 = arith.addf %635, %640 : vector<8x8xf32>
    %642 = vector.extract_strided_slice %633 {offsets = [8, 0], sizes = [8, 64], strides = [1, 1]} : vector<128x64xf32> to vector<8x64xf32>
    %643 = vector.broadcast %477 : vector<1x64xf32> to vector<8x64xf32>
    %644 = arith.mulf %642, %643 : vector<8x64xf32>
    %645 = arith.addf %639, %644 : vector<8x64xf32>
    %646 = vector.extract_strided_slice %632 {offsets = [8, 0], sizes = [8, 8], strides = [1, 1]} : vector<128x8xf32> to vector<8x8xf32>
    %647 = arith.addf %641, %646 : vector<8x8xf32>
    %648 = vector.extract_strided_slice %633 {offsets = [16, 0], sizes = [8, 64], strides = [1, 1]} : vector<128x64xf32> to vector<8x64xf32>
    %649 = vector.broadcast %484 : vector<1x64xf32> to vector<8x64xf32>
    %650 = arith.mulf %648, %649 : vector<8x64xf32>
    %651 = arith.addf %645, %650 : vector<8x64xf32>
    %652 = vector.extract_strided_slice %632 {offsets = [16, 0], sizes = [8, 8], strides = [1, 1]} : vector<128x8xf32> to vector<8x8xf32>
    %653 = arith.addf %647, %652 : vector<8x8xf32>
    %654 = vector.extract_strided_slice %633 {offsets = [24, 0], sizes = [8, 64], strides = [1, 1]} : vector<128x64xf32> to vector<8x64xf32>
    %655 = vector.broadcast %491 : vector<1x64xf32> to vector<8x64xf32>
    %656 = arith.mulf %654, %655 : vector<8x64xf32>
    %657 = arith.addf %651, %656 : vector<8x64xf32>
    %658 = vector.extract_strided_slice %632 {offsets = [24, 0], sizes = [8, 8], strides = [1, 1]} : vector<128x8xf32> to vector<8x8xf32>
    %659 = arith.addf %653, %658 : vector<8x8xf32>
    %660 = vector.extract_strided_slice %633 {offsets = [32, 0], sizes = [8, 64], strides = [1, 1]} : vector<128x64xf32> to vector<8x64xf32>
    %661 = vector.broadcast %498 : vector<1x64xf32> to vector<8x64xf32>
    %662 = arith.mulf %660, %661 : vector<8x64xf32>
    %663 = arith.addf %657, %662 : vector<8x64xf32>
    %664 = vector.extract_strided_slice %632 {offsets = [32, 0], sizes = [8, 8], strides = [1, 1]} : vector<128x8xf32> to vector<8x8xf32>
    %665 = arith.addf %659, %664 : vector<8x8xf32>
    %666 = vector.extract_strided_slice %633 {offsets = [40, 0], sizes = [8, 64], strides = [1, 1]} : vector<128x64xf32> to vector<8x64xf32>
    %667 = vector.broadcast %505 : vector<1x64xf32> to vector<8x64xf32>
    %668 = arith.mulf %666, %667 : vector<8x64xf32>
    %669 = arith.addf %663, %668 : vector<8x64xf32>
    %670 = vector.extract_strided_slice %632 {offsets = [40, 0], sizes = [8, 8], strides = [1, 1]} : vector<128x8xf32> to vector<8x8xf32>
    %671 = arith.addf %665, %670 : vector<8x8xf32>
    %672 = vector.extract_strided_slice %633 {offsets = [48, 0], sizes = [8, 64], strides = [1, 1]} : vector<128x64xf32> to vector<8x64xf32>
    %673 = vector.broadcast %512 : vector<1x64xf32> to vector<8x64xf32>
    %674 = arith.mulf %672, %673 : vector<8x64xf32>
    %675 = arith.addf %669, %674 : vector<8x64xf32>
    %676 = vector.extract_strided_slice %632 {offsets = [48, 0], sizes = [8, 8], strides = [1, 1]} : vector<128x8xf32> to vector<8x8xf32>
    %677 = arith.addf %671, %676 : vector<8x8xf32>
    %678 = vector.extract_strided_slice %633 {offsets = [56, 0], sizes = [8, 64], strides = [1, 1]} : vector<128x64xf32> to vector<8x64xf32>
    %679 = vector.broadcast %519 : vector<1x64xf32> to vector<8x64xf32>
    %680 = arith.mulf %678, %679 : vector<8x64xf32>
    %681 = arith.addf %675, %680 : vector<8x64xf32>
    %682 = vector.extract_strided_slice %632 {offsets = [56, 0], sizes = [8, 8], strides = [1, 1]} : vector<128x8xf32> to vector<8x8xf32>
    %683 = arith.addf %677, %682 : vector<8x8xf32>
    %684 = vector.extract_strided_slice %633 {offsets = [64, 0], sizes = [8, 64], strides = [1, 1]} : vector<128x64xf32> to vector<8x64xf32>
    %685 = vector.broadcast %526 : vector<1x64xf32> to vector<8x64xf32>
    %686 = arith.mulf %684, %685 : vector<8x64xf32>
    %687 = arith.addf %681, %686 : vector<8x64xf32>
    %688 = vector.extract_strided_slice %632 {offsets = [64, 0], sizes = [8, 8], strides = [1, 1]} : vector<128x8xf32> to vector<8x8xf32>
    %689 = arith.addf %683, %688 : vector<8x8xf32>
    %690 = vector.extract_strided_slice %633 {offsets = [72, 0], sizes = [8, 64], strides = [1, 1]} : vector<128x64xf32> to vector<8x64xf32>
    %691 = vector.broadcast %533 : vector<1x64xf32> to vector<8x64xf32>
    %692 = arith.mulf %690, %691 : vector<8x64xf32>
    %693 = arith.addf %687, %692 : vector<8x64xf32>
    %694 = vector.extract_strided_slice %632 {offsets = [72, 0], sizes = [8, 8], strides = [1, 1]} : vector<128x8xf32> to vector<8x8xf32>
    %695 = arith.addf %689, %694 : vector<8x8xf32>
    %696 = vector.extract_strided_slice %633 {offsets = [80, 0], sizes = [8, 64], strides = [1, 1]} : vector<128x64xf32> to vector<8x64xf32>
    %697 = vector.broadcast %540 : vector<1x64xf32> to vector<8x64xf32>
    %698 = arith.mulf %696, %697 : vector<8x64xf32>
    %699 = arith.addf %693, %698 : vector<8x64xf32>
    %700 = vector.extract_strided_slice %632 {offsets = [80, 0], sizes = [8, 8], strides = [1, 1]} : vector<128x8xf32> to vector<8x8xf32>
    %701 = arith.addf %695, %700 : vector<8x8xf32>
    %702 = vector.extract_strided_slice %633 {offsets = [88, 0], sizes = [8, 64], strides = [1, 1]} : vector<128x64xf32> to vector<8x64xf32>
    %703 = vector.broadcast %547 : vector<1x64xf32> to vector<8x64xf32>
    %704 = arith.mulf %702, %703 : vector<8x64xf32>
    %705 = arith.addf %699, %704 : vector<8x64xf32>
    %706 = vector.extract_strided_slice %632 {offsets = [88, 0], sizes = [8, 8], strides = [1, 1]} : vector<128x8xf32> to vector<8x8xf32>
    %707 = arith.addf %701, %706 : vector<8x8xf32>
    %708 = vector.extract_strided_slice %633 {offsets = [96, 0], sizes = [8, 64], strides = [1, 1]} : vector<128x64xf32> to vector<8x64xf32>
    %709 = vector.broadcast %554 : vector<1x64xf32> to vector<8x64xf32>
    %710 = arith.mulf %708, %709 : vector<8x64xf32>
    %711 = arith.addf %705, %710 : vector<8x64xf32>
    %712 = vector.extract_strided_slice %632 {offsets = [96, 0], sizes = [8, 8], strides = [1, 1]} : vector<128x8xf32> to vector<8x8xf32>
    %713 = arith.addf %707, %712 : vector<8x8xf32>
    %714 = vector.extract_strided_slice %633 {offsets = [104, 0], sizes = [8, 64], strides = [1, 1]} : vector<128x64xf32> to vector<8x64xf32>
    %715 = vector.broadcast %561 : vector<1x64xf32> to vector<8x64xf32>
    %716 = arith.mulf %714, %715 : vector<8x64xf32>
    %717 = arith.addf %711, %716 : vector<8x64xf32>
    %718 = vector.extract_strided_slice %632 {offsets = [104, 0], sizes = [8, 8], strides = [1, 1]} : vector<128x8xf32> to vector<8x8xf32>
    %719 = arith.addf %713, %718 : vector<8x8xf32>
    %720 = vector.extract_strided_slice %633 {offsets = [112, 0], sizes = [8, 64], strides = [1, 1]} : vector<128x64xf32> to vector<8x64xf32>
    %721 = vector.broadcast %568 : vector<1x64xf32> to vector<8x64xf32>
    %722 = arith.mulf %720, %721 : vector<8x64xf32>
    %723 = arith.addf %717, %722 : vector<8x64xf32>
    %724 = vector.extract_strided_slice %632 {offsets = [112, 0], sizes = [8, 8], strides = [1, 1]} : vector<128x8xf32> to vector<8x8xf32>
    %725 = arith.addf %719, %724 : vector<8x8xf32>
    %726 = vector.extract_strided_slice %633 {offsets = [120, 0], sizes = [8, 64], strides = [1, 1]} : vector<128x64xf32> to vector<8x64xf32>
    %727 = vector.broadcast %575 : vector<1x64xf32> to vector<8x64xf32>
    %728 = arith.mulf %726, %727 : vector<8x64xf32>
    %729 = arith.addf %723, %728 : vector<8x64xf32>
    %730 = vector.extract_strided_slice %632 {offsets = [120, 0], sizes = [8, 8], strides = [1, 1]} : vector<128x8xf32> to vector<8x8xf32>
    %731 = arith.addf %725, %730 : vector<8x8xf32>
    %cst_155 = arith.constant dense<0.000000e+00> : vector<8x64xf32>
    %732 = tpu.matmul %729, %455, %cst_155 {dimension_numbers = #tpu.dot_dimension_numbers<[1], [1], [0], [0], [0, 0, 1, 0], [], []>} : vector<8x64xf32>, vector<64x64xf32>, vector<8x64xf32> -> vector<8x64xf32>
    %733 = vector.broadcast %461 : vector<1x64xf32> to vector<8x64xf32>
    %734 = arith.addf %732, %733 : vector<8x64xf32>
    %cst_156 = arith.constant 6.250000e-02 : f32
    %735 = vector.broadcast %cst_156 : f32 to vector<8x8xf32>
    %736 = arith.mulf %731, %735 : vector<8x8xf32>
    %cst_157 = arith.constant dense<0.000000e+00> : vector<8x64xf32>
    %737 = tpu.matmul %6, %449, %cst_157 {dimension_numbers = #tpu.dot_dimension_numbers<[1], [1], [0], [0], [0, 0, 1, 0], [], []>} : vector<8x64xf32>, vector<64x64xf32>, vector<8x64xf32> -> vector<8x64xf32>
    %738 = vector.broadcast %458 : vector<1x64xf32> to vector<8x64xf32>
    %739 = arith.addf %737, %738 : vector<8x64xf32>
    %cst_158 = arith.constant dense<0.000000e+00> : vector<6x64xf32>
    %740 = tpu.matmul %10, %451, %cst_158 {dimension_numbers = #tpu.dot_dimension_numbers<[1], [1], [0], [0], [0, 0, 1, 0], [], []>} : vector<6x64xf32>, vector<64x64xf32>, vector<6x64xf32> -> vector<6x64xf32>
    %741 = vector.broadcast %459 : vector<1x64xf32> to vector<6x64xf32>
    %742 = arith.addf %740, %741 : vector<6x64xf32>
    %cst_159 = arith.constant dense<0.000000e+00> : vector<6x64xf32>
    %743 = tpu.matmul %14, %453, %cst_159 {dimension_numbers = #tpu.dot_dimension_numbers<[1], [1], [0], [0], [0, 0, 1, 0], [], []>} : vector<6x64xf32>, vector<64x64xf32>, vector<6x64xf32> -> vector<6x64xf32>
    %744 = vector.broadcast %460 : vector<1x64xf32> to vector<6x64xf32>
    %745 = arith.addf %743, %744 : vector<6x64xf32>
    %746 = tpu.concatenate %742, %462 in 0 : vector<6x64xf32>, vector<1x64xf32> -> vector<7x64xf32>
    %747 = tpu.concatenate %745, %463 in 0 : vector<6x64xf32>, vector<1x64xf32> -> vector<7x64xf32>
    %cst_160 = arith.constant 0.000000e+00 : f32
    %748 = vector.broadcast %cst_160 : f32 to vector<1x64xf32>
    %749 = tpu.concatenate %746, %748 in 0 : vector<7x64xf32>, vector<1x64xf32> -> vector<8x64xf32>
    %750 = tpu.concatenate %747, %748 in 0 : vector<7x64xf32>, vector<1x64xf32> -> vector<8x64xf32>
    %751 = vector.broadcast %470 : vector<1x64xf32> to vector<8x64xf32>
    %752 = arith.mulf %739, %751 : vector<8x64xf32>
    %753 = vector.broadcast %477 : vector<1x64xf32> to vector<8x64xf32>
    %754 = arith.mulf %739, %753 : vector<8x64xf32>
    %755 = vector.broadcast %484 : vector<1x64xf32> to vector<8x64xf32>
    %756 = arith.mulf %739, %755 : vector<8x64xf32>
    %757 = vector.broadcast %491 : vector<1x64xf32> to vector<8x64xf32>
    %758 = arith.mulf %739, %757 : vector<8x64xf32>
    %759 = vector.broadcast %498 : vector<1x64xf32> to vector<8x64xf32>
    %760 = arith.mulf %739, %759 : vector<8x64xf32>
    %761 = vector.broadcast %505 : vector<1x64xf32> to vector<8x64xf32>
    %762 = arith.mulf %739, %761 : vector<8x64xf32>
    %763 = vector.broadcast %512 : vector<1x64xf32> to vector<8x64xf32>
    %764 = arith.mulf %739, %763 : vector<8x64xf32>
    %765 = vector.broadcast %519 : vector<1x64xf32> to vector<8x64xf32>
    %766 = arith.mulf %739, %765 : vector<8x64xf32>
    %767 = vector.broadcast %526 : vector<1x64xf32> to vector<8x64xf32>
    %768 = arith.mulf %739, %767 : vector<8x64xf32>
    %769 = vector.broadcast %533 : vector<1x64xf32> to vector<8x64xf32>
    %770 = arith.mulf %739, %769 : vector<8x64xf32>
    %771 = vector.broadcast %540 : vector<1x64xf32> to vector<8x64xf32>
    %772 = arith.mulf %739, %771 : vector<8x64xf32>
    %773 = vector.broadcast %547 : vector<1x64xf32> to vector<8x64xf32>
    %774 = arith.mulf %739, %773 : vector<8x64xf32>
    %775 = vector.broadcast %554 : vector<1x64xf32> to vector<8x64xf32>
    %776 = arith.mulf %739, %775 : vector<8x64xf32>
    %777 = vector.broadcast %561 : vector<1x64xf32> to vector<8x64xf32>
    %778 = arith.mulf %739, %777 : vector<8x64xf32>
    %779 = vector.broadcast %568 : vector<1x64xf32> to vector<8x64xf32>
    %780 = arith.mulf %739, %779 : vector<8x64xf32>
    %781 = vector.broadcast %575 : vector<1x64xf32> to vector<8x64xf32>
    %782 = arith.mulf %739, %781 : vector<8x64xf32>
    %783 = tpu.concatenate %752, %754, %756, %758, %760, %762, %764, %766, %768, %770, %772, %774, %776, %778, %780, %782 in 0 : vector<8x64xf32>, vector<8x64xf32>, vector<8x64xf32>, vector<8x64xf32>, vector<8x64xf32>, vector<8x64xf32>, vector<8x64xf32>, vector<8x64xf32>, vector<8x64xf32>, vector<8x64xf32>, vector<8x64xf32>, vector<8x64xf32>, vector<8x64xf32>, vector<8x64xf32>, vector<8x64xf32>, vector<8x64xf32> -> vector<128x64xf32>
    %cst_161 = arith.constant dense<0.000000e+00> : vector<128x8xf32>
    %784 = tpu.matmul %783, %749, %cst_161 {dimension_numbers = #tpu.dot_dimension_numbers<[1], [1], [0], [0], [0, 0, 1, 0], [], []>} : vector<128x64xf32>, vector<8x64xf32>, vector<128x8xf32> -> vector<128x8xf32>
    %cst_162 = arith.constant dense<0xFF800000> : vector<128xf32>
    %785 = vector.multi_reduction <maximumf>, %784, %cst_162 [1] : vector<128x8xf32> to vector<128xf32>
    %786 = vector.shape_cast %785 : vector<128xf32> to vector<128x1xf32>
    %787 = vector.broadcast %786 : vector<128x1xf32> to vector<128x8xf32>
    %788 = arith.subf %784, %787 : vector<128x8xf32>
    %789 = math.exp %788 : vector<128x8xf32>
    %cst_163 = arith.constant dense<0.000000e+00> : vector<128xf32>
    %790 = vector.multi_reduction <add>, %789, %cst_163 [1] : vector<128x8xf32> to vector<128xf32>
    %791 = vector.shape_cast %790 : vector<128xf32> to vector<128x1xf32>
    %792 = vector.broadcast %791 : vector<128x1xf32> to vector<128x8xf32>
    %793 = arith.divf %789, %792 : vector<128x8xf32>
    %cst_164 = arith.constant dense<0.000000e+00> : vector<128x64xf32>
    %794 = tpu.matmul %793, %750, %cst_164 {dimension_numbers = #tpu.dot_dimension_numbers<[1], [0], [0], [1], [0, 0, 1, 1], [], []>} : vector<128x8xf32>, vector<8x64xf32>, vector<128x64xf32> -> vector<128x64xf32>
    %cst_165 = arith.constant 0.000000e+00 : f32
    %795 = vector.broadcast %cst_165 : f32 to vector<8x64xf32>
    %cst_166 = arith.constant 0.000000e+00 : f32
    %796 = vector.broadcast %cst_166 : f32 to vector<8x8xf32>
    %797 = vector.extract_strided_slice %794 {offsets = [0, 0], sizes = [8, 64], strides = [1, 1]} : vector<128x64xf32> to vector<8x64xf32>
    %798 = vector.broadcast %470 : vector<1x64xf32> to vector<8x64xf32>
    %799 = arith.mulf %797, %798 : vector<8x64xf32>
    %800 = arith.addf %795, %799 : vector<8x64xf32>
    %801 = vector.extract_strided_slice %793 {offsets = [0, 0], sizes = [8, 8], strides = [1, 1]} : vector<128x8xf32> to vector<8x8xf32>
    %802 = arith.addf %796, %801 : vector<8x8xf32>
    %803 = vector.extract_strided_slice %794 {offsets = [8, 0], sizes = [8, 64], strides = [1, 1]} : vector<128x64xf32> to vector<8x64xf32>
    %804 = vector.broadcast %477 : vector<1x64xf32> to vector<8x64xf32>
    %805 = arith.mulf %803, %804 : vector<8x64xf32>
    %806 = arith.addf %800, %805 : vector<8x64xf32>
    %807 = vector.extract_strided_slice %793 {offsets = [8, 0], sizes = [8, 8], strides = [1, 1]} : vector<128x8xf32> to vector<8x8xf32>
    %808 = arith.addf %802, %807 : vector<8x8xf32>
    %809 = vector.extract_strided_slice %794 {offsets = [16, 0], sizes = [8, 64], strides = [1, 1]} : vector<128x64xf32> to vector<8x64xf32>
    %810 = vector.broadcast %484 : vector<1x64xf32> to vector<8x64xf32>
    %811 = arith.mulf %809, %810 : vector<8x64xf32>
    %812 = arith.addf %806, %811 : vector<8x64xf32>
    %813 = vector.extract_strided_slice %793 {offsets = [16, 0], sizes = [8, 8], strides = [1, 1]} : vector<128x8xf32> to vector<8x8xf32>
    %814 = arith.addf %808, %813 : vector<8x8xf32>
    %815 = vector.extract_strided_slice %794 {offsets = [24, 0], sizes = [8, 64], strides = [1, 1]} : vector<128x64xf32> to vector<8x64xf32>
    %816 = vector.broadcast %491 : vector<1x64xf32> to vector<8x64xf32>
    %817 = arith.mulf %815, %816 : vector<8x64xf32>
    %818 = arith.addf %812, %817 : vector<8x64xf32>
    %819 = vector.extract_strided_slice %793 {offsets = [24, 0], sizes = [8, 8], strides = [1, 1]} : vector<128x8xf32> to vector<8x8xf32>
    %820 = arith.addf %814, %819 : vector<8x8xf32>
    %821 = vector.extract_strided_slice %794 {offsets = [32, 0], sizes = [8, 64], strides = [1, 1]} : vector<128x64xf32> to vector<8x64xf32>
    %822 = vector.broadcast %498 : vector<1x64xf32> to vector<8x64xf32>
    %823 = arith.mulf %821, %822 : vector<8x64xf32>
    %824 = arith.addf %818, %823 : vector<8x64xf32>
    %825 = vector.extract_strided_slice %793 {offsets = [32, 0], sizes = [8, 8], strides = [1, 1]} : vector<128x8xf32> to vector<8x8xf32>
    %826 = arith.addf %820, %825 : vector<8x8xf32>
    %827 = vector.extract_strided_slice %794 {offsets = [40, 0], sizes = [8, 64], strides = [1, 1]} : vector<128x64xf32> to vector<8x64xf32>
    %828 = vector.broadcast %505 : vector<1x64xf32> to vector<8x64xf32>
    %829 = arith.mulf %827, %828 : vector<8x64xf32>
    %830 = arith.addf %824, %829 : vector<8x64xf32>
    %831 = vector.extract_strided_slice %793 {offsets = [40, 0], sizes = [8, 8], strides = [1, 1]} : vector<128x8xf32> to vector<8x8xf32>
    %832 = arith.addf %826, %831 : vector<8x8xf32>
    %833 = vector.extract_strided_slice %794 {offsets = [48, 0], sizes = [8, 64], strides = [1, 1]} : vector<128x64xf32> to vector<8x64xf32>
    %834 = vector.broadcast %512 : vector<1x64xf32> to vector<8x64xf32>
    %835 = arith.mulf %833, %834 : vector<8x64xf32>
    %836 = arith.addf %830, %835 : vector<8x64xf32>
    %837 = vector.extract_strided_slice %793 {offsets = [48, 0], sizes = [8, 8], strides = [1, 1]} : vector<128x8xf32> to vector<8x8xf32>
    %838 = arith.addf %832, %837 : vector<8x8xf32>
    %839 = vector.extract_strided_slice %794 {offsets = [56, 0], sizes = [8, 64], strides = [1, 1]} : vector<128x64xf32> to vector<8x64xf32>
    %840 = vector.broadcast %519 : vector<1x64xf32> to vector<8x64xf32>
    %841 = arith.mulf %839, %840 : vector<8x64xf32>
    %842 = arith.addf %836, %841 : vector<8x64xf32>
    %843 = vector.extract_strided_slice %793 {offsets = [56, 0], sizes = [8, 8], strides = [1, 1]} : vector<128x8xf32> to vector<8x8xf32>
    %844 = arith.addf %838, %843 : vector<8x8xf32>
    %845 = vector.extract_strided_slice %794 {offsets = [64, 0], sizes = [8, 64], strides = [1, 1]} : vector<128x64xf32> to vector<8x64xf32>
    %846 = vector.broadcast %526 : vector<1x64xf32> to vector<8x64xf32>
    %847 = arith.mulf %845, %846 : vector<8x64xf32>
    %848 = arith.addf %842, %847 : vector<8x64xf32>
    %849 = vector.extract_strided_slice %793 {offsets = [64, 0], sizes = [8, 8], strides = [1, 1]} : vector<128x8xf32> to vector<8x8xf32>
    %850 = arith.addf %844, %849 : vector<8x8xf32>
    %851 = vector.extract_strided_slice %794 {offsets = [72, 0], sizes = [8, 64], strides = [1, 1]} : vector<128x64xf32> to vector<8x64xf32>
    %852 = vector.broadcast %533 : vector<1x64xf32> to vector<8x64xf32>
    %853 = arith.mulf %851, %852 : vector<8x64xf32>
    %854 = arith.addf %848, %853 : vector<8x64xf32>
    %855 = vector.extract_strided_slice %793 {offsets = [72, 0], sizes = [8, 8], strides = [1, 1]} : vector<128x8xf32> to vector<8x8xf32>
    %856 = arith.addf %850, %855 : vector<8x8xf32>
    %857 = vector.extract_strided_slice %794 {offsets = [80, 0], sizes = [8, 64], strides = [1, 1]} : vector<128x64xf32> to vector<8x64xf32>
    %858 = vector.broadcast %540 : vector<1x64xf32> to vector<8x64xf32>
    %859 = arith.mulf %857, %858 : vector<8x64xf32>
    %860 = arith.addf %854, %859 : vector<8x64xf32>
    %861 = vector.extract_strided_slice %793 {offsets = [80, 0], sizes = [8, 8], strides = [1, 1]} : vector<128x8xf32> to vector<8x8xf32>
    %862 = arith.addf %856, %861 : vector<8x8xf32>
    %863 = vector.extract_strided_slice %794 {offsets = [88, 0], sizes = [8, 64], strides = [1, 1]} : vector<128x64xf32> to vector<8x64xf32>
    %864 = vector.broadcast %547 : vector<1x64xf32> to vector<8x64xf32>
    %865 = arith.mulf %863, %864 : vector<8x64xf32>
    %866 = arith.addf %860, %865 : vector<8x64xf32>
    %867 = vector.extract_strided_slice %793 {offsets = [88, 0], sizes = [8, 8], strides = [1, 1]} : vector<128x8xf32> to vector<8x8xf32>
    %868 = arith.addf %862, %867 : vector<8x8xf32>
    %869 = vector.extract_strided_slice %794 {offsets = [96, 0], sizes = [8, 64], strides = [1, 1]} : vector<128x64xf32> to vector<8x64xf32>
    %870 = vector.broadcast %554 : vector<1x64xf32> to vector<8x64xf32>
    %871 = arith.mulf %869, %870 : vector<8x64xf32>
    %872 = arith.addf %866, %871 : vector<8x64xf32>
    %873 = vector.extract_strided_slice %793 {offsets = [96, 0], sizes = [8, 8], strides = [1, 1]} : vector<128x8xf32> to vector<8x8xf32>
    %874 = arith.addf %868, %873 : vector<8x8xf32>
    %875 = vector.extract_strided_slice %794 {offsets = [104, 0], sizes = [8, 64], strides = [1, 1]} : vector<128x64xf32> to vector<8x64xf32>
    %876 = vector.broadcast %561 : vector<1x64xf32> to vector<8x64xf32>
    %877 = arith.mulf %875, %876 : vector<8x64xf32>
    %878 = arith.addf %872, %877 : vector<8x64xf32>
    %879 = vector.extract_strided_slice %793 {offsets = [104, 0], sizes = [8, 8], strides = [1, 1]} : vector<128x8xf32> to vector<8x8xf32>
    %880 = arith.addf %874, %879 : vector<8x8xf32>
    %881 = vector.extract_strided_slice %794 {offsets = [112, 0], sizes = [8, 64], strides = [1, 1]} : vector<128x64xf32> to vector<8x64xf32>
    %882 = vector.broadcast %568 : vector<1x64xf32> to vector<8x64xf32>
    %883 = arith.mulf %881, %882 : vector<8x64xf32>
    %884 = arith.addf %878, %883 : vector<8x64xf32>
    %885 = vector.extract_strided_slice %793 {offsets = [112, 0], sizes = [8, 8], strides = [1, 1]} : vector<128x8xf32> to vector<8x8xf32>
    %886 = arith.addf %880, %885 : vector<8x8xf32>
    %887 = vector.extract_strided_slice %794 {offsets = [120, 0], sizes = [8, 64], strides = [1, 1]} : vector<128x64xf32> to vector<8x64xf32>
    %888 = vector.broadcast %575 : vector<1x64xf32> to vector<8x64xf32>
    %889 = arith.mulf %887, %888 : vector<8x64xf32>
    %890 = arith.addf %884, %889 : vector<8x64xf32>
    %891 = vector.extract_strided_slice %793 {offsets = [120, 0], sizes = [8, 8], strides = [1, 1]} : vector<128x8xf32> to vector<8x8xf32>
    %892 = arith.addf %886, %891 : vector<8x8xf32>
    %cst_167 = arith.constant dense<0.000000e+00> : vector<8x64xf32>
    %893 = tpu.matmul %890, %455, %cst_167 {dimension_numbers = #tpu.dot_dimension_numbers<[1], [1], [0], [0], [0, 0, 1, 0], [], []>} : vector<8x64xf32>, vector<64x64xf32>, vector<8x64xf32> -> vector<8x64xf32>
    %894 = vector.broadcast %461 : vector<1x64xf32> to vector<8x64xf32>
    %895 = arith.addf %893, %894 : vector<8x64xf32>
    %cst_168 = arith.constant 6.250000e-02 : f32
    %896 = vector.broadcast %cst_168 : f32 to vector<8x8xf32>
    %897 = arith.mulf %892, %896 : vector<8x8xf32>
    %898 = vector.shape_cast %734 : vector<8x64xf32> to vector<8x1x64xf32>
    %899 = vector.shape_cast %895 : vector<8x64xf32> to vector<8x1x64xf32>
    %900 = tpu.concatenate %898, %899 in 1 : vector<8x1x64xf32>, vector<8x1x64xf32> -> vector<8x2x64xf32>
    %c0_169 = arith.constant 0 : index
    %c0_170 = arith.constant 0 : index
    %c0_171 = arith.constant 0 : index
    %901 = vector.load %arg12[%c0_169, %c0_170, %c0_171] : memref<8x2x64xf32, #tpu.memory_space<vmem>>, vector<8x2x64xf32>
    tpu.vector_store %arg12[%c0_169, %c0_170, %c0_171], %900 {strides = array<i32>} : memref<8x2x64xf32, #tpu.memory_space<vmem>>, vector<8x2x64xf32>,
    %902 = vector.shape_cast %736 : vector<8x8xf32> to vector<1x8x8xf32>
    %903 = vector.shape_cast %897 : vector<8x8xf32> to vector<1x8x8xf32>
    %904 = tpu.concatenate %902, %903 in 0 : vector<1x8x8xf32>, vector<1x8x8xf32> -> vector<2x8x8xf32>
    %c0_172 = arith.constant 0 : index
    %c0_173 = arith.constant 0 : index
    %c0_174 = arith.constant 0 : index
    %905 = vector.load %arg13[%c0_172, %c0_173, %c0_174] : memref<2x8x8xf32, #tpu.memory_space<vmem>>, vector<2x8x8xf32>
    tpu.vector_store %arg13[%c0_172, %c0_173, %c0_174], %904 {strides = array<i32>} : memref<2x8x8xf32, #tpu.memory_space<vmem>>, vector<2x8x8xf32>,
    return
  }
}

</mosaic_0001>

<llo_original>
// kernel: _lambda_.3
$region0: #{_lambda_.3}
  #allocation0 [shape = 'u32[]', space=smem, size = 0x4, offset = 0x4, fixed_abs, tag = 'smem constant byte address 0x4 - core index']
  #allocation1 [shape = 'u32[72,128]{1,0:T(1,128)}', space=vmem, size = 0x9000, scoped, tag = 'internal scratch']
  %s0 = inlined_call_operand.vmem [shape: f32[2,8,40], index: 0, kind: input, shape index: {}]
  %s1 = inlined_call_operand.vmem [shape: f32[2,6,40], index: 1, kind: input, shape index: {}]
  %s2 = inlined_call_operand.vmem [shape: f32[2,6,40], index: 2, kind: input, shape index: {}]
  %s3 = inlined_call_operand.hbm [shape: f32[3,40,40], index: 3, kind: input, shape index: {}]
  %s4 = inlined_call_operand.hbm [shape: f32[3,40,40], index: 4, kind: input, shape index: {}]
  %s5 = inlined_call_operand.hbm [shape: f32[3,40,40], index: 5, kind: input, shape index: {}]
  %s6 = inlined_call_operand.hbm [shape: f32[3,40,40], index: 6, kind: input, shape index: {}]
  %s7 = inlined_call_operand.vmem [shape: f32[3,8,40], index: 7, kind: input, shape index: {}]
  %s8 = inlined_call_operand.hbm [shape: f32[2,8,40], index: 8, kind: output, shape index: {0}]
  %s9 = inlined_call_operand.vmem [shape: f32[2,8,6], index: 9, kind: output, shape index: {1}]
  %s10 = inlined_call_operand.hbm [shape: f32[2,8,40], index: 10, kind: output, shape index: {2}]
  %s11 = inlined_call_operand.vmem [shape: f32[2,8,6], index: 11, kind: output, shape index: {3}]
  %s12 = inlined_call_operand.hbm [shape: f32[2,8,40], index: 12, kind: output, shape index: {4}]
  %s13 = inlined_call_operand.hbm [shape: f32[2,8,8], index: 13, kind: output, shape index: {5}]
  %14 = xla_tuple %s8, %s9, %s10, %s11, %s12, %s13
  %s15 = sld [smem:[#allocation0]]
  $region98: #{_lambda_.3} parent=0
    _
  %s17 = ssub.s32 1, %s15
  %s18 = scalar_select 0, %s17, %s15
  $region1: #{_lambda_.3} parent=0
    #allocation2 [shape = 'u8[61440]{0}', space=vmem, size = 0xf000, scoped, tag = 'input window, operand 3, single buffered']
    #allocation3 [shape = 's32[1]{0}', space=sflag, size = 0x4, scoped, tag = 'scoped memory for _lambda_.3']
    #allocation4 [shape = 's32[1]{0}', space=sflag, size = 0x4, scoped, tag = 'scoped memory for _lambda_.3']
    #allocation5 [shape = 'u8[61440]{0}', space=vmem, size = 0xf000, scoped, tag = 'input window, operand 4, single buffered']
    #allocation6 [shape = 's32[1]{0}', space=sflag, size = 0x4, scoped, tag = 'scoped memory for _lambda_.3']
    #allocation7 [shape = 'u8[61440]{0}', space=vmem, size = 0xf000, scoped, tag = 'input window, operand 5, single buffered']
    #allocation8 [shape = 'u8[61440]{0}', space=vmem, size = 0xf000, scoped, tag = 'input window, operand 6, single buffered']
    #allocation9 [shape = 's32[1]{0}', space=sflag, size = 0x4, scoped, tag = 'scoped memory for _lambda_.3']
    #allocation10 [shape = 'u8[8192]{0}', space=vmem, size = 0x2000, scoped, tag = 'output window, operand 0, single buffered']
    #allocation11 [shape = 'u8[8192]{0}', space=vmem, size = 0x2000, scoped, tag = 'output window, operand 2, single buffered']
    #allocation12 [shape = 's32[1]{0}', space=sflag, size = 0x4, scoped, tag = 'scoped memory for _lambda_.3']
    #allocation13 [shape = 'u8[8192]{0}', space=vmem, size = 0x2000, scoped, tag = 'output window, operand 4, single buffered']
    #allocation14 [shape = 'u8[8192]{0}', space=vmem, size = 0x2000, scoped, tag = 'output window, operand 5, single buffered']
    #allocation15 [shape = 's32[1]{0}', space=sflag, size = 0x4, scoped, tag = 'scoped memory for _lambda_.3']
    %19 = vsyncpa [#allocation3], 0
    %20 = vsyncpa [#allocation6], 0
    %21 = vsyncpa [#allocation9], 0
    %22 = vsyncpa [#allocation4], 0
    %23 = vsyncpa [#allocation12], 0
    %24 = vsyncpa [#allocation15], 0
    // Predicated region
    $region2: #{_lambda_.3} parent=1 // pred_check
      _
    $region3: #{_lambda_.3} parent=1 // pred_check_branch
      %26 = sbr.rel (0) target = $region5
    $region4: #{_lambda_.3} parent=1 // pred_region
      _
    $region5: #{_lambda_.3} parent=1 // pred_fallthru
      _
    // Predicated region
    $region6: #{_lambda_.3} parent=1 // pred_check
      _
    $region7: #{_lambda_.3} parent=1 // pred_check_branch
      %28 = sbr.rel (0) target = $region9
    $region8: #{_lambda_.3} parent=1 // pred_region
      _
    $region9: #{_lambda_.3} parent=1 // pred_fallthru
      _
    // Predicated region
    $region10: #{_lambda_.3} parent=1 // pred_check
      _
    $region11: #{_lambda_.3} parent=1 // pred_check_branch
      %30 = sbr.rel (0) target = $region13
    $region12: #{_lambda_.3} parent=1 // pred_region
      _
    $region13: #{_lambda_.3} parent=1 // pred_fallthru
      _
    // Predicated region
    $region14: #{_lambda_.3} parent=1 // pred_check
      _
    $region15: #{_lambda_.3} parent=1 // pred_check_branch
      %32 = sbr.rel (0) target = $region17
    $region16: #{_lambda_.3} parent=1 // pred_region
      %34 = vsyncadd [#allocation3], 0
      %s35 = sshll.u32 %s3, 4
      %s36 = int_to_ptr.hbm [resolvable:$true] %s35
      %s37 = sshll.u32 [#allocation2], 4
      %s38 = int_to_ptr.vmem [resolvable:$true] %s37
      %43 = dma.hbm_to_vmem [thread:$0]  %s36, 1920, %s38, [#allocation3], 128, 128, 8
    $region17: #{_lambda_.3} parent=1 // pred_fallthru
      _
    // Predicated region
    $region18: #{_lambda_.3} parent=1 // pred_check
      _
    $region19: #{_lambda_.3} parent=1 // pred_check_branch
      %45 = sbr.rel (0) target = $region21
    $region20: #{_lambda_.3} parent=1 // pred_region
      %47 = vsyncadd [#allocation6], 0
      %s48 = sshll.u32 %s4, 4
      %s49 = int_to_ptr.hbm [resolvable:$true] %s48
      %s50 = sshll.u32 [#allocation5], 4
      %s51 = int_to_ptr.vmem [resolvable:$true] %s50
      %56 = dma.hbm_to_vmem [thread:$0]  %s49, 1920, %s51, [#allocation6], 128, 128, 8
    $region21: #{_lambda_.3} parent=1 // pred_fallthru
      _
    // Predicated region
    $region22: #{_lambda_.3} parent=1 // pred_check
      _
    $region23: #{_lambda_.3} parent=1 // pred_check_branch
      %58 = sbr.rel (0) target = $region25
    $region24: #{_lambda_.3} parent=1 // pred_region
      %60 = vsyncadd [#allocation6], 0
      %s61 = sshll.u32 %s5, 4
      %s62 = int_to_ptr.hbm [resolvable:$true] %s61
      %s63 = sshll.u32 [#allocation7], 4
      %s64 = int_to_ptr.vmem [resolvable:$true] %s63
      %69 = dma.hbm_to_vmem [thread:$0]  %s62, 1920, %s64, [#allocation6], 128, 128, 8
    $region25: #{_lambda_.3} parent=1 // pred_fallthru
      _
    // Predicated region
    $region26: #{_lambda_.3} parent=1 // pred_check
      _
    $region27: #{_lambda_.3} parent=1 // pred_check_branch
      %71 = sbr.rel (0) target = $region29
    $region28: #{_lambda_.3} parent=1 // pred_region
      %73 = vsyncadd [#allocation9], 0
      %s74 = sshll.u32 %s6, 4
      %s75 = int_to_ptr.hbm [resolvable:$true] %s74
      %s76 = sshll.u32 [#allocation8], 4
      %s77 = int_to_ptr.vmem [resolvable:$true] %s76
      %82 = dma.hbm_to_vmem [thread:$0]  %s75, 1920, %s77, [#allocation9], 128, 128, 8
    $region29: #{_lambda_.3} parent=1 // pred_fallthru
      _
    // Predicated region
    $region30: #{_lambda_.3} parent=1 // pred_check
      _
    $region31: #{_lambda_.3} parent=1 // pred_check_branch
      %84 = sbr.rel (0) target = $region33
    $region32: #{_lambda_.3} parent=1 // pred_region
      _
    $region33: #{_lambda_.3} parent=1 // pred_fallthru
      _
    // Predicated region
    $region34: #{_lambda_.3} parent=1 // pred_check
      _
    $region35: #{_lambda_.3} parent=1 // pred_check_branch
      %86 = sbr.rel (0) target = $region37
    $region36: #{_lambda_.3} parent=1 // pred_region
      %88 = dma.done [#allocation3], 1920
    $region37: #{_lambda_.3} parent=1 // pred_fallthru
      _
    // Predicated region
    $region38: #{_lambda_.3} parent=1 // pred_check
      _
    $region39: #{_lambda_.3} parent=1 // pred_check_branch
      %90 = sbr.rel (0) target = $region41
    $region40: #{_lambda_.3} parent=1 // pred_region
      %92 = dma.done [#allocation6], 1920
    $region41: #{_lambda_.3} parent=1 // pred_fallthru
      _
    // Predicated region
    $region42: #{_lambda_.3} parent=1 // pred_check
      _
    $region43: #{_lambda_.3} parent=1 // pred_check_branch
      %94 = sbr.rel (0) target = $region45
    $region44: #{_lambda_.3} parent=1 // pred_region
      %96 = dma.done [#allocation6], 1920
    $region45: #{_lambda_.3} parent=1 // pred_fallthru
      _
    // Predicated region
    $region46: #{_lambda_.3} parent=1 // pred_check
      _
    $region47: #{_lambda_.3} parent=1 // pred_check_branch
      %98 = sbr.rel (0) target = $region49
    $region48: #{_lambda_.3} parent=1 // pred_region
      %100 = dma.done [#allocation9], 1920
    $region49: #{_lambda_.3} parent=1 // pred_fallthru
      _
    %v101 = vld [vmem:[%s0] sm:$0xff]
    %v102 = vld [vmem:[%s0 + $0x8] sm:$0xff]
    %v103 = vld [vmem:[%s1] sm:$0x3f]
    %v104 = vld [vmem:[%s1 + $0x8] sm:$0x3f]
    %v105 = vld [vmem:[%s2] sm:$0x3f]
    %v106 = vld [vmem:[%s2 + $0x8] sm:$0x3f]
    %v107 = vlaneseq
    %v108 = vand.u32 %v107, 127
    %v109 = vld [vmem:[#allocation2] sm:$0xff]
    %v110 = vld [vmem:[#allocation2 + $0x8] sm:$0xff]
    %v111 = vld [vmem:[#allocation2 + $0x10] sm:$0xff]
    %v112 = vld [vmem:[#allocation2 + $0x18] sm:$0xff]
    %v113 = vld [vmem:[#allocation2 + $0x20] sm:$0xff]
    %v114 = vld [vmem:[#allocation5] sm:$0xff]
    %v115 = vld [vmem:[#allocation5 + $0x8] sm:$0xff]
    %v116 = vld [vmem:[#allocation5 + $0x10] sm:$0xff]
    %v117 = vld [vmem:[#allocation5 + $0x18] sm:$0xff]
    %v118 = vld [vmem:[#allocation5 + $0x20] sm:$0xff]
    %v119 = vld [vmem:[#allocation7] sm:$0xff]
    %v120 = vld [vmem:[#allocation7 + $0x8] sm:$0xff]
    %v121 = vld [vmem:[#allocation7 + $0x10] sm:$0xff]
    %v122 = vld [vmem:[#allocation7 + $0x18] sm:$0xff]
    %v123 = vld [vmem:[#allocation7 + $0x20] sm:$0xff]
    %v124 = vld [vmem:[#allocation8] sm:$0xff]
    %v125 = vld [vmem:[#allocation8 + $0x8] sm:$0xff]
    %v126 = vld [vmem:[#allocation8 + $0x10] sm:$0xff]
    %v127 = vld [vmem:[#allocation8 + $0x18] sm:$0xff]
    %v128 = vld [vmem:[#allocation8 + $0x20] sm:$0xff]
    %v129 = vld [vmem:[%s7] sm:$0xff]
    %vm130 = vcmp.ge.s32.totalorder %v108, 0
    %vm131 = vcmp.lt.s32.totalorder %v108, 10
    %vm132 = vmand %vm130, %vm131
    %v133 = vsel %vm132, 1, 0
    %v134 = vcvt.s32.f32 %v133
    %vm135 = vcmp.ge.s32.totalorder %v108, 10
    %vm136 = vcmp.lt.s32.totalorder %v108, 20
    %vm137 = vmand %vm135, %vm136
    %v138 = vsel %vm137, 1, 0
    %v139 = vcvt.s32.f32 %v138
    %vm140 = vcmp.ge.s32.totalorder %v108, 20
    %vm141 = vcmp.lt.s32.totalorder %v108, 30
    %vm142 = vmand %vm140, %vm141
    %v143 = vsel %vm142, 1, 0
    %v144 = vcvt.s32.f32 %v143
    %vm145 = vcmp.ge.s32.totalorder %v108, 30
    %vm146 = vcmp.lt.s32.totalorder %v108, 40
    %vm147 = vmand %vm145, %vm146
    %v148 = vsel %vm147, 1, 0
    %v149 = vcvt.s32.f32 %v148
    %v150 = vperm.slane %v129, 0
    %vm151 = vcmask 326656
    %v153 = vsel %vm151, %v101, 0
    %v156 = vsel %vm151, %v109, 0
    %v159 = vsel %vm151, %v110, 0
    %v162 = vsel %vm151, %v111, 0
    %v165 = vsel %vm151, %v112, 0
    %v168 = vsel %vm151, %v113, 0
    %170 = vmatpush.xpose.msra.mxu0 0.0
    %171 = vmatpush.xpose.msra.mxu0 0.0
    %172 = vmatpush.xpose.msra.mxu0 0.0
    %173 = vmatpush.xpose.msra.mxu0 0.0
    %174 = vmatpush.xpose.msra.mxu0 0.0
    %175 = vmatpush.xpose.msra.mxu0 0.0
    %176 = vmatpush.xpose.msra.mxu0 0.0
    %177 = vmatpush.xpose.msra.mxu0 0.0
    %178 = vmatpush.xpose.msra.mxu0 0.0
    %179 = vmatpush.xpose.msra.mxu0 0.0
    %180 = vmatpush.xpose.msra.mxu0 0.0
    %181 = vmatpush.xpose.msra.mxu0 %v168
    %182 = vmatpush.xpose.msra.mxu0 %v165
    %183 = vmatpush.xpose.msra.mxu0 %v162
    %184 = vmatpush.xpose.msra.mxu0 %v159
    %185 = vmatpush.xpose.msra.mxu0 %v156
    %186 = vmatmul.f32.gmra.mxu0 %v153
    %v187 = vpop.f32.mrf.mxu0
    %v188 = vadd.f32 %v150, %v187
    %189 = vdwg.mxu0
    %v190 = vperm.slane %v129, 1
    %v192 = vsel %vm151, %v103, 0
    %v195 = vsel %vm151, %v114, 0
    %v198 = vsel %vm151, %v115, 0
    %v201 = vsel %vm151, %v116, 0
    %v204 = vsel %vm151, %v117, 0
    %v207 = vsel %vm151, %v118, 0
    %209 = vmatpush.xpose.msra.mxu0 0.0
    %210 = vmatpush.xpose.msra.mxu0 0.0
    %211 = vmatpush.xpose.msra.mxu0 0.0
    %212 = vmatpush.xpose.msra.mxu0 0.0
    %213 = vmatpush.xpose.msra.mxu0 0.0
    %214 = vmatpush.xpose.msra.mxu0 0.0
    %215 = vmatpush.xpose.msra.mxu0 0.0
    %216 = vmatpush.xpose.msra.mxu0 0.0
    %217 = vmatpush.xpose.msra.mxu0 0.0
    %218 = vmatpush.xpose.msra.mxu0 0.0
    %219 = vmatpush.xpose.msra.mxu0 0.0
    %220 = vmatpush.xpose.msra.mxu0 %v207
    %221 = vmatpush.xpose.msra.mxu0 %v204
    %222 = vmatpush.xpose.msra.mxu0 %v201
    %223 = vmatpush.xpose.msra.mxu0 %v198
    %224 = vmatpush.xpose.msra.mxu0 %v195
    %225 = vmatmul.f32.gmra.mxu0 %v192
    %v226 = vpop.f32.mrf.mxu0
    %v227 = vadd.f32 %v190, %v226
    %228 = vdwg.mxu0
    %v229 = vperm.slane %v129, 2
    %v231 = vsel %vm151, %v105, 0
    %v234 = vsel %vm151, %v119, 0
    %v237 = vsel %vm151, %v120, 0
    %v240 = vsel %vm151, %v121, 0
    %v243 = vsel %vm151, %v122, 0
    %v246 = vsel %vm151, %v123, 0
    %248 = vmatpush.xpose.msra.mxu0 0.0
    %249 = vmatpush.xpose.msra.mxu0 0.0
    %250 = vmatpush.xpose.msra.mxu0 0.0
    %251 = vmatpush.xpose.msra.mxu0 0.0
    %252 = vmatpush.xpose.msra.mxu0 0.0
    %253 = vmatpush.xpose.msra.mxu0 0.0
    %254 = vmatpush.xpose.msra.mxu0 0.0
    %255 = vmatpush.xpose.msra.mxu0 0.0
    %256 = vmatpush.xpose.msra.mxu0 0.0
    %257 = vmatpush.xpose.msra.mxu0 0.0
    %258 = vmatpush.xpose.msra.mxu0 0.0
    %259 = vmatpush.xpose.msra.mxu0 %v246
    %260 = vmatpush.xpose.msra.mxu0 %v243
    %261 = vmatpush.xpose.msra.mxu0 %v240
    %262 = vmatpush.xpose.msra.mxu0 %v237
    %263 = vmatpush.xpose.msra.mxu0 %v234
    %264 = vmatmul.f32.gmra.mxu0 %v231
    %v265 = vpop.f32.mrf.mxu0
    %v266 = vadd.f32 %v229, %v265
    %267 = vdwg.mxu0
    %v268 = vmul.f32 %v188, %v134
    %v269 = vmul.f32 %v188, %v139
    %v270 = vmul.f32 %v188, %v144
    %v271 = vmul.f32 %v188, %v149
    %v273 = vsel %vm151, %v268, 0
    %v276 = vsel %vm151, %v269, 0
    %v279 = vsel %vm151, %v270, 0
    %v282 = vsel %vm151, %v271, 0
    %v285 = vsel %vm151, %v227, 0
    %287 = vmatpush.xpose.msra.mxu0 0.0
    %288 = vmatpush.xpose.msra.mxu0 0.0
    %289 = vmatpush.xpose.msra.mxu0 0.0
    %290 = vmatpush.xpose.msra.mxu0 0.0
    %291 = vmatpush.xpose.msra.mxu0 0.0
    %292 = vmatpush.xpose.msra.mxu0 0.0
    %293 = vmatpush.xpose.msra.mxu0 0.0
    %294 = vmatpush.xpose.msra.mxu0 0.0
    %295 = vmatpush.xpose.msra.mxu0 0.0
    %296 = vmatpush.xpose.msra.mxu0 0.0
    %297 = vmatpush.xpose.msra.mxu0 0.0
    %298 = vmatpush.xpose.msra.mxu0 0.0
    %299 = vmatpush.xpose.msra.mxu0 0.0
    %300 = vmatpush.xpose.msra.mxu0 0.0
    %301 = vmatpush.xpose.msra.mxu0 0.0
    %302 = vmatpush.xpose.msra.mxu0 %v285
    %303 = vmatmul.f32.gmra.mxu0 %v273
    %v304 = vpop.f32.mrf.mxu0
    %v305 = vadd.f32 0.0, %v304
    %306 = vmatmul.f32.gmra.mxu0 %v276
    %v307 = vpop.f32.mrf.mxu0
    %v308 = vadd.f32 0.0, %v307
    %309 = vmatmul.f32.gmra.mxu0 %v279
    %v310 = vpop.f32.mrf.mxu0
    %v311 = vadd.f32 0.0, %v310
    %312 = vmatmul.f32.gmra.mxu0 %v282
    %v313 = vpop.f32.mrf.mxu0
    %v314 = vadd.f32 0.0, %v313
    %315 = vdwg.mxu0
    %vm316 = vcmask 48128
    %v317 = vsel %vm316, %v305, -inf
    %318 = vmax.xlane.f32.xlu0 %v317
    %v319 = vpop.xlane.xlu0 %318
    %v320 = vsel %vm316, %v308, -inf
    %321 = vmax.xlane.f32.xlu0 %v320
    %v322 = vpop.xlane.xlu0 %321
    %v323 = vsel %vm316, %v311, -inf
    %324 = vmax.xlane.f32.xlu0 %v323
    %v325 = vpop.xlane.xlu0 %324
    %v326 = vsel %vm316, %v314, -inf
    %327 = vmax.xlane.f32.xlu0 %v326
    %v328 = vpop.xlane.xlu0 %327
    %v329 = vsub.f32 %v305, %v319
    %v330 = vsub.f32 %v308, %v322
    %v331 = vsub.f32 %v311, %v325
    %v332 = vsub.f32 %v314, %v328
    %v333 = vmul.f32 %v329, 1.442695
    %v334 = vpow.pop %v333
    %v335 = vmul.f32 %v330, 1.442695
    %v336 = vpow.pop %v335
    %v337 = vmul.f32 %v331, 1.442695
    %v338 = vpow.pop %v337
    %v339 = vmul.f32 %v332, 1.442695
    %v340 = vpow.pop %v339
    %v341 = vsel %vm316, %v334, 0.0
    %342 = vadd.xlane.f32.xlu0 %v341
    %v343 = vpop.xlane.xlu0 %342
    %v344 = vsel %vm316, %v336, 0.0
    %345 = vadd.xlane.f32.xlu0 %v344
    %v346 = vpop.xlane.xlu0 %345
    %v347 = vsel %vm316, %v338, 0.0
    %348 = vadd.xlane.f32.xlu0 %v347
    %v349 = vpop.xlane.xlu0 %348
    %v350 = vsel %vm316, %v340, 0.0
    %351 = vadd.xlane.f32.xlu0 %v350
    %v352 = vpop.xlane.xlu0 %351
    %v353 = vrcp.pop %v343
    %v354 = vmul.f32 %v343, %v353
    %v355 = vsub.f32 1.0, %v354
    %v356 = vmul.f32 %v353, %v355
    %v357 = vadd.f32 %v353, %v356
    %vm358 = vweird.f32 %v343
    %vm359 = vweird.f32 %v353
    %vm360 = vmor %vm358, %vm359
    %v361 = vsel %vm360, %v353, %v357
    %v362 = vand.u32 2147483647, %v343
    %vm363 = vcmp.eq.f32.partialorder %v362, 8.507059e+37
    %v364 = vand.u32 %v343, 2147483648
    %v365 = vor.u32 1.1754944e-38, %v364
    %v366 = vsel %vm363, %v365, %v361
    %v367 = vmul.f32 %v334, %v366
    %v368 = vrcp.pop %v346
    %v369 = vmul.f32 %v346, %v368
    %v370 = vsub.f32 1.0, %v369
    %v371 = vmul.f32 %v368, %v370
    %v372 = vadd.f32 %v368, %v371
    %vm373 = vweird.f32 %v346
    %vm374 = vweird.f32 %v368
    %vm375 = vmor %vm373, %vm374
    %v376 = vsel %vm375, %v368, %v372
    %v377 = vand.u32 2147483647, %v346
    %vm378 = vcmp.eq.f32.partialorder %v377, 8.507059e+37
    %v379 = vand.u32 %v346, 2147483648
    %v380 = vor.u32 1.1754944e-38, %v379
    %v381 = vsel %vm378, %v380, %v376
    %v382 = vmul.f32 %v336, %v381
    %v383 = vrcp.pop %v349
    %v384 = vmul.f32 %v349, %v383
    %v385 = vsub.f32 1.0, %v384
    %v386 = vmul.f32 %v383, %v385
    %v387 = vadd.f32 %v383, %v386
    %vm388 = vweird.f32 %v349
    %vm389 = vweird.f32 %v383
    %vm390 = vmor %vm388, %vm389
    %v391 = vsel %vm390, %v383, %v387
    %v392 = vand.u32 2147483647, %v349
    %vm393 = vcmp.eq.f32.partialorder %v392, 8.507059e+37
    %v394 = vand.u32 %v349, 2147483648
    %v395 = vor.u32 1.1754944e-38, %v394
    %v396 = vsel %vm393, %v395, %v391
    %v397 = vmul.f32 %v338, %v396
    %v398 = vrcp.pop %v352
    %v399 = vmul.f32 %v352, %v398
    %v400 = vsub.f32 1.0, %v399
    %v401 = vmul.f32 %v398, %v400
    %v402 = vadd.f32 %v398, %v401
    %vm403 = vweird.f32 %v352
    %vm404 = vweird.f32 %v398
    %vm405 = vmor %vm403, %vm404
    %v406 = vsel %vm405, %v398, %v402
    %v407 = vand.u32 2147483647, %v352
    %vm408 = vcmp.eq.f32.partialorder %v407, 8.507059e+37
    %v409 = vand.u32 %v352, 2147483648
    %v410 = vor.u32 1.1754944e-38, %v409
    %v411 = vsel %vm408, %v410, %v406
    %v412 = vmul.f32 %v340, %v411
    %v414 = vsel %vm316, %v367, 0
    %v417 = vsel %vm316, %v382, 0
    %v420 = vsel %vm316, %v397, 0
    %v423 = vsel %vm316, %v412, 0
    %vm425 = vcmask 1045504
    %v427 = vsel %vm425, %v266, 0
    %429 = vmatpush.msra.mxu0 0.0
    %430 = vmatpush.msra.mxu0 0.0
    %431 = vmatpush.msra.mxu0 0.0
    %432 = vmatpush.msra.mxu0 0.0
    %433 = vmatpush.msra.mxu0 0.0
    %434 = vmatpush.msra.mxu0 0.0
    %435 = vmatpush.msra.mxu0 0.0
    %436 = vmatpush.msra.mxu0 0.0
    %437 = vmatpush.msra.mxu0 0.0
    %438 = vmatpush.msra.mxu0 0.0
    %439 = vmatpush.msra.mxu0 0.0
    %440 = vmatpush.msra.mxu0 0.0
    %441 = vmatpush.msra.mxu0 0.0
    %442 = vmatpush.msra.mxu0 0.0
    %443 = vmatpush.msra.mxu0 0.0
    %444 = vmatpush.msra.mxu0 %v427
    %445 = vmatmul.f32.gmra.mxu0 %v414
    %v446 = vpop.f32.mrf.mxu0
    %v447 = vadd.f32 0.0, %v446
    %448 = vmatmul.f32.gmra.mxu0 %v417
    %v449 = vpop.f32.mrf.mxu0
    %v450 = vadd.f32 0.0, %v449
    %451 = vmatmul.f32.gmra.mxu0 %v420
    %v452 = vpop.f32.mrf.mxu0
    %v453 = vadd.f32 0.0, %v452
    %454 = vmatmul.f32.gmra.mxu0 %v423
    %v455 = vpop.f32.mrf.mxu0
    %v456 = vadd.f32 0.0, %v455
    %457 = vdwg.mxu0
    %v458 = vmul.f32 %v447, %v134
    %v459 = vadd.f32 %v458, 0.0
    %v460 = vadd.f32 %v367, 0.0
    %v461 = vmul.f32 %v450, %v139
    %v462 = vadd.f32 %v459, %v461
    %v463 = vadd.f32 %v460, %v382
    %v464 = vmul.f32 %v453, %v144
    %v465 = vadd.f32 %v462, %v464
    %v466 = vadd.f32 %v463, %v397
    %v467 = vmul.f32 %v456, %v149
    %v468 = vadd.f32 %v465, %v467
    %v469 = vadd.f32 %v466, %v412
    %v470 = vperm.slane %v129, 3
    %v472 = vsel %vm151, %v468, 0
    %v475 = vsel %vm151, %v124, 0
    %v478 = vsel %vm151, %v125, 0
    %v481 = vsel %vm151, %v126, 0
    %v484 = vsel %vm151, %v127, 0
    %v487 = vsel %vm151, %v128, 0
    %489 = vmatpush.xpose.msra.mxu0 0.0
    %490 = vmatpush.xpose.msra.mxu0 0.0
    %491 = vmatpush.xpose.msra.mxu0 0.0
    %492 = vmatpush.xpose.msra.mxu0 0.0
    %493 = vmatpush.xpose.msra.mxu0 0.0
    %494 = vmatpush.xpose.msra.mxu0 0.0
    %495 = vmatpush.xpose.msra.mxu0 0.0
    %496 = vmatpush.xpose.msra.mxu0 0.0
    %497 = vmatpush.xpose.msra.mxu0 0.0
    %498 = vmatpush.xpose.msra.mxu0 0.0
    %499 = vmatpush.xpose.msra.mxu0 0.0
    %500 = vmatpush.xpose.msra.mxu0 %v487
    %501 = vmatpush.xpose.msra.mxu0 %v484
    %502 = vmatpush.xpose.msra.mxu0 %v481
    %503 = vmatpush.xpose.msra.mxu0 %v478
    %504 = vmatpush.xpose.msra.mxu0 %v475
    %505 = vmatmul.f32.gmra.mxu0 %v472
    %v506 = vpop.f32.mrf.mxu0
    %v507 = vadd.f32 %v470, %v506
    %508 = vdwg.mxu0
    %v509 = vmul.f32 %v469, 0.25
    %v511 = vsel %vm151, %v102, 0
    %513 = vmatpush.xpose.msra.mxu0 0.0
    %514 = vmatpush.xpose.msra.mxu0 0.0
    %515 = vmatpush.xpose.msra.mxu0 0.0
    %516 = vmatpush.xpose.msra.mxu0 0.0
    %517 = vmatpush.xpose.msra.mxu0 0.0
    %518 = vmatpush.xpose.msra.mxu0 0.0
    %519 = vmatpush.xpose.msra.mxu0 0.0
    %520 = vmatpush.xpose.msra.mxu0 0.0
    %521 = vmatpush.xpose.msra.mxu0 0.0
    %522 = vmatpush.xpose.msra.mxu0 0.0
    %523 = vmatpush.xpose.msra.mxu0 0.0
    %524 = vmatpush.xpose.msra.mxu0 %v168
    %525 = vmatpush.xpose.msra.mxu0 %v165
    %526 = vmatpush.xpose.msra.mxu0 %v162
    %527 = vmatpush.xpose.msra.mxu0 %v159
    %528 = vmatpush.xpose.msra.mxu0 %v156
    %529 = vmatmul.f32.gmra.mxu0 %v511
    %v530 = vpop.f32.mrf.mxu0
    %v531 = vadd.f32 %v150, %v530
    %532 = vdwg.mxu0
    %v534 = vsel %vm151, %v104, 0
    %536 = vmatpush.xpose.msra.mxu0 0.0
    %537 = vmatpush.xpose.msra.mxu0 0.0
    %538 = vmatpush.xpose.msra.mxu0 0.0
    %539 = vmatpush.xpose.msra.mxu0 0.0
    %540 = vmatpush.xpose.msra.mxu0 0.0
    %541 = vmatpush.xpose.msra.mxu0 0.0
    %542 = vmatpush.xpose.msra.mxu0 0.0
    %543 = vmatpush.xpose.msra.mxu0 0.0
    %544 = vmatpush.xpose.msra.mxu0 0.0
    %545 = vmatpush.xpose.msra.mxu0 0.0
    %546 = vmatpush.xpose.msra.mxu0 0.0
    %547 = vmatpush.xpose.msra.mxu0 %v207
    %548 = vmatpush.xpose.msra.mxu0 %v204
    %549 = vmatpush.xpose.msra.mxu0 %v201
    %550 = vmatpush.xpose.msra.mxu0 %v198
    %551 = vmatpush.xpose.msra.mxu0 %v195
    %552 = vmatmul.f32.gmra.mxu0 %v534
    %v553 = vpop.f32.mrf.mxu0
    %v554 = vadd.f32 %v190, %v553
    %555 = vdwg.mxu0
    %v557 = vsel %vm151, %v106, 0
    %559 = vmatpush.xpose.msra.mxu0 0.0
    %560 = vmatpush.xpose.msra.mxu0 0.0
    %561 = vmatpush.xpose.msra.mxu0 0.0
    %562 = vmatpush.xpose.msra.mxu0 0.0
    %563 = vmatpush.xpose.msra.mxu0 0.0
    %564 = vmatpush.xpose.msra.mxu0 0.0
    %565 = vmatpush.xpose.msra.mxu0 0.0
    %566 = vmatpush.xpose.msra.mxu0 0.0
    %567 = vmatpush.xpose.msra.mxu0 0.0
    %568 = vmatpush.xpose.msra.mxu0 0.0
    %569 = vmatpush.xpose.msra.mxu0 0.0
    %570 = vmatpush.xpose.msra.mxu0 %v246
    %571 = vmatpush.xpose.msra.mxu0 %v243
    %572 = vmatpush.xpose.msra.mxu0 %v240
    %573 = vmatpush.xpose.msra.mxu0 %v237
    %574 = vmatpush.xpose.msra.mxu0 %v234
    %575 = vmatmul.f32.gmra.mxu0 %v557
    %v576 = vpop.f32.mrf.mxu0
    %v577 = vadd.f32 %v229, %v576
    %578 = vdwg.mxu0
    %v579 = vmul.f32 %v531, %v134
    %v580 = vmul.f32 %v531, %v139
    %v581 = vmul.f32 %v531, %v144
    %v582 = vmul.f32 %v531, %v149
    %v584 = vsel %vm151, %v579, 0
    %v587 = vsel %vm151, %v580, 0
    %v590 = vsel %vm151, %v581, 0
    %v593 = vsel %vm151, %v582, 0
    %v596 = vsel %vm151, %v554, 0
    %598 = vmatpush.xpose.msra.mxu0 0.0
    %599 = vmatpush.xpose.msra.mxu0 0.0
    %600 = vmatpush.xpose.msra.mxu0 0.0
    %601 = vmatpush.xpose.msra.mxu0 0.0
    %602 = vmatpush.xpose.msra.mxu0 0.0
    %603 = vmatpush.xpose.msra.mxu0 0.0
    %604 = vmatpush.xpose.msra.mxu0 0.0
    %605 = vmatpush.xpose.msra.mxu0 0.0
    %606 = vmatpush.xpose.msra.mxu0 0.0
    %607 = vmatpush.xpose.msra.mxu0 0.0
    %608 = vmatpush.xpose.msra.mxu0 0.0
    %609 = vmatpush.xpose.msra.mxu0 0.0
    %610 = vmatpush.xpose.msra.mxu0 0.0
    %611 = vmatpush.xpose.msra.mxu0 0.0
    %612 = vmatpush.xpose.msra.mxu0 0.0
    %613 = vmatpush.xpose.msra.mxu0 %v596
    %614 = vmatmul.f32.gmra.mxu0 %v584
    %v615 = vpop.f32.mrf.mxu0
    %v616 = vadd.f32 0.0, %v615
    %617 = vmatmul.f32.gmra.mxu0 %v587
    %v618 = vpop.f32.mrf.mxu0
    %v619 = vadd.f32 0.0, %v618
    %620 = vmatmul.f32.gmra.mxu0 %v590
    %v621 = vpop.f32.mrf.mxu0
    %v622 = vadd.f32 0.0, %v621
    %623 = vmatmul.f32.gmra.mxu0 %v593
    %v624 = vpop.f32.mrf.mxu0
    %v625 = vadd.f32 0.0, %v624
    %626 = vdwg.mxu0
    %v627 = vsel %vm316, %v616, -inf
    %628 = vmax.xlane.f32.xlu0 %v627
    %v629 = vpop.xlane.xlu0 %628
    %v630 = vsel %vm316, %v619, -inf
    %631 = vmax.xlane.f32.xlu0 %v630
    %v632 = vpop.xlane.xlu0 %631
    %v633 = vsel %vm316, %v622, -inf
    %634 = vmax.xlane.f32.xlu0 %v633
    %v635 = vpop.xlane.xlu0 %634
    %v636 = vsel %vm316, %v625, -inf
    %637 = vmax.xlane.f32.xlu0 %v636
    %v638 = vpop.xlane.xlu0 %637
    %v639 = vsub.f32 %v616, %v629
    %v640 = vsub.f32 %v619, %v632
    %v641 = vsub.f32 %v622, %v635
    %v642 = vsub.f32 %v625, %v638
    %v643 = vmul.f32 %v639, 1.442695
    %v644 = vpow.pop %v643
    %v645 = vmul.f32 %v640, 1.442695
    %v646 = vpow.pop %v645
    %v647 = vmul.f32 %v641, 1.442695
    %v648 = vpow.pop %v647
    %v649 = vmul.f32 %v642, 1.442695
    %v650 = vpow.pop %v649
    %v651 = vsel %vm316, %v644, 0.0
    %652 = vadd.xlane.f32.xlu0 %v651
    %v653 = vpop.xlane.xlu0 %652
    %v654 = vsel %vm316, %v646, 0.0
    %655 = vadd.xlane.f32.xlu0 %v654
    %v656 = vpop.xlane.xlu0 %655
    %v657 = vsel %vm316, %v648, 0.0
    %658 = vadd.xlane.f32.xlu0 %v657
    %v659 = vpop.xlane.xlu0 %658
    %v660 = vsel %vm316, %v650, 0.0
    %661 = vadd.xlane.f32.xlu0 %v660
    %v662 = vpop.xlane.xlu0 %661
    %v663 = vrcp.pop %v653
    %v664 = vmul.f32 %v653, %v663
    %v665 = vsub.f32 1.0, %v664
    %v666 = vmul.f32 %v663, %v665
    %v667 = vadd.f32 %v663, %v666
    %vm668 = vweird.f32 %v653
    %vm669 = vweird.f32 %v663
    %vm670 = vmor %vm668, %vm669
    %v671 = vsel %vm670, %v663, %v667
    %v672 = vand.u32 2147483647, %v653
    %vm673 = vcmp.eq.f32.partialorder %v672, 8.507059e+37
    %v674 = vand.u32 %v653, 2147483648
    %v675 = vor.u32 1.1754944e-38, %v674
    %v676 = vsel %vm673, %v675, %v671
    %v677 = vmul.f32 %v644, %v676
    %v678 = vrcp.pop %v656
    %v679 = vmul.f32 %v656, %v678
    %v680 = vsub.f32 1.0, %v679
    %v681 = vmul.f32 %v678, %v680
    %v682 = vadd.f32 %v678, %v681
    %vm683 = vweird.f32 %v656
    %vm684 = vweird.f32 %v678
    %vm685 = vmor %vm683, %vm684
    %v686 = vsel %vm685, %v678, %v682
    %v687 = vand.u32 2147483647, %v656
    %vm688 = vcmp.eq.f32.partialorder %v687, 8.507059e+37
    %v689 = vand.u32 %v656, 2147483648
    %v690 = vor.u32 1.1754944e-38, %v689
    %v691 = vsel %vm688, %v690, %v686
    %v692 = vmul.f32 %v646, %v691
    %v693 = vrcp.pop %v659
    %v694 = vmul.f32 %v659, %v693
    %v695 = vsub.f32 1.0, %v694
    %v696 = vmul.f32 %v693, %v695
    %v697 = vadd.f32 %v693, %v696
    %vm698 = vweird.f32 %v659
    %vm699 = vweird.f32 %v693
    %vm700 = vmor %vm698, %vm699
    %v701 = vsel %vm700, %v693, %v697
    %v702 = vand.u32 2147483647, %v659
    %vm703 = vcmp.eq.f32.partialorder %v702, 8.507059e+37
    %v704 = vand.u32 %v659, 2147483648
    %v705 = vor.u32 1.1754944e-38, %v704
    %v706 = vsel %vm703, %v705, %v701
    %v707 = vmul.f32 %v648, %v706
    %v708 = vrcp.pop %v662
    %v709 = vmul.f32 %v662, %v708
    %v710 = vsub.f32 1.0, %v709
    %v711 = vmul.f32 %v708, %v710
    %v712 = vadd.f32 %v708, %v711
    %vm713 = vweird.f32 %v662
    %vm714 = vweird.f32 %v708
    %vm715 = vmor %vm713, %vm714
    %v716 = vsel %vm715, %v708, %v712
    %v717 = vand.u32 2147483647, %v662
    %vm718 = vcmp.eq.f32.partialorder %v717, 8.507059e+37
    %v719 = vand.u32 %v662, 2147483648
    %v720 = vor.u32 1.1754944e-38, %v719
    %v721 = vsel %vm718, %v720, %v716
    %v722 = vmul.f32 %v650, %v721
    %v724 = vsel %vm316, %v677, 0
    %v727 = vsel %vm316, %v692, 0
    %v730 = vsel %vm316, %v707, 0
    %v733 = vsel %vm316, %v722, 0
    %v736 = vsel %vm425, %v577, 0
    %738 = vmatpush.msra.mxu0 0.0
    %739 = vmatpush.msra.mxu0 0.0
    %740 = vmatpush.msra.mxu0 0.0
    %741 = vmatpush.msra.mxu0 0.0
    %742 = vmatpush.msra.mxu0 0.0
    %743 = vmatpush.msra.mxu0 0.0
    %744 = vmatpush.msra.mxu0 0.0
    %745 = vmatpush.msra.mxu0 0.0
    %746 = vmatpush.msra.mxu0 0.0
    %747 = vmatpush.msra.mxu0 0.0
    %748 = vmatpush.msra.mxu0 0.0
    %749 = vmatpush.msra.mxu0 0.0
    %750 = vmatpush.msra.mxu0 0.0
    %751 = vmatpush.msra.mxu0 0.0
    %752 = vmatpush.msra.mxu0 0.0
    %753 = vmatpush.msra.mxu0 %v736
    %754 = vmatmul.f32.gmra.mxu0 %v724
    %v755 = vpop.f32.mrf.mxu0
    %v756 = vadd.f32 0.0, %v755
    %757 = vmatmul.f32.gmra.mxu0 %v727
    %v758 = vpop.f32.mrf.mxu0
    %v759 = vadd.f32 0.0, %v758
    %760 = vmatmul.f32.gmra.mxu0 %v730
    %v761 = vpop.f32.mrf.mxu0
    %v762 = vadd.f32 0.0, %v761
    %763 = vmatmul.f32.gmra.mxu0 %v733
    %v764 = vpop.f32.mrf.mxu0
    %v765 = vadd.f32 0.0, %v764
    %766 = vdwg.mxu0
    %v767 = vmul.f32 %v756, %v134
    %v768 = vadd.f32 %v767, 0.0
    %v769 = vadd.f32 %v677, 0.0
    %v770 = vmul.f32 %v759, %v139
    %v771 = vadd.f32 %v768, %v770
    %v772 = vadd.f32 %v769, %v692
    %v773 = vmul.f32 %v762, %v144
    %v774 = vadd.f32 %v771, %v773
    %v775 = vadd.f32 %v772, %v707
    %v776 = vmul.f32 %v765, %v149
    %v777 = vadd.f32 %v774, %v776
    %v778 = vadd.f32 %v775, %v722
    %v780 = vsel %vm151, %v777, 0
    %782 = vmatpush.xpose.msra.mxu0 0.0
    %783 = vmatpush.xpose.msra.mxu0 0.0
    %784 = vmatpush.xpose.msra.mxu0 0.0
    %785 = vmatpush.xpose.msra.mxu0 0.0
    %786 = vmatpush.xpose.msra.mxu0 0.0
    %787 = vmatpush.xpose.msra.mxu0 0.0
    %788 = vmatpush.xpose.msra.mxu0 0.0
    %789 = vmatpush.xpose.msra.mxu0 0.0
    %790 = vmatpush.xpose.msra.mxu0 0.0
    %791 = vmatpush.xpose.msra.mxu0 0.0
    %792 = vmatpush.xpose.msra.mxu0 0.0
    %793 = vmatpush.xpose.msra.mxu0 %v487
    %794 = vmatpush.xpose.msra.mxu0 %v484
    %795 = vmatpush.xpose.msra.mxu0 %v481
    %796 = vmatpush.xpose.msra.mxu0 %v478
    %797 = vmatpush.xpose.msra.mxu0 %v475
    %798 = vmatmul.f32.gmra.mxu0 %v780
    %v799 = vpop.f32.mrf.mxu0
    %v800 = vadd.f32 %v470, %v799
    %801 = vdwg.mxu0
    %v802 = vmul.f32 %v778, 0.25
    %803 = vst.msk [vmem:[#allocation10] sm:$0xff] %vm151, %v507
    %804 = vst.msk [vmem:[#allocation10 + $0x8] sm:$0xff] %vm151, %v800
    %805 = vst.msk [vmem:[%s9] sm:$0xff] %vm316, %v509
    %806 = vst.msk [vmem:[%s9 + $0x8] sm:$0xff] %vm316, %v802
    %s807 = scalar_lea.vmem [#allocation2], 40
    %v808 = vld [vmem:[%s807] sm:$0xff]
    %v809 = vld [vmem:[%s807 + $0x8] sm:$0xff]
    %v810 = vld [vmem:[%s807 + $0x10] sm:$0xff]
    %v811 = vld [vmem:[%s807 + $0x18] sm:$0xff]
    %v812 = vld [vmem:[%s807 + $0x20] sm:$0xff]
    %s813 = scalar_lea.vmem [#allocation5], 40
    %v814 = vld [vmem:[%s813] sm:$0xff]
    %v815 = vld [vmem:[%s813 + $0x8] sm:$0xff]
    %v816 = vld [vmem:[%s813 + $0x10] sm:$0xff]
    %v817 = vld [vmem:[%s813 + $0x18] sm:$0xff]
    %v818 = vld [vmem:[%s813 + $0x20] sm:$0xff]
    %s819 = scalar_lea.vmem [#allocation7], 40
    %v820 = vld [vmem:[%s819] sm:$0xff]
    %v821 = vld [vmem:[%s819 + $0x8] sm:$0xff]
    %v822 = vld [vmem:[%s819 + $0x10] sm:$0xff]
    %v823 = vld [vmem:[%s819 + $0x18] sm:$0xff]
    %v824 = vld [vmem:[%s819 + $0x20] sm:$0xff]
    %s825 = scalar_lea.vmem [#allocation8], 40
    %v826 = vld [vmem:[%s825] sm:$0xff]
    %v827 = vld [vmem:[%s825 + $0x8] sm:$0xff]
    %v828 = vld [vmem:[%s825 + $0x10] sm:$0xff]
    %v829 = vld [vmem:[%s825 + $0x18] sm:$0xff]
    %v830 = vld [vmem:[%s825 + $0x20] sm:$0xff]
    %s831 = scalar_lea.vmem %s7, 8
    %v832 = vld [vmem:[%s831] sm:$0xff]
    %vm833 = vcmp.lt.s32.totalorder %v108, 5
    %vm834 = vmand %vm130, %vm833
    %v835 = vsel %vm834, 1, 0
    %v836 = vcvt.s32.f32 %v835
    %vm837 = vcmp.ge.s32.totalorder %v108, 5
    %vm838 = vmand %vm837, %vm131
    %v839 = vsel %vm838, 1, 0
    %v840 = vcvt.s32.f32 %v839
    %vm841 = vcmp.lt.s32.totalorder %v108, 15
    %vm842 = vmand %vm135, %vm841
    %v843 = vsel %vm842, 1, 0
    %v844 = vcvt.s32.f32 %v843
    %vm845 = vcmp.ge.s32.totalorder %v108, 15
    %vm846 = vmand %vm845, %vm136
    %v847 = vsel %vm846, 1, 0
    %v848 = vcvt.s32.f32 %v847
    %vm849 = vcmp.lt.s32.totalorder %v108, 25
    %vm850 = vmand %vm140, %vm849
    %v851 = vsel %vm850, 1, 0
    %v852 = vcvt.s32.f32 %v851
    %vm853 = vcmp.ge.s32.totalorder %v108, 25
    %vm854 = vmand %vm853, %vm141
    %v855 = vsel %vm854, 1, 0
    %v856 = vcvt.s32.f32 %v855
    %vm857 = vcmp.lt.s32.totalorder %v108, 35
    %vm858 = vmand %vm145, %vm857
    %v859 = vsel %vm858, 1, 0
    %v860 = vcvt.s32.f32 %v859
    %vm861 = vcmp.ge.s32.totalorder %v108, 35
    %vm862 = vmand %vm861, %vm146
    %v863 = vsel %vm862, 1, 0
    %v864 = vcvt.s32.f32 %v863
    %v865 = vperm.slane %v832, 0
    %v867 = vsel %vm151, %v808, 0
    %v870 = vsel %vm151, %v809, 0
    %v873 = vsel %vm151, %v810, 0
    %v876 = vsel %vm151, %v811, 0
    %v879 = vsel %vm151, %v812, 0
    %881 = vmatpush.xpose.msra.mxu0 0.0
    %882 = vmatpush.xpose.msra.mxu0 0.0
    %883 = vmatpush.xpose.msra.mxu0 0.0
    %884 = vmatpush.xpose.msra.mxu0 0.0
    %885 = vmatpush.xpose.msra.mxu0 0.0
    %886 = vmatpush.xpose.msra.mxu0 0.0
    %887 = vmatpush.xpose.msra.mxu0 0.0
    %888 = vmatpush.xpose.msra.mxu0 0.0
    %889 = vmatpush.xpose.msra.mxu0 0.0
    %890 = vmatpush.xpose.msra.mxu0 0.0
    %891 = vmatpush.xpose.msra.mxu0 0.0
    %892 = vmatpush.xpose.msra.mxu0 %v879
    %893 = vmatpush.xpose.msra.mxu0 %v876
    %894 = vmatpush.xpose.msra.mxu0 %v873
    %895 = vmatpush.xpose.msra.mxu0 %v870
    %896 = vmatpush.xpose.msra.mxu0 %v867
    %897 = vmatmul.f32.gmra.mxu0 %v153
    %v898 = vpop.f32.mrf.mxu0
    %v899 = vadd.f32 %v865, %v898
    %900 = vdwg.mxu0
    %v901 = vperm.slane %v832, 1
    %v903 = vsel %vm151, %v814, 0
    %v906 = vsel %vm151, %v815, 0
    %v909 = vsel %vm151, %v816, 0
    %v912 = vsel %vm151, %v817, 0
    %v915 = vsel %vm151, %v818, 0
    %917 = vmatpush.xpose.msra.mxu0 0.0
    %918 = vmatpush.xpose.msra.mxu0 0.0
    %919 = vmatpush.xpose.msra.mxu0 0.0
    %920 = vmatpush.xpose.msra.mxu0 0.0
    %921 = vmatpush.xpose.msra.mxu0 0.0
    %922 = vmatpush.xpose.msra.mxu0 0.0
    %923 = vmatpush.xpose.msra.mxu0 0.0
    %924 = vmatpush.xpose.msra.mxu0 0.0
    %925 = vmatpush.xpose.msra.mxu0 0.0
    %926 = vmatpush.xpose.msra.mxu0 0.0
    %927 = vmatpush.xpose.msra.mxu0 0.0
    %928 = vmatpush.xpose.msra.mxu0 %v915
    %929 = vmatpush.xpose.msra.mxu0 %v912
    %930 = vmatpush.xpose.msra.mxu0 %v909
    %931 = vmatpush.xpose.msra.mxu0 %v906
    %932 = vmatpush.xpose.msra.mxu0 %v903
    %933 = vmatmul.f32.gmra.mxu0 %v192
    %v934 = vpop.f32.mrf.mxu0
    %v935 = vadd.f32 %v901, %v934
    %936 = vdwg.mxu0
    %v937 = vperm.slane %v832, 2
    %v939 = vsel %vm151, %v820, 0
    %v942 = vsel %vm151, %v821, 0
    %v945 = vsel %vm151, %v822, 0
    %v948 = vsel %vm151, %v823, 0
    %v951 = vsel %vm151, %v824, 0
    %953 = vmatpush.xpose.msra.mxu0 0.0
    %954 = vmatpush.xpose.msra.mxu0 0.0
    %955 = vmatpush.xpose.msra.mxu0 0.0
    %956 = vmatpush.xpose.msra.mxu0 0.0
    %957 = vmatpush.xpose.msra.mxu0 0.0
    %958 = vmatpush.xpose.msra.mxu0 0.0
    %959 = vmatpush.xpose.msra.mxu0 0.0
    %960 = vmatpush.xpose.msra.mxu0 0.0
    %961 = vmatpush.xpose.msra.mxu0 0.0
    %962 = vmatpush.xpose.msra.mxu0 0.0
    %963 = vmatpush.xpose.msra.mxu0 0.0
    %964 = vmatpush.xpose.msra.mxu0 %v951
    %965 = vmatpush.xpose.msra.mxu0 %v948
    %966 = vmatpush.xpose.msra.mxu0 %v945
    %967 = vmatpush.xpose.msra.mxu0 %v942
    %968 = vmatpush.xpose.msra.mxu0 %v939
    %969 = vmatmul.f32.gmra.mxu0 %v231
    %v970 = vpop.f32.mrf.mxu0
    %v971 = vadd.f32 %v937, %v970
    %972 = vdwg.mxu0
    %v973 = vmul.f32 %v899, %v836
    %v974 = vmul.f32 %v899, %v840
    %v975 = vmul.f32 %v899, %v844
    %v976 = vmul.f32 %v899, %v848
    %v977 = vmul.f32 %v899, %v852
    %v978 = vmul.f32 %v899, %v856
    %v979 = vmul.f32 %v899, %v860
    %v980 = vmul.f32 %v899, %v864
    %v982 = vsel %vm151, %v973, 0
    %v985 = vsel %vm151, %v974, 0
    %v988 = vsel %vm151, %v975, 0
    %v991 = vsel %vm151, %v976, 0
    %v994 = vsel %vm151, %v977, 0
    %v997 = vsel %vm151, %v978, 0
    %v1000 = vsel %vm151, %v979, 0
    %v1003 = vsel %vm151, %v980, 0
    %v1006 = vsel %vm151, %v935, 0
    %1008 = vmatpush.xpose.msra.mxu0 0.0
    %1009 = vmatpush.xpose.msra.mxu0 0.0
    %1010 = vmatpush.xpose.msra.mxu0 0.0
    %1011 = vmatpush.xpose.msra.mxu0 0.0
    %1012 = vmatpush.xpose.msra.mxu0 0.0
    %1013 = vmatpush.xpose.msra.mxu0 0.0
    %1014 = vmatpush.xpose.msra.mxu0 0.0
    %1015 = vmatpush.xpose.msra.mxu0 0.0
    %1016 = vmatpush.xpose.msra.mxu0 0.0
    %1017 = vmatpush.xpose.msra.mxu0 0.0
    %1018 = vmatpush.xpose.msra.mxu0 0.0
    %1019 = vmatpush.xpose.msra.mxu0 0.0
    %1020 = vmatpush.xpose.msra.mxu0 0.0
    %1021 = vmatpush.xpose.msra.mxu0 0.0
    %1022 = vmatpush.xpose.msra.mxu0 0.0
    %1023 = vmatpush.xpose.msra.mxu0 %v1006
    %1024 = vmatmul.f32.gmra.mxu0 %v982
    %v1025 = vpop.f32.mrf.mxu0
    %v1026 = vadd.f32 0.0, %v1025
    %1027 = vmatmul.f32.gmra.mxu0 %v985
    %v1028 = vpop.f32.mrf.mxu0
    %v1029 = vadd.f32 0.0, %v1028
    %1030 = vmatmul.f32.gmra.mxu0 %v988
    %v1031 = vpop.f32.mrf.mxu0
    %v1032 = vadd.f32 0.0, %v1031
    %1033 = vmatmul.f32.gmra.mxu0 %v991
    %v1034 = vpop.f32.mrf.mxu0
    %v1035 = vadd.f32 0.0, %v1034
    %1036 = vmatmul.f32.gmra.mxu0 %v994
    %v1037 = vpop.f32.mrf.mxu0
    %v1038 = vadd.f32 0.0, %v1037
    %1039 = vmatmul.f32.gmra.mxu0 %v997
    %v1040 = vpop.f32.mrf.mxu0
    %v1041 = vadd.f32 0.0, %v1040
    %1042 = vmatmul.f32.gmra.mxu0 %v1000
    %v1043 = vpop.f32.mrf.mxu0
    %v1044 = vadd.f32 0.0, %v1043
    %1045 = vmatmul.f32.gmra.mxu0 %v1003
    %v1046 = vpop.f32.mrf.mxu0
    %v1047 = vadd.f32 0.0, %v1046
    %1048 = vdwg.mxu0
    %v1049 = vsel %vm316, %v1026, -inf
    %1050 = vmax.xlane.f32.xlu0 %v1049
    %v1051 = vpop.xlane.xlu0 %1050
    %v1052 = vsel %vm316, %v1029, -inf
    %1053 = vmax.xlane.f32.xlu0 %v1052
    %v1054 = vpop.xlane.xlu0 %1053
    %v1055 = vsel %vm316, %v1032, -inf
    %1056 = vmax.xlane.f32.xlu0 %v1055
    %v1057 = vpop.xlane.xlu0 %1056
    %v1058 = vsel %vm316, %v1035, -inf
    %1059 = vmax.xlane.f32.xlu0 %v1058
    %v1060 = vpop.xlane.xlu0 %1059
    %v1061 = vsel %vm316, %v1038, -inf
    %1062 = vmax.xlane.f32.xlu0 %v1061
    %v1063 = vpop.xlane.xlu0 %1062
    %v1064 = vsel %vm316, %v1041, -inf
    %1065 = vmax.xlane.f32.xlu0 %v1064
    %v1066 = vpop.xlane.xlu0 %1065
    %v1067 = vsel %vm316, %v1044, -inf
    %1068 = vmax.xlane.f32.xlu0 %v1067
    %v1069 = vpop.xlane.xlu0 %1068
    %v1070 = vsel %vm316, %v1047, -inf
    %1071 = vmax.xlane.f32.xlu0 %v1070
    %v1072 = vpop.xlane.xlu0 %1071
    %v1073 = vsub.f32 %v1026, %v1051
    %v1074 = vsub.f32 %v1029, %v1054
    %v1075 = vsub.f32 %v1032, %v1057
    %v1076 = vsub.f32 %v1035, %v1060
    %v1077 = vsub.f32 %v1038, %v1063
    %v1078 = vsub.f32 %v1041, %v1066
    %v1079 = vsub.f32 %v1044, %v1069
    %v1080 = vsub.f32 %v1047, %v1072
    %v1081 = vmul.f32 %v1073, 1.442695
    %v1082 = vpow.pop %v1081
    %v1083 = vmul.f32 %v1074, 1.442695
    %v1084 = vpow.pop %v1083
    %v1085 = vmul.f32 %v1075, 1.442695
    %v1086 = vpow.pop %v1085
    %v1087 = vmul.f32 %v1076, 1.442695
    %v1088 = vpow.pop %v1087
    %v1089 = vmul.f32 %v1077, 1.442695
    %v1090 = vpow.pop %v1089
    %v1091 = vmul.f32 %v1078, 1.442695
    %v1092 = vpow.pop %v1091
    %v1093 = vmul.f32 %v1079, 1.442695
    %v1094 = vpow.pop %v1093
    %v1095 = vmul.f32 %v1080, 1.442695
    %v1096 = vpow.pop %v1095
    %v1097 = vsel %vm316, %v1082, 0.0
    %1098 = vadd.xlane.f32.xlu0 %v1097
    %v1099 = vpop.xlane.xlu0 %1098
    %v1100 = vsel %vm316, %v1084, 0.0
    %1101 = vadd.xlane.f32.xlu0 %v1100
    %v1102 = vpop.xlane.xlu0 %1101
    %v1103 = vsel %vm316, %v1086, 0.0
    %1104 = vadd.xlane.f32.xlu0 %v1103
    %v1105 = vpop.xlane.xlu0 %1104
    %v1106 = vsel %vm316, %v1088, 0.0
    %1107 = vadd.xlane.f32.xlu0 %v1106
    %v1108 = vpop.xlane.xlu0 %1107
    %v1109 = vsel %vm316, %v1090, 0.0
    %1110 = vadd.xlane.f32.xlu0 %v1109
    %v1111 = vpop.xlane.xlu0 %1110
    %v1112 = vsel %vm316, %v1092, 0.0
    %1113 = vadd.xlane.f32.xlu0 %v1112
    %v1114 = vpop.xlane.xlu0 %1113
    %v1115 = vsel %vm316, %v1094, 0.0
    %1116 = vadd.xlane.f32.xlu0 %v1115
    %v1117 = vpop.xlane.xlu0 %1116
    %v1118 = vsel %vm316, %v1096, 0.0
    %1119 = vadd.xlane.f32.xlu0 %v1118
    %v1120 = vpop.xlane.xlu0 %1119
    %v1121 = vrcp.pop %v1099
    %v1122 = vmul.f32 %v1099, %v1121
    %v1123 = vsub.f32 1.0, %v1122
    %v1124 = vmul.f32 %v1121, %v1123
    %v1125 = vadd.f32 %v1121, %v1124
    %vm1126 = vweird.f32 %v1099
    %vm1127 = vweird.f32 %v1121
    %vm1128 = vmor %vm1126, %vm1127
    %v1129 = vsel %vm1128, %v1121, %v1125
    %v1130 = vand.u32 2147483647, %v1099
    %vm1131 = vcmp.eq.f32.partialorder %v1130, 8.507059e+37
    %v1132 = vand.u32 %v1099, 2147483648
    %v1133 = vor.u32 1.1754944e-38, %v1132
    %v1134 = vsel %vm1131, %v1133, %v1129
    %v1135 = vmul.f32 %v1082, %v1134
    %v1136 = vrcp.pop %v1102
    %v1137 = vmul.f32 %v1102, %v1136
    %v1138 = vsub.f32 1.0, %v1137
    %v1139 = vmul.f32 %v1136, %v1138
    %v1140 = vadd.f32 %v1136, %v1139
    %vm1141 = vweird.f32 %v1102
    %vm1142 = vweird.f32 %v1136
    %vm1143 = vmor %vm1141, %vm1142
    %v1144 = vsel %vm1143, %v1136, %v1140
    %v1145 = vand.u32 2147483647, %v1102
    %vm1146 = vcmp.eq.f32.partialorder %v1145, 8.507059e+37
    %v1147 = vand.u32 %v1102, 2147483648
    %v1148 = vor.u32 1.1754944e-38, %v1147
    %v1149 = vsel %vm1146, %v1148, %v1144
    %v1150 = vmul.f32 %v1084, %v1149
    %v1151 = vrcp.pop %v1105
    %v1152 = vmul.f32 %v1105, %v1151
    %v1153 = vsub.f32 1.0, %v1152
    %v1154 = vmul.f32 %v1151, %v1153
    %v1155 = vadd.f32 %v1151, %v1154
    %vm1156 = vweird.f32 %v1105
    %vm1157 = vweird.f32 %v1151
    %vm1158 = vmor %vm1156, %vm1157
    %v1159 = vsel %vm1158, %v1151, %v1155
    %v1160 = vand.u32 2147483647, %v1105
    %vm1161 = vcmp.eq.f32.partialorder %v1160, 8.507059e+37
    %v1162 = vand.u32 %v1105, 2147483648
    %v1163 = vor.u32 1.1754944e-38, %v1162
    %v1164 = vsel %vm1161, %v1163, %v1159
    %v1165 = vmul.f32 %v1086, %v1164
    %v1166 = vrcp.pop %v1108
    %v1167 = vmul.f32 %v1108, %v1166
    %v1168 = vsub.f32 1.0, %v1167
    %v1169 = vmul.f32 %v1166, %v1168
    %v1170 = vadd.f32 %v1166, %v1169
    %vm1171 = vweird.f32 %v1108
    %vm1172 = vweird.f32 %v1166
    %vm1173 = vmor %vm1171, %vm1172
    %v1174 = vsel %vm1173, %v1166, %v1170
    %v1175 = vand.u32 2147483647, %v1108
    %vm1176 = vcmp.eq.f32.partialorder %v1175, 8.507059e+37
    %v1177 = vand.u32 %v1108, 2147483648
    %v1178 = vor.u32 1.1754944e-38, %v1177
    %v1179 = vsel %vm1176, %v1178, %v1174
    %v1180 = vmul.f32 %v1088, %v1179
    %v1181 = vrcp.pop %v1111
    %v1182 = vmul.f32 %v1111, %v1181
    %v1183 = vsub.f32 1.0, %v1182
    %v1184 = vmul.f32 %v1181, %v1183
    %v1185 = vadd.f32 %v1181, %v1184
    %vm1186 = vweird.f32 %v1111
    %vm1187 = vweird.f32 %v1181
    %vm1188 = vmor %vm1186, %vm1187
    %v1189 = vsel %vm1188, %v1181, %v1185
    %v1190 = vand.u32 2147483647, %v1111
    %vm1191 = vcmp.eq.f32.partialorder %v1190, 8.507059e+37
    %v1192 = vand.u32 %v1111, 2147483648
    %v1193 = vor.u32 1.1754944e-38, %v1192
    %v1194 = vsel %vm1191, %v1193, %v1189
    %v1195 = vmul.f32 %v1090, %v1194
    %v1196 = vrcp.pop %v1114
    %v1197 = vmul.f32 %v1114, %v1196
    %v1198 = vsub.f32 1.0, %v1197
    %v1199 = vmul.f32 %v1196, %v1198
    %v1200 = vadd.f32 %v1196, %v1199
    %vm1201 = vweird.f32 %v1114
    %vm1202 = vweird.f32 %v1196
    %vm1203 = vmor %vm1201, %vm1202
    %v1204 = vsel %vm1203, %v1196, %v1200
    %v1205 = vand.u32 2147483647, %v1114
    %vm1206 = vcmp.eq.f32.partialorder %v1205, 8.507059e+37
    %v1207 = vand.u32 %v1114, 2147483648
    %v1208 = vor.u32 1.1754944e-38, %v1207
    %v1209 = vsel %vm1206, %v1208, %v1204
    %v1210 = vmul.f32 %v1092, %v1209
    %v1211 = vrcp.pop %v1117
    %v1212 = vmul.f32 %v1117, %v1211
    %v1213 = vsub.f32 1.0, %v1212
    %v1214 = vmul.f32 %v1211, %v1213
    %v1215 = vadd.f32 %v1211, %v1214
    %vm1216 = vweird.f32 %v1117
    %vm1217 = vweird.f32 %v1211
    %vm1218 = vmor %vm1216, %vm1217
    %v1219 = vsel %vm1218, %v1211, %v1215
    %v1220 = vand.u32 2147483647, %v1117
    %vm1221 = vcmp.eq.f32.partialorder %v1220, 8.507059e+37
    %v1222 = vand.u32 %v1117, 2147483648
    %v1223 = vor.u32 1.1754944e-38, %v1222
    %v1224 = vsel %vm1221, %v1223, %v1219
    %v1225 = vmul.f32 %v1094, %v1224
    %v1226 = vrcp.pop %v1120
    %v1227 = vmul.f32 %v1120, %v1226
    %v1228 = vsub.f32 1.0, %v1227
    %v1229 = vmul.f32 %v1226, %v1228
    %v1230 = vadd.f32 %v1226, %v1229
    %vm1231 = vweird.f32 %v1120
    %vm1232 = vweird.f32 %v1226
    %vm1233 = vmor %vm1231, %vm1232
    %v1234 = vsel %vm1233, %v1226, %v1230
    %v1235 = vand.u32 2147483647, %v1120
    %vm1236 = vcmp.eq.f32.partialorder %v1235, 8.507059e+37
    %v1237 = vand.u32 %v1120, 2147483648
    %v1238 = vor.u32 1.1754944e-38, %v1237
    %v1239 = vsel %vm1236, %v1238, %v1234
    %v1240 = vmul.f32 %v1096, %v1239
    %v1242 = vsel %vm316, %v1135, 0
    %v1245 = vsel %vm316, %v1150, 0
    %v1248 = vsel %vm316, %v1165, 0
    %v1251 = vsel %vm316, %v1180, 0
    %v1254 = vsel %vm316, %v1195, 0
    %v1257 = vsel %vm316, %v1210, 0
    %v1260 = vsel %vm316, %v1225, 0
    %v1263 = vsel %vm316, %v1240, 0
    %v1266 = vsel %vm425, %v971, 0
    %1268 = vmatpush.msra.mxu0 0.0
    %1269 = vmatpush.msra.mxu0 0.0
    %1270 = vmatpush.msra.mxu0 0.0
    %1271 = vmatpush.msra.mxu0 0.0
    %1272 = vmatpush.msra.mxu0 0.0
    %1273 = vmatpush.msra.mxu0 0.0
    %1274 = vmatpush.msra.mxu0 0.0
    %1275 = vmatpush.msra.mxu0 0.0
    %1276 = vmatpush.msra.mxu0 0.0
    %1277 = vmatpush.msra.mxu0 0.0
    %1278 = vmatpush.msra.mxu0 0.0
    %1279 = vmatpush.msra.mxu0 0.0
    %1280 = vmatpush.msra.mxu0 0.0
    %1281 = vmatpush.msra.mxu0 0.0
    %1282 = vmatpush.msra.mxu0 0.0
    %1283 = vmatpush.msra.mxu0 %v1266
    %1284 = vmatmul.f32.gmra.mxu0 %v1242
    %v1285 = vpop.f32.mrf.mxu0
    %v1286 = vadd.f32 0.0, %v1285
    %1287 = vmatmul.f32.gmra.mxu0 %v1245
    %v1288 = vpop.f32.mrf.mxu0
    %v1289 = vadd.f32 0.0, %v1288
    %1290 = vmatmul.f32.gmra.mxu0 %v1248
    %v1291 = vpop.f32.mrf.mxu0
    %v1292 = vadd.f32 0.0, %v1291
    %1293 = vmatmul.f32.gmra.mxu0 %v1251
    %v1294 = vpop.f32.mrf.mxu0
    %v1295 = vadd.f32 0.0, %v1294
    %1296 = vmatmul.f32.gmra.mxu0 %v1254
    %v1297 = vpop.f32.mrf.mxu0
    %v1298 = vadd.f32 0.0, %v1297
    %1299 = vmatmul.f32.gmra.mxu0 %v1257
    %v1300 = vpop.f32.mrf.mxu0
    %v1301 = vadd.f32 0.0, %v1300
    %1302 = vmatmul.f32.gmra.mxu0 %v1260
    %v1303 = vpop.f32.mrf.mxu0
    %v1304 = vadd.f32 0.0, %v1303
    %1305 = vmatmul.f32.gmra.mxu0 %v1263
    %v1306 = vpop.f32.mrf.mxu0
    %v1307 = vadd.f32 0.0, %v1306
    %1308 = vdwg.mxu0
    %v1309 = vmul.f32 %v1286, %v836
    %v1310 = vadd.f32 %v1309, 0.0
    %v1311 = vadd.f32 %v1135, 0.0
    %v1312 = vmul.f32 %v1289, %v840
    %v1313 = vadd.f32 %v1310, %v1312
    %v1314 = vadd.f32 %v1311, %v1150
    %v1315 = vmul.f32 %v1292, %v844
    %v1316 = vadd.f32 %v1313, %v1315
    %v1317 = vadd.f32 %v1314, %v1165
    %v1318 = vmul.f32 %v1295, %v848
    %v1319 = vadd.f32 %v1316, %v1318
    %v1320 = vadd.f32 %v1317, %v1180
    %v1321 = vmul.f32 %v1298, %v852
    %v1322 = vadd.f32 %v1319, %v1321
    %v1323 = vadd.f32 %v1320, %v1195
    %v1324 = vmul.f32 %v1301, %v856
    %v1325 = vadd.f32 %v1322, %v1324
    %v1326 = vadd.f32 %v1323, %v1210
    %v1327 = vmul.f32 %v1304, %v860
    %v1328 = vadd.f32 %v1325, %v1327
    %v1329 = vadd.f32 %v1326, %v1225
    %v1330 = vmul.f32 %v1307, %v864
    %v1331 = vadd.f32 %v1328, %v1330
    %v1332 = vadd.f32 %v1329, %v1240
    %v1333 = vperm.slane %v832, 3
    %v1335 = vsel %vm151, %v1331, 0
    %v1338 = vsel %vm151, %v826, 0
    %v1341 = vsel %vm151, %v827, 0
    %v1344 = vsel %vm151, %v828, 0
    %v1347 = vsel %vm151, %v829, 0
    %v1350 = vsel %vm151, %v830, 0
    %1352 = vmatpush.xpose.msra.mxu0 0.0
    %1353 = vmatpush.xpose.msra.mxu0 0.0
    %1354 = vmatpush.xpose.msra.mxu0 0.0
    %1355 = vmatpush.xpose.msra.mxu0 0.0
    %1356 = vmatpush.xpose.msra.mxu0 0.0
    %1357 = vmatpush.xpose.msra.mxu0 0.0
    %1358 = vmatpush.xpose.msra.mxu0 0.0
    %1359 = vmatpush.xpose.msra.mxu0 0.0
    %1360 = vmatpush.xpose.msra.mxu0 0.0
    %1361 = vmatpush.xpose.msra.mxu0 0.0
    %1362 = vmatpush.xpose.msra.mxu0 0.0
    %1363 = vmatpush.xpose.msra.mxu0 %v1350
    %1364 = vmatpush.xpose.msra.mxu0 %v1347
    %1365 = vmatpush.xpose.msra.mxu0 %v1344
    %1366 = vmatpush.xpose.msra.mxu0 %v1341
    %1367 = vmatpush.xpose.msra.mxu0 %v1338
    %1368 = vmatmul.f32.gmra.mxu0 %v1335
    %v1369 = vpop.f32.mrf.mxu0
    %v1370 = vadd.f32 %v1333, %v1369
    %1371 = vdwg.mxu0
    %v1372 = vmul.f32 %v1332, 0.125
    %1373 = vmatpush.xpose.msra.mxu0 0.0
    %1374 = vmatpush.xpose.msra.mxu0 0.0
    %1375 = vmatpush.xpose.msra.mxu0 0.0
    %1376 = vmatpush.xpose.msra.mxu0 0.0
    %1377 = vmatpush.xpose.msra.mxu0 0.0
    %1378 = vmatpush.xpose.msra.mxu0 0.0
    %1379 = vmatpush.xpose.msra.mxu0 0.0
    %1380 = vmatpush.xpose.msra.mxu0 0.0
    %1381 = vmatpush.xpose.msra.mxu0 0.0
    %1382 = vmatpush.xpose.msra.mxu0 0.0
    %1383 = vmatpush.xpose.msra.mxu0 0.0
    %1384 = vmatpush.xpose.msra.mxu0 %v879
    %1385 = vmatpush.xpose.msra.mxu0 %v876
    %1386 = vmatpush.xpose.msra.mxu0 %v873
    %1387 = vmatpush.xpose.msra.mxu0 %v870
    %1388 = vmatpush.xpose.msra.mxu0 %v867
    %1389 = vmatmul.f32.gmra.mxu0 %v511
    %v1390 = vpop.f32.mrf.mxu0
    %v1391 = vadd.f32 %v865, %v1390
    %1392 = vdwg.mxu0
    %1393 = vmatpush.xpose.msra.mxu0 0.0
    %1394 = vmatpush.xpose.msra.mxu0 0.0
    %1395 = vmatpush.xpose.msra.mxu0 0.0
    %1396 = vmatpush.xpose.msra.mxu0 0.0
    %1397 = vmatpush.xpose.msra.mxu0 0.0
    %1398 = vmatpush.xpose.msra.mxu0 0.0
    %1399 = vmatpush.xpose.msra.mxu0 0.0
    %1400 = vmatpush.xpose.msra.mxu0 0.0
    %1401 = vmatpush.xpose.msra.mxu0 0.0
    %1402 = vmatpush.xpose.msra.mxu0 0.0
    %1403 = vmatpush.xpose.msra.mxu0 0.0
    %1404 = vmatpush.xpose.msra.mxu0 %v915
    %1405 = vmatpush.xpose.msra.mxu0 %v912
    %1406 = vmatpush.xpose.msra.mxu0 %v909
    %1407 = vmatpush.xpose.msra.mxu0 %v906
    %1408 = vmatpush.xpose.msra.mxu0 %v903
    %1409 = vmatmul.f32.gmra.mxu0 %v534
    %v1410 = vpop.f32.mrf.mxu0
    %v1411 = vadd.f32 %v901, %v1410
    %1412 = vdwg.mxu0
    %1413 = vmatpush.xpose.msra.mxu0 0.0
    %1414 = vmatpush.xpose.msra.mxu0 0.0
    %1415 = vmatpush.xpose.msra.mxu0 0.0
    %1416 = vmatpush.xpose.msra.mxu0 0.0
    %1417 = vmatpush.xpose.msra.mxu0 0.0
    %1418 = vmatpush.xpose.msra.mxu0 0.0
    %1419 = vmatpush.xpose.msra.mxu0 0.0
    %1420 = vmatpush.xpose.msra.mxu0 0.0
    %1421 = vmatpush.xpose.msra.mxu0 0.0
    %1422 = vmatpush.xpose.msra.mxu0 0.0
    %1423 = vmatpush.xpose.msra.mxu0 0.0
    %1424 = vmatpush.xpose.msra.mxu0 %v951
    %1425 = vmatpush.xpose.msra.mxu0 %v948
    %1426 = vmatpush.xpose.msra.mxu0 %v945
    %1427 = vmatpush.xpose.msra.mxu0 %v942
    %1428 = vmatpush.xpose.msra.mxu0 %v939
    %1429 = vmatmul.f32.gmra.mxu0 %v557
    %v1430 = vpop.f32.mrf.mxu0
    %v1431 = vadd.f32 %v937, %v1430
    %1432 = vdwg.mxu0
    %v1433 = vmul.f32 %v1391, %v836
    %v1434 = vmul.f32 %v1391, %v840
    %v1435 = vmul.f32 %v1391, %v844
    %v1436 = vmul.f32 %v1391, %v848
    %v1437 = vmul.f32 %v1391, %v852
    %v1438 = vmul.f32 %v1391, %v856
    %v1439 = vmul.f32 %v1391, %v860
    %v1440 = vmul.f32 %v1391, %v864
    %v1442 = vsel %vm151, %v1433, 0
    %v1445 = vsel %vm151, %v1434, 0
    %v1448 = vsel %vm151, %v1435, 0
    %v1451 = vsel %vm151, %v1436, 0
    %v1454 = vsel %vm151, %v1437, 0
    %v1457 = vsel %vm151, %v1438, 0
    %v1460 = vsel %vm151, %v1439, 0
    %v1463 = vsel %vm151, %v1440, 0
    %v1466 = vsel %vm151, %v1411, 0
    %1468 = vmatpush.xpose.msra.mxu0 0.0
    %1469 = vmatpush.xpose.msra.mxu0 0.0
    %1470 = vmatpush.xpose.msra.mxu0 0.0
    %1471 = vmatpush.xpose.msra.mxu0 0.0
    %1472 = vmatpush.xpose.msra.mxu0 0.0
    %1473 = vmatpush.xpose.msra.mxu0 0.0
    %1474 = vmatpush.xpose.msra.mxu0 0.0
    %1475 = vmatpush.xpose.msra.mxu0 0.0
    %1476 = vmatpush.xpose.msra.mxu0 0.0
    %1477 = vmatpush.xpose.msra.mxu0 0.0
    %1478 = vmatpush.xpose.msra.mxu0 0.0
    %1479 = vmatpush.xpose.msra.mxu0 0.0
    %1480 = vmatpush.xpose.msra.mxu0 0.0
    %1481 = vmatpush.xpose.msra.mxu0 0.0
    %1482 = vmatpush.xpose.msra.mxu0 0.0
    %1483 = vmatpush.xpose.msra.mxu0 %v1466
    %1484 = vmatmul.f32.gmra.mxu0 %v1442
    %v1485 = vpop.f32.mrf.mxu0
    %v1486 = vadd.f32 0.0, %v1485
    %1487 = vmatmul.f32.gmra.mxu0 %v1445
    %v1488 = vpop.f32.mrf.mxu0
    %v1489 = vadd.f32 0.0, %v1488
    %1490 = vmatmul.f32.gmra.mxu0 %v1448
    %v1491 = vpop.f32.mrf.mxu0
    %v1492 = vadd.f32 0.0, %v1491
    %1493 = vmatmul.f32.gmra.mxu0 %v1451
    %v1494 = vpop.f32.mrf.mxu0
    %v1495 = vadd.f32 0.0, %v1494
    %1496 = vmatmul.f32.gmra.mxu0 %v1454
    %v1497 = vpop.f32.mrf.mxu0
    %v1498 = vadd.f32 0.0, %v1497
    %1499 = vmatmul.f32.gmra.mxu0 %v1457
    %v1500 = vpop.f32.mrf.mxu0
    %v1501 = vadd.f32 0.0, %v1500
    %1502 = vmatmul.f32.gmra.mxu0 %v1460
    %v1503 = vpop.f32.mrf.mxu0
    %v1504 = vadd.f32 0.0, %v1503
    %1505 = vmatmul.f32.gmra.mxu0 %v1463
    %v1506 = vpop.f32.mrf.mxu0
    %v1507 = vadd.f32 0.0, %v1506
    %1508 = vdwg.mxu0
    %v1509 = vsel %vm316, %v1486, -inf
    %1510 = vmax.xlane.f32.xlu0 %v1509
    %v1511 = vpop.xlane.xlu0 %1510
    %v1512 = vsel %vm316, %v1489, -inf
    %1513 = vmax.xlane.f32.xlu0 %v1512
    %v1514 = vpop.xlane.xlu0 %1513
    %v1515 = vsel %vm316, %v1492, -inf
    %1516 = vmax.xlane.f32.xlu0 %v1515
    %v1517 = vpop.xlane.xlu0 %1516
    %v1518 = vsel %vm316, %v1495, -inf
    %1519 = vmax.xlane.f32.xlu0 %v1518
    %v1520 = vpop.xlane.xlu0 %1519
    %v1521 = vsel %vm316, %v1498, -inf
    %1522 = vmax.xlane.f32.xlu0 %v1521
    %v1523 = vpop.xlane.xlu0 %1522
    %v1524 = vsel %vm316, %v1501, -inf
    %1525 = vmax.xlane.f32.xlu0 %v1524
    %v1526 = vpop.xlane.xlu0 %1525
    %v1527 = vsel %vm316, %v1504, -inf
    %1528 = vmax.xlane.f32.xlu0 %v1527
    %v1529 = vpop.xlane.xlu0 %1528
    %v1530 = vsel %vm316, %v1507, -inf
    %1531 = vmax.xlane.f32.xlu0 %v1530
    %v1532 = vpop.xlane.xlu0 %1531
    %v1533 = vsub.f32 %v1486, %v1511
    %v1534 = vsub.f32 %v1489, %v1514
    %v1535 = vsub.f32 %v1492, %v1517
    %v1536 = vsub.f32 %v1495, %v1520
    %v1537 = vsub.f32 %v1498, %v1523
    %v1538 = vsub.f32 %v1501, %v1526
    %v1539 = vsub.f32 %v1504, %v1529
    %v1540 = vsub.f32 %v1507, %v1532
    %v1541 = vmul.f32 %v1533, 1.442695
    %v1542 = vpow.pop %v1541
    %v1543 = vmul.f32 %v1534, 1.442695
    %v1544 = vpow.pop %v1543
    %v1545 = vmul.f32 %v1535, 1.442695
    %v1546 = vpow.pop %v1545
    %v1547 = vmul.f32 %v1536, 1.442695
    %v1548 = vpow.pop %v1547
    %v1549 = vmul.f32 %v1537, 1.442695
    %v1550 = vpow.pop %v1549
    %v1551 = vmul.f32 %v1538, 1.442695
    %v1552 = vpow.pop %v1551
    %v1553 = vmul.f32 %v1539, 1.442695
    %v1554 = vpow.pop %v1553
    %v1555 = vmul.f32 %v1540, 1.442695
    %v1556 = vpow.pop %v1555
    %v1557 = vsel %vm316, %v1542, 0.0
    %1558 = vadd.xlane.f32.xlu0 %v1557
    %v1559 = vpop.xlane.xlu0 %1558
    %v1560 = vsel %vm316, %v1544, 0.0
    %1561 = vadd.xlane.f32.xlu0 %v1560
    %v1562 = vpop.xlane.xlu0 %1561
    %v1563 = vsel %vm316, %v1546, 0.0
    %1564 = vadd.xlane.f32.xlu0 %v1563
    %v1565 = vpop.xlane.xlu0 %1564
    %v1566 = vsel %vm316, %v1548, 0.0
    %1567 = vadd.xlane.f32.xlu0 %v1566
    %v1568 = vpop.xlane.xlu0 %1567
    %v1569 = vsel %vm316, %v1550, 0.0
    %1570 = vadd.xlane.f32.xlu0 %v1569
    %v1571 = vpop.xlane.xlu0 %1570
    %v1572 = vsel %vm316, %v1552, 0.0
    %1573 = vadd.xlane.f32.xlu0 %v1572
    %v1574 = vpop.xlane.xlu0 %1573
    %v1575 = vsel %vm316, %v1554, 0.0
    %1576 = vadd.xlane.f32.xlu0 %v1575
    %v1577 = vpop.xlane.xlu0 %1576
    %v1578 = vsel %vm316, %v1556, 0.0
    %1579 = vadd.xlane.f32.xlu0 %v1578
    %v1580 = vpop.xlane.xlu0 %1579
    %v1581 = vrcp.pop %v1559
    %v1582 = vmul.f32 %v1559, %v1581
    %v1583 = vsub.f32 1.0, %v1582
    %v1584 = vmul.f32 %v1581, %v1583
    %v1585 = vadd.f32 %v1581, %v1584
    %vm1586 = vweird.f32 %v1559
    %vm1587 = vweird.f32 %v1581
    %vm1588 = vmor %vm1586, %vm1587
    %v1589 = vsel %vm1588, %v1581, %v1585
    %v1590 = vand.u32 2147483647, %v1559
    %vm1591 = vcmp.eq.f32.partialorder %v1590, 8.507059e+37
    %v1592 = vand.u32 %v1559, 2147483648
    %v1593 = vor.u32 1.1754944e-38, %v1592
    %v1594 = vsel %vm1591, %v1593, %v1589
    %v1595 = vmul.f32 %v1542, %v1594
    %v1596 = vrcp.pop %v1562
    %v1597 = vmul.f32 %v1562, %v1596
    %v1598 = vsub.f32 1.0, %v1597
    %v1599 = vmul.f32 %v1596, %v1598
    %v1600 = vadd.f32 %v1596, %v1599
    %vm1601 = vweird.f32 %v1562
    %vm1602 = vweird.f32 %v1596
    %vm1603 = vmor %vm1601, %vm1602
    %v1604 = vsel %vm1603, %v1596, %v1600
    %v1605 = vand.u32 2147483647, %v1562
    %vm1606 = vcmp.eq.f32.partialorder %v1605, 8.507059e+37
    %v1607 = vand.u32 %v1562, 2147483648
    %v1608 = vor.u32 1.1754944e-38, %v1607
    %v1609 = vsel %vm1606, %v1608, %v1604
    %v1610 = vmul.f32 %v1544, %v1609
    %v1611 = vrcp.pop %v1565
    %v1612 = vmul.f32 %v1565, %v1611
    %v1613 = vsub.f32 1.0, %v1612
    %v1614 = vmul.f32 %v1611, %v1613
    %v1615 = vadd.f32 %v1611, %v1614
    %vm1616 = vweird.f32 %v1565
    %vm1617 = vweird.f32 %v1611
    %vm1618 = vmor %vm1616, %vm1617
    %v1619 = vsel %vm1618, %v1611, %v1615
    %v1620 = vand.u32 2147483647, %v1565
    %vm1621 = vcmp.eq.f32.partialorder %v1620, 8.507059e+37
    %v1622 = vand.u32 %v1565, 2147483648
    %v1623 = vor.u32 1.1754944e-38, %v1622
    %v1624 = vsel %vm1621, %v1623, %v1619
    %v1625 = vmul.f32 %v1546, %v1624
    %v1626 = vrcp.pop %v1568
    %v1627 = vmul.f32 %v1568, %v1626
    %v1628 = vsub.f32 1.0, %v1627
    %v1629 = vmul.f32 %v1626, %v1628
    %v1630 = vadd.f32 %v1626, %v1629
    %vm1631 = vweird.f32 %v1568
    %vm1632 = vweird.f32 %v1626
    %vm1633 = vmor %vm1631, %vm1632
    %v1634 = vsel %vm1633, %v1626, %v1630
    %v1635 = vand.u32 2147483647, %v1568
    %vm1636 = vcmp.eq.f32.partialorder %v1635, 8.507059e+37
    %v1637 = vand.u32 %v1568, 2147483648
    %v1638 = vor.u32 1.1754944e-38, %v1637
    %v1639 = vsel %vm1636, %v1638, %v1634
    %v1640 = vmul.f32 %v1548, %v1639
    %v1641 = vrcp.pop %v1571
    %v1642 = vmul.f32 %v1571, %v1641
    %v1643 = vsub.f32 1.0, %v1642
    %v1644 = vmul.f32 %v1641, %v1643
    %v1645 = vadd.f32 %v1641, %v1644
    %vm1646 = vweird.f32 %v1571
    %vm1647 = vweird.f32 %v1641
    %vm1648 = vmor %vm1646, %vm1647
    %v1649 = vsel %vm1648, %v1641, %v1645
    %v1650 = vand.u32 2147483647, %v1571
    %vm1651 = vcmp.eq.f32.partialorder %v1650, 8.507059e+37
    %v1652 = vand.u32 %v1571, 2147483648
    %v1653 = vor.u32 1.1754944e-38, %v1652
    %v1654 = vsel %vm1651, %v1653, %v1649
    %v1655 = vmul.f32 %v1550, %v1654
    %v1656 = vrcp.pop %v1574
    %v1657 = vmul.f32 %v1574, %v1656
    %v1658 = vsub.f32 1.0, %v1657
    %v1659 = vmul.f32 %v1656, %v1658
    %v1660 = vadd.f32 %v1656, %v1659
    %vm1661 = vweird.f32 %v1574
    %vm1662 = vweird.f32 %v1656
    %vm1663 = vmor %vm1661, %vm1662
    %v1664 = vsel %vm1663, %v1656, %v1660
    %v1665 = vand.u32 2147483647, %v1574
    %vm1666 = vcmp.eq.f32.partialorder %v1665, 8.507059e+37
    %v1667 = vand.u32 %v1574, 2147483648
    %v1668 = vor.u32 1.1754944e-38, %v1667
    %v1669 = vsel %vm1666, %v1668, %v1664
    %v1670 = vmul.f32 %v1552, %v1669
    %v1671 = vrcp.pop %v1577
    %v1672 = vmul.f32 %v1577, %v1671
    %v1673 = vsub.f32 1.0, %v1672
    %v1674 = vmul.f32 %v1671, %v1673
    %v1675 = vadd.f32 %v1671, %v1674
    %vm1676 = vweird.f32 %v1577
    %vm1677 = vweird.f32 %v1671
    %vm1678 = vmor %vm1676, %vm1677
    %v1679 = vsel %vm1678, %v1671, %v1675
    %v1680 = vand.u32 2147483647, %v1577
    %vm1681 = vcmp.eq.f32.partialorder %v1680, 8.507059e+37
    %v1682 = vand.u32 %v1577, 2147483648
    %v1683 = vor.u32 1.1754944e-38, %v1682
    %v1684 = vsel %vm1681, %v1683, %v1679
    %v1685 = vmul.f32 %v1554, %v1684
    %v1686 = vrcp.pop %v1580
    %v1687 = vmul.f32 %v1580, %v1686
    %v1688 = vsub.f32 1.0, %v1687
    %v1689 = vmul.f32 %v1686, %v1688
    %v1690 = vadd.f32 %v1686, %v1689
    %vm1691 = vweird.f32 %v1580
    %vm1692 = vweird.f32 %v1686
    %vm1693 = vmor %vm1691, %vm1692
    %v1694 = vsel %vm1693, %v1686, %v1690
    %v1695 = vand.u32 2147483647, %v1580
    %vm1696 = vcmp.eq.f32.partialorder %v1695, 8.507059e+37
    %v1697 = vand.u32 %v1580, 2147483648
    %v1698 = vor.u32 1.1754944e-38, %v1697
    %v1699 = vsel %vm1696, %v1698, %v1694
    %v1700 = vmul.f32 %v1556, %v1699
    %v1702 = vsel %vm316, %v1595, 0
    %v1705 = vsel %vm316, %v1610, 0
    %v1708 = vsel %vm316, %v1625, 0
    %v1711 = vsel %vm316, %v1640, 0
    %v1714 = vsel %vm316, %v1655, 0
    %v1717 = vsel %vm316, %v1670, 0
    %v1720 = vsel %vm316, %v1685, 0
    %v1723 = vsel %vm316, %v1700, 0
    %v1726 = vsel %vm425, %v1431, 0
    %1728 = vmatpush.msra.mxu0 0.0
    %1729 = vmatpush.msra.mxu0 0.0
    %1730 = vmatpush.msra.mxu0 0.0
    %1731 = vmatpush.msra.mxu0 0.0
    %1732 = vmatpush.msra.mxu0 0.0
    %1733 = vmatpush.msra.mxu0 0.0
    %1734 = vmatpush.msra.mxu0 0.0
    %1735 = vmatpush.msra.mxu0 0.0
    %1736 = vmatpush.msra.mxu0 0.0
    %1737 = vmatpush.msra.mxu0 0.0
    %1738 = vmatpush.msra.mxu0 0.0
    %1739 = vmatpush.msra.mxu0 0.0
    %1740 = vmatpush.msra.mxu0 0.0
    %1741 = vmatpush.msra.mxu0 0.0
    %1742 = vmatpush.msra.mxu0 0.0
    %1743 = vmatpush.msra.mxu0 %v1726
    %1744 = vmatmul.f32.gmra.mxu0 %v1702
    %v1745 = vpop.f32.mrf.mxu0
    %v1746 = vadd.f32 0.0, %v1745
    %1747 = vmatmul.f32.gmra.mxu0 %v1705
    %v1748 = vpop.f32.mrf.mxu0
    %v1749 = vadd.f32 0.0, %v1748
    %1750 = vmatmul.f32.gmra.mxu0 %v1708
    %v1751 = vpop.f32.mrf.mxu0
    %v1752 = vadd.f32 0.0, %v1751
    %1753 = vmatmul.f32.gmra.mxu0 %v1711
    %v1754 = vpop.f32.mrf.mxu0
    %v1755 = vadd.f32 0.0, %v1754
    %1756 = vmatmul.f32.gmra.mxu0 %v1714
    %v1757 = vpop.f32.mrf.mxu0
    %v1758 = vadd.f32 0.0, %v1757
    %1759 = vmatmul.f32.gmra.mxu0 %v1717
    %v1760 = vpop.f32.mrf.mxu0
    %v1761 = vadd.f32 0.0, %v1760
    %1762 = vmatmul.f32.gmra.mxu0 %v1720
    %v1763 = vpop.f32.mrf.mxu0
    %v1764 = vadd.f32 0.0, %v1763
    %1765 = vmatmul.f32.gmra.mxu0 %v1723
    %v1766 = vpop.f32.mrf.mxu0
    %v1767 = vadd.f32 0.0, %v1766
    %1768 = vdwg.mxu0
    %v1769 = vmul.f32 %v1746, %v836
    %v1770 = vadd.f32 %v1769, 0.0
    %v1771 = vadd.f32 %v1595, 0.0
    %v1772 = vmul.f32 %v1749, %v840
    %v1773 = vadd.f32 %v1770, %v1772
    %v1774 = vadd.f32 %v1771, %v1610
    %v1775 = vmul.f32 %v1752, %v844
    %v1776 = vadd.f32 %v1773, %v1775
    %v1777 = vadd.f32 %v1774, %v1625
    %v1778 = vmul.f32 %v1755, %v848
    %v1779 = vadd.f32 %v1776, %v1778
    %v1780 = vadd.f32 %v1777, %v1640
    %v1781 = vmul.f32 %v1758, %v852
    %v1782 = vadd.f32 %v1779, %v1781
    %v1783 = vadd.f32 %v1780, %v1655
    %v1784 = vmul.f32 %v1761, %v856
    %v1785 = vadd.f32 %v1782, %v1784
    %v1786 = vadd.f32 %v1783, %v1670
    %v1787 = vmul.f32 %v1764, %v860
    %v1788 = vadd.f32 %v1785, %v1787
    %v1789 = vadd.f32 %v1786, %v1685
    %v1790 = vmul.f32 %v1767, %v864
    %v1791 = vadd.f32 %v1788, %v1790
    %v1792 = vadd.f32 %v1789, %v1700
    %v1794 = vsel %vm151, %v1791, 0
    %1796 = vmatpush.xpose.msra.mxu0 0.0
    %1797 = vmatpush.xpose.msra.mxu0 0.0
    %1798 = vmatpush.xpose.msra.mxu0 0.0
    %1799 = vmatpush.xpose.msra.mxu0 0.0
    %1800 = vmatpush.xpose.msra.mxu0 0.0
    %1801 = vmatpush.xpose.msra.mxu0 0.0
    %1802 = vmatpush.xpose.msra.mxu0 0.0
    %1803 = vmatpush.xpose.msra.mxu0 0.0
    %1804 = vmatpush.xpose.msra.mxu0 0.0
    %1805 = vmatpush.xpose.msra.mxu0 0.0
    %1806 = vmatpush.xpose.msra.mxu0 0.0
    %1807 = vmatpush.xpose.msra.mxu0 %v1350
    %1808 = vmatpush.xpose.msra.mxu0 %v1347
    %1809 = vmatpush.xpose.msra.mxu0 %v1344
    %1810 = vmatpush.xpose.msra.mxu0 %v1341
    %1811 = vmatpush.xpose.msra.mxu0 %v1338
    %1812 = vmatmul.f32.gmra.mxu0 %v1794
    %v1813 = vpop.f32.mrf.mxu0
    %v1814 = vadd.f32 %v1333, %v1813
    %1815 = vdwg.mxu0
    %v1816 = vmul.f32 %v1792, 0.125
    %1817 = vst.msk [vmem:[#allocation11] sm:$0xff] %vm151, %v1370
    %1818 = vst.msk [vmem:[#allocation11 + $0x8] sm:$0xff] %vm151, %v1814
    %1819 = vst.msk [vmem:[%s11] sm:$0xff] %vm316, %v1372
    %1820 = vst.msk [vmem:[%s11 + $0x8] sm:$0xff] %vm316, %v1816
    %s1821 = scalar_lea.vmem [#allocation2], 80
    %v1822 = vld [vmem:[%s1821] sm:$0xff]
    %v1823 = vld [vmem:[%s1821 + $0x8] sm:$0xff]
    %v1824 = vld [vmem:[%s1821 + $0x10] sm:$0xff]
    %v1825 = vld [vmem:[%s1821 + $0x18] sm:$0xff]
    %v1826 = vld [vmem:[%s1821 + $0x20] sm:$0xff]
    %s1827 = scalar_lea.vmem [#allocation5], 80
    %v1828 = vld [vmem:[%s1827] sm:$0xff]
    %v1829 = vld [vmem:[%s1827 + $0x8] sm:$0xff]
    %v1830 = vld [vmem:[%s1827 + $0x10] sm:$0xff]
    %v1831 = vld [vmem:[%s1827 + $0x18] sm:$0xff]
    %v1832 = vld [vmem:[%s1827 + $0x20] sm:$0xff]
    %s1833 = scalar_lea.vmem [#allocation7], 80
    %v1834 = vld [vmem:[%s1833] sm:$0xff]
    %v1835 = vld [vmem:[%s1833 + $0x8] sm:$0xff]
    %v1836 = vld [vmem:[%s1833 + $0x10] sm:$0xff]
    %v1837 = vld [vmem:[%s1833 + $0x18] sm:$0xff]
    %v1838 = vld [vmem:[%s1833 + $0x20] sm:$0xff]
    %s1839 = scalar_lea.vmem [#allocation8], 80
    %v1840 = vld [vmem:[%s1839] sm:$0xff]
    %v1841 = vld [vmem:[%s1839 + $0x8] sm:$0xff]
    %v1842 = vld [vmem:[%s1839 + $0x10] sm:$0xff]
    %v1843 = vld [vmem:[%s1839 + $0x18] sm:$0xff]
    %v1844 = vld [vmem:[%s1839 + $0x20] sm:$0xff]
    %s1845 = scalar_lea.vmem %s7, 16
    %v1846 = vld [vmem:[%s1845] sm:$0xff]
    %vm1847 = vcmp.lt.s32.totalorder %v108, 4
    %vm1848 = vmand %vm130, %vm1847
    %v1849 = vsel %vm1848, 1, 0
    %v1850 = vcvt.s32.f32 %v1849
    %vm1851 = vcmp.ge.s32.totalorder %v108, 4
    %vm1852 = vcmp.lt.s32.totalorder %v108, 8
    %vm1853 = vmand %vm1851, %vm1852
    %v1854 = vsel %vm1853, 1, 0
    %v1855 = vcvt.s32.f32 %v1854
    %vm1856 = vcmp.ge.s32.totalorder %v108, 8
    %vm1857 = vcmp.lt.s32.totalorder %v108, 12
    %vm1858 = vmand %vm1856, %vm1857
    %v1859 = vsel %vm1858, 1, 0
    %v1860 = vcvt.s32.f32 %v1859
    %vm1861 = vcmp.ge.s32.totalorder %v108, 12
    %vm1862 = vcmp.lt.s32.totalorder %v108, 16
    %vm1863 = vmand %vm1861, %vm1862
    %v1864 = vsel %vm1863, 1, 0
    %v1865 = vcvt.s32.f32 %v1864
    %vm1866 = vcmp.ge.s32.totalorder %v108, 16
    %vm1867 = vmand %vm1866, %vm136
    %v1868 = vsel %vm1867, 1, 0
    %v1869 = vcvt.s32.f32 %v1868
    %vm1870 = vcmp.lt.s32.totalorder %v108, 24
    %vm1871 = vmand %vm140, %vm1870
    %v1872 = vsel %vm1871, 1, 0
    %v1873 = vcvt.s32.f32 %v1872
    %vm1874 = vcmp.ge.s32.totalorder %v108, 24
    %vm1875 = vcmp.lt.s32.totalorder %v108, 28
    %vm1876 = vmand %vm1874, %vm1875
    %v1877 = vsel %vm1876, 1, 0
    %v1878 = vcvt.s32.f32 %v1877
    %vm1879 = vcmp.ge.s32.totalorder %v108, 28
    %vm1880 = vcmp.lt.s32.totalorder %v108, 32
    %vm1881 = vmand %vm1879, %vm1880
    %v1882 = vsel %vm1881, 1, 0
    %v1883 = vcvt.s32.f32 %v1882
    %vm1884 = vcmp.ge.s32.totalorder %v108, 32
    %vm1885 = vcmp.lt.s32.totalorder %v108, 36
    %vm1886 = vmand %vm1884, %vm1885
    %v1887 = vsel %vm1886, 1, 0
    %v1888 = vcvt.s32.f32 %v1887
    %vm1889 = vcmp.ge.s32.totalorder %v108, 36
    %vm1890 = vmand %vm1889, %vm146
    %v1891 = vsel %vm1890, 1, 0
    %v1892 = vcvt.s32.f32 %v1891
    %v1893 = vperm.slane %v1846, 0
    %v1895 = vsel %vm151, %v1822, 0
    %v1898 = vsel %vm151, %v1823, 0
    %v1901 = vsel %vm151, %v1824, 0
    %v1904 = vsel %vm151, %v1825, 0
    %v1907 = vsel %vm151, %v1826, 0
    %1909 = vmatpush.xpose.msra.mxu0 0.0
    %1910 = vmatpush.xpose.msra.mxu0 0.0
    %1911 = vmatpush.xpose.msra.mxu0 0.0
    %1912 = vmatpush.xpose.msra.mxu0 0.0
    %1913 = vmatpush.xpose.msra.mxu0 0.0
    %1914 = vmatpush.xpose.msra.mxu0 0.0
    %1915 = vmatpush.xpose.msra.mxu0 0.0
    %1916 = vmatpush.xpose.msra.mxu0 0.0
    %1917 = vmatpush.xpose.msra.mxu0 0.0
    %1918 = vmatpush.xpose.msra.mxu0 0.0
    %1919 = vmatpush.xpose.msra.mxu0 0.0
    %1920 = vmatpush.xpose.msra.mxu0 %v1907
    %1921 = vmatpush.xpose.msra.mxu0 %v1904
    %1922 = vmatpush.xpose.msra.mxu0 %v1901
    %1923 = vmatpush.xpose.msra.mxu0 %v1898
    %1924 = vmatpush.xpose.msra.mxu0 %v1895
    %1925 = vmatmul.f32.gmra.mxu0 %v153
    %v1926 = vpop.f32.mrf.mxu0
    %v1927 = vadd.f32 %v1893, %v1926
    %1928 = vdwg.mxu0
    %v1929 = vperm.slane %v1846, 1
    %v1931 = vsel %vm151, %v1828, 0
    %v1934 = vsel %vm151, %v1829, 0
    %v1937 = vsel %vm151, %v1830, 0
    %v1940 = vsel %vm151, %v1831, 0
    %v1943 = vsel %vm151, %v1832, 0
    %1945 = vmatpush.xpose.msra.mxu0 0.0
    %1946 = vmatpush.xpose.msra.mxu0 0.0
    %1947 = vmatpush.xpose.msra.mxu0 0.0
    %1948 = vmatpush.xpose.msra.mxu0 0.0
    %1949 = vmatpush.xpose.msra.mxu0 0.0
    %1950 = vmatpush.xpose.msra.mxu0 0.0
    %1951 = vmatpush.xpose.msra.mxu0 0.0
    %1952 = vmatpush.xpose.msra.mxu0 0.0
    %1953 = vmatpush.xpose.msra.mxu0 0.0
    %1954 = vmatpush.xpose.msra.mxu0 0.0
    %1955 = vmatpush.xpose.msra.mxu0 0.0
    %1956 = vmatpush.xpose.msra.mxu0 %v1943
    %1957 = vmatpush.xpose.msra.mxu0 %v1940
    %1958 = vmatpush.xpose.msra.mxu0 %v1937
    %1959 = vmatpush.xpose.msra.mxu0 %v1934
    %1960 = vmatpush.xpose.msra.mxu0 %v1931
    %1961 = vmatmul.f32.gmra.mxu0 %v192
    %v1962 = vpop.f32.mrf.mxu0
    %v1963 = vadd.f32 %v1929, %v1962
    %1964 = vdwg.mxu0
    %v1965 = vperm.slane %v1846, 2
    %v1967 = vsel %vm151, %v1834, 0
    %v1970 = vsel %vm151, %v1835, 0
    %v1973 = vsel %vm151, %v1836, 0
    %v1976 = vsel %vm151, %v1837, 0
    %v1979 = vsel %vm151, %v1838, 0
    %1981 = vmatpush.xpose.msra.mxu0 0.0
    %1982 = vmatpush.xpose.msra.mxu0 0.0
    %1983 = vmatpush.xpose.msra.mxu0 0.0
    %1984 = vmatpush.xpose.msra.mxu0 0.0
    %1985 = vmatpush.xpose.msra.mxu0 0.0
    %1986 = vmatpush.xpose.msra.mxu0 0.0
    %1987 = vmatpush.xpose.msra.mxu0 0.0
    %1988 = vmatpush.xpose.msra.mxu0 0.0
    %1989 = vmatpush.xpose.msra.mxu0 0.0
    %1990 = vmatpush.xpose.msra.mxu0 0.0
    %1991 = vmatpush.xpose.msra.mxu0 0.0
    %1992 = vmatpush.xpose.msra.mxu0 %v1979
    %1993 = vmatpush.xpose.msra.mxu0 %v1976
    %1994 = vmatpush.xpose.msra.mxu0 %v1973
    %1995 = vmatpush.xpose.msra.mxu0 %v1970
    %1996 = vmatpush.xpose.msra.mxu0 %v1967
    %1997 = vmatmul.f32.gmra.mxu0 %v231
    %v1998 = vpop.f32.mrf.mxu0
    %v1999 = vadd.f32 %v1965, %v1998
    %2000 = vdwg.mxu0
    %v2002 = vrot.slane %v1846, 6
    %v2004 = vsel %vm425, %v1963, %v2002
    %v2005 = vrot.slane %v1846, 7
    %v2007 = vsel %vm425, %v1999, %v2005
    %vm2008 = vcmask 1046528
    %v2009 = vsel %vm2008, %v2004, 0.0
    %v2010 = vsel %vm2008, %v2007, 0.0
    %v2011 = vmul.f32 %v1927, %v1850
    %v2012 = vmul.f32 %v1927, %v1855
    %v2013 = vmul.f32 %v1927, %v1860
    %v2014 = vmul.f32 %v1927, %v1865
    %v2015 = vmul.f32 %v1927, %v1869
    %v2016 = vmul.f32 %v1927, %v1873
    %v2017 = vmul.f32 %v1927, %v1878
    %v2018 = vmul.f32 %v1927, %v1883
    %v2019 = vmul.f32 %v1927, %v1888
    %v2020 = vmul.f32 %v1927, %v1892
    %v2022 = vsel %vm151, %v2011, 0
    %v2025 = vsel %vm151, %v2012, 0
    %v2028 = vsel %vm151, %v2013, 0
    %v2031 = vsel %vm151, %v2014, 0
    %v2034 = vsel %vm151, %v2015, 0
    %v2037 = vsel %vm151, %v2016, 0
    %v2040 = vsel %vm151, %v2017, 0
    %v2043 = vsel %vm151, %v2018, 0
    %v2046 = vsel %vm151, %v2019, 0
    %v2049 = vsel %vm151, %v2020, 0
    %v2052 = vsel %vm151, %v2009, 0
    %2054 = vmatpush.xpose.msra.mxu0 0.0
    %2055 = vmatpush.xpose.msra.mxu0 0.0
    %2056 = vmatpush.xpose.msra.mxu0 0.0
    %2057 = vmatpush.xpose.msra.mxu0 0.0
    %2058 = vmatpush.xpose.msra.mxu0 0.0
    %2059 = vmatpush.xpose.msra.mxu0 0.0
    %2060 = vmatpush.xpose.msra.mxu0 0.0
    %2061 = vmatpush.xpose.msra.mxu0 0.0
    %2062 = vmatpush.xpose.msra.mxu0 0.0
    %2063 = vmatpush.xpose.msra.mxu0 0.0
    %2064 = vmatpush.xpose.msra.mxu0 0.0
    %2065 = vmatpush.xpose.msra.mxu0 0.0
    %2066 = vmatpush.xpose.msra.mxu0 0.0
    %2067 = vmatpush.xpose.msra.mxu0 0.0
    %2068 = vmatpush.xpose.msra.mxu0 0.0
    %2069 = vmatpush.xpose.msra.mxu0 %v2052
    %2070 = vmatmul.f32.gmra.mxu0 %v2022
    %v2071 = vpop.f32.mrf.mxu0
    %v2072 = vadd.f32 0.0, %v2071
    %2073 = vmatmul.f32.gmra.mxu0 %v2025
    %v2074 = vpop.f32.mrf.mxu0
    %v2075 = vadd.f32 0.0, %v2074
    %2076 = vmatmul.f32.gmra.mxu0 %v2028
    %v2077 = vpop.f32.mrf.mxu0
    %v2078 = vadd.f32 0.0, %v2077
    %2079 = vmatmul.f32.gmra.mxu0 %v2031
    %v2080 = vpop.f32.mrf.mxu0
    %v2081 = vadd.f32 0.0, %v2080
    %2082 = vmatmul.f32.gmra.mxu0 %v2034
    %v2083 = vpop.f32.mrf.mxu0
    %v2084 = vadd.f32 0.0, %v2083
    %2085 = vmatmul.f32.gmra.mxu0 %v2037
    %v2086 = vpop.f32.mrf.mxu0
    %v2087 = vadd.f32 0.0, %v2086
    %2088 = vmatmul.f32.gmra.mxu0 %v2040
    %v2089 = vpop.f32.mrf.mxu0
    %v2090 = vadd.f32 0.0, %v2089
    %2091 = vmatmul.f32.gmra.mxu0 %v2043
    %v2092 = vpop.f32.mrf.mxu0
    %v2093 = vadd.f32 0.0, %v2092
    %2094 = vmatmul.f32.gmra.mxu0 %v2046
    %v2095 = vpop.f32.mrf.mxu0
    %v2096 = vadd.f32 0.0, %v2095
    %2097 = vmatmul.f32.gmra.mxu0 %v2049
    %v2098 = vpop.f32.mrf.mxu0
    %v2099 = vadd.f32 0.0, %v2098
    %2100 = vdwg.mxu0
    %vm2101 = vcmask 64512
    %v2102 = vsel %vm2101, %v2072, -inf
    %2103 = vmax.xlane.f32.xlu0 %v2102
    %v2104 = vpop.xlane.xlu0 %2103
    %v2105 = vsel %vm2101, %v2075, -inf
    %2106 = vmax.xlane.f32.xlu0 %v2105
    %v2107 = vpop.xlane.xlu0 %2106
    %v2108 = vsel %vm2101, %v2078, -inf
    %2109 = vmax.xlane.f32.xlu0 %v2108
    %v2110 = vpop.xlane.xlu0 %2109
    %v2111 = vsel %vm2101, %v2081, -inf
    %2112 = vmax.xlane.f32.xlu0 %v2111
    %v2113 = vpop.xlane.xlu0 %2112
    %v2114 = vsel %vm2101, %v2084, -inf
    %2115 = vmax.xlane.f32.xlu0 %v2114
    %v2116 = vpop.xlane.xlu0 %2115
    %v2117 = vsel %vm2101, %v2087, -inf
    %2118 = vmax.xlane.f32.xlu0 %v2117
    %v2119 = vpop.xlane.xlu0 %2118
    %v2120 = vsel %vm2101, %v2090, -inf
    %2121 = vmax.xlane.f32.xlu0 %v2120
    %v2122 = vpop.xlane.xlu0 %2121
    %v2123 = vsel %vm2101, %v2093, -inf
    %2124 = vmax.xlane.f32.xlu0 %v2123
    %v2125 = vpop.xlane.xlu0 %2124
    %v2126 = vsel %vm2101, %v2096, -inf
    %2127 = vmax.xlane.f32.xlu0 %v2126
    %v2128 = vpop.xlane.xlu0 %2127
    %v2129 = vsel %vm2101, %v2099, -inf
    %2130 = vmax.xlane.f32.xlu0 %v2129
    %v2131 = vpop.xlane.xlu0 %2130
    %v2132 = vsub.f32 %v2072, %v2104
    %v2133 = vsub.f32 %v2075, %v2107
    %v2134 = vsub.f32 %v2078, %v2110
    %v2135 = vsub.f32 %v2081, %v2113
    %v2136 = vsub.f32 %v2084, %v2116
    %v2137 = vsub.f32 %v2087, %v2119
    %v2138 = vsub.f32 %v2090, %v2122
    %v2139 = vsub.f32 %v2093, %v2125
    %v2140 = vsub.f32 %v2096, %v2128
    %v2141 = vsub.f32 %v2099, %v2131
    %v2142 = vmul.f32 %v2132, 1.442695
    %v2143 = vpow.pop %v2142
    %v2144 = vmul.f32 %v2133, 1.442695
    %v2145 = vpow.pop %v2144
    %v2146 = vmul.f32 %v2134, 1.442695
    %v2147 = vpow.pop %v2146
    %v2148 = vmul.f32 %v2135, 1.442695
    %v2149 = vpow.pop %v2148
    %v2150 = vmul.f32 %v2136, 1.442695
    %v2151 = vpow.pop %v2150
    %v2152 = vmul.f32 %v2137, 1.442695
    %v2153 = vpow.pop %v2152
    %v2154 = vmul.f32 %v2138, 1.442695
    %v2155 = vpow.pop %v2154
    %v2156 = vmul.f32 %v2139, 1.442695
    %v2157 = vpow.pop %v2156
    %v2158 = vmul.f32 %v2140, 1.442695
    %v2159 = vpow.pop %v2158
    %v2160 = vmul.f32 %v2141, 1.442695
    %v2161 = vpow.pop %v2160
    %v2162 = vsel %vm2101, %v2143, 0.0
    %2163 = vadd.xlane.f32.xlu0 %v2162
    %v2164 = vpop.xlane.xlu0 %2163
    %v2165 = vsel %vm2101, %v2145, 0.0
    %2166 = vadd.xlane.f32.xlu0 %v2165
    %v2167 = vpop.xlane.xlu0 %2166
    %v2168 = vsel %vm2101, %v2147, 0.0
    %2169 = vadd.xlane.f32.xlu0 %v2168
    %v2170 = vpop.xlane.xlu0 %2169
    %v2171 = vsel %vm2101, %v2149, 0.0
    %2172 = vadd.xlane.f32.xlu0 %v2171
    %v2173 = vpop.xlane.xlu0 %2172
    %v2174 = vsel %vm2101, %v2151, 0.0
    %2175 = vadd.xlane.f32.xlu0 %v2174
    %v2176 = vpop.xlane.xlu0 %2175
    %v2177 = vsel %vm2101, %v2153, 0.0
    %2178 = vadd.xlane.f32.xlu0 %v2177
    %v2179 = vpop.xlane.xlu0 %2178
    %v2180 = vsel %vm2101, %v2155, 0.0
    %2181 = vadd.xlane.f32.xlu0 %v2180
    %v2182 = vpop.xlane.xlu0 %2181
    %v2183 = vsel %vm2101, %v2157, 0.0
    %2184 = vadd.xlane.f32.xlu0 %v2183
    %v2185 = vpop.xlane.xlu0 %2184
    %v2186 = vsel %vm2101, %v2159, 0.0
    %2187 = vadd.xlane.f32.xlu0 %v2186
    %v2188 = vpop.xlane.xlu0 %2187
    %v2189 = vsel %vm2101, %v2161, 0.0
    %2190 = vadd.xlane.f32.xlu0 %v2189
    %v2191 = vpop.xlane.xlu0 %2190
    %v2192 = vrcp.pop %v2164
    %v2193 = vmul.f32 %v2164, %v2192
    %v2194 = vsub.f32 1.0, %v2193
    %v2195 = vmul.f32 %v2192, %v2194
    %v2196 = vadd.f32 %v2192, %v2195
    %vm2197 = vweird.f32 %v2164
    %vm2198 = vweird.f32 %v2192
    %vm2199 = vmor %vm2197, %vm2198
    %v2200 = vsel %vm2199, %v2192, %v2196
    %v2201 = vand.u32 2147483647, %v2164
    %vm2202 = vcmp.eq.f32.partialorder %v2201, 8.507059e+37
    %v2203 = vand.u32 %v2164, 2147483648
    %v2204 = vor.u32 1.1754944e-38, %v2203
    %v2205 = vsel %vm2202, %v2204, %v2200
    %v2206 = vmul.f32 %v2143, %v2205
    %v2207 = vrcp.pop %v2167
    %v2208 = vmul.f32 %v2167, %v2207
    %v2209 = vsub.f32 1.0, %v2208
    %v2210 = vmul.f32 %v2207, %v2209
    %v2211 = vadd.f32 %v2207, %v2210
    %vm2212 = vweird.f32 %v2167
    %vm2213 = vweird.f32 %v2207
    %vm2214 = vmor %vm2212, %vm2213
    %v2215 = vsel %vm2214, %v2207, %v2211
    %v2216 = vand.u32 2147483647, %v2167
    %vm2217 = vcmp.eq.f32.partialorder %v2216, 8.507059e+37
    %v2218 = vand.u32 %v2167, 2147483648
    %v2219 = vor.u32 1.1754944e-38, %v2218
    %v2220 = vsel %vm2217, %v2219, %v2215
    %v2221 = vmul.f32 %v2145, %v2220
    %v2222 = vrcp.pop %v2170
    %v2223 = vmul.f32 %v2170, %v2222
    %v2224 = vsub.f32 1.0, %v2223
    %v2225 = vmul.f32 %v2222, %v2224
    %v2226 = vadd.f32 %v2222, %v2225
    %vm2227 = vweird.f32 %v2170
    %vm2228 = vweird.f32 %v2222
    %vm2229 = vmor %vm2227, %vm2228
    %v2230 = vsel %vm2229, %v2222, %v2226
    %v2231 = vand.u32 2147483647, %v2170
    %vm2232 = vcmp.eq.f32.partialorder %v2231, 8.507059e+37
    %v2233 = vand.u32 %v2170, 2147483648
    %v2234 = vor.u32 1.1754944e-38, %v2233
    %v2235 = vsel %vm2232, %v2234, %v2230
    %v2236 = vmul.f32 %v2147, %v2235
    %v2237 = vrcp.pop %v2173
    %v2238 = vmul.f32 %v2173, %v2237
    %v2239 = vsub.f32 1.0, %v2238
    %v2240 = vmul.f32 %v2237, %v2239
    %v2241 = vadd.f32 %v2237, %v2240
    %vm2242 = vweird.f32 %v2173
    %vm2243 = vweird.f32 %v2237
    %vm2244 = vmor %vm2242, %vm2243
    %v2245 = vsel %vm2244, %v2237, %v2241
    %v2246 = vand.u32 2147483647, %v2173
    %vm2247 = vcmp.eq.f32.partialorder %v2246, 8.507059e+37
    %v2248 = vand.u32 %v2173, 2147483648
    %v2249 = vor.u32 1.1754944e-38, %v2248
    %v2250 = vsel %vm2247, %v2249, %v2245
    %v2251 = vmul.f32 %v2149, %v2250
    %v2252 = vrcp.pop %v2176
    %v2253 = vmul.f32 %v2176, %v2252
    %v2254 = vsub.f32 1.0, %v2253
    %v2255 = vmul.f32 %v2252, %v2254
    %v2256 = vadd.f32 %v2252, %v2255
    %vm2257 = vweird.f32 %v2176
    %vm2258 = vweird.f32 %v2252
    %vm2259 = vmor %vm2257, %vm2258
    %v2260 = vsel %vm2259, %v2252, %v2256
    %v2261 = vand.u32 2147483647, %v2176
    %vm2262 = vcmp.eq.f32.partialorder %v2261, 8.507059e+37
    %v2263 = vand.u32 %v2176, 2147483648
    %v2264 = vor.u32 1.1754944e-38, %v2263
    %v2265 = vsel %vm2262, %v2264, %v2260
    %v2266 = vmul.f32 %v2151, %v2265
    %v2267 = vrcp.pop %v2179
    %v2268 = vmul.f32 %v2179, %v2267
    %v2269 = vsub.f32 1.0, %v2268
    %v2270 = vmul.f32 %v2267, %v2269
    %v2271 = vadd.f32 %v2267, %v2270
    %vm2272 = vweird.f32 %v2179
    %vm2273 = vweird.f32 %v2267
    %vm2274 = vmor %vm2272, %vm2273
    %v2275 = vsel %vm2274, %v2267, %v2271
    %v2276 = vand.u32 2147483647, %v2179
    %vm2277 = vcmp.eq.f32.partialorder %v2276, 8.507059e+37
    %v2278 = vand.u32 %v2179, 2147483648
    %v2279 = vor.u32 1.1754944e-38, %v2278
    %v2280 = vsel %vm2277, %v2279, %v2275
    %v2281 = vmul.f32 %v2153, %v2280
    %v2282 = vrcp.pop %v2182
    %v2283 = vmul.f32 %v2182, %v2282
    %v2284 = vsub.f32 1.0, %v2283
    %v2285 = vmul.f32 %v2282, %v2284
    %v2286 = vadd.f32 %v2282, %v2285
    %vm2287 = vweird.f32 %v2182
    %vm2288 = vweird.f32 %v2282
    %vm2289 = vmor %vm2287, %vm2288
    %v2290 = vsel %vm2289, %v2282, %v2286
    %v2291 = vand.u32 2147483647, %v2182
    %vm2292 = vcmp.eq.f32.partialorder %v2291, 8.507059e+37
    %v2293 = vand.u32 %v2182, 2147483648
    %v2294 = vor.u32 1.1754944e-38, %v2293
    %v2295 = vsel %vm2292, %v2294, %v2290
    %v2296 = vmul.f32 %v2155, %v2295
    %v2297 = vrcp.pop %v2185
    %v2298 = vmul.f32 %v2185, %v2297
    %v2299 = vsub.f32 1.0, %v2298
    %v2300 = vmul.f32 %v2297, %v2299
    %v2301 = vadd.f32 %v2297, %v2300
    %vm2302 = vweird.f32 %v2185
    %vm2303 = vweird.f32 %v2297
    %vm2304 = vmor %vm2302, %vm2303
    %v2305 = vsel %vm2304, %v2297, %v2301
    %v2306 = vand.u32 2147483647, %v2185
    %vm2307 = vcmp.eq.f32.partialorder %v2306, 8.507059e+37
    %v2308 = vand.u32 %v2185, 2147483648
    %v2309 = vor.u32 1.1754944e-38, %v2308
    %v2310 = vsel %vm2307, %v2309, %v2305
    %v2311 = vmul.f32 %v2157, %v2310
    %v2312 = vrcp.pop %v2188
    %v2313 = vmul.f32 %v2188, %v2312
    %v2314 = vsub.f32 1.0, %v2313
    %v2315 = vmul.f32 %v2312, %v2314
    %v2316 = vadd.f32 %v2312, %v2315
    %vm2317 = vweird.f32 %v2188
    %vm2318 = vweird.f32 %v2312
    %vm2319 = vmor %vm2317, %vm2318
    %v2320 = vsel %vm2319, %v2312, %v2316
    %v2321 = vand.u32 2147483647, %v2188
    %vm2322 = vcmp.eq.f32.partialorder %v2321, 8.507059e+37
    %v2323 = vand.u32 %v2188, 2147483648
    %v2324 = vor.u32 1.1754944e-38, %v2323
    %v2325 = vsel %vm2322, %v2324, %v2320
    %v2326 = vmul.f32 %v2159, %v2325
    %v2327 = vrcp.pop %v2191
    %v2328 = vmul.f32 %v2191, %v2327
    %v2329 = vsub.f32 1.0, %v2328
    %v2330 = vmul.f32 %v2327, %v2329
    %v2331 = vadd.f32 %v2327, %v2330
    %vm2332 = vweird.f32 %v2191
    %vm2333 = vweird.f32 %v2327
    %vm2334 = vmor %vm2332, %vm2333
    %v2335 = vsel %vm2334, %v2327, %v2331
    %v2336 = vand.u32 2147483647, %v2191
    %vm2337 = vcmp.eq.f32.partialorder %v2336, 8.507059e+37
    %v2338 = vand.u32 %v2191, 2147483648
    %v2339 = vor.u32 1.1754944e-38, %v2338
    %v2340 = vsel %vm2337, %v2339, %v2335
    %v2341 = vmul.f32 %v2161, %v2340
    %v2343 = vsel %vm2101, %v2206, 0
    %v2346 = vsel %vm2101, %v2221, 0
    %v2349 = vsel %vm2101, %v2236, 0
    %v2352 = vsel %vm2101, %v2251, 0
    %v2355 = vsel %vm2101, %v2266, 0
    %v2358 = vsel %vm2101, %v2281, 0
    %v2361 = vsel %vm2101, %v2296, 0
    %v2364 = vsel %vm2101, %v2311, 0
    %v2367 = vsel %vm2101, %v2326, 0
    %v2370 = vsel %vm2101, %v2341, 0
    %2372 = vmatpush.msra.mxu0 0.0
    %2373 = vmatpush.msra.mxu0 0.0
    %2374 = vmatpush.msra.mxu0 0.0
    %2375 = vmatpush.msra.mxu0 0.0
    %2376 = vmatpush.msra.mxu0 0.0
    %2377 = vmatpush.msra.mxu0 0.0
    %2378 = vmatpush.msra.mxu0 0.0
    %2379 = vmatpush.msra.mxu0 0.0
    %2380 = vmatpush.msra.mxu0 0.0
    %2381 = vmatpush.msra.mxu0 0.0
    %2382 = vmatpush.msra.mxu0 0.0
    %2383 = vmatpush.msra.mxu0 0.0
    %2384 = vmatpush.msra.mxu0 0.0
    %2385 = vmatpush.msra.mxu0 0.0
    %2386 = vmatpush.msra.mxu0 0.0
    %2387 = vmatpush.msra.mxu0 %v2010
    %2388 = vmatmul.f32.gmra.mxu0 %v2343
    %v2389 = vpop.f32.mrf.mxu0
    %v2390 = vadd.f32 0.0, %v2389
    %2391 = vmatmul.f32.gmra.mxu0 %v2346
    %v2392 = vpop.f32.mrf.mxu0
    %v2393 = vadd.f32 0.0, %v2392
    %2394 = vmatmul.f32.gmra.mxu0 %v2349
    %v2395 = vpop.f32.mrf.mxu0
    %v2396 = vadd.f32 0.0, %v2395
    %2397 = vmatmul.f32.gmra.mxu0 %v2352
    %v2398 = vpop.f32.mrf.mxu0
    %v2399 = vadd.f32 0.0, %v2398
    %2400 = vmatmul.f32.gmra.mxu0 %v2355
    %v2401 = vpop.f32.mrf.mxu0
    %v2402 = vadd.f32 0.0, %v2401
    %2403 = vmatmul.f32.gmra.mxu0 %v2358
    %v2404 = vpop.f32.mrf.mxu0
    %v2405 = vadd.f32 0.0, %v2404
    %2406 = vmatmul.f32.gmra.mxu0 %v2361
    %v2407 = vpop.f32.mrf.mxu0
    %v2408 = vadd.f32 0.0, %v2407
    %2409 = vmatmul.f32.gmra.mxu0 %v2364
    %v2410 = vpop.f32.mrf.mxu0
    %v2411 = vadd.f32 0.0, %v2410
    %2412 = vmatmul.f32.gmra.mxu0 %v2367
    %v2413 = vpop.f32.mrf.mxu0
    %v2414 = vadd.f32 0.0, %v2413
    %2415 = vmatmul.f32.gmra.mxu0 %v2370
    %v2416 = vpop.f32.mrf.mxu0
    %v2417 = vadd.f32 0.0, %v2416
    %2418 = vdwg.mxu0
    %v2419 = vmul.f32 %v2390, %v1850
    %v2420 = vadd.f32 %v2419, 0.0
    %v2421 = vadd.f32 %v2206, 0.0
    %v2422 = vmul.f32 %v2393, %v1855
    %v2423 = vadd.f32 %v2420, %v2422
    %v2424 = vadd.f32 %v2421, %v2221
    %v2425 = vmul.f32 %v2396, %v1860
    %v2426 = vadd.f32 %v2423, %v2425
    %v2427 = vadd.f32 %v2424, %v2236
    %v2428 = vmul.f32 %v2399, %v1865
    %v2429 = vadd.f32 %v2426, %v2428
    %v2430 = vadd.f32 %v2427, %v2251
    %v2431 = vmul.f32 %v2402, %v1869
    %v2432 = vadd.f32 %v2429, %v2431
    %v2433 = vadd.f32 %v2430, %v2266
    %v2434 = vmul.f32 %v2405, %v1873
    %v2435 = vadd.f32 %v2432, %v2434
    %v2436 = vadd.f32 %v2433, %v2281
    %v2437 = vmul.f32 %v2408, %v1878
    %v2438 = vadd.f32 %v2435, %v2437
    %v2439 = vadd.f32 %v2436, %v2296
    %v2440 = vmul.f32 %v2411, %v1883
    %v2441 = vadd.f32 %v2438, %v2440
    %v2442 = vadd.f32 %v2439, %v2311
    %v2443 = vmul.f32 %v2414, %v1888
    %v2444 = vadd.f32 %v2441, %v2443
    %v2445 = vadd.f32 %v2442, %v2326
    %v2446 = vmul.f32 %v2417, %v1892
    %v2447 = vadd.f32 %v2444, %v2446
    %v2448 = vadd.f32 %v2445, %v2341
    %v2449 = vperm.slane %v1846, 3
    %v2451 = vsel %vm151, %v2447, 0
    %v2454 = vsel %vm151, %v1840, 0
    %v2457 = vsel %vm151, %v1841, 0
    %v2460 = vsel %vm151, %v1842, 0
    %v2463 = vsel %vm151, %v1843, 0
    %v2466 = vsel %vm151, %v1844, 0
    %2468 = vmatpush.xpose.msra.mxu0 0.0
    %2469 = vmatpush.xpose.msra.mxu0 0.0
    %2470 = vmatpush.xpose.msra.mxu0 0.0
    %2471 = vmatpush.xpose.msra.mxu0 0.0
    %2472 = vmatpush.xpose.msra.mxu0 0.0
    %2473 = vmatpush.xpose.msra.mxu0 0.0
    %2474 = vmatpush.xpose.msra.mxu0 0.0
    %2475 = vmatpush.xpose.msra.mxu0 0.0
    %2476 = vmatpush.xpose.msra.mxu0 0.0
    %2477 = vmatpush.xpose.msra.mxu0 0.0
    %2478 = vmatpush.xpose.msra.mxu0 0.0
    %2479 = vmatpush.xpose.msra.mxu0 %v2466
    %2480 = vmatpush.xpose.msra.mxu0 %v2463
    %2481 = vmatpush.xpose.msra.mxu0 %v2460
    %2482 = vmatpush.xpose.msra.mxu0 %v2457
    %2483 = vmatpush.xpose.msra.mxu0 %v2454
    %2484 = vmatmul.f32.gmra.mxu0 %v2451
    %v2485 = vpop.f32.mrf.mxu0
    %v2486 = vadd.f32 %v2449, %v2485
    %2487 = vdwg.mxu0
    %v2488 = vmul.f32 %v2448, 0.1
    %2489 = vmatpush.xpose.msra.mxu0 0.0
    %2490 = vmatpush.xpose.msra.mxu0 0.0
    %2491 = vmatpush.xpose.msra.mxu0 0.0
    %2492 = vmatpush.xpose.msra.mxu0 0.0
    %2493 = vmatpush.xpose.msra.mxu0 0.0
    %2494 = vmatpush.xpose.msra.mxu0 0.0
    %2495 = vmatpush.xpose.msra.mxu0 0.0
    %2496 = vmatpush.xpose.msra.mxu0 0.0
    %2497 = vmatpush.xpose.msra.mxu0 0.0
    %2498 = vmatpush.xpose.msra.mxu0 0.0
    %2499 = vmatpush.xpose.msra.mxu0 0.0
    %2500 = vmatpush.xpose.msra.mxu0 %v1907
    %2501 = vmatpush.xpose.msra.mxu0 %v1904
    %2502 = vmatpush.xpose.msra.mxu0 %v1901
    %2503 = vmatpush.xpose.msra.mxu0 %v1898
    %2504 = vmatpush.xpose.msra.mxu0 %v1895
    %2505 = vmatmul.f32.gmra.mxu0 %v511
    %v2506 = vpop.f32.mrf.mxu0
    %v2507 = vadd.f32 %v1893, %v2506
    %2508 = vdwg.mxu0
    %2509 = vmatpush.xpose.msra.mxu0 0.0
    %2510 = vmatpush.xpose.msra.mxu0 0.0
    %2511 = vmatpush.xpose.msra.mxu0 0.0
    %2512 = vmatpush.xpose.msra.mxu0 0.0
    %2513 = vmatpush.xpose.msra.mxu0 0.0
    %2514 = vmatpush.xpose.msra.mxu0 0.0
    %2515 = vmatpush.xpose.msra.mxu0 0.0
    %2516 = vmatpush.xpose.msra.mxu0 0.0
    %2517 = vmatpush.xpose.msra.mxu0 0.0
    %2518 = vmatpush.xpose.msra.mxu0 0.0
    %2519 = vmatpush.xpose.msra.mxu0 0.0
    %2520 = vmatpush.xpose.msra.mxu0 %v1943
    %2521 = vmatpush.xpose.msra.mxu0 %v1940
    %2522 = vmatpush.xpose.msra.mxu0 %v1937
    %2523 = vmatpush.xpose.msra.mxu0 %v1934
    %2524 = vmatpush.xpose.msra.mxu0 %v1931
    %2525 = vmatmul.f32.gmra.mxu0 %v534
    %v2526 = vpop.f32.mrf.mxu0
    %v2527 = vadd.f32 %v1929, %v2526
    %2528 = vdwg.mxu0
    %2529 = vmatpush.xpose.msra.mxu0 0.0
    %2530 = vmatpush.xpose.msra.mxu0 0.0
    %2531 = vmatpush.xpose.msra.mxu0 0.0
    %2532 = vmatpush.xpose.msra.mxu0 0.0
    %2533 = vmatpush.xpose.msra.mxu0 0.0
    %2534 = vmatpush.xpose.msra.mxu0 0.0
    %2535 = vmatpush.xpose.msra.mxu0 0.0
    %2536 = vmatpush.xpose.msra.mxu0 0.0
    %2537 = vmatpush.xpose.msra.mxu0 0.0
    %2538 = vmatpush.xpose.msra.mxu0 0.0
    %2539 = vmatpush.xpose.msra.mxu0 0.0
    %2540 = vmatpush.xpose.msra.mxu0 %v1979
    %2541 = vmatpush.xpose.msra.mxu0 %v1976
    %2542 = vmatpush.xpose.msra.mxu0 %v1973
    %2543 = vmatpush.xpose.msra.mxu0 %v1970
    %2544 = vmatpush.xpose.msra.mxu0 %v1967
    %2545 = vmatmul.f32.gmra.mxu0 %v557
    %v2546 = vpop.f32.mrf.mxu0
    %v2547 = vadd.f32 %v1965, %v2546
    %2548 = vdwg.mxu0
    %v2549 = vsel %vm425, %v2527, %v2002
    %v2550 = vsel %vm425, %v2547, %v2005
    %v2551 = vsel %vm2008, %v2549, 0.0
    %v2552 = vsel %vm2008, %v2550, 0.0
    %v2553 = vmul.f32 %v2507, %v1850
    %v2554 = vmul.f32 %v2507, %v1855
    %v2555 = vmul.f32 %v2507, %v1860
    %v2556 = vmul.f32 %v2507, %v1865
    %v2557 = vmul.f32 %v2507, %v1869
    %v2558 = vmul.f32 %v2507, %v1873
    %v2559 = vmul.f32 %v2507, %v1878
    %v2560 = vmul.f32 %v2507, %v1883
    %v2561 = vmul.f32 %v2507, %v1888
    %v2562 = vmul.f32 %v2507, %v1892
    %v2564 = vsel %vm151, %v2553, 0
    %v2567 = vsel %vm151, %v2554, 0
    %v2570 = vsel %vm151, %v2555, 0
    %v2573 = vsel %vm151, %v2556, 0
    %v2576 = vsel %vm151, %v2557, 0
    %v2579 = vsel %vm151, %v2558, 0
    %v2582 = vsel %vm151, %v2559, 0
    %v2585 = vsel %vm151, %v2560, 0
    %v2588 = vsel %vm151, %v2561, 0
    %v2591 = vsel %vm151, %v2562, 0
    %v2594 = vsel %vm151, %v2551, 0
    %2596 = vmatpush.xpose.msra.mxu0 0.0
    %2597 = vmatpush.xpose.msra.mxu0 0.0
    %2598 = vmatpush.xpose.msra.mxu0 0.0
    %2599 = vmatpush.xpose.msra.mxu0 0.0
    %2600 = vmatpush.xpose.msra.mxu0 0.0
    %2601 = vmatpush.xpose.msra.mxu0 0.0
    %2602 = vmatpush.xpose.msra.mxu0 0.0
    %2603 = vmatpush.xpose.msra.mxu0 0.0
    %2604 = vmatpush.xpose.msra.mxu0 0.0
    %2605 = vmatpush.xpose.msra.mxu0 0.0
    %2606 = vmatpush.xpose.msra.mxu0 0.0
    %2607 = vmatpush.xpose.msra.mxu0 0.0
    %2608 = vmatpush.xpose.msra.mxu0 0.0
    %2609 = vmatpush.xpose.msra.mxu0 0.0
    %2610 = vmatpush.xpose.msra.mxu0 0.0
    %2611 = vmatpush.xpose.msra.mxu0 %v2594
    %2612 = vmatmul.f32.gmra.mxu0 %v2564
    %v2613 = vpop.f32.mrf.mxu0
    %v2614 = vadd.f32 0.0, %v2613
    %2615 = vmatmul.f32.gmra.mxu0 %v2567
    %v2616 = vpop.f32.mrf.mxu0
    %v2617 = vadd.f32 0.0, %v2616
    %2618 = vmatmul.f32.gmra.mxu0 %v2570
    %v2619 = vpop.f32.mrf.mxu0
    %v2620 = vadd.f32 0.0, %v2619
    %2621 = vmatmul.f32.gmra.mxu0 %v2573
    %v2622 = vpop.f32.mrf.mxu0
    %v2623 = vadd.f32 0.0, %v2622
    %2624 = vmatmul.f32.gmra.mxu0 %v2576
    %v2625 = vpop.f32.mrf.mxu0
    %v2626 = vadd.f32 0.0, %v2625
    %2627 = vmatmul.f32.gmra.mxu0 %v2579
    %v2628 = vpop.f32.mrf.mxu0
    %v2629 = vadd.f32 0.0, %v2628
    %2630 = vmatmul.f32.gmra.mxu0 %v2582
    %v2631 = vpop.f32.mrf.mxu0
    %v2632 = vadd.f32 0.0, %v2631
    %2633 = vmatmul.f32.gmra.mxu0 %v2585
    %v2634 = vpop.f32.mrf.mxu0
    %v2635 = vadd.f32 0.0, %v2634
    %2636 = vmatmul.f32.gmra.mxu0 %v2588
    %v2637 = vpop.f32.mrf.mxu0
    %v2638 = vadd.f32 0.0, %v2637
    %2639 = vmatmul.f32.gmra.mxu0 %v2591
    %v2640 = vpop.f32.mrf.mxu0
    %v2641 = vadd.f32 0.0, %v2640
    %2642 = vdwg.mxu0
    %v2643 = vsel %vm2101, %v2614, -inf
    %2644 = vmax.xlane.f32.xlu0 %v2643
    %v2645 = vpop.xlane.xlu0 %2644
    %v2646 = vsel %vm2101, %v2617, -inf
    %2647 = vmax.xlane.f32.xlu0 %v2646
    %v2648 = vpop.xlane.xlu0 %2647
    %v2649 = vsel %vm2101, %v2620, -inf
    %2650 = vmax.xlane.f32.xlu0 %v2649
    %v2651 = vpop.xlane.xlu0 %2650
    %v2652 = vsel %vm2101, %v2623, -inf
    %2653 = vmax.xlane.f32.xlu0 %v2652
    %v2654 = vpop.xlane.xlu0 %2653
    %v2655 = vsel %vm2101, %v2626, -inf
    %2656 = vmax.xlane.f32.xlu0 %v2655
    %v2657 = vpop.xlane.xlu0 %2656
    %v2658 = vsel %vm2101, %v2629, -inf
    %2659 = vmax.xlane.f32.xlu0 %v2658
    %v2660 = vpop.xlane.xlu0 %2659
    %v2661 = vsel %vm2101, %v2632, -inf
    %2662 = vmax.xlane.f32.xlu0 %v2661
    %v2663 = vpop.xlane.xlu0 %2662
    %v2664 = vsel %vm2101, %v2635, -inf
    %2665 = vmax.xlane.f32.xlu0 %v2664
    %v2666 = vpop.xlane.xlu0 %2665
    %v2667 = vsel %vm2101, %v2638, -inf
    %2668 = vmax.xlane.f32.xlu0 %v2667
    %v2669 = vpop.xlane.xlu0 %2668
    %v2670 = vsel %vm2101, %v2641, -inf
    %2671 = vmax.xlane.f32.xlu0 %v2670
    %v2672 = vpop.xlane.xlu0 %2671
    %v2673 = vsub.f32 %v2614, %v2645
    %v2674 = vsub.f32 %v2617, %v2648
    %v2675 = vsub.f32 %v2620, %v2651
    %v2676 = vsub.f32 %v2623, %v2654
    %v2677 = vsub.f32 %v2626, %v2657
    %v2678 = vsub.f32 %v2629, %v2660
    %v2679 = vsub.f32 %v2632, %v2663
    %v2680 = vsub.f32 %v2635, %v2666
    %v2681 = vsub.f32 %v2638, %v2669
    %v2682 = vsub.f32 %v2641, %v2672
    %v2683 = vmul.f32 %v2673, 1.442695
    %v2684 = vpow.pop %v2683
    %v2685 = vmul.f32 %v2674, 1.442695
    %v2686 = vpow.pop %v2685
    %v2687 = vmul.f32 %v2675, 1.442695
    %v2688 = vpow.pop %v2687
    %v2689 = vmul.f32 %v2676, 1.442695
    %v2690 = vpow.pop %v2689
    %v2691 = vmul.f32 %v2677, 1.442695
    %v2692 = vpow.pop %v2691
    %v2693 = vmul.f32 %v2678, 1.442695
    %v2694 = vpow.pop %v2693
    %v2695 = vmul.f32 %v2679, 1.442695
    %v2696 = vpow.pop %v2695
    %v2697 = vmul.f32 %v2680, 1.442695
    %v2698 = vpow.pop %v2697
    %v2699 = vmul.f32 %v2681, 1.442695
    %v2700 = vpow.pop %v2699
    %v2701 = vmul.f32 %v2682, 1.442695
    %v2702 = vpow.pop %v2701
    %v2703 = vsel %vm2101, %v2684, 0.0
    %2704 = vadd.xlane.f32.xlu0 %v2703
    %v2705 = vpop.xlane.xlu0 %2704
    %v2706 = vsel %vm2101, %v2686, 0.0
    %2707 = vadd.xlane.f32.xlu0 %v2706
    %v2708 = vpop.xlane.xlu0 %2707
    %v2709 = vsel %vm2101, %v2688, 0.0
    %2710 = vadd.xlane.f32.xlu0 %v2709
    %v2711 = vpop.xlane.xlu0 %2710
    %v2712 = vsel %vm2101, %v2690, 0.0
    %2713 = vadd.xlane.f32.xlu0 %v2712
    %v2714 = vpop.xlane.xlu0 %2713
    %v2715 = vsel %vm2101, %v2692, 0.0
    %2716 = vadd.xlane.f32.xlu0 %v2715
    %v2717 = vpop.xlane.xlu0 %2716
    %v2718 = vsel %vm2101, %v2694, 0.0
    %2719 = vadd.xlane.f32.xlu0 %v2718
    %v2720 = vpop.xlane.xlu0 %2719
    %v2721 = vsel %vm2101, %v2696, 0.0
    %2722 = vadd.xlane.f32.xlu0 %v2721
    %v2723 = vpop.xlane.xlu0 %2722
    %v2724 = vsel %vm2101, %v2698, 0.0
    %2725 = vadd.xlane.f32.xlu0 %v2724
    %v2726 = vpop.xlane.xlu0 %2725
    %v2727 = vsel %vm2101, %v2700, 0.0
    %2728 = vadd.xlane.f32.xlu0 %v2727
    %v2729 = vpop.xlane.xlu0 %2728
    %v2730 = vsel %vm2101, %v2702, 0.0
    %2731 = vadd.xlane.f32.xlu0 %v2730
    %v2732 = vpop.xlane.xlu0 %2731
    %v2733 = vrcp.pop %v2705
    %v2734 = vmul.f32 %v2705, %v2733
    %v2735 = vsub.f32 1.0, %v2734
    %v2736 = vmul.f32 %v2733, %v2735
    %v2737 = vadd.f32 %v2733, %v2736
    %vm2738 = vweird.f32 %v2705
    %vm2739 = vweird.f32 %v2733
    %vm2740 = vmor %vm2738, %vm2739
    %v2741 = vsel %vm2740, %v2733, %v2737
    %v2742 = vand.u32 2147483647, %v2705
    %vm2743 = vcmp.eq.f32.partialorder %v2742, 8.507059e+37
    %v2744 = vand.u32 %v2705, 2147483648
    %v2745 = vor.u32 1.1754944e-38, %v2744
    %v2746 = vsel %vm2743, %v2745, %v2741
    %v2747 = vmul.f32 %v2684, %v2746
    %v2748 = vrcp.pop %v2708
    %v2749 = vmul.f32 %v2708, %v2748
    %v2750 = vsub.f32 1.0, %v2749
    %v2751 = vmul.f32 %v2748, %v2750
    %v2752 = vadd.f32 %v2748, %v2751
    %vm2753 = vweird.f32 %v2708
    %vm2754 = vweird.f32 %v2748
    %vm2755 = vmor %vm2753, %vm2754
    %v2756 = vsel %vm2755, %v2748, %v2752
    %v2757 = vand.u32 2147483647, %v2708
    %vm2758 = vcmp.eq.f32.partialorder %v2757, 8.507059e+37
    %v2759 = vand.u32 %v2708, 2147483648
    %v2760 = vor.u32 1.1754944e-38, %v2759
    %v2761 = vsel %vm2758, %v2760, %v2756
    %v2762 = vmul.f32 %v2686, %v2761
    %v2763 = vrcp.pop %v2711
    %v2764 = vmul.f32 %v2711, %v2763
    %v2765 = vsub.f32 1.0, %v2764
    %v2766 = vmul.f32 %v2763, %v2765
    %v2767 = vadd.f32 %v2763, %v2766
    %vm2768 = vweird.f32 %v2711
    %vm2769 = vweird.f32 %v2763
    %vm2770 = vmor %vm2768, %vm2769
    %v2771 = vsel %vm2770, %v2763, %v2767
    %v2772 = vand.u32 2147483647, %v2711
    %vm2773 = vcmp.eq.f32.partialorder %v2772, 8.507059e+37
    %v2774 = vand.u32 %v2711, 2147483648
    %v2775 = vor.u32 1.1754944e-38, %v2774
    %v2776 = vsel %vm2773, %v2775, %v2771
    %v2777 = vmul.f32 %v2688, %v2776
    %v2778 = vrcp.pop %v2714
    %v2779 = vmul.f32 %v2714, %v2778
    %v2780 = vsub.f32 1.0, %v2779
    %v2781 = vmul.f32 %v2778, %v2780
    %v2782 = vadd.f32 %v2778, %v2781
    %vm2783 = vweird.f32 %v2714
    %vm2784 = vweird.f32 %v2778
    %vm2785 = vmor %vm2783, %vm2784
    %v2786 = vsel %vm2785, %v2778, %v2782
    %v2787 = vand.u32 2147483647, %v2714
    %vm2788 = vcmp.eq.f32.partialorder %v2787, 8.507059e+37
    %v2789 = vand.u32 %v2714, 2147483648
    %v2790 = vor.u32 1.1754944e-38, %v2789
    %v2791 = vsel %vm2788, %v2790, %v2786
    %v2792 = vmul.f32 %v2690, %v2791
    %v2793 = vrcp.pop %v2717
    %v2794 = vmul.f32 %v2717, %v2793
    %v2795 = vsub.f32 1.0, %v2794
    %v2796 = vmul.f32 %v2793, %v2795
    %v2797 = vadd.f32 %v2793, %v2796
    %vm2798 = vweird.f32 %v2717
    %vm2799 = vweird.f32 %v2793
    %vm2800 = vmor %vm2798, %vm2799
    %v2801 = vsel %vm2800, %v2793, %v2797
    %v2802 = vand.u32 2147483647, %v2717
    %vm2803 = vcmp.eq.f32.partialorder %v2802, 8.507059e+37
    %v2804 = vand.u32 %v2717, 2147483648
    %v2805 = vor.u32 1.1754944e-38, %v2804
    %v2806 = vsel %vm2803, %v2805, %v2801
    %v2807 = vmul.f32 %v2692, %v2806
    %v2808 = vrcp.pop %v2720
    %v2809 = vmul.f32 %v2720, %v2808
    %v2810 = vsub.f32 1.0, %v2809
    %v2811 = vmul.f32 %v2808, %v2810
    %v2812 = vadd.f32 %v2808, %v2811
    %vm2813 = vweird.f32 %v2720
    %vm2814 = vweird.f32 %v2808
    %vm2815 = vmor %vm2813, %vm2814
    %v2816 = vsel %vm2815, %v2808, %v2812
    %v2817 = vand.u32 2147483647, %v2720
    %vm2818 = vcmp.eq.f32.partialorder %v2817, 8.507059e+37
    %v2819 = vand.u32 %v2720, 2147483648
    %v2820 = vor.u32 1.1754944e-38, %v2819
    %v2821 = vsel %vm2818, %v2820, %v2816
    %v2822 = vmul.f32 %v2694, %v2821
    %v2823 = vrcp.pop %v2723
    %v2824 = vmul.f32 %v2723, %v2823
    %v2825 = vsub.f32 1.0, %v2824
    %v2826 = vmul.f32 %v2823, %v2825
    %v2827 = vadd.f32 %v2823, %v2826
    %vm2828 = vweird.f32 %v2723
    %vm2829 = vweird.f32 %v2823
    %vm2830 = vmor %vm2828, %vm2829
    %v2831 = vsel %vm2830, %v2823, %v2827
    %v2832 = vand.u32 2147483647, %v2723
    %vm2833 = vcmp.eq.f32.partialorder %v2832, 8.507059e+37
    %v2834 = vand.u32 %v2723, 2147483648
    %v2835 = vor.u32 1.1754944e-38, %v2834
    %v2836 = vsel %vm2833, %v2835, %v2831
    %v2837 = vmul.f32 %v2696, %v2836
    %v2838 = vrcp.pop %v2726
    %v2839 = vmul.f32 %v2726, %v2838
    %v2840 = vsub.f32 1.0, %v2839
    %v2841 = vmul.f32 %v2838, %v2840
    %v2842 = vadd.f32 %v2838, %v2841
    %vm2843 = vweird.f32 %v2726
    %vm2844 = vweird.f32 %v2838
    %vm2845 = vmor %vm2843, %vm2844
    %v2846 = vsel %vm2845, %v2838, %v2842
    %v2847 = vand.u32 2147483647, %v2726
    %vm2848 = vcmp.eq.f32.partialorder %v2847, 8.507059e+37
    %v2849 = vand.u32 %v2726, 2147483648
    %v2850 = vor.u32 1.1754944e-38, %v2849
    %v2851 = vsel %vm2848, %v2850, %v2846
    %v2852 = vmul.f32 %v2698, %v2851
    %v2853 = vrcp.pop %v2729
    %v2854 = vmul.f32 %v2729, %v2853
    %v2855 = vsub.f32 1.0, %v2854
    %v2856 = vmul.f32 %v2853, %v2855
    %v2857 = vadd.f32 %v2853, %v2856
    %vm2858 = vweird.f32 %v2729
    %vm2859 = vweird.f32 %v2853
    %vm2860 = vmor %vm2858, %vm2859
    %v2861 = vsel %vm2860, %v2853, %v2857
    %v2862 = vand.u32 2147483647, %v2729
    %vm2863 = vcmp.eq.f32.partialorder %v2862, 8.507059e+37
    %v2864 = vand.u32 %v2729, 2147483648
    %v2865 = vor.u32 1.1754944e-38, %v2864
    %v2866 = vsel %vm2863, %v2865, %v2861
    %v2867 = vmul.f32 %v2700, %v2866
    %v2868 = vrcp.pop %v2732
    %v2869 = vmul.f32 %v2732, %v2868
    %v2870 = vsub.f32 1.0, %v2869
    %v2871 = vmul.f32 %v2868, %v2870
    %v2872 = vadd.f32 %v2868, %v2871
    %vm2873 = vweird.f32 %v2732
    %vm2874 = vweird.f32 %v2868
    %vm2875 = vmor %vm2873, %vm2874
    %v2876 = vsel %vm2875, %v2868, %v2872
    %v2877 = vand.u32 2147483647, %v2732
    %vm2878 = vcmp.eq.f32.partialorder %v2877, 8.507059e+37
    %v2879 = vand.u32 %v2732, 2147483648
    %v2880 = vor.u32 1.1754944e-38, %v2879
    %v2881 = vsel %vm2878, %v2880, %v2876
    %v2882 = vmul.f32 %v2702, %v2881
    %v2884 = vsel %vm2101, %v2747, 0
    %v2887 = vsel %vm2101, %v2762, 0
    %v2890 = vsel %vm2101, %v2777, 0
    %v2893 = vsel %vm2101, %v2792, 0
    %v2896 = vsel %vm2101, %v2807, 0
    %v2899 = vsel %vm2101, %v2822, 0
    %v2902 = vsel %vm2101, %v2837, 0
    %v2905 = vsel %vm2101, %v2852, 0
    %v2908 = vsel %vm2101, %v2867, 0
    %v2911 = vsel %vm2101, %v2882, 0
    %2913 = vmatpush.msra.mxu0 0.0
    %2914 = vmatpush.msra.mxu0 0.0
    %2915 = vmatpush.msra.mxu0 0.0
    %2916 = vmatpush.msra.mxu0 0.0
    %2917 = vmatpush.msra.mxu0 0.0
    %2918 = vmatpush.msra.mxu0 0.0
    %2919 = vmatpush.msra.mxu0 0.0
    %2920 = vmatpush.msra.mxu0 0.0
    %2921 = vmatpush.msra.mxu0 0.0
    %2922 = vmatpush.msra.mxu0 0.0
    %2923 = vmatpush.msra.mxu0 0.0
    %2924 = vmatpush.msra.mxu0 0.0
    %2925 = vmatpush.msra.mxu0 0.0
    %2926 = vmatpush.msra.mxu0 0.0
    %2927 = vmatpush.msra.mxu0 0.0
    %2928 = vmatpush.msra.mxu0 %v2552
    %2929 = vmatmul.f32.gmra.mxu0 %v2884
    %v2930 = vpop.f32.mrf.mxu0
    %v2931 = vadd.f32 0.0, %v2930
    %2932 = vmatmul.f32.gmra.mxu0 %v2887
    %v2933 = vpop.f32.mrf.mxu0
    %v2934 = vadd.f32 0.0, %v2933
    %2935 = vmatmul.f32.gmra.mxu0 %v2890
    %v2936 = vpop.f32.mrf.mxu0
    %v2937 = vadd.f32 0.0, %v2936
    %2938 = vmatmul.f32.gmra.mxu0 %v2893
    %v2939 = vpop.f32.mrf.mxu0
    %v2940 = vadd.f32 0.0, %v2939
    %2941 = vmatmul.f32.gmra.mxu0 %v2896
    %v2942 = vpop.f32.mrf.mxu0
    %v2943 = vadd.f32 0.0, %v2942
    %2944 = vmatmul.f32.gmra.mxu0 %v2899
    %v2945 = vpop.f32.mrf.mxu0
    %v2946 = vadd.f32 0.0, %v2945
    %2947 = vmatmul.f32.gmra.mxu0 %v2902
    %v2948 = vpop.f32.mrf.mxu0
    %v2949 = vadd.f32 0.0, %v2948
    %2950 = vmatmul.f32.gmra.mxu0 %v2905
    %v2951 = vpop.f32.mrf.mxu0
    %v2952 = vadd.f32 0.0, %v2951
    %2953 = vmatmul.f32.gmra.mxu0 %v2908
    %v2954 = vpop.f32.mrf.mxu0
    %v2955 = vadd.f32 0.0, %v2954
    %2956 = vmatmul.f32.gmra.mxu0 %v2911
    %v2957 = vpop.f32.mrf.mxu0
    %v2958 = vadd.f32 0.0, %v2957
    %2959 = vdwg.mxu0
    %v2960 = vmul.f32 %v2931, %v1850
    %v2961 = vadd.f32 %v2960, 0.0
    %v2962 = vadd.f32 %v2747, 0.0
    %v2963 = vmul.f32 %v2934, %v1855
    %v2964 = vadd.f32 %v2961, %v2963
    %v2965 = vadd.f32 %v2962, %v2762
    %v2966 = vmul.f32 %v2937, %v1860
    %v2967 = vadd.f32 %v2964, %v2966
    %v2968 = vadd.f32 %v2965, %v2777
    %v2969 = vmul.f32 %v2940, %v1865
    %v2970 = vadd.f32 %v2967, %v2969
    %v2971 = vadd.f32 %v2968, %v2792
    %v2972 = vmul.f32 %v2943, %v1869
    %v2973 = vadd.f32 %v2970, %v2972
    %v2974 = vadd.f32 %v2971, %v2807
    %v2975 = vmul.f32 %v2946, %v1873
    %v2976 = vadd.f32 %v2973, %v2975
    %v2977 = vadd.f32 %v2974, %v2822
    %v2978 = vmul.f32 %v2949, %v1878
    %v2979 = vadd.f32 %v2976, %v2978
    %v2980 = vadd.f32 %v2977, %v2837
    %v2981 = vmul.f32 %v2952, %v1883
    %v2982 = vadd.f32 %v2979, %v2981
    %v2983 = vadd.f32 %v2980, %v2852
    %v2984 = vmul.f32 %v2955, %v1888
    %v2985 = vadd.f32 %v2982, %v2984
    %v2986 = vadd.f32 %v2983, %v2867
    %v2987 = vmul.f32 %v2958, %v1892
    %v2988 = vadd.f32 %v2985, %v2987
    %v2989 = vadd.f32 %v2986, %v2882
    %v2991 = vsel %vm151, %v2988, 0
    %2993 = vmatpush.xpose.msra.mxu0 0.0
    %2994 = vmatpush.xpose.msra.mxu0 0.0
    %2995 = vmatpush.xpose.msra.mxu0 0.0
    %2996 = vmatpush.xpose.msra.mxu0 0.0
    %2997 = vmatpush.xpose.msra.mxu0 0.0
    %2998 = vmatpush.xpose.msra.mxu0 0.0
    %2999 = vmatpush.xpose.msra.mxu0 0.0
    %3000 = vmatpush.xpose.msra.mxu0 0.0
    %3001 = vmatpush.xpose.msra.mxu0 0.0
    %3002 = vmatpush.xpose.msra.mxu0 0.0
    %3003 = vmatpush.xpose.msra.mxu0 0.0
    %3004 = vmatpush.xpose.msra.mxu0 %v2466
    %3005 = vmatpush.xpose.msra.mxu0 %v2463
    %3006 = vmatpush.xpose.msra.mxu0 %v2460
    %3007 = vmatpush.xpose.msra.mxu0 %v2457
    %3008 = vmatpush.xpose.msra.mxu0 %v2454
    %3009 = vmatmul.f32.gmra.mxu0 %v2991
    %v3010 = vpop.f32.mrf.mxu0
    %v3011 = vadd.f32 %v2449, %v3010
    %3012 = vdwg.mxu0
    %v3013 = vmul.f32 %v2989, 0.1
    %3014 = vst.msk [vmem:[#allocation13] sm:$0xff] %vm151, %v2486
    %3015 = vst.msk [vmem:[#allocation13 + $0x8] sm:$0xff] %vm151, %v3011
    %3016 = vst.msk [vmem:[#allocation14] sm:$0xff] %vm2101, %v2488
    %3017 = vst.msk [vmem:[#allocation14 + $0x8] sm:$0xff] %vm2101, %v3013
    // Predicated region
    $region50: #{_lambda_.3} parent=1 // pred_check
      _
    $region51: #{_lambda_.3} parent=1 // pred_check_branch
      %3019 = sbr.rel (0) target = $region53
    $region52: #{_lambda_.3} parent=1 // pred_region
      %3021 = vsyncadd [#allocation4], 0
      %s3022 = sshll.u32 [#allocation10], 4
      %s3023 = int_to_ptr.vmem [resolvable:$true] %s3022
      %s3024 = sshll.u32 %s8, 4
      %s3025 = int_to_ptr.hbm [resolvable:$true] %s3024
      %3030 = dma.vmem_to_hbm [thread:$0]  %s3023, 256, %s3025, [#allocation4], 128, 128, 8
    $region53: #{_lambda_.3} parent=1 // pred_fallthru
      _
    // Predicated region
    $region54: #{_lambda_.3} parent=1 // pred_check
      _
    $region55: #{_lambda_.3} parent=1 // pred_check_branch
      %3032 = sbr.rel (0) target = $region57
    $region56: #{_lambda_.3} parent=1 // pred_region
      _
    $region57: #{_lambda_.3} parent=1 // pred_fallthru
      _
    // Predicated region
    $region58: #{_lambda_.3} parent=1 // pred_check
      _
    $region59: #{_lambda_.3} parent=1 // pred_check_branch
      %3034 = sbr.rel (0) target = $region61
    $region60: #{_lambda_.3} parent=1 // pred_region
      %3036 = vsyncadd [#allocation12], 0
      %s3037 = sshll.u32 [#allocation11], 4
      %s3038 = int_to_ptr.vmem [resolvable:$true] %s3037
      %s3039 = sshll.u32 %s10, 4
      %s3040 = int_to_ptr.hbm [resolvable:$true] %s3039
      %3045 = dma.vmem_to_hbm [thread:$0]  %s3038, 256, %s3040, [#allocation12], 128, 128, 8
    $region61: #{_lambda_.3} parent=1 // pred_fallthru
      _
    // Predicated region
    $region62: #{_lambda_.3} parent=1 // pred_check
      _
    $region63: #{_lambda_.3} parent=1 // pred_check_branch
      %3047 = sbr.rel (0) target = $region65
    $region64: #{_lambda_.3} parent=1 // pred_region
      _
    $region65: #{_lambda_.3} parent=1 // pred_fallthru
      _
    // Predicated region
    $region66: #{_lambda_.3} parent=1 // pred_check
      _
    $region67: #{_lambda_.3} parent=1 // pred_check_branch
      %3049 = sbr.rel (0) target = $region69
    $region68: #{_lambda_.3} parent=1 // pred_region
      %3051 = vsyncadd [#allocation12], 0
      %s3052 = sshll.u32 [#allocation13], 4
      %s3053 = int_to_ptr.vmem [resolvable:$true] %s3052
      %s3054 = sshll.u32 %s12, 4
      %s3055 = int_to_ptr.hbm [resolvable:$true] %s3054
      %3060 = dma.vmem_to_hbm [thread:$0]  %s3053, 256, %s3055, [#allocation12], 128, 128, 8
    $region69: #{_lambda_.3} parent=1 // pred_fallthru
      _
    // Predicated region
    $region70: #{_lambda_.3} parent=1 // pred_check
      _
    $region71: #{_lambda_.3} parent=1 // pred_check_branch
      %3062 = sbr.rel (0) target = $region73
    $region72: #{_lambda_.3} parent=1 // pred_region
      %3064 = vsyncadd [#allocation15], 0
      %s3065 = sshll.u32 [#allocation14], 4
      %s3066 = int_to_ptr.vmem [resolvable:$true] %s3065
      %s3067 = sshll.u32 %s13, 4
      %s3068 = int_to_ptr.hbm [resolvable:$true] %s3067
      %3073 = dma.vmem_to_hbm [thread:$0]  %s3066, 256, %s3068, [#allocation15], 128, 128, 8
    $region73: #{_lambda_.3} parent=1 // pred_fallthru
      _
    // Predicated region
    $region74: #{_lambda_.3} parent=1 // pred_check
      _
    $region75: #{_lambda_.3} parent=1 // pred_check_branch
      %3075 = sbr.rel (0) target = $region77
    $region76: #{_lambda_.3} parent=1 // pred_region
      %3077 = dma.done [#allocation4], 256
    $region77: #{_lambda_.3} parent=1 // pred_fallthru
      _
    // Predicated region
    $region78: #{_lambda_.3} parent=1 // pred_check
      _
    $region79: #{_lambda_.3} parent=1 // pred_check_branch
      %3079 = sbr.rel (0) target = $region81
    $region80: #{_lambda_.3} parent=1 // pred_region
      _
    $region81: #{_lambda_.3} parent=1 // pred_fallthru
      _
    // Predicated region
    $region82: #{_lambda_.3} parent=1 // pred_check
      _
    $region83: #{_lambda_.3} parent=1 // pred_check_branch
      %3081 = sbr.rel (0) target = $region85
    $region84: #{_lambda_.3} parent=1 // pred_region
      %3083 = dma.done [#allocation12], 256
    $region85: #{_lambda_.3} parent=1 // pred_fallthru
      _
    // Predicated region
    $region86: #{_lambda_.3} parent=1 // pred_check
      _
    $region87: #{_lambda_.3} parent=1 // pred_check_branch
      %3085 = sbr.rel (0) target = $region89
    $region88: #{_lambda_.3} parent=1 // pred_region
      _
    $region89: #{_lambda_.3} parent=1 // pred_fallthru
      _
    // Predicated region
    $region90: #{_lambda_.3} parent=1 // pred_check
      _
    $region91: #{_lambda_.3} parent=1 // pred_check_branch
      %3087 = sbr.rel (0) target = $region93
    $region92: #{_lambda_.3} parent=1 // pred_region
      %3089 = dma.done [#allocation12], 256
    $region93: #{_lambda_.3} parent=1 // pred_fallthru
      _
    // Predicated region
    $region94: #{_lambda_.3} parent=1 // pred_check
      _
    $region95: #{_lambda_.3} parent=1 // pred_check_branch
      %3091 = sbr.rel (0) target = $region97
    $region96: #{_lambda_.3} parent=1 // pred_region
      %3093 = dma.done [#allocation15], 256
    $region97: #{_lambda_.3} parent=1 // pred_fallthru
      _
    %3094 = vsyncpa [#allocation3], 1
    %3095 = vsyncpa [#allocation6], 1
    %3096 = vsyncpa [#allocation9], 1
    %3097 = vsyncpa [#allocation4], 1
    %3098 = vsyncpa [#allocation12], 1
    %3099 = vsyncpa [#allocation15], 1

// kernel: _lambda_.2
$region0: #{_lambda_.2}
  #allocation0 [shape = 'u32[]', space=smem, size = 0x4, offset = 0x4, fixed_abs, tag = 'smem constant byte address 0x4 - core index']
  #allocation1 [shape = 'u32[72,128]{1,0:T(1,128)}', space=vmem, size = 0x9000, scoped, tag = 'internal scratch']
  %s0 = inlined_call_operand.vmem [shape: f32[8,2,64], index: 0, kind: input, shape index: {}]
  %s1 = inlined_call_operand.vmem [shape: f32[6,2,64], index: 1, kind: input, shape index: {}]
  %s2 = inlined_call_operand.vmem [shape: f32[6,2,64], index: 2, kind: input, shape index: {}]
  %s3 = inlined_call_operand.hbm [shape: f32[3,64,64], index: 3, kind: input, shape index: {}]
  %s4 = inlined_call_operand.hbm [shape: f32[3,64,64], index: 4, kind: input, shape index: {}]
  %s5 = inlined_call_operand.hbm [shape: f32[3,64,64], index: 5, kind: input, shape index: {}]
  %s6 = inlined_call_operand.hbm [shape: f32[3,64,64], index: 6, kind: input, shape index: {}]
  %s7 = inlined_call_operand.vmem [shape: f32[3,8,64], index: 7, kind: input, shape index: {}]
  %s8 = inlined_call_operand.hbm [shape: f32[8,2,64], index: 8, kind: output, shape index: {0}]
  %s9 = inlined_call_operand.vmem [shape: f32[2,8,6], index: 9, kind: output, shape index: {1}]
  %s10 = inlined_call_operand.hbm [shape: f32[8,2,64], index: 10, kind: output, shape index: {2}]
  %s11 = inlined_call_operand.vmem [shape: f32[2,8,6], index: 11, kind: output, shape index: {3}]
  %s12 = inlined_call_operand.hbm [shape: f32[8,2,64], index: 12, kind: output, shape index: {4}]
  %s13 = inlined_call_operand.hbm [shape: f32[2,8,8], index: 13, kind: output, shape index: {5}]
  %14 = xla_tuple %s8, %s9, %s10, %s11, %s12, %s13
  %s15 = sld [smem:[#allocation0]]
  $region98: #{_lambda_.2} parent=0
    _
  %s17 = ssub.s32 1, %s15
  %s18 = scalar_select 0, %s17, %s15
  $region1: #{_lambda_.2} parent=0
    #allocation2 [shape = 'u8[98304]{0}', space=vmem, size = 0x18000, scoped, tag = 'input window, operand 3, single buffered']
    #allocation3 [shape = 's32[1]{0}', space=sflag, size = 0x4, scoped, tag = 'scoped memory for _lambda_.2']
    #allocation4 [shape = 's32[1]{0}', space=sflag, size = 0x4, scoped, tag = 'scoped memory for _lambda_.2']
    #allocation5 [shape = 'u8[98304]{0}', space=vmem, size = 0x18000, scoped, tag = 'input window, operand 4, single buffered']
    #allocation6 [shape = 's32[1]{0}', space=sflag, size = 0x4, scoped, tag = 'scoped memory for _lambda_.2']
    #allocation7 [shape = 'u8[98304]{0}', space=vmem, size = 0x18000, scoped, tag = 'input window, operand 5, single buffered']
    #allocation8 [shape = 'u8[98304]{0}', space=vmem, size = 0x18000, scoped, tag = 'input window, operand 6, single buffered']
    #allocation9 [shape = 's32[1]{0}', space=sflag, size = 0x4, scoped, tag = 'scoped memory for _lambda_.2']
    #allocation10 [shape = 'u8[8192]{0}', space=vmem, size = 0x2000, scoped, tag = 'output window, operand 0, single buffered']
    #allocation11 [shape = 'u8[8192]{0}', space=vmem, size = 0x2000, scoped, tag = 'output window, operand 2, single buffered']
    #allocation12 [shape = 's32[1]{0}', space=sflag, size = 0x4, scoped, tag = 'scoped memory for _lambda_.2']
    #allocation13 [shape = 'u8[8192]{0}', space=vmem, size = 0x2000, scoped, tag = 'output window, operand 4, single buffered']
    #allocation14 [shape = 'u8[8192]{0}', space=vmem, size = 0x2000, scoped, tag = 'output window, operand 5, single buffered']
    #allocation15 [shape = 's32[1]{0}', space=sflag, size = 0x4, scoped, tag = 'scoped memory for _lambda_.2']
    %19 = vsyncpa [#allocation3], 0
    %20 = vsyncpa [#allocation6], 0
    %21 = vsyncpa [#allocation9], 0
    %22 = vsyncpa [#allocation4], 0
    %23 = vsyncpa [#allocation12], 0
    %24 = vsyncpa [#allocation15], 0
    // Predicated region
    $region2: #{_lambda_.2} parent=1 // pred_check
      _
    $region3: #{_lambda_.2} parent=1 // pred_check_branch
      %26 = sbr.rel (0) target = $region5
    $region4: #{_lambda_.2} parent=1 // pred_region
      _
    $region5: #{_lambda_.2} parent=1 // pred_fallthru
      _
    // Predicated region
    $region6: #{_lambda_.2} parent=1 // pred_check
      _
    $region7: #{_lambda_.2} parent=1 // pred_check_branch
      %28 = sbr.rel (0) target = $region9
    $region8: #{_lambda_.2} parent=1 // pred_region
      _
    $region9: #{_lambda_.2} parent=1 // pred_fallthru
      _
    // Predicated region
    $region10: #{_lambda_.2} parent=1 // pred_check
      _
    $region11: #{_lambda_.2} parent=1 // pred_check_branch
      %30 = sbr.rel (0) target = $region13
    $region12: #{_lambda_.2} parent=1 // pred_region
      _
    $region13: #{_lambda_.2} parent=1 // pred_fallthru
      _
    // Predicated region
    $region14: #{_lambda_.2} parent=1 // pred_check
      _
    $region15: #{_lambda_.2} parent=1 // pred_check_branch
      %32 = sbr.rel (0) target = $region17
    $region16: #{_lambda_.2} parent=1 // pred_region
      %34 = vsyncadd [#allocation3], 0
      %s35 = sshll.u32 %s3, 4
      %s36 = int_to_ptr.hbm [resolvable:$true] %s35
      %s37 = sshll.u32 [#allocation2], 4
      %s38 = int_to_ptr.vmem [resolvable:$true] %s37
      %43 = dma.hbm_to_vmem [thread:$0]  %s36, 3072, %s38, [#allocation3], 128, 128, 8
    $region17: #{_lambda_.2} parent=1 // pred_fallthru
      _
    // Predicated region
    $region18: #{_lambda_.2} parent=1 // pred_check
      _
    $region19: #{_lambda_.2} parent=1 // pred_check_branch
      %45 = sbr.rel (0) target = $region21
    $region20: #{_lambda_.2} parent=1 // pred_region
      %47 = vsyncadd [#allocation6], 0
      %s48 = sshll.u32 %s4, 4
      %s49 = int_to_ptr.hbm [resolvable:$true] %s48
      %s50 = sshll.u32 [#allocation5], 4
      %s51 = int_to_ptr.vmem [resolvable:$true] %s50
      %56 = dma.hbm_to_vmem [thread:$0]  %s49, 3072, %s51, [#allocation6], 128, 128, 8
    $region21: #{_lambda_.2} parent=1 // pred_fallthru
      _
    // Predicated region
    $region22: #{_lambda_.2} parent=1 // pred_check
      _
    $region23: #{_lambda_.2} parent=1 // pred_check_branch
      %58 = sbr.rel (0) target = $region25
    $region24: #{_lambda_.2} parent=1 // pred_region
      %60 = vsyncadd [#allocation6], 0
      %s61 = sshll.u32 %s5, 4
      %s62 = int_to_ptr.hbm [resolvable:$true] %s61
      %s63 = sshll.u32 [#allocation7], 4
      %s64 = int_to_ptr.vmem [resolvable:$true] %s63
      %69 = dma.hbm_to_vmem [thread:$0]  %s62, 3072, %s64, [#allocation6], 128, 128, 8
    $region25: #{_lambda_.2} parent=1 // pred_fallthru
      _
    // Predicated region
    $region26: #{_lambda_.2} parent=1 // pred_check
      _
    $region27: #{_lambda_.2} parent=1 // pred_check_branch
      %71 = sbr.rel (0) target = $region29
    $region28: #{_lambda_.2} parent=1 // pred_region
      %73 = vsyncadd [#allocation9], 0
      %s74 = sshll.u32 %s6, 4
      %s75 = int_to_ptr.hbm [resolvable:$true] %s74
      %s76 = sshll.u32 [#allocation8], 4
      %s77 = int_to_ptr.vmem [resolvable:$true] %s76
      %82 = dma.hbm_to_vmem [thread:$0]  %s75, 3072, %s77, [#allocation9], 128, 128, 8
    $region29: #{_lambda_.2} parent=1 // pred_fallthru
      _
    // Predicated region
    $region30: #{_lambda_.2} parent=1 // pred_check
      _
    $region31: #{_lambda_.2} parent=1 // pred_check_branch
      %84 = sbr.rel (0) target = $region33
    $region32: #{_lambda_.2} parent=1 // pred_region
      _
    $region33: #{_lambda_.2} parent=1 // pred_fallthru
      _
    // Predicated region
    $region34: #{_lambda_.2} parent=1 // pred_check
      _
    $region35: #{_lambda_.2} parent=1 // pred_check_branch
      %86 = sbr.rel (0) target = $region37
    $region36: #{_lambda_.2} parent=1 // pred_region
      %88 = dma.done [#allocation3], 3072
    $region37: #{_lambda_.2} parent=1 // pred_fallthru
      _
    // Predicated region
    $region38: #{_lambda_.2} parent=1 // pred_check
      _
    $region39: #{_lambda_.2} parent=1 // pred_check_branch
      %90 = sbr.rel (0) target = $region41
    $region40: #{_lambda_.2} parent=1 // pred_region
      %92 = dma.done [#allocation6], 3072
    $region41: #{_lambda_.2} parent=1 // pred_fallthru
      _
    // Predicated region
    $region42: #{_lambda_.2} parent=1 // pred_check
      _
    $region43: #{_lambda_.2} parent=1 // pred_check_branch
      %94 = sbr.rel (0) target = $region45
    $region44: #{_lambda_.2} parent=1 // pred_region
      %96 = dma.done [#allocation6], 3072
    $region45: #{_lambda_.2} parent=1 // pred_fallthru
      _
    // Predicated region
    $region46: #{_lambda_.2} parent=1 // pred_check
      _
    $region47: #{_lambda_.2} parent=1 // pred_check_branch
      %98 = sbr.rel (0) target = $region49
    $region48: #{_lambda_.2} parent=1 // pred_region
      %100 = dma.done [#allocation9], 3072
    $region49: #{_lambda_.2} parent=1 // pred_fallthru
      _
    %v101 = vld [vmem:[%s0] sm:$0x3]
    %v102 = vld [vmem:[%s0 + $0x2] sm:$0x3]
    %v103 = vld [vmem:[%s0 + $0x4] sm:$0x3]
    %v104 = vld [vmem:[%s0 + $0x6] sm:$0x3]
    %v105 = vld [vmem:[%s0 + $0x8] sm:$0x3]
    %v106 = vld [vmem:[%s0 + $0xa] sm:$0x3]
    %v107 = vld [vmem:[%s0 + $0xc] sm:$0x3]
    %v108 = vld [vmem:[%s0 + $0xe] sm:$0x3]
    %v109 = vld [vmem:[%s1] sm:$0x3]
    %v110 = vld [vmem:[%s1 + $0x2] sm:$0x3]
    %v111 = vld [vmem:[%s1 + $0x4] sm:$0x3]
    %v112 = vld [vmem:[%s1 + $0x6] sm:$0x3]
    %v113 = vld [vmem:[%s1 + $0x8] sm:$0x3]
    %v114 = vld [vmem:[%s1 + $0xa] sm:$0x3]
    %v115 = vld [vmem:[%s2] sm:$0x3]
    %v116 = vld [vmem:[%s2 + $0x2] sm:$0x3]
    %v117 = vld [vmem:[%s2 + $0x4] sm:$0x3]
    %v118 = vld [vmem:[%s2 + $0x6] sm:$0x3]
    %v119 = vld [vmem:[%s2 + $0x8] sm:$0x3]
    %v120 = vld [vmem:[%s2 + $0xa] sm:$0x3]
    %v121 = vlaneseq
    %v122 = vand.u32 %v121, 127
    %v123 = vld [vmem:[#allocation2] sm:$0xff]
    %v124 = vld [vmem:[#allocation2 + $0x8] sm:$0xff]
    %v125 = vld [vmem:[#allocation2 + $0x10] sm:$0xff]
    %v126 = vld [vmem:[#allocation2 + $0x18] sm:$0xff]
    %v127 = vld [vmem:[#allocation2 + $0x20] sm:$0xff]
    %v128 = vld [vmem:[#allocation2 + $0x28] sm:$0xff]
    %v129 = vld [vmem:[#allocation2 + $0x30] sm:$0xff]
    %v130 = vld [vmem:[#allocation2 + $0x38] sm:$0xff]
    %v131 = vld [vmem:[#allocation5] sm:$0xff]
    %v132 = vld [vmem:[#allocation5 + $0x8] sm:$0xff]
    %v133 = vld [vmem:[#allocation5 + $0x10] sm:$0xff]
    %v134 = vld [vmem:[#allocation5 + $0x18] sm:$0xff]
    %v135 = vld [vmem:[#allocation5 + $0x20] sm:$0xff]
    %v136 = vld [vmem:[#allocation5 + $0x28] sm:$0xff]
    %v137 = vld [vmem:[#allocation5 + $0x30] sm:$0xff]
    %v138 = vld [vmem:[#allocation5 + $0x38] sm:$0xff]
    %v139 = vld [vmem:[#allocation7] sm:$0xff]
    %v140 = vld [vmem:[#allocation7 + $0x8] sm:$0xff]
    %v141 = vld [vmem:[#allocation7 + $0x10] sm:$0xff]
    %v142 = vld [vmem:[#allocation7 + $0x18] sm:$0xff]
    %v143 = vld [vmem:[#allocation7 + $0x20] sm:$0xff]
    %v144 = vld [vmem:[#allocation7 + $0x28] sm:$0xff]
    %v145 = vld [vmem:[#allocation7 + $0x30] sm:$0xff]
    %v146 = vld [vmem:[#allocation7 + $0x38] sm:$0xff]
    %v147 = vld [vmem:[#allocation8] sm:$0xff]
    %v148 = vld [vmem:[#allocation8 + $0x8] sm:$0xff]
    %v149 = vld [vmem:[#allocation8 + $0x10] sm:$0xff]
    %v150 = vld [vmem:[#allocation8 + $0x18] sm:$0xff]
    %v151 = vld [vmem:[#allocation8 + $0x20] sm:$0xff]
    %v152 = vld [vmem:[#allocation8 + $0x28] sm:$0xff]
    %v153 = vld [vmem:[#allocation8 + $0x30] sm:$0xff]
    %v154 = vld [vmem:[#allocation8 + $0x38] sm:$0xff]
    %v155 = vld [vmem:[%s7] sm:$0xff]
    %vm156 = vcmp.ge.s32.totalorder %v122, 0
    %vm157 = vcmp.lt.s32.totalorder %v122, 16
    %vm158 = vmand %vm156, %vm157
    %v159 = vsel %vm158, 1, 0
    %v160 = vcvt.s32.f32 %v159
    %vm161 = vcmp.ge.s32.totalorder %v122, 16
    %vm162 = vcmp.lt.s32.totalorder %v122, 32
    %vm163 = vmand %vm161, %vm162
    %v164 = vsel %vm163, 1, 0
    %v165 = vcvt.s32.f32 %v164
    %vm166 = vcmp.ge.s32.totalorder %v122, 32
    %vm167 = vcmp.lt.s32.totalorder %v122, 48
    %vm168 = vmand %vm166, %vm167
    %v169 = vsel %vm168, 1, 0
    %v170 = vcvt.s32.f32 %v169
    %vm171 = vcmp.ge.s32.totalorder %v122, 48
    %vm172 = vcmp.lt.s32.totalorder %v122, 64
    %vm173 = vmand %vm171, %vm172
    %v174 = vsel %vm173, 1, 0
    %v175 = vcvt.s32.f32 %v174
    %v176 = vperm.slane %v155, 0
    %v185 = vrot.slane %v102, 7
    %vm186 = vcmask 1041409
    %v187 = vsel %vm186, %v185, %v101
    %v188 = vrot.slane %v103, 6
    %vm189 = vcmask 1042434
    %v190 = vsel %vm189, %v188, %v187
    %v191 = vrot.slane %v104, 5
    %vm192 = vcmask 1043459
    %v193 = vsel %vm192, %v191, %v190
    %v194 = vrot.slane %v105, 4
    %vm195 = vcmask 1044484
    %v196 = vsel %vm195, %v194, %v193
    %v197 = vrot.slane %v106, 3
    %vm198 = vcmask 1045509
    %v199 = vsel %vm198, %v197, %v196
    %v200 = vrot.slane %v107, 2
    %vm201 = vcmask 1046534
    %v202 = vsel %vm201, %v200, %v199
    %v203 = vrot.slane %v108, 1
    %vm204 = vcmask 1047559
    %v205 = vsel %vm204, %v203, %v202
    %vm206 = vcmask 523264
    %v207 = vsel %vm206, %v205, 0
    %v210 = vsel %vm206, %v123, 0
    %v213 = vsel %vm206, %v124, 0
    %v216 = vsel %vm206, %v125, 0
    %v219 = vsel %vm206, %v126, 0
    %v222 = vsel %vm206, %v127, 0
    %v225 = vsel %vm206, %v128, 0
    %v228 = vsel %vm206, %v129, 0
    %v231 = vsel %vm206, %v130, 0
    %233 = vmatpush.xpose.msra.mxu0 0.0
    %234 = vmatpush.xpose.msra.mxu0 0.0
    %235 = vmatpush.xpose.msra.mxu0 0.0
    %236 = vmatpush.xpose.msra.mxu0 0.0
    %237 = vmatpush.xpose.msra.mxu0 0.0
    %238 = vmatpush.xpose.msra.mxu0 0.0
    %239 = vmatpush.xpose.msra.mxu0 0.0
    %240 = vmatpush.xpose.msra.mxu0 0.0
    %241 = vmatpush.xpose.msra.mxu0 %v231
    %242 = vmatpush.xpose.msra.mxu0 %v228
    %243 = vmatpush.xpose.msra.mxu0 %v225
    %244 = vmatpush.xpose.msra.mxu0 %v222
    %245 = vmatpush.xpose.msra.mxu0 %v219
    %246 = vmatpush.xpose.msra.mxu0 %v216
    %247 = vmatpush.xpose.msra.mxu0 %v213
    %248 = vmatpush.xpose.msra.mxu0 %v210
    %249 = vmatmul.f32.gmra.mxu0 %v207
    %v250 = vpop.f32.mrf.mxu0
    %v251 = vadd.f32 %v176, %v250
    %252 = vdwg.mxu0
    %v253 = vperm.slane %v155, 1
    %v260 = vrot.slane %v110, 7
    %v261 = vsel %vm186, %v260, %v109
    %v262 = vrot.slane %v111, 6
    %v263 = vsel %vm189, %v262, %v261
    %v264 = vrot.slane %v112, 5
    %v265 = vsel %vm192, %v264, %v263
    %v266 = vrot.slane %v113, 4
    %v267 = vsel %vm195, %v266, %v265
    %v268 = vrot.slane %v114, 3
    %v269 = vsel %vm198, %v268, %v267
    %v270 = vsel %vm206, %v269, 0
    %v273 = vsel %vm206, %v131, 0
    %v276 = vsel %vm206, %v132, 0
    %v279 = vsel %vm206, %v133, 0
    %v282 = vsel %vm206, %v134, 0
    %v285 = vsel %vm206, %v135, 0
    %v288 = vsel %vm206, %v136, 0
    %v291 = vsel %vm206, %v137, 0
    %v294 = vsel %vm206, %v138, 0
    %296 = vmatpush.xpose.msra.mxu0 0.0
    %297 = vmatpush.xpose.msra.mxu0 0.0
    %298 = vmatpush.xpose.msra.mxu0 0.0
    %299 = vmatpush.xpose.msra.mxu0 0.0
    %300 = vmatpush.xpose.msra.mxu0 0.0
    %301 = vmatpush.xpose.msra.mxu0 0.0
    %302 = vmatpush.xpose.msra.mxu0 0.0
    %303 = vmatpush.xpose.msra.mxu0 0.0
    %304 = vmatpush.xpose.msra.mxu0 %v294
    %305 = vmatpush.xpose.msra.mxu0 %v291
    %306 = vmatpush.xpose.msra.mxu0 %v288
    %307 = vmatpush.xpose.msra.mxu0 %v285
    %308 = vmatpush.xpose.msra.mxu0 %v282
    %309 = vmatpush.xpose.msra.mxu0 %v279
    %310 = vmatpush.xpose.msra.mxu0 %v276
    %311 = vmatpush.xpose.msra.mxu0 %v273
    %312 = vmatmul.f32.gmra.mxu0 %v270
    %v313 = vpop.f32.mrf.mxu0
    %v314 = vadd.f32 %v253, %v313
    %315 = vdwg.mxu0
    %v316 = vperm.slane %v155, 2
    %v323 = vrot.slane %v116, 7
    %v324 = vsel %vm186, %v323, %v115
    %v325 = vrot.slane %v117, 6
    %v326 = vsel %vm189, %v325, %v324
    %v327 = vrot.slane %v118, 5
    %v328 = vsel %vm192, %v327, %v326
    %v329 = vrot.slane %v119, 4
    %v330 = vsel %vm195, %v329, %v328
    %v331 = vrot.slane %v120, 3
    %v332 = vsel %vm198, %v331, %v330
    %v333 = vsel %vm206, %v332, 0
    %v336 = vsel %vm206, %v139, 0
    %v339 = vsel %vm206, %v140, 0
    %v342 = vsel %vm206, %v141, 0
    %v345 = vsel %vm206, %v142, 0
    %v348 = vsel %vm206, %v143, 0
    %v351 = vsel %vm206, %v144, 0
    %v354 = vsel %vm206, %v145, 0
    %v357 = vsel %vm206, %v146, 0
    %359 = vmatpush.xpose.msra.mxu0 0.0
    %360 = vmatpush.xpose.msra.mxu0 0.0
    %361 = vmatpush.xpose.msra.mxu0 0.0
    %362 = vmatpush.xpose.msra.mxu0 0.0
    %363 = vmatpush.xpose.msra.mxu0 0.0
    %364 = vmatpush.xpose.msra.mxu0 0.0
    %365 = vmatpush.xpose.msra.mxu0 0.0
    %366 = vmatpush.xpose.msra.mxu0 0.0
    %367 = vmatpush.xpose.msra.mxu0 %v357
    %368 = vmatpush.xpose.msra.mxu0 %v354
    %369 = vmatpush.xpose.msra.mxu0 %v351
    %370 = vmatpush.xpose.msra.mxu0 %v348
    %371 = vmatpush.xpose.msra.mxu0 %v345
    %372 = vmatpush.xpose.msra.mxu0 %v342
    %373 = vmatpush.xpose.msra.mxu0 %v339
    %374 = vmatpush.xpose.msra.mxu0 %v336
    %375 = vmatmul.f32.gmra.mxu0 %v333
    %v376 = vpop.f32.mrf.mxu0
    %v377 = vadd.f32 %v316, %v376
    %378 = vdwg.mxu0
    %v379 = vmul.f32 %v251, %v160
    %v380 = vmul.f32 %v251, %v165
    %v381 = vmul.f32 %v251, %v170
    %v382 = vmul.f32 %v251, %v175
    %v384 = vsel %vm206, %v379, 0
    %v387 = vsel %vm206, %v380, 0
    %v390 = vsel %vm206, %v381, 0
    %v393 = vsel %vm206, %v382, 0
    %v396 = vsel %vm206, %v314, 0
    %398 = vmatpush.xpose.msra.mxu0 0.0
    %399 = vmatpush.xpose.msra.mxu0 0.0
    %400 = vmatpush.xpose.msra.mxu0 0.0
    %401 = vmatpush.xpose.msra.mxu0 0.0
    %402 = vmatpush.xpose.msra.mxu0 0.0
    %403 = vmatpush.xpose.msra.mxu0 0.0
    %404 = vmatpush.xpose.msra.mxu0 0.0
    %405 = vmatpush.xpose.msra.mxu0 0.0
    %406 = vmatpush.xpose.msra.mxu0 0.0
    %407 = vmatpush.xpose.msra.mxu0 0.0
    %408 = vmatpush.xpose.msra.mxu0 0.0
    %409 = vmatpush.xpose.msra.mxu0 0.0
    %410 = vmatpush.xpose.msra.mxu0 0.0
    %411 = vmatpush.xpose.msra.mxu0 0.0
    %412 = vmatpush.xpose.msra.mxu0 0.0
    %413 = vmatpush.xpose.msra.mxu0 %v396
    %414 = vmatmul.f32.gmra.mxu0 %v384
    %v415 = vpop.f32.mrf.mxu0
    %v416 = vadd.f32 0.0, %v415
    %417 = vmatmul.f32.gmra.mxu0 %v387
    %v418 = vpop.f32.mrf.mxu0
    %v419 = vadd.f32 0.0, %v418
    %420 = vmatmul.f32.gmra.mxu0 %v390
    %v421 = vpop.f32.mrf.mxu0
    %v422 = vadd.f32 0.0, %v421
    %423 = vmatmul.f32.gmra.mxu0 %v393
    %v424 = vpop.f32.mrf.mxu0
    %v425 = vadd.f32 0.0, %v424
    %426 = vdwg.mxu0
    %vm427 = vcmask 48128
    %v428 = vsel %vm427, %v416, -inf
    %429 = vmax.xlane.f32.xlu0 %v428
    %v430 = vpop.xlane.xlu0 %429
    %v431 = vsel %vm427, %v419, -inf
    %432 = vmax.xlane.f32.xlu0 %v431
    %v433 = vpop.xlane.xlu0 %432
    %v434 = vsel %vm427, %v422, -inf
    %435 = vmax.xlane.f32.xlu0 %v434
    %v436 = vpop.xlane.xlu0 %435
    %v437 = vsel %vm427, %v425, -inf
    %438 = vmax.xlane.f32.xlu0 %v437
    %v439 = vpop.xlane.xlu0 %438
    %v440 = vsub.f32 %v416, %v430
    %v441 = vsub.f32 %v419, %v433
    %v442 = vsub.f32 %v422, %v436
    %v443 = vsub.f32 %v425, %v439
    %v444 = vmul.f32 %v440, 1.442695
    %v445 = vpow.pop %v444
    %v446 = vmul.f32 %v441, 1.442695
    %v447 = vpow.pop %v446
    %v448 = vmul.f32 %v442, 1.442695
    %v449 = vpow.pop %v448
    %v450 = vmul.f32 %v443, 1.442695
    %v451 = vpow.pop %v450
    %v452 = vsel %vm427, %v445, 0.0
    %453 = vadd.xlane.f32.xlu0 %v452
    %v454 = vpop.xlane.xlu0 %453
    %v455 = vsel %vm427, %v447, 0.0
    %456 = vadd.xlane.f32.xlu0 %v455
    %v457 = vpop.xlane.xlu0 %456
    %v458 = vsel %vm427, %v449, 0.0
    %459 = vadd.xlane.f32.xlu0 %v458
    %v460 = vpop.xlane.xlu0 %459
    %v461 = vsel %vm427, %v451, 0.0
    %462 = vadd.xlane.f32.xlu0 %v461
    %v463 = vpop.xlane.xlu0 %462
    %v464 = vrcp.pop %v454
    %v465 = vmul.f32 %v454, %v464
    %v466 = vsub.f32 1.0, %v465
    %v467 = vmul.f32 %v464, %v466
    %v468 = vadd.f32 %v464, %v467
    %vm469 = vweird.f32 %v454
    %vm470 = vweird.f32 %v464
    %vm471 = vmor %vm469, %vm470
    %v472 = vsel %vm471, %v464, %v468
    %v473 = vand.u32 2147483647, %v454
    %vm474 = vcmp.eq.f32.partialorder %v473, 8.507059e+37
    %v475 = vand.u32 %v454, 2147483648
    %v476 = vor.u32 1.1754944e-38, %v475
    %v477 = vsel %vm474, %v476, %v472
    %v478 = vmul.f32 %v445, %v477
    %v479 = vrcp.pop %v457
    %v480 = vmul.f32 %v457, %v479
    %v481 = vsub.f32 1.0, %v480
    %v482 = vmul.f32 %v479, %v481
    %v483 = vadd.f32 %v479, %v482
    %vm484 = vweird.f32 %v457
    %vm485 = vweird.f32 %v479
    %vm486 = vmor %vm484, %vm485
    %v487 = vsel %vm486, %v479, %v483
    %v488 = vand.u32 2147483647, %v457
    %vm489 = vcmp.eq.f32.partialorder %v488, 8.507059e+37
    %v490 = vand.u32 %v457, 2147483648
    %v491 = vor.u32 1.1754944e-38, %v490
    %v492 = vsel %vm489, %v491, %v487
    %v493 = vmul.f32 %v447, %v492
    %v494 = vrcp.pop %v460
    %v495 = vmul.f32 %v460, %v494
    %v496 = vsub.f32 1.0, %v495
    %v497 = vmul.f32 %v494, %v496
    %v498 = vadd.f32 %v494, %v497
    %vm499 = vweird.f32 %v460
    %vm500 = vweird.f32 %v494
    %vm501 = vmor %vm499, %vm500
    %v502 = vsel %vm501, %v494, %v498
    %v503 = vand.u32 2147483647, %v460
    %vm504 = vcmp.eq.f32.partialorder %v503, 8.507059e+37
    %v505 = vand.u32 %v460, 2147483648
    %v506 = vor.u32 1.1754944e-38, %v505
    %v507 = vsel %vm504, %v506, %v502
    %v508 = vmul.f32 %v449, %v507
    %v509 = vrcp.pop %v463
    %v510 = vmul.f32 %v463, %v509
    %v511 = vsub.f32 1.0, %v510
    %v512 = vmul.f32 %v509, %v511
    %v513 = vadd.f32 %v509, %v512
    %vm514 = vweird.f32 %v463
    %vm515 = vweird.f32 %v509
    %vm516 = vmor %vm514, %vm515
    %v517 = vsel %vm516, %v509, %v513
    %v518 = vand.u32 2147483647, %v463
    %vm519 = vcmp.eq.f32.partialorder %v518, 8.507059e+37
    %v520 = vand.u32 %v463, 2147483648
    %v521 = vor.u32 1.1754944e-38, %v520
    %v522 = vsel %vm519, %v521, %v517
    %v523 = vmul.f32 %v451, %v522
    %v525 = vsel %vm427, %v478, 0
    %v528 = vsel %vm427, %v493, 0
    %v531 = vsel %vm427, %v508, 0
    %v534 = vsel %vm427, %v523, 0
    %vm536 = vcmask 1045504
    %v538 = vsel %vm536, %v377, 0
    %540 = vmatpush.msra.mxu0 0.0
    %541 = vmatpush.msra.mxu0 0.0
    %542 = vmatpush.msra.mxu0 0.0
    %543 = vmatpush.msra.mxu0 0.0
    %544 = vmatpush.msra.mxu0 0.0
    %545 = vmatpush.msra.mxu0 0.0
    %546 = vmatpush.msra.mxu0 0.0
    %547 = vmatpush.msra.mxu0 0.0
    %548 = vmatpush.msra.mxu0 0.0
    %549 = vmatpush.msra.mxu0 0.0
    %550 = vmatpush.msra.mxu0 0.0
    %551 = vmatpush.msra.mxu0 0.0
    %552 = vmatpush.msra.mxu0 0.0
    %553 = vmatpush.msra.mxu0 0.0
    %554 = vmatpush.msra.mxu0 0.0
    %555 = vmatpush.msra.mxu0 %v538
    %556 = vmatmul.f32.gmra.mxu0 %v525
    %v557 = vpop.f32.mrf.mxu0
    %v558 = vadd.f32 0.0, %v557
    %559 = vmatmul.f32.gmra.mxu0 %v528
    %v560 = vpop.f32.mrf.mxu0
    %v561 = vadd.f32 0.0, %v560
    %562 = vmatmul.f32.gmra.mxu0 %v531
    %v563 = vpop.f32.mrf.mxu0
    %v564 = vadd.f32 0.0, %v563
    %565 = vmatmul.f32.gmra.mxu0 %v534
    %v566 = vpop.f32.mrf.mxu0
    %v567 = vadd.f32 0.0, %v566
    %568 = vdwg.mxu0
    %v569 = vmul.f32 %v558, %v160
    %v570 = vadd.f32 %v569, 0.0
    %v571 = vadd.f32 %v478, 0.0
    %v572 = vmul.f32 %v561, %v165
    %v573 = vadd.f32 %v570, %v572
    %v574 = vadd.f32 %v571, %v493
    %v575 = vmul.f32 %v564, %v170
    %v576 = vadd.f32 %v573, %v575
    %v577 = vadd.f32 %v574, %v508
    %v578 = vmul.f32 %v567, %v175
    %v579 = vadd.f32 %v576, %v578
    %v580 = vadd.f32 %v577, %v523
    %v581 = vperm.slane %v155, 3
    %v583 = vsel %vm206, %v579, 0
    %v586 = vsel %vm206, %v147, 0
    %v589 = vsel %vm206, %v148, 0
    %v592 = vsel %vm206, %v149, 0
    %v595 = vsel %vm206, %v150, 0
    %v598 = vsel %vm206, %v151, 0
    %v601 = vsel %vm206, %v152, 0
    %v604 = vsel %vm206, %v153, 0
    %v607 = vsel %vm206, %v154, 0
    %609 = vmatpush.xpose.msra.mxu0 0.0
    %610 = vmatpush.xpose.msra.mxu0 0.0
    %611 = vmatpush.xpose.msra.mxu0 0.0
    %612 = vmatpush.xpose.msra.mxu0 0.0
    %613 = vmatpush.xpose.msra.mxu0 0.0
    %614 = vmatpush.xpose.msra.mxu0 0.0
    %615 = vmatpush.xpose.msra.mxu0 0.0
    %616 = vmatpush.xpose.msra.mxu0 0.0
    %617 = vmatpush.xpose.msra.mxu0 %v607
    %618 = vmatpush.xpose.msra.mxu0 %v604
    %619 = vmatpush.xpose.msra.mxu0 %v601
    %620 = vmatpush.xpose.msra.mxu0 %v598
    %621 = vmatpush.xpose.msra.mxu0 %v595
    %622 = vmatpush.xpose.msra.mxu0 %v592
    %623 = vmatpush.xpose.msra.mxu0 %v589
    %624 = vmatpush.xpose.msra.mxu0 %v586
    %625 = vmatmul.f32.gmra.mxu0 %v583
    %v626 = vpop.f32.mrf.mxu0
    %v627 = vadd.f32 %v581, %v626
    %628 = vdwg.mxu0
    %v629 = vmul.f32 %v580, 0.25
    %v630 = vrot.slane %v101, 1
    %v631 = vsel %vm186, %v102, %v630
    %v632 = vrot.slane %v103, 7
    %v633 = vsel %vm189, %v632, %v631
    %v634 = vrot.slane %v104, 6
    %v635 = vsel %vm192, %v634, %v633
    %v636 = vrot.slane %v105, 5
    %v637 = vsel %vm195, %v636, %v635
    %v638 = vrot.slane %v106, 4
    %v639 = vsel %vm198, %v638, %v637
    %v640 = vrot.slane %v107, 3
    %v641 = vsel %vm201, %v640, %v639
    %v642 = vrot.slane %v108, 2
    %v643 = vsel %vm204, %v642, %v641
    %v644 = vsel %vm206, %v643, 0
    %646 = vmatpush.xpose.msra.mxu0 0.0
    %647 = vmatpush.xpose.msra.mxu0 0.0
    %648 = vmatpush.xpose.msra.mxu0 0.0
    %649 = vmatpush.xpose.msra.mxu0 0.0
    %650 = vmatpush.xpose.msra.mxu0 0.0
    %651 = vmatpush.xpose.msra.mxu0 0.0
    %652 = vmatpush.xpose.msra.mxu0 0.0
    %653 = vmatpush.xpose.msra.mxu0 0.0
    %654 = vmatpush.xpose.msra.mxu0 %v231
    %655 = vmatpush.xpose.msra.mxu0 %v228
    %656 = vmatpush.xpose.msra.mxu0 %v225
    %657 = vmatpush.xpose.msra.mxu0 %v222
    %658 = vmatpush.xpose.msra.mxu0 %v219
    %659 = vmatpush.xpose.msra.mxu0 %v216
    %660 = vmatpush.xpose.msra.mxu0 %v213
    %661 = vmatpush.xpose.msra.mxu0 %v210
    %662 = vmatmul.f32.gmra.mxu0 %v644
    %v663 = vpop.f32.mrf.mxu0
    %v664 = vadd.f32 %v176, %v663
    %665 = vdwg.mxu0
    %v666 = vrot.slane %v109, 1
    %v667 = vsel %vm186, %v110, %v666
    %v668 = vrot.slane %v111, 7
    %v669 = vsel %vm189, %v668, %v667
    %v670 = vrot.slane %v112, 6
    %v671 = vsel %vm192, %v670, %v669
    %v672 = vrot.slane %v113, 5
    %v673 = vsel %vm195, %v672, %v671
    %v674 = vrot.slane %v114, 4
    %v675 = vsel %vm198, %v674, %v673
    %v676 = vsel %vm206, %v675, 0
    %678 = vmatpush.xpose.msra.mxu0 0.0
    %679 = vmatpush.xpose.msra.mxu0 0.0
    %680 = vmatpush.xpose.msra.mxu0 0.0
    %681 = vmatpush.xpose.msra.mxu0 0.0
    %682 = vmatpush.xpose.msra.mxu0 0.0
    %683 = vmatpush.xpose.msra.mxu0 0.0
    %684 = vmatpush.xpose.msra.mxu0 0.0
    %685 = vmatpush.xpose.msra.mxu0 0.0
    %686 = vmatpush.xpose.msra.mxu0 %v294
    %687 = vmatpush.xpose.msra.mxu0 %v291
    %688 = vmatpush.xpose.msra.mxu0 %v288
    %689 = vmatpush.xpose.msra.mxu0 %v285
    %690 = vmatpush.xpose.msra.mxu0 %v282
    %691 = vmatpush.xpose.msra.mxu0 %v279
    %692 = vmatpush.xpose.msra.mxu0 %v276
    %693 = vmatpush.xpose.msra.mxu0 %v273
    %694 = vmatmul.f32.gmra.mxu0 %v676
    %v695 = vpop.f32.mrf.mxu0
    %v696 = vadd.f32 %v253, %v695
    %697 = vdwg.mxu0
    %v698 = vrot.slane %v115, 1
    %v699 = vsel %vm186, %v116, %v698
    %v700 = vrot.slane %v117, 7
    %v701 = vsel %vm189, %v700, %v699
    %v702 = vrot.slane %v118, 6
    %v703 = vsel %vm192, %v702, %v701
    %v704 = vrot.slane %v119, 5
    %v705 = vsel %vm195, %v704, %v703
    %v706 = vrot.slane %v120, 4
    %v707 = vsel %vm198, %v706, %v705
    %v708 = vsel %vm206, %v707, 0
    %710 = vmatpush.xpose.msra.mxu0 0.0
    %711 = vmatpush.xpose.msra.mxu0 0.0
    %712 = vmatpush.xpose.msra.mxu0 0.0
    %713 = vmatpush.xpose.msra.mxu0 0.0
    %714 = vmatpush.xpose.msra.mxu0 0.0
    %715 = vmatpush.xpose.msra.mxu0 0.0
    %716 = vmatpush.xpose.msra.mxu0 0.0
    %717 = vmatpush.xpose.msra.mxu0 0.0
    %718 = vmatpush.xpose.msra.mxu0 %v357
    %719 = vmatpush.xpose.msra.mxu0 %v354
    %720 = vmatpush.xpose.msra.mxu0 %v351
    %721 = vmatpush.xpose.msra.mxu0 %v348
    %722 = vmatpush.xpose.msra.mxu0 %v345
    %723 = vmatpush.xpose.msra.mxu0 %v342
    %724 = vmatpush.xpose.msra.mxu0 %v339
    %725 = vmatpush.xpose.msra.mxu0 %v336
    %726 = vmatmul.f32.gmra.mxu0 %v708
    %v727 = vpop.f32.mrf.mxu0
    %v728 = vadd.f32 %v316, %v727
    %729 = vdwg.mxu0
    %v730 = vmul.f32 %v664, %v160
    %v731 = vmul.f32 %v664, %v165
    %v732 = vmul.f32 %v664, %v170
    %v733 = vmul.f32 %v664, %v175
    %v735 = vsel %vm206, %v730, 0
    %v738 = vsel %vm206, %v731, 0
    %v741 = vsel %vm206, %v732, 0
    %v744 = vsel %vm206, %v733, 0
    %v747 = vsel %vm206, %v696, 0
    %749 = vmatpush.xpose.msra.mxu0 0.0
    %750 = vmatpush.xpose.msra.mxu0 0.0
    %751 = vmatpush.xpose.msra.mxu0 0.0
    %752 = vmatpush.xpose.msra.mxu0 0.0
    %753 = vmatpush.xpose.msra.mxu0 0.0
    %754 = vmatpush.xpose.msra.mxu0 0.0
    %755 = vmatpush.xpose.msra.mxu0 0.0
    %756 = vmatpush.xpose.msra.mxu0 0.0
    %757 = vmatpush.xpose.msra.mxu0 0.0
    %758 = vmatpush.xpose.msra.mxu0 0.0
    %759 = vmatpush.xpose.msra.mxu0 0.0
    %760 = vmatpush.xpose.msra.mxu0 0.0
    %761 = vmatpush.xpose.msra.mxu0 0.0
    %762 = vmatpush.xpose.msra.mxu0 0.0
    %763 = vmatpush.xpose.msra.mxu0 0.0
    %764 = vmatpush.xpose.msra.mxu0 %v747
    %765 = vmatmul.f32.gmra.mxu0 %v735
    %v766 = vpop.f32.mrf.mxu0
    %v767 = vadd.f32 0.0, %v766
    %768 = vmatmul.f32.gmra.mxu0 %v738
    %v769 = vpop.f32.mrf.mxu0
    %v770 = vadd.f32 0.0, %v769
    %771 = vmatmul.f32.gmra.mxu0 %v741
    %v772 = vpop.f32.mrf.mxu0
    %v773 = vadd.f32 0.0, %v772
    %774 = vmatmul.f32.gmra.mxu0 %v744
    %v775 = vpop.f32.mrf.mxu0
    %v776 = vadd.f32 0.0, %v775
    %777 = vdwg.mxu0
    %v778 = vsel %vm427, %v767, -inf
    %779 = vmax.xlane.f32.xlu0 %v778
    %v780 = vpop.xlane.xlu0 %779
    %v781 = vsel %vm427, %v770, -inf
    %782 = vmax.xlane.f32.xlu0 %v781
    %v783 = vpop.xlane.xlu0 %782
    %v784 = vsel %vm427, %v773, -inf
    %785 = vmax.xlane.f32.xlu0 %v784
    %v786 = vpop.xlane.xlu0 %785
    %v787 = vsel %vm427, %v776, -inf
    %788 = vmax.xlane.f32.xlu0 %v787
    %v789 = vpop.xlane.xlu0 %788
    %v790 = vsub.f32 %v767, %v780
    %v791 = vsub.f32 %v770, %v783
    %v792 = vsub.f32 %v773, %v786
    %v793 = vsub.f32 %v776, %v789
    %v794 = vmul.f32 %v790, 1.442695
    %v795 = vpow.pop %v794
    %v796 = vmul.f32 %v791, 1.442695
    %v797 = vpow.pop %v796
    %v798 = vmul.f32 %v792, 1.442695
    %v799 = vpow.pop %v798
    %v800 = vmul.f32 %v793, 1.442695
    %v801 = vpow.pop %v800
    %v802 = vsel %vm427, %v795, 0.0
    %803 = vadd.xlane.f32.xlu0 %v802
    %v804 = vpop.xlane.xlu0 %803
    %v805 = vsel %vm427, %v797, 0.0
    %806 = vadd.xlane.f32.xlu0 %v805
    %v807 = vpop.xlane.xlu0 %806
    %v808 = vsel %vm427, %v799, 0.0
    %809 = vadd.xlane.f32.xlu0 %v808
    %v810 = vpop.xlane.xlu0 %809
    %v811 = vsel %vm427, %v801, 0.0
    %812 = vadd.xlane.f32.xlu0 %v811
    %v813 = vpop.xlane.xlu0 %812
    %v814 = vrcp.pop %v804
    %v815 = vmul.f32 %v804, %v814
    %v816 = vsub.f32 1.0, %v815
    %v817 = vmul.f32 %v814, %v816
    %v818 = vadd.f32 %v814, %v817
    %vm819 = vweird.f32 %v804
    %vm820 = vweird.f32 %v814
    %vm821 = vmor %vm819, %vm820
    %v822 = vsel %vm821, %v814, %v818
    %v823 = vand.u32 2147483647, %v804
    %vm824 = vcmp.eq.f32.partialorder %v823, 8.507059e+37
    %v825 = vand.u32 %v804, 2147483648
    %v826 = vor.u32 1.1754944e-38, %v825
    %v827 = vsel %vm824, %v826, %v822
    %v828 = vmul.f32 %v795, %v827
    %v829 = vrcp.pop %v807
    %v830 = vmul.f32 %v807, %v829
    %v831 = vsub.f32 1.0, %v830
    %v832 = vmul.f32 %v829, %v831
    %v833 = vadd.f32 %v829, %v832
    %vm834 = vweird.f32 %v807
    %vm835 = vweird.f32 %v829
    %vm836 = vmor %vm834, %vm835
    %v837 = vsel %vm836, %v829, %v833
    %v838 = vand.u32 2147483647, %v807
    %vm839 = vcmp.eq.f32.partialorder %v838, 8.507059e+37
    %v840 = vand.u32 %v807, 2147483648
    %v841 = vor.u32 1.1754944e-38, %v840
    %v842 = vsel %vm839, %v841, %v837
    %v843 = vmul.f32 %v797, %v842
    %v844 = vrcp.pop %v810
    %v845 = vmul.f32 %v810, %v844
    %v846 = vsub.f32 1.0, %v845
    %v847 = vmul.f32 %v844, %v846
    %v848 = vadd.f32 %v844, %v847
    %vm849 = vweird.f32 %v810
    %vm850 = vweird.f32 %v844
    %vm851 = vmor %vm849, %vm850
    %v852 = vsel %vm851, %v844, %v848
    %v853 = vand.u32 2147483647, %v810
    %vm854 = vcmp.eq.f32.partialorder %v853, 8.507059e+37
    %v855 = vand.u32 %v810, 2147483648
    %v856 = vor.u32 1.1754944e-38, %v855
    %v857 = vsel %vm854, %v856, %v852
    %v858 = vmul.f32 %v799, %v857
    %v859 = vrcp.pop %v813
    %v860 = vmul.f32 %v813, %v859
    %v861 = vsub.f32 1.0, %v860
    %v862 = vmul.f32 %v859, %v861
    %v863 = vadd.f32 %v859, %v862
    %vm864 = vweird.f32 %v813
    %vm865 = vweird.f32 %v859
    %vm866 = vmor %vm864, %vm865
    %v867 = vsel %vm866, %v859, %v863
    %v868 = vand.u32 2147483647, %v813
    %vm869 = vcmp.eq.f32.partialorder %v868, 8.507059e+37
    %v870 = vand.u32 %v813, 2147483648
    %v871 = vor.u32 1.1754944e-38, %v870
    %v872 = vsel %vm869, %v871, %v867
    %v873 = vmul.f32 %v801, %v872
    %v875 = vsel %vm427, %v828, 0
    %v878 = vsel %vm427, %v843, 0
    %v881 = vsel %vm427, %v858, 0
    %v884 = vsel %vm427, %v873, 0
    %v887 = vsel %vm536, %v728, 0
    %889 = vmatpush.msra.mxu0 0.0
    %890 = vmatpush.msra.mxu0 0.0
    %891 = vmatpush.msra.mxu0 0.0
    %892 = vmatpush.msra.mxu0 0.0
    %893 = vmatpush.msra.mxu0 0.0
    %894 = vmatpush.msra.mxu0 0.0
    %895 = vmatpush.msra.mxu0 0.0
    %896 = vmatpush.msra.mxu0 0.0
    %897 = vmatpush.msra.mxu0 0.0
    %898 = vmatpush.msra.mxu0 0.0
    %899 = vmatpush.msra.mxu0 0.0
    %900 = vmatpush.msra.mxu0 0.0
    %901 = vmatpush.msra.mxu0 0.0
    %902 = vmatpush.msra.mxu0 0.0
    %903 = vmatpush.msra.mxu0 0.0
    %904 = vmatpush.msra.mxu0 %v887
    %905 = vmatmul.f32.gmra.mxu0 %v875
    %v906 = vpop.f32.mrf.mxu0
    %v907 = vadd.f32 0.0, %v906
    %908 = vmatmul.f32.gmra.mxu0 %v878
    %v909 = vpop.f32.mrf.mxu0
    %v910 = vadd.f32 0.0, %v909
    %911 = vmatmul.f32.gmra.mxu0 %v881
    %v912 = vpop.f32.mrf.mxu0
    %v913 = vadd.f32 0.0, %v912
    %914 = vmatmul.f32.gmra.mxu0 %v884
    %v915 = vpop.f32.mrf.mxu0
    %v916 = vadd.f32 0.0, %v915
    %917 = vdwg.mxu0
    %v918 = vmul.f32 %v907, %v160
    %v919 = vadd.f32 %v918, 0.0
    %v920 = vadd.f32 %v828, 0.0
    %v921 = vmul.f32 %v910, %v165
    %v922 = vadd.f32 %v919, %v921
    %v923 = vadd.f32 %v920, %v843
    %v924 = vmul.f32 %v913, %v170
    %v925 = vadd.f32 %v922, %v924
    %v926 = vadd.f32 %v923, %v858
    %v927 = vmul.f32 %v916, %v175
    %v928 = vadd.f32 %v925, %v927
    %v929 = vadd.f32 %v926, %v873
    %v931 = vsel %vm206, %v928, 0
    %933 = vmatpush.xpose.msra.mxu0 0.0
    %934 = vmatpush.xpose.msra.mxu0 0.0
    %935 = vmatpush.xpose.msra.mxu0 0.0
    %936 = vmatpush.xpose.msra.mxu0 0.0
    %937 = vmatpush.xpose.msra.mxu0 0.0
    %938 = vmatpush.xpose.msra.mxu0 0.0
    %939 = vmatpush.xpose.msra.mxu0 0.0
    %940 = vmatpush.xpose.msra.mxu0 0.0
    %941 = vmatpush.xpose.msra.mxu0 %v607
    %942 = vmatpush.xpose.msra.mxu0 %v604
    %943 = vmatpush.xpose.msra.mxu0 %v601
    %944 = vmatpush.xpose.msra.mxu0 %v598
    %945 = vmatpush.xpose.msra.mxu0 %v595
    %946 = vmatpush.xpose.msra.mxu0 %v592
    %947 = vmatpush.xpose.msra.mxu0 %v589
    %948 = vmatpush.xpose.msra.mxu0 %v586
    %949 = vmatmul.f32.gmra.mxu0 %v931
    %v950 = vpop.f32.mrf.mxu0
    %v951 = vadd.f32 %v581, %v950
    %952 = vdwg.mxu0
    %v953 = vmul.f32 %v929, 0.25
    %v955 = vrot.slane %v627, 1
    %v956 = vrot.slane %v627, 2
    %v957 = vrot.slane %v627, 3
    %v958 = vrot.slane %v627, 4
    %v959 = vrot.slane %v627, 5
    %v960 = vrot.slane %v627, 6
    %v961 = vrot.slane %v627, 7
    %v970 = vrot.slane %v951, 1
    %v971 = vrot.slane %v951, 2
    %v972 = vrot.slane %v951, 3
    %v973 = vrot.slane %v951, 4
    %v974 = vrot.slane %v951, 5
    %v975 = vrot.slane %v951, 6
    %v976 = vrot.slane %v951, 7
    %v977 = vperm.slane %v951, 0
    %v978 = vperm.slane %v970, 0
    %v979 = vperm.slane %v971, 0
    %v980 = vperm.slane %v972, 0
    %v981 = vperm.slane %v973, 0
    %v982 = vperm.slane %v974, 0
    %v983 = vperm.slane %v975, 0
    %v984 = vperm.slane %v976, 0
    %vm993 = vcmask 1040384
    %v994 = vsel %vm993, %v627, %v977
    %v995 = vsel %vm993, %v955, %v978
    %v996 = vsel %vm993, %v956, %v979
    %v997 = vsel %vm993, %v957, %v980
    %v998 = vsel %vm993, %v958, %v981
    %v999 = vsel %vm993, %v959, %v982
    %v1000 = vsel %vm993, %v960, %v983
    %v1001 = vsel %vm993, %v961, %v984
    %vm1002 = vcmask 517120
    %1003 = vst.msk [vmem:[#allocation10] sm:$0x3] %vm1002, %v994
    %1004 = vst.msk [vmem:[#allocation10 + $0x2] sm:$0x3] %vm1002, %v995
    %1005 = vst.msk [vmem:[#allocation10 + $0x4] sm:$0x3] %vm1002, %v996
    %1006 = vst.msk [vmem:[#allocation10 + $0x6] sm:$0x3] %vm1002, %v997
    %1007 = vst.msk [vmem:[#allocation10 + $0x8] sm:$0x3] %vm1002, %v998
    %1008 = vst.msk [vmem:[#allocation10 + $0xa] sm:$0x3] %vm1002, %v999
    %1009 = vst.msk [vmem:[#allocation10 + $0xc] sm:$0x3] %vm1002, %v1000
    %1010 = vst.msk [vmem:[#allocation10 + $0xe] sm:$0x3] %vm1002, %v1001
    %1011 = vst.msk [vmem:[%s9] sm:$0xff] %vm427, %v629
    %1012 = vst.msk [vmem:[%s9 + $0x8] sm:$0xff] %vm427, %v953
    %s1013 = scalar_lea.vmem [#allocation2], 64
    %v1014 = vld [vmem:[%s1013] sm:$0xff]
    %v1015 = vld [vmem:[%s1013 + $0x8] sm:$0xff]
    %v1016 = vld [vmem:[%s1013 + $0x10] sm:$0xff]
    %v1017 = vld [vmem:[%s1013 + $0x18] sm:$0xff]
    %v1018 = vld [vmem:[%s1013 + $0x20] sm:$0xff]
    %v1019 = vld [vmem:[%s1013 + $0x28] sm:$0xff]
    %v1020 = vld [vmem:[%s1013 + $0x30] sm:$0xff]
    %v1021 = vld [vmem:[%s1013 + $0x38] sm:$0xff]
    %s1022 = scalar_lea.vmem [#allocation5], 64
    %v1023 = vld [vmem:[%s1022] sm:$0xff]
    %v1024 = vld [vmem:[%s1022 + $0x8] sm:$0xff]
    %v1025 = vld [vmem:[%s1022 + $0x10] sm:$0xff]
    %v1026 = vld [vmem:[%s1022 + $0x18] sm:$0xff]
    %v1027 = vld [vmem:[%s1022 + $0x20] sm:$0xff]
    %v1028 = vld [vmem:[%s1022 + $0x28] sm:$0xff]
    %v1029 = vld [vmem:[%s1022 + $0x30] sm:$0xff]
    %v1030 = vld [vmem:[%s1022 + $0x38] sm:$0xff]
    %s1031 = scalar_lea.vmem [#allocation7], 64
    %v1032 = vld [vmem:[%s1031] sm:$0xff]
    %v1033 = vld [vmem:[%s1031 + $0x8] sm:$0xff]
    %v1034 = vld [vmem:[%s1031 + $0x10] sm:$0xff]
    %v1035 = vld [vmem:[%s1031 + $0x18] sm:$0xff]
    %v1036 = vld [vmem:[%s1031 + $0x20] sm:$0xff]
    %v1037 = vld [vmem:[%s1031 + $0x28] sm:$0xff]
    %v1038 = vld [vmem:[%s1031 + $0x30] sm:$0xff]
    %v1039 = vld [vmem:[%s1031 + $0x38] sm:$0xff]
    %s1040 = scalar_lea.vmem [#allocation8], 64
    %v1041 = vld [vmem:[%s1040] sm:$0xff]
    %v1042 = vld [vmem:[%s1040 + $0x8] sm:$0xff]
    %v1043 = vld [vmem:[%s1040 + $0x10] sm:$0xff]
    %v1044 = vld [vmem:[%s1040 + $0x18] sm:$0xff]
    %v1045 = vld [vmem:[%s1040 + $0x20] sm:$0xff]
    %v1046 = vld [vmem:[%s1040 + $0x28] sm:$0xff]
    %v1047 = vld [vmem:[%s1040 + $0x30] sm:$0xff]
    %v1048 = vld [vmem:[%s1040 + $0x38] sm:$0xff]
    %s1049 = scalar_lea.vmem %s7, 8
    %v1050 = vld [vmem:[%s1049] sm:$0xff]
    %vm1051 = vcmp.lt.s32.totalorder %v122, 8
    %vm1052 = vmand %vm156, %vm1051
    %v1053 = vsel %vm1052, 1, 0
    %v1054 = vcvt.s32.f32 %v1053
    %vm1055 = vcmp.ge.s32.totalorder %v122, 8
    %vm1056 = vmand %vm1055, %vm157
    %v1057 = vsel %vm1056, 1, 0
    %v1058 = vcvt.s32.f32 %v1057
    %vm1059 = vcmp.lt.s32.totalorder %v122, 24
    %vm1060 = vmand %vm161, %vm1059
    %v1061 = vsel %vm1060, 1, 0
    %v1062 = vcvt.s32.f32 %v1061
    %vm1063 = vcmp.ge.s32.totalorder %v122, 24
    %vm1064 = vmand %vm1063, %vm162
    %v1065 = vsel %vm1064, 1, 0
    %v1066 = vcvt.s32.f32 %v1065
    %vm1067 = vcmp.lt.s32.totalorder %v122, 40
    %vm1068 = vmand %vm166, %vm1067
    %v1069 = vsel %vm1068, 1, 0
    %v1070 = vcvt.s32.f32 %v1069
    %vm1071 = vcmp.ge.s32.totalorder %v122, 40
    %vm1072 = vmand %vm1071, %vm167
    %v1073 = vsel %vm1072, 1, 0
    %v1074 = vcvt.s32.f32 %v1073
    %vm1075 = vcmp.lt.s32.totalorder %v122, 56
    %vm1076 = vmand %vm171, %vm1075
    %v1077 = vsel %vm1076, 1, 0
    %v1078 = vcvt.s32.f32 %v1077
    %vm1079 = vcmp.ge.s32.totalorder %v122, 56
    %vm1080 = vmand %vm1079, %vm172
    %v1081 = vsel %vm1080, 1, 0
    %v1082 = vcvt.s32.f32 %v1081
    %v1083 = vperm.slane %v1050, 0
    %v1085 = vsel %vm206, %v1014, 0
    %v1088 = vsel %vm206, %v1015, 0
    %v1091 = vsel %vm206, %v1016, 0
    %v1094 = vsel %vm206, %v1017, 0
    %v1097 = vsel %vm206, %v1018, 0
    %v1100 = vsel %vm206, %v1019, 0
    %v1103 = vsel %vm206, %v1020, 0
    %v1106 = vsel %vm206, %v1021, 0
    %1108 = vmatpush.xpose.msra.mxu0 0.0
    %1109 = vmatpush.xpose.msra.mxu0 0.0
    %1110 = vmatpush.xpose.msra.mxu0 0.0
    %1111 = vmatpush.xpose.msra.mxu0 0.0
    %1112 = vmatpush.xpose.msra.mxu0 0.0
    %1113 = vmatpush.xpose.msra.mxu0 0.0
    %1114 = vmatpush.xpose.msra.mxu0 0.0
    %1115 = vmatpush.xpose.msra.mxu0 0.0
    %1116 = vmatpush.xpose.msra.mxu0 %v1106
    %1117 = vmatpush.xpose.msra.mxu0 %v1103
    %1118 = vmatpush.xpose.msra.mxu0 %v1100
    %1119 = vmatpush.xpose.msra.mxu0 %v1097
    %1120 = vmatpush.xpose.msra.mxu0 %v1094
    %1121 = vmatpush.xpose.msra.mxu0 %v1091
    %1122 = vmatpush.xpose.msra.mxu0 %v1088
    %1123 = vmatpush.xpose.msra.mxu0 %v1085
    %1124 = vmatmul.f32.gmra.mxu0 %v207
    %v1125 = vpop.f32.mrf.mxu0
    %v1126 = vadd.f32 %v1083, %v1125
    %1127 = vdwg.mxu0
    %v1128 = vperm.slane %v1050, 1
    %v1130 = vsel %vm206, %v1023, 0
    %v1133 = vsel %vm206, %v1024, 0
    %v1136 = vsel %vm206, %v1025, 0
    %v1139 = vsel %vm206, %v1026, 0
    %v1142 = vsel %vm206, %v1027, 0
    %v1145 = vsel %vm206, %v1028, 0
    %v1148 = vsel %vm206, %v1029, 0
    %v1151 = vsel %vm206, %v1030, 0
    %1153 = vmatpush.xpose.msra.mxu0 0.0
    %1154 = vmatpush.xpose.msra.mxu0 0.0
    %1155 = vmatpush.xpose.msra.mxu0 0.0
    %1156 = vmatpush.xpose.msra.mxu0 0.0
    %1157 = vmatpush.xpose.msra.mxu0 0.0
    %1158 = vmatpush.xpose.msra.mxu0 0.0
    %1159 = vmatpush.xpose.msra.mxu0 0.0
    %1160 = vmatpush.xpose.msra.mxu0 0.0
    %1161 = vmatpush.xpose.msra.mxu0 %v1151
    %1162 = vmatpush.xpose.msra.mxu0 %v1148
    %1163 = vmatpush.xpose.msra.mxu0 %v1145
    %1164 = vmatpush.xpose.msra.mxu0 %v1142
    %1165 = vmatpush.xpose.msra.mxu0 %v1139
    %1166 = vmatpush.xpose.msra.mxu0 %v1136
    %1167 = vmatpush.xpose.msra.mxu0 %v1133
    %1168 = vmatpush.xpose.msra.mxu0 %v1130
    %1169 = vmatmul.f32.gmra.mxu0 %v270
    %v1170 = vpop.f32.mrf.mxu0
    %v1171 = vadd.f32 %v1128, %v1170
    %1172 = vdwg.mxu0
    %v1173 = vperm.slane %v1050, 2
    %v1175 = vsel %vm206, %v1032, 0
    %v1178 = vsel %vm206, %v1033, 0
    %v1181 = vsel %vm206, %v1034, 0
    %v1184 = vsel %vm206, %v1035, 0
    %v1187 = vsel %vm206, %v1036, 0
    %v1190 = vsel %vm206, %v1037, 0
    %v1193 = vsel %vm206, %v1038, 0
    %v1196 = vsel %vm206, %v1039, 0
    %1198 = vmatpush.xpose.msra.mxu0 0.0
    %1199 = vmatpush.xpose.msra.mxu0 0.0
    %1200 = vmatpush.xpose.msra.mxu0 0.0
    %1201 = vmatpush.xpose.msra.mxu0 0.0
    %1202 = vmatpush.xpose.msra.mxu0 0.0
    %1203 = vmatpush.xpose.msra.mxu0 0.0
    %1204 = vmatpush.xpose.msra.mxu0 0.0
    %1205 = vmatpush.xpose.msra.mxu0 0.0
    %1206 = vmatpush.xpose.msra.mxu0 %v1196
    %1207 = vmatpush.xpose.msra.mxu0 %v1193
    %1208 = vmatpush.xpose.msra.mxu0 %v1190
    %1209 = vmatpush.xpose.msra.mxu0 %v1187
    %1210 = vmatpush.xpose.msra.mxu0 %v1184
    %1211 = vmatpush.xpose.msra.mxu0 %v1181
    %1212 = vmatpush.xpose.msra.mxu0 %v1178
    %1213 = vmatpush.xpose.msra.mxu0 %v1175
    %1214 = vmatmul.f32.gmra.mxu0 %v333
    %v1215 = vpop.f32.mrf.mxu0
    %v1216 = vadd.f32 %v1173, %v1215
    %1217 = vdwg.mxu0
    %v1218 = vmul.f32 %v1126, %v1054
    %v1219 = vmul.f32 %v1126, %v1058
    %v1220 = vmul.f32 %v1126, %v1062
    %v1221 = vmul.f32 %v1126, %v1066
    %v1222 = vmul.f32 %v1126, %v1070
    %v1223 = vmul.f32 %v1126, %v1074
    %v1224 = vmul.f32 %v1126, %v1078
    %v1225 = vmul.f32 %v1126, %v1082
    %v1227 = vsel %vm206, %v1218, 0
    %v1230 = vsel %vm206, %v1219, 0
    %v1233 = vsel %vm206, %v1220, 0
    %v1236 = vsel %vm206, %v1221, 0
    %v1239 = vsel %vm206, %v1222, 0
    %v1242 = vsel %vm206, %v1223, 0
    %v1245 = vsel %vm206, %v1224, 0
    %v1248 = vsel %vm206, %v1225, 0
    %v1251 = vsel %vm206, %v1171, 0
    %1253 = vmatpush.xpose.msra.mxu0 0.0
    %1254 = vmatpush.xpose.msra.mxu0 0.0
    %1255 = vmatpush.xpose.msra.mxu0 0.0
    %1256 = vmatpush.xpose.msra.mxu0 0.0
    %1257 = vmatpush.xpose.msra.mxu0 0.0
    %1258 = vmatpush.xpose.msra.mxu0 0.0
    %1259 = vmatpush.xpose.msra.mxu0 0.0
    %1260 = vmatpush.xpose.msra.mxu0 0.0
    %1261 = vmatpush.xpose.msra.mxu0 0.0
    %1262 = vmatpush.xpose.msra.mxu0 0.0
    %1263 = vmatpush.xpose.msra.mxu0 0.0
    %1264 = vmatpush.xpose.msra.mxu0 0.0
    %1265 = vmatpush.xpose.msra.mxu0 0.0
    %1266 = vmatpush.xpose.msra.mxu0 0.0
    %1267 = vmatpush.xpose.msra.mxu0 0.0
    %1268 = vmatpush.xpose.msra.mxu0 %v1251
    %1269 = vmatmul.f32.gmra.mxu0 %v1227
    %v1270 = vpop.f32.mrf.mxu0
    %v1271 = vadd.f32 0.0, %v1270
    %1272 = vmatmul.f32.gmra.mxu0 %v1230
    %v1273 = vpop.f32.mrf.mxu0
    %v1274 = vadd.f32 0.0, %v1273
    %1275 = vmatmul.f32.gmra.mxu0 %v1233
    %v1276 = vpop.f32.mrf.mxu0
    %v1277 = vadd.f32 0.0, %v1276
    %1278 = vmatmul.f32.gmra.mxu0 %v1236
    %v1279 = vpop.f32.mrf.mxu0
    %v1280 = vadd.f32 0.0, %v1279
    %1281 = vmatmul.f32.gmra.mxu0 %v1239
    %v1282 = vpop.f32.mrf.mxu0
    %v1283 = vadd.f32 0.0, %v1282
    %1284 = vmatmul.f32.gmra.mxu0 %v1242
    %v1285 = vpop.f32.mrf.mxu0
    %v1286 = vadd.f32 0.0, %v1285
    %1287 = vmatmul.f32.gmra.mxu0 %v1245
    %v1288 = vpop.f32.mrf.mxu0
    %v1289 = vadd.f32 0.0, %v1288
    %1290 = vmatmul.f32.gmra.mxu0 %v1248
    %v1291 = vpop.f32.mrf.mxu0
    %v1292 = vadd.f32 0.0, %v1291
    %1293 = vdwg.mxu0
    %v1294 = vsel %vm427, %v1271, -inf
    %1295 = vmax.xlane.f32.xlu0 %v1294
    %v1296 = vpop.xlane.xlu0 %1295
    %v1297 = vsel %vm427, %v1274, -inf
    %1298 = vmax.xlane.f32.xlu0 %v1297
    %v1299 = vpop.xlane.xlu0 %1298
    %v1300 = vsel %vm427, %v1277, -inf
    %1301 = vmax.xlane.f32.xlu0 %v1300
    %v1302 = vpop.xlane.xlu0 %1301
    %v1303 = vsel %vm427, %v1280, -inf
    %1304 = vmax.xlane.f32.xlu0 %v1303
    %v1305 = vpop.xlane.xlu0 %1304
    %v1306 = vsel %vm427, %v1283, -inf
    %1307 = vmax.xlane.f32.xlu0 %v1306
    %v1308 = vpop.xlane.xlu0 %1307
    %v1309 = vsel %vm427, %v1286, -inf
    %1310 = vmax.xlane.f32.xlu0 %v1309
    %v1311 = vpop.xlane.xlu0 %1310
    %v1312 = vsel %vm427, %v1289, -inf
    %1313 = vmax.xlane.f32.xlu0 %v1312
    %v1314 = vpop.xlane.xlu0 %1313
    %v1315 = vsel %vm427, %v1292, -inf
    %1316 = vmax.xlane.f32.xlu0 %v1315
    %v1317 = vpop.xlane.xlu0 %1316
    %v1318 = vsub.f32 %v1271, %v1296
    %v1319 = vsub.f32 %v1274, %v1299
    %v1320 = vsub.f32 %v1277, %v1302
    %v1321 = vsub.f32 %v1280, %v1305
    %v1322 = vsub.f32 %v1283, %v1308
    %v1323 = vsub.f32 %v1286, %v1311
    %v1324 = vsub.f32 %v1289, %v1314
    %v1325 = vsub.f32 %v1292, %v1317
    %v1326 = vmul.f32 %v1318, 1.442695
    %v1327 = vpow.pop %v1326
    %v1328 = vmul.f32 %v1319, 1.442695
    %v1329 = vpow.pop %v1328
    %v1330 = vmul.f32 %v1320, 1.442695
    %v1331 = vpow.pop %v1330
    %v1332 = vmul.f32 %v1321, 1.442695
    %v1333 = vpow.pop %v1332
    %v1334 = vmul.f32 %v1322, 1.442695
    %v1335 = vpow.pop %v1334
    %v1336 = vmul.f32 %v1323, 1.442695
    %v1337 = vpow.pop %v1336
    %v1338 = vmul.f32 %v1324, 1.442695
    %v1339 = vpow.pop %v1338
    %v1340 = vmul.f32 %v1325, 1.442695
    %v1341 = vpow.pop %v1340
    %v1342 = vsel %vm427, %v1327, 0.0
    %1343 = vadd.xlane.f32.xlu0 %v1342
    %v1344 = vpop.xlane.xlu0 %1343
    %v1345 = vsel %vm427, %v1329, 0.0
    %1346 = vadd.xlane.f32.xlu0 %v1345
    %v1347 = vpop.xlane.xlu0 %1346
    %v1348 = vsel %vm427, %v1331, 0.0
    %1349 = vadd.xlane.f32.xlu0 %v1348
    %v1350 = vpop.xlane.xlu0 %1349
    %v1351 = vsel %vm427, %v1333, 0.0
    %1352 = vadd.xlane.f32.xlu0 %v1351
    %v1353 = vpop.xlane.xlu0 %1352
    %v1354 = vsel %vm427, %v1335, 0.0
    %1355 = vadd.xlane.f32.xlu0 %v1354
    %v1356 = vpop.xlane.xlu0 %1355
    %v1357 = vsel %vm427, %v1337, 0.0
    %1358 = vadd.xlane.f32.xlu0 %v1357
    %v1359 = vpop.xlane.xlu0 %1358
    %v1360 = vsel %vm427, %v1339, 0.0
    %1361 = vadd.xlane.f32.xlu0 %v1360
    %v1362 = vpop.xlane.xlu0 %1361
    %v1363 = vsel %vm427, %v1341, 0.0
    %1364 = vadd.xlane.f32.xlu0 %v1363
    %v1365 = vpop.xlane.xlu0 %1364
    %v1366 = vrcp.pop %v1344
    %v1367 = vmul.f32 %v1344, %v1366
    %v1368 = vsub.f32 1.0, %v1367
    %v1369 = vmul.f32 %v1366, %v1368
    %v1370 = vadd.f32 %v1366, %v1369
    %vm1371 = vweird.f32 %v1344
    %vm1372 = vweird.f32 %v1366
    %vm1373 = vmor %vm1371, %vm1372
    %v1374 = vsel %vm1373, %v1366, %v1370
    %v1375 = vand.u32 2147483647, %v1344
    %vm1376 = vcmp.eq.f32.partialorder %v1375, 8.507059e+37
    %v1377 = vand.u32 %v1344, 2147483648
    %v1378 = vor.u32 1.1754944e-38, %v1377
    %v1379 = vsel %vm1376, %v1378, %v1374
    %v1380 = vmul.f32 %v1327, %v1379
    %v1381 = vrcp.pop %v1347
    %v1382 = vmul.f32 %v1347, %v1381
    %v1383 = vsub.f32 1.0, %v1382
    %v1384 = vmul.f32 %v1381, %v1383
    %v1385 = vadd.f32 %v1381, %v1384
    %vm1386 = vweird.f32 %v1347
    %vm1387 = vweird.f32 %v1381
    %vm1388 = vmor %vm1386, %vm1387
    %v1389 = vsel %vm1388, %v1381, %v1385
    %v1390 = vand.u32 2147483647, %v1347
    %vm1391 = vcmp.eq.f32.partialorder %v1390, 8.507059e+37
    %v1392 = vand.u32 %v1347, 2147483648
    %v1393 = vor.u32 1.1754944e-38, %v1392
    %v1394 = vsel %vm1391, %v1393, %v1389
    %v1395 = vmul.f32 %v1329, %v1394
    %v1396 = vrcp.pop %v1350
    %v1397 = vmul.f32 %v1350, %v1396
    %v1398 = vsub.f32 1.0, %v1397
    %v1399 = vmul.f32 %v1396, %v1398
    %v1400 = vadd.f32 %v1396, %v1399
    %vm1401 = vweird.f32 %v1350
    %vm1402 = vweird.f32 %v1396
    %vm1403 = vmor %vm1401, %vm1402
    %v1404 = vsel %vm1403, %v1396, %v1400
    %v1405 = vand.u32 2147483647, %v1350
    %vm1406 = vcmp.eq.f32.partialorder %v1405, 8.507059e+37
    %v1407 = vand.u32 %v1350, 2147483648
    %v1408 = vor.u32 1.1754944e-38, %v1407
    %v1409 = vsel %vm1406, %v1408, %v1404
    %v1410 = vmul.f32 %v1331, %v1409
    %v1411 = vrcp.pop %v1353
    %v1412 = vmul.f32 %v1353, %v1411
    %v1413 = vsub.f32 1.0, %v1412
    %v1414 = vmul.f32 %v1411, %v1413
    %v1415 = vadd.f32 %v1411, %v1414
    %vm1416 = vweird.f32 %v1353
    %vm1417 = vweird.f32 %v1411
    %vm1418 = vmor %vm1416, %vm1417
    %v1419 = vsel %vm1418, %v1411, %v1415
    %v1420 = vand.u32 2147483647, %v1353
    %vm1421 = vcmp.eq.f32.partialorder %v1420, 8.507059e+37
    %v1422 = vand.u32 %v1353, 2147483648
    %v1423 = vor.u32 1.1754944e-38, %v1422
    %v1424 = vsel %vm1421, %v1423, %v1419
    %v1425 = vmul.f32 %v1333, %v1424
    %v1426 = vrcp.pop %v1356
    %v1427 = vmul.f32 %v1356, %v1426
    %v1428 = vsub.f32 1.0, %v1427
    %v1429 = vmul.f32 %v1426, %v1428
    %v1430 = vadd.f32 %v1426, %v1429
    %vm1431 = vweird.f32 %v1356
    %vm1432 = vweird.f32 %v1426
    %vm1433 = vmor %vm1431, %vm1432
    %v1434 = vsel %vm1433, %v1426, %v1430
    %v1435 = vand.u32 2147483647, %v1356
    %vm1436 = vcmp.eq.f32.partialorder %v1435, 8.507059e+37
    %v1437 = vand.u32 %v1356, 2147483648
    %v1438 = vor.u32 1.1754944e-38, %v1437
    %v1439 = vsel %vm1436, %v1438, %v1434
    %v1440 = vmul.f32 %v1335, %v1439
    %v1441 = vrcp.pop %v1359
    %v1442 = vmul.f32 %v1359, %v1441
    %v1443 = vsub.f32 1.0, %v1442
    %v1444 = vmul.f32 %v1441, %v1443
    %v1445 = vadd.f32 %v1441, %v1444
    %vm1446 = vweird.f32 %v1359
    %vm1447 = vweird.f32 %v1441
    %vm1448 = vmor %vm1446, %vm1447
    %v1449 = vsel %vm1448, %v1441, %v1445
    %v1450 = vand.u32 2147483647, %v1359
    %vm1451 = vcmp.eq.f32.partialorder %v1450, 8.507059e+37
    %v1452 = vand.u32 %v1359, 2147483648
    %v1453 = vor.u32 1.1754944e-38, %v1452
    %v1454 = vsel %vm1451, %v1453, %v1449
    %v1455 = vmul.f32 %v1337, %v1454
    %v1456 = vrcp.pop %v1362
    %v1457 = vmul.f32 %v1362, %v1456
    %v1458 = vsub.f32 1.0, %v1457
    %v1459 = vmul.f32 %v1456, %v1458
    %v1460 = vadd.f32 %v1456, %v1459
    %vm1461 = vweird.f32 %v1362
    %vm1462 = vweird.f32 %v1456
    %vm1463 = vmor %vm1461, %vm1462
    %v1464 = vsel %vm1463, %v1456, %v1460
    %v1465 = vand.u32 2147483647, %v1362
    %vm1466 = vcmp.eq.f32.partialorder %v1465, 8.507059e+37
    %v1467 = vand.u32 %v1362, 2147483648
    %v1468 = vor.u32 1.1754944e-38, %v1467
    %v1469 = vsel %vm1466, %v1468, %v1464
    %v1470 = vmul.f32 %v1339, %v1469
    %v1471 = vrcp.pop %v1365
    %v1472 = vmul.f32 %v1365, %v1471
    %v1473 = vsub.f32 1.0, %v1472
    %v1474 = vmul.f32 %v1471, %v1473
    %v1475 = vadd.f32 %v1471, %v1474
    %vm1476 = vweird.f32 %v1365
    %vm1477 = vweird.f32 %v1471
    %vm1478 = vmor %vm1476, %vm1477
    %v1479 = vsel %vm1478, %v1471, %v1475
    %v1480 = vand.u32 2147483647, %v1365
    %vm1481 = vcmp.eq.f32.partialorder %v1480, 8.507059e+37
    %v1482 = vand.u32 %v1365, 2147483648
    %v1483 = vor.u32 1.1754944e-38, %v1482
    %v1484 = vsel %vm1481, %v1483, %v1479
    %v1485 = vmul.f32 %v1341, %v1484
    %v1487 = vsel %vm427, %v1380, 0
    %v1490 = vsel %vm427, %v1395, 0
    %v1493 = vsel %vm427, %v1410, 0
    %v1496 = vsel %vm427, %v1425, 0
    %v1499 = vsel %vm427, %v1440, 0
    %v1502 = vsel %vm427, %v1455, 0
    %v1505 = vsel %vm427, %v1470, 0
    %v1508 = vsel %vm427, %v1485, 0
    %v1511 = vsel %vm536, %v1216, 0
    %1513 = vmatpush.msra.mxu0 0.0
    %1514 = vmatpush.msra.mxu0 0.0
    %1515 = vmatpush.msra.mxu0 0.0
    %1516 = vmatpush.msra.mxu0 0.0
    %1517 = vmatpush.msra.mxu0 0.0
    %1518 = vmatpush.msra.mxu0 0.0
    %1519 = vmatpush.msra.mxu0 0.0
    %1520 = vmatpush.msra.mxu0 0.0
    %1521 = vmatpush.msra.mxu0 0.0
    %1522 = vmatpush.msra.mxu0 0.0
    %1523 = vmatpush.msra.mxu0 0.0
    %1524 = vmatpush.msra.mxu0 0.0
    %1525 = vmatpush.msra.mxu0 0.0
    %1526 = vmatpush.msra.mxu0 0.0
    %1527 = vmatpush.msra.mxu0 0.0
    %1528 = vmatpush.msra.mxu0 %v1511
    %1529 = vmatmul.f32.gmra.mxu0 %v1487
    %v1530 = vpop.f32.mrf.mxu0
    %v1531 = vadd.f32 0.0, %v1530
    %1532 = vmatmul.f32.gmra.mxu0 %v1490
    %v1533 = vpop.f32.mrf.mxu0
    %v1534 = vadd.f32 0.0, %v1533
    %1535 = vmatmul.f32.gmra.mxu0 %v1493
    %v1536 = vpop.f32.mrf.mxu0
    %v1537 = vadd.f32 0.0, %v1536
    %1538 = vmatmul.f32.gmra.mxu0 %v1496
    %v1539 = vpop.f32.mrf.mxu0
    %v1540 = vadd.f32 0.0, %v1539
    %1541 = vmatmul.f32.gmra.mxu0 %v1499
    %v1542 = vpop.f32.mrf.mxu0
    %v1543 = vadd.f32 0.0, %v1542
    %1544 = vmatmul.f32.gmra.mxu0 %v1502
    %v1545 = vpop.f32.mrf.mxu0
    %v1546 = vadd.f32 0.0, %v1545
    %1547 = vmatmul.f32.gmra.mxu0 %v1505
    %v1548 = vpop.f32.mrf.mxu0
    %v1549 = vadd.f32 0.0, %v1548
    %1550 = vmatmul.f32.gmra.mxu0 %v1508
    %v1551 = vpop.f32.mrf.mxu0
    %v1552 = vadd.f32 0.0, %v1551
    %1553 = vdwg.mxu0
    %v1554 = vmul.f32 %v1531, %v1054
    %v1555 = vadd.f32 %v1554, 0.0
    %v1556 = vadd.f32 %v1380, 0.0
    %v1557 = vmul.f32 %v1534, %v1058
    %v1558 = vadd.f32 %v1555, %v1557
    %v1559 = vadd.f32 %v1556, %v1395
    %v1560 = vmul.f32 %v1537, %v1062
    %v1561 = vadd.f32 %v1558, %v1560
    %v1562 = vadd.f32 %v1559, %v1410
    %v1563 = vmul.f32 %v1540, %v1066
    %v1564 = vadd.f32 %v1561, %v1563
    %v1565 = vadd.f32 %v1562, %v1425
    %v1566 = vmul.f32 %v1543, %v1070
    %v1567 = vadd.f32 %v1564, %v1566
    %v1568 = vadd.f32 %v1565, %v1440
    %v1569 = vmul.f32 %v1546, %v1074
    %v1570 = vadd.f32 %v1567, %v1569
    %v1571 = vadd.f32 %v1568, %v1455
    %v1572 = vmul.f32 %v1549, %v1078
    %v1573 = vadd.f32 %v1570, %v1572
    %v1574 = vadd.f32 %v1571, %v1470
    %v1575 = vmul.f32 %v1552, %v1082
    %v1576 = vadd.f32 %v1573, %v1575
    %v1577 = vadd.f32 %v1574, %v1485
    %v1578 = vperm.slane %v1050, 3
    %v1580 = vsel %vm206, %v1576, 0
    %v1583 = vsel %vm206, %v1041, 0
    %v1586 = vsel %vm206, %v1042, 0
    %v1589 = vsel %vm206, %v1043, 0
    %v1592 = vsel %vm206, %v1044, 0
    %v1595 = vsel %vm206, %v1045, 0
    %v1598 = vsel %vm206, %v1046, 0
    %v1601 = vsel %vm206, %v1047, 0
    %v1604 = vsel %vm206, %v1048, 0
    %1606 = vmatpush.xpose.msra.mxu0 0.0
    %1607 = vmatpush.xpose.msra.mxu0 0.0
    %1608 = vmatpush.xpose.msra.mxu0 0.0
    %1609 = vmatpush.xpose.msra.mxu0 0.0
    %1610 = vmatpush.xpose.msra.mxu0 0.0
    %1611 = vmatpush.xpose.msra.mxu0 0.0
    %1612 = vmatpush.xpose.msra.mxu0 0.0
    %1613 = vmatpush.xpose.msra.mxu0 0.0
    %1614 = vmatpush.xpose.msra.mxu0 %v1604
    %1615 = vmatpush.xpose.msra.mxu0 %v1601
    %1616 = vmatpush.xpose.msra.mxu0 %v1598
    %1617 = vmatpush.xpose.msra.mxu0 %v1595
    %1618 = vmatpush.xpose.msra.mxu0 %v1592
    %1619 = vmatpush.xpose.msra.mxu0 %v1589
    %1620 = vmatpush.xpose.msra.mxu0 %v1586
    %1621 = vmatpush.xpose.msra.mxu0 %v1583
    %1622 = vmatmul.f32.gmra.mxu0 %v1580
    %v1623 = vpop.f32.mrf.mxu0
    %v1624 = vadd.f32 %v1578, %v1623
    %1625 = vdwg.mxu0
    %v1626 = vmul.f32 %v1577, 0.125
    %1627 = vmatpush.xpose.msra.mxu0 0.0
    %1628 = vmatpush.xpose.msra.mxu0 0.0
    %1629 = vmatpush.xpose.msra.mxu0 0.0
    %1630 = vmatpush.xpose.msra.mxu0 0.0
    %1631 = vmatpush.xpose.msra.mxu0 0.0
    %1632 = vmatpush.xpose.msra.mxu0 0.0
    %1633 = vmatpush.xpose.msra.mxu0 0.0
    %1634 = vmatpush.xpose.msra.mxu0 0.0
    %1635 = vmatpush.xpose.msra.mxu0 %v1106
    %1636 = vmatpush.xpose.msra.mxu0 %v1103
    %1637 = vmatpush.xpose.msra.mxu0 %v1100
    %1638 = vmatpush.xpose.msra.mxu0 %v1097
    %1639 = vmatpush.xpose.msra.mxu0 %v1094
    %1640 = vmatpush.xpose.msra.mxu0 %v1091
    %1641 = vmatpush.xpose.msra.mxu0 %v1088
    %1642 = vmatpush.xpose.msra.mxu0 %v1085
    %1643 = vmatmul.f32.gmra.mxu0 %v644
    %v1644 = vpop.f32.mrf.mxu0
    %v1645 = vadd.f32 %v1083, %v1644
    %1646 = vdwg.mxu0
    %1647 = vmatpush.xpose.msra.mxu0 0.0
    %1648 = vmatpush.xpose.msra.mxu0 0.0
    %1649 = vmatpush.xpose.msra.mxu0 0.0
    %1650 = vmatpush.xpose.msra.mxu0 0.0
    %1651 = vmatpush.xpose.msra.mxu0 0.0
    %1652 = vmatpush.xpose.msra.mxu0 0.0
    %1653 = vmatpush.xpose.msra.mxu0 0.0
    %1654 = vmatpush.xpose.msra.mxu0 0.0
    %1655 = vmatpush.xpose.msra.mxu0 %v1151
    %1656 = vmatpush.xpose.msra.mxu0 %v1148
    %1657 = vmatpush.xpose.msra.mxu0 %v1145
    %1658 = vmatpush.xpose.msra.mxu0 %v1142
    %1659 = vmatpush.xpose.msra.mxu0 %v1139
    %1660 = vmatpush.xpose.msra.mxu0 %v1136
    %1661 = vmatpush.xpose.msra.mxu0 %v1133
    %1662 = vmatpush.xpose.msra.mxu0 %v1130
    %1663 = vmatmul.f32.gmra.mxu0 %v676
    %v1664 = vpop.f32.mrf.mxu0
    %v1665 = vadd.f32 %v1128, %v1664
    %1666 = vdwg.mxu0
    %1667 = vmatpush.xpose.msra.mxu0 0.0
    %1668 = vmatpush.xpose.msra.mxu0 0.0
    %1669 = vmatpush.xpose.msra.mxu0 0.0
    %1670 = vmatpush.xpose.msra.mxu0 0.0
    %1671 = vmatpush.xpose.msra.mxu0 0.0
    %1672 = vmatpush.xpose.msra.mxu0 0.0
    %1673 = vmatpush.xpose.msra.mxu0 0.0
    %1674 = vmatpush.xpose.msra.mxu0 0.0
    %1675 = vmatpush.xpose.msra.mxu0 %v1196
    %1676 = vmatpush.xpose.msra.mxu0 %v1193
    %1677 = vmatpush.xpose.msra.mxu0 %v1190
    %1678 = vmatpush.xpose.msra.mxu0 %v1187
    %1679 = vmatpush.xpose.msra.mxu0 %v1184
    %1680 = vmatpush.xpose.msra.mxu0 %v1181
    %1681 = vmatpush.xpose.msra.mxu0 %v1178
    %1682 = vmatpush.xpose.msra.mxu0 %v1175
    %1683 = vmatmul.f32.gmra.mxu0 %v708
    %v1684 = vpop.f32.mrf.mxu0
    %v1685 = vadd.f32 %v1173, %v1684
    %1686 = vdwg.mxu0
    %v1687 = vmul.f32 %v1645, %v1054
    %v1688 = vmul.f32 %v1645, %v1058
    %v1689 = vmul.f32 %v1645, %v1062
    %v1690 = vmul.f32 %v1645, %v1066
    %v1691 = vmul.f32 %v1645, %v1070
    %v1692 = vmul.f32 %v1645, %v1074
    %v1693 = vmul.f32 %v1645, %v1078
    %v1694 = vmul.f32 %v1645, %v1082
    %v1696 = vsel %vm206, %v1687, 0
    %v1699 = vsel %vm206, %v1688, 0
    %v1702 = vsel %vm206, %v1689, 0
    %v1705 = vsel %vm206, %v1690, 0
    %v1708 = vsel %vm206, %v1691, 0
    %v1711 = vsel %vm206, %v1692, 0
    %v1714 = vsel %vm206, %v1693, 0
    %v1717 = vsel %vm206, %v1694, 0
    %v1720 = vsel %vm206, %v1665, 0
    %1722 = vmatpush.xpose.msra.mxu0 0.0
    %1723 = vmatpush.xpose.msra.mxu0 0.0
    %1724 = vmatpush.xpose.msra.mxu0 0.0
    %1725 = vmatpush.xpose.msra.mxu0 0.0
    %1726 = vmatpush.xpose.msra.mxu0 0.0
    %1727 = vmatpush.xpose.msra.mxu0 0.0
    %1728 = vmatpush.xpose.msra.mxu0 0.0
    %1729 = vmatpush.xpose.msra.mxu0 0.0
    %1730 = vmatpush.xpose.msra.mxu0 0.0
    %1731 = vmatpush.xpose.msra.mxu0 0.0
    %1732 = vmatpush.xpose.msra.mxu0 0.0
    %1733 = vmatpush.xpose.msra.mxu0 0.0
    %1734 = vmatpush.xpose.msra.mxu0 0.0
    %1735 = vmatpush.xpose.msra.mxu0 0.0
    %1736 = vmatpush.xpose.msra.mxu0 0.0
    %1737 = vmatpush.xpose.msra.mxu0 %v1720
    %1738 = vmatmul.f32.gmra.mxu0 %v1696
    %v1739 = vpop.f32.mrf.mxu0
    %v1740 = vadd.f32 0.0, %v1739
    %1741 = vmatmul.f32.gmra.mxu0 %v1699
    %v1742 = vpop.f32.mrf.mxu0
    %v1743 = vadd.f32 0.0, %v1742
    %1744 = vmatmul.f32.gmra.mxu0 %v1702
    %v1745 = vpop.f32.mrf.mxu0
    %v1746 = vadd.f32 0.0, %v1745
    %1747 = vmatmul.f32.gmra.mxu0 %v1705
    %v1748 = vpop.f32.mrf.mxu0
    %v1749 = vadd.f32 0.0, %v1748
    %1750 = vmatmul.f32.gmra.mxu0 %v1708
    %v1751 = vpop.f32.mrf.mxu0
    %v1752 = vadd.f32 0.0, %v1751
    %1753 = vmatmul.f32.gmra.mxu0 %v1711
    %v1754 = vpop.f32.mrf.mxu0
    %v1755 = vadd.f32 0.0, %v1754
    %1756 = vmatmul.f32.gmra.mxu0 %v1714
    %v1757 = vpop.f32.mrf.mxu0
    %v1758 = vadd.f32 0.0, %v1757
    %1759 = vmatmul.f32.gmra.mxu0 %v1717
    %v1760 = vpop.f32.mrf.mxu0
    %v1761 = vadd.f32 0.0, %v1760
    %1762 = vdwg.mxu0
    %v1763 = vsel %vm427, %v1740, -inf
    %1764 = vmax.xlane.f32.xlu0 %v1763
    %v1765 = vpop.xlane.xlu0 %1764
    %v1766 = vsel %vm427, %v1743, -inf
    %1767 = vmax.xlane.f32.xlu0 %v1766
    %v1768 = vpop.xlane.xlu0 %1767
    %v1769 = vsel %vm427, %v1746, -inf
    %1770 = vmax.xlane.f32.xlu0 %v1769
    %v1771 = vpop.xlane.xlu0 %1770
    %v1772 = vsel %vm427, %v1749, -inf
    %1773 = vmax.xlane.f32.xlu0 %v1772
    %v1774 = vpop.xlane.xlu0 %1773
    %v1775 = vsel %vm427, %v1752, -inf
    %1776 = vmax.xlane.f32.xlu0 %v1775
    %v1777 = vpop.xlane.xlu0 %1776
    %v1778 = vsel %vm427, %v1755, -inf
    %1779 = vmax.xlane.f32.xlu0 %v1778
    %v1780 = vpop.xlane.xlu0 %1779
    %v1781 = vsel %vm427, %v1758, -inf
    %1782 = vmax.xlane.f32.xlu0 %v1781
    %v1783 = vpop.xlane.xlu0 %1782
    %v1784 = vsel %vm427, %v1761, -inf
    %1785 = vmax.xlane.f32.xlu0 %v1784
    %v1786 = vpop.xlane.xlu0 %1785
    %v1787 = vsub.f32 %v1740, %v1765
    %v1788 = vsub.f32 %v1743, %v1768
    %v1789 = vsub.f32 %v1746, %v1771
    %v1790 = vsub.f32 %v1749, %v1774
    %v1791 = vsub.f32 %v1752, %v1777
    %v1792 = vsub.f32 %v1755, %v1780
    %v1793 = vsub.f32 %v1758, %v1783
    %v1794 = vsub.f32 %v1761, %v1786
    %v1795 = vmul.f32 %v1787, 1.442695
    %v1796 = vpow.pop %v1795
    %v1797 = vmul.f32 %v1788, 1.442695
    %v1798 = vpow.pop %v1797
    %v1799 = vmul.f32 %v1789, 1.442695
    %v1800 = vpow.pop %v1799
    %v1801 = vmul.f32 %v1790, 1.442695
    %v1802 = vpow.pop %v1801
    %v1803 = vmul.f32 %v1791, 1.442695
    %v1804 = vpow.pop %v1803
    %v1805 = vmul.f32 %v1792, 1.442695
    %v1806 = vpow.pop %v1805
    %v1807 = vmul.f32 %v1793, 1.442695
    %v1808 = vpow.pop %v1807
    %v1809 = vmul.f32 %v1794, 1.442695
    %v1810 = vpow.pop %v1809
    %v1811 = vsel %vm427, %v1796, 0.0
    %1812 = vadd.xlane.f32.xlu0 %v1811
    %v1813 = vpop.xlane.xlu0 %1812
    %v1814 = vsel %vm427, %v1798, 0.0
    %1815 = vadd.xlane.f32.xlu0 %v1814
    %v1816 = vpop.xlane.xlu0 %1815
    %v1817 = vsel %vm427, %v1800, 0.0
    %1818 = vadd.xlane.f32.xlu0 %v1817
    %v1819 = vpop.xlane.xlu0 %1818
    %v1820 = vsel %vm427, %v1802, 0.0
    %1821 = vadd.xlane.f32.xlu0 %v1820
    %v1822 = vpop.xlane.xlu0 %1821
    %v1823 = vsel %vm427, %v1804, 0.0
    %1824 = vadd.xlane.f32.xlu0 %v1823
    %v1825 = vpop.xlane.xlu0 %1824
    %v1826 = vsel %vm427, %v1806, 0.0
    %1827 = vadd.xlane.f32.xlu0 %v1826
    %v1828 = vpop.xlane.xlu0 %1827
    %v1829 = vsel %vm427, %v1808, 0.0
    %1830 = vadd.xlane.f32.xlu0 %v1829
    %v1831 = vpop.xlane.xlu0 %1830
    %v1832 = vsel %vm427, %v1810, 0.0
    %1833 = vadd.xlane.f32.xlu0 %v1832
    %v1834 = vpop.xlane.xlu0 %1833
    %v1835 = vrcp.pop %v1813
    %v1836 = vmul.f32 %v1813, %v1835
    %v1837 = vsub.f32 1.0, %v1836
    %v1838 = vmul.f32 %v1835, %v1837
    %v1839 = vadd.f32 %v1835, %v1838
    %vm1840 = vweird.f32 %v1813
    %vm1841 = vweird.f32 %v1835
    %vm1842 = vmor %vm1840, %vm1841
    %v1843 = vsel %vm1842, %v1835, %v1839
    %v1844 = vand.u32 2147483647, %v1813
    %vm1845 = vcmp.eq.f32.partialorder %v1844, 8.507059e+37
    %v1846 = vand.u32 %v1813, 2147483648
    %v1847 = vor.u32 1.1754944e-38, %v1846
    %v1848 = vsel %vm1845, %v1847, %v1843
    %v1849 = vmul.f32 %v1796, %v1848
    %v1850 = vrcp.pop %v1816
    %v1851 = vmul.f32 %v1816, %v1850
    %v1852 = vsub.f32 1.0, %v1851
    %v1853 = vmul.f32 %v1850, %v1852
    %v1854 = vadd.f32 %v1850, %v1853
    %vm1855 = vweird.f32 %v1816
    %vm1856 = vweird.f32 %v1850
    %vm1857 = vmor %vm1855, %vm1856
    %v1858 = vsel %vm1857, %v1850, %v1854
    %v1859 = vand.u32 2147483647, %v1816
    %vm1860 = vcmp.eq.f32.partialorder %v1859, 8.507059e+37
    %v1861 = vand.u32 %v1816, 2147483648
    %v1862 = vor.u32 1.1754944e-38, %v1861
    %v1863 = vsel %vm1860, %v1862, %v1858
    %v1864 = vmul.f32 %v1798, %v1863
    %v1865 = vrcp.pop %v1819
    %v1866 = vmul.f32 %v1819, %v1865
    %v1867 = vsub.f32 1.0, %v1866
    %v1868 = vmul.f32 %v1865, %v1867
    %v1869 = vadd.f32 %v1865, %v1868
    %vm1870 = vweird.f32 %v1819
    %vm1871 = vweird.f32 %v1865
    %vm1872 = vmor %vm1870, %vm1871
    %v1873 = vsel %vm1872, %v1865, %v1869
    %v1874 = vand.u32 2147483647, %v1819
    %vm1875 = vcmp.eq.f32.partialorder %v1874, 8.507059e+37
    %v1876 = vand.u32 %v1819, 2147483648
    %v1877 = vor.u32 1.1754944e-38, %v1876
    %v1878 = vsel %vm1875, %v1877, %v1873
    %v1879 = vmul.f32 %v1800, %v1878
    %v1880 = vrcp.pop %v1822
    %v1881 = vmul.f32 %v1822, %v1880
    %v1882 = vsub.f32 1.0, %v1881
    %v1883 = vmul.f32 %v1880, %v1882
    %v1884 = vadd.f32 %v1880, %v1883
    %vm1885 = vweird.f32 %v1822
    %vm1886 = vweird.f32 %v1880
    %vm1887 = vmor %vm1885, %vm1886
    %v1888 = vsel %vm1887, %v1880, %v1884
    %v1889 = vand.u32 2147483647, %v1822
    %vm1890 = vcmp.eq.f32.partialorder %v1889, 8.507059e+37
    %v1891 = vand.u32 %v1822, 2147483648
    %v1892 = vor.u32 1.1754944e-38, %v1891
    %v1893 = vsel %vm1890, %v1892, %v1888
    %v1894 = vmul.f32 %v1802, %v1893
    %v1895 = vrcp.pop %v1825
    %v1896 = vmul.f32 %v1825, %v1895
    %v1897 = vsub.f32 1.0, %v1896
    %v1898 = vmul.f32 %v1895, %v1897
    %v1899 = vadd.f32 %v1895, %v1898
    %vm1900 = vweird.f32 %v1825
    %vm1901 = vweird.f32 %v1895
    %vm1902 = vmor %vm1900, %vm1901
    %v1903 = vsel %vm1902, %v1895, %v1899
    %v1904 = vand.u32 2147483647, %v1825
    %vm1905 = vcmp.eq.f32.partialorder %v1904, 8.507059e+37
    %v1906 = vand.u32 %v1825, 2147483648
    %v1907 = vor.u32 1.1754944e-38, %v1906
    %v1908 = vsel %vm1905, %v1907, %v1903
    %v1909 = vmul.f32 %v1804, %v1908
    %v1910 = vrcp.pop %v1828
    %v1911 = vmul.f32 %v1828, %v1910
    %v1912 = vsub.f32 1.0, %v1911
    %v1913 = vmul.f32 %v1910, %v1912
    %v1914 = vadd.f32 %v1910, %v1913
    %vm1915 = vweird.f32 %v1828
    %vm1916 = vweird.f32 %v1910
    %vm1917 = vmor %vm1915, %vm1916
    %v1918 = vsel %vm1917, %v1910, %v1914
    %v1919 = vand.u32 2147483647, %v1828
    %vm1920 = vcmp.eq.f32.partialorder %v1919, 8.507059e+37
    %v1921 = vand.u32 %v1828, 2147483648
    %v1922 = vor.u32 1.1754944e-38, %v1921
    %v1923 = vsel %vm1920, %v1922, %v1918
    %v1924 = vmul.f32 %v1806, %v1923
    %v1925 = vrcp.pop %v1831
    %v1926 = vmul.f32 %v1831, %v1925
    %v1927 = vsub.f32 1.0, %v1926
    %v1928 = vmul.f32 %v1925, %v1927
    %v1929 = vadd.f32 %v1925, %v1928
    %vm1930 = vweird.f32 %v1831
    %vm1931 = vweird.f32 %v1925
    %vm1932 = vmor %vm1930, %vm1931
    %v1933 = vsel %vm1932, %v1925, %v1929
    %v1934 = vand.u32 2147483647, %v1831
    %vm1935 = vcmp.eq.f32.partialorder %v1934, 8.507059e+37
    %v1936 = vand.u32 %v1831, 2147483648
    %v1937 = vor.u32 1.1754944e-38, %v1936
    %v1938 = vsel %vm1935, %v1937, %v1933
    %v1939 = vmul.f32 %v1808, %v1938
    %v1940 = vrcp.pop %v1834
    %v1941 = vmul.f32 %v1834, %v1940
    %v1942 = vsub.f32 1.0, %v1941
    %v1943 = vmul.f32 %v1940, %v1942
    %v1944 = vadd.f32 %v1940, %v1943
    %vm1945 = vweird.f32 %v1834
    %vm1946 = vweird.f32 %v1940
    %vm1947 = vmor %vm1945, %vm1946
    %v1948 = vsel %vm1947, %v1940, %v1944
    %v1949 = vand.u32 2147483647, %v1834
    %vm1950 = vcmp.eq.f32.partialorder %v1949, 8.507059e+37
    %v1951 = vand.u32 %v1834, 2147483648
    %v1952 = vor.u32 1.1754944e-38, %v1951
    %v1953 = vsel %vm1950, %v1952, %v1948
    %v1954 = vmul.f32 %v1810, %v1953
    %v1956 = vsel %vm427, %v1849, 0
    %v1959 = vsel %vm427, %v1864, 0
    %v1962 = vsel %vm427, %v1879, 0
    %v1965 = vsel %vm427, %v1894, 0
    %v1968 = vsel %vm427, %v1909, 0
    %v1971 = vsel %vm427, %v1924, 0
    %v1974 = vsel %vm427, %v1939, 0
    %v1977 = vsel %vm427, %v1954, 0
    %v1980 = vsel %vm536, %v1685, 0
    %1982 = vmatpush.msra.mxu0 0.0
    %1983 = vmatpush.msra.mxu0 0.0
    %1984 = vmatpush.msra.mxu0 0.0
    %1985 = vmatpush.msra.mxu0 0.0
    %1986 = vmatpush.msra.mxu0 0.0
    %1987 = vmatpush.msra.mxu0 0.0
    %1988 = vmatpush.msra.mxu0 0.0
    %1989 = vmatpush.msra.mxu0 0.0
    %1990 = vmatpush.msra.mxu0 0.0
    %1991 = vmatpush.msra.mxu0 0.0
    %1992 = vmatpush.msra.mxu0 0.0
    %1993 = vmatpush.msra.mxu0 0.0
    %1994 = vmatpush.msra.mxu0 0.0
    %1995 = vmatpush.msra.mxu0 0.0
    %1996 = vmatpush.msra.mxu0 0.0
    %1997 = vmatpush.msra.mxu0 %v1980
    %1998 = vmatmul.f32.gmra.mxu0 %v1956
    %v1999 = vpop.f32.mrf.mxu0
    %v2000 = vadd.f32 0.0, %v1999
    %2001 = vmatmul.f32.gmra.mxu0 %v1959
    %v2002 = vpop.f32.mrf.mxu0
    %v2003 = vadd.f32 0.0, %v2002
    %2004 = vmatmul.f32.gmra.mxu0 %v1962
    %v2005 = vpop.f32.mrf.mxu0
    %v2006 = vadd.f32 0.0, %v2005
    %2007 = vmatmul.f32.gmra.mxu0 %v1965
    %v2008 = vpop.f32.mrf.mxu0
    %v2009 = vadd.f32 0.0, %v2008
    %2010 = vmatmul.f32.gmra.mxu0 %v1968
    %v2011 = vpop.f32.mrf.mxu0
    %v2012 = vadd.f32 0.0, %v2011
    %2013 = vmatmul.f32.gmra.mxu0 %v1971
    %v2014 = vpop.f32.mrf.mxu0
    %v2015 = vadd.f32 0.0, %v2014
    %2016 = vmatmul.f32.gmra.mxu0 %v1974
    %v2017 = vpop.f32.mrf.mxu0
    %v2018 = vadd.f32 0.0, %v2017
    %2019 = vmatmul.f32.gmra.mxu0 %v1977
    %v2020 = vpop.f32.mrf.mxu0
    %v2021 = vadd.f32 0.0, %v2020
    %2022 = vdwg.mxu0
    %v2023 = vmul.f32 %v2000, %v1054
    %v2024 = vadd.f32 %v2023, 0.0
    %v2025 = vadd.f32 %v1849, 0.0
    %v2026 = vmul.f32 %v2003, %v1058
    %v2027 = vadd.f32 %v2024, %v2026
    %v2028 = vadd.f32 %v2025, %v1864
    %v2029 = vmul.f32 %v2006, %v1062
    %v2030 = vadd.f32 %v2027, %v2029
    %v2031 = vadd.f32 %v2028, %v1879
    %v2032 = vmul.f32 %v2009, %v1066
    %v2033 = vadd.f32 %v2030, %v2032
    %v2034 = vadd.f32 %v2031, %v1894
    %v2035 = vmul.f32 %v2012, %v1070
    %v2036 = vadd.f32 %v2033, %v2035
    %v2037 = vadd.f32 %v2034, %v1909
    %v2038 = vmul.f32 %v2015, %v1074
    %v2039 = vadd.f32 %v2036, %v2038
    %v2040 = vadd.f32 %v2037, %v1924
    %v2041 = vmul.f32 %v2018, %v1078
    %v2042 = vadd.f32 %v2039, %v2041
    %v2043 = vadd.f32 %v2040, %v1939
    %v2044 = vmul.f32 %v2021, %v1082
    %v2045 = vadd.f32 %v2042, %v2044
    %v2046 = vadd.f32 %v2043, %v1954
    %v2048 = vsel %vm206, %v2045, 0
    %2050 = vmatpush.xpose.msra.mxu0 0.0
    %2051 = vmatpush.xpose.msra.mxu0 0.0
    %2052 = vmatpush.xpose.msra.mxu0 0.0
    %2053 = vmatpush.xpose.msra.mxu0 0.0
    %2054 = vmatpush.xpose.msra.mxu0 0.0
    %2055 = vmatpush.xpose.msra.mxu0 0.0
    %2056 = vmatpush.xpose.msra.mxu0 0.0
    %2057 = vmatpush.xpose.msra.mxu0 0.0
    %2058 = vmatpush.xpose.msra.mxu0 %v1604
    %2059 = vmatpush.xpose.msra.mxu0 %v1601
    %2060 = vmatpush.xpose.msra.mxu0 %v1598
    %2061 = vmatpush.xpose.msra.mxu0 %v1595
    %2062 = vmatpush.xpose.msra.mxu0 %v1592
    %2063 = vmatpush.xpose.msra.mxu0 %v1589
    %2064 = vmatpush.xpose.msra.mxu0 %v1586
    %2065 = vmatpush.xpose.msra.mxu0 %v1583
    %2066 = vmatmul.f32.gmra.mxu0 %v2048
    %v2067 = vpop.f32.mrf.mxu0
    %v2068 = vadd.f32 %v1578, %v2067
    %2069 = vdwg.mxu0
    %v2070 = vmul.f32 %v2046, 0.125
    %v2072 = vrot.slane %v1624, 1
    %v2073 = vrot.slane %v1624, 2
    %v2074 = vrot.slane %v1624, 3
    %v2075 = vrot.slane %v1624, 4
    %v2076 = vrot.slane %v1624, 5
    %v2077 = vrot.slane %v1624, 6
    %v2078 = vrot.slane %v1624, 7
    %v2087 = vrot.slane %v2068, 1
    %v2088 = vrot.slane %v2068, 2
    %v2089 = vrot.slane %v2068, 3
    %v2090 = vrot.slane %v2068, 4
    %v2091 = vrot.slane %v2068, 5
    %v2092 = vrot.slane %v2068, 6
    %v2093 = vrot.slane %v2068, 7
    %v2094 = vperm.slane %v2068, 0
    %v2095 = vperm.slane %v2087, 0
    %v2096 = vperm.slane %v2088, 0
    %v2097 = vperm.slane %v2089, 0
    %v2098 = vperm.slane %v2090, 0
    %v2099 = vperm.slane %v2091, 0
    %v2100 = vperm.slane %v2092, 0
    %v2101 = vperm.slane %v2093, 0
    %v2110 = vsel %vm993, %v1624, %v2094
    %v2111 = vsel %vm993, %v2072, %v2095
    %v2112 = vsel %vm993, %v2073, %v2096
    %v2113 = vsel %vm993, %v2074, %v2097
    %v2114 = vsel %vm993, %v2075, %v2098
    %v2115 = vsel %vm993, %v2076, %v2099
    %v2116 = vsel %vm993, %v2077, %v2100
    %v2117 = vsel %vm993, %v2078, %v2101
    %2118 = vst.msk [vmem:[#allocation11] sm:$0x3] %vm1002, %v2110
    %2119 = vst.msk [vmem:[#allocation11 + $0x2] sm:$0x3] %vm1002, %v2111
    %2120 = vst.msk [vmem:[#allocation11 + $0x4] sm:$0x3] %vm1002, %v2112
    %2121 = vst.msk [vmem:[#allocation11 + $0x6] sm:$0x3] %vm1002, %v2113
    %2122 = vst.msk [vmem:[#allocation11 + $0x8] sm:$0x3] %vm1002, %v2114
    %2123 = vst.msk [vmem:[#allocation11 + $0xa] sm:$0x3] %vm1002, %v2115
    %2124 = vst.msk [vmem:[#allocation11 + $0xc] sm:$0x3] %vm1002, %v2116
    %2125 = vst.msk [vmem:[#allocation11 + $0xe] sm:$0x3] %vm1002, %v2117
    %2126 = vst.msk [vmem:[%s11] sm:$0xff] %vm427, %v1626
    %2127 = vst.msk [vmem:[%s11 + $0x8] sm:$0xff] %vm427, %v2070
    %s2128 = scalar_lea.vmem [#allocation2], 128
    %v2129 = vld [vmem:[%s2128] sm:$0xff]
    %v2130 = vld [vmem:[%s2128 + $0x8] sm:$0xff]
    %v2131 = vld [vmem:[%s2128 + $0x10] sm:$0xff]
    %v2132 = vld [vmem:[%s2128 + $0x18] sm:$0xff]
    %v2133 = vld [vmem:[%s2128 + $0x20] sm:$0xff]
    %v2134 = vld [vmem:[%s2128 + $0x28] sm:$0xff]
    %v2135 = vld [vmem:[%s2128 + $0x30] sm:$0xff]
    %v2136 = vld [vmem:[%s2128 + $0x38] sm:$0xff]
    %s2137 = scalar_lea.vmem [#allocation5], 128
    %v2138 = vld [vmem:[%s2137] sm:$0xff]
    %v2139 = vld [vmem:[%s2137 + $0x8] sm:$0xff]
    %v2140 = vld [vmem:[%s2137 + $0x10] sm:$0xff]
    %v2141 = vld [vmem:[%s2137 + $0x18] sm:$0xff]
    %v2142 = vld [vmem:[%s2137 + $0x20] sm:$0xff]
    %v2143 = vld [vmem:[%s2137 + $0x28] sm:$0xff]
    %v2144 = vld [vmem:[%s2137 + $0x30] sm:$0xff]
    %v2145 = vld [vmem:[%s2137 + $0x38] sm:$0xff]
    %s2146 = scalar_lea.vmem [#allocation7], 128
    %v2147 = vld [vmem:[%s2146] sm:$0xff]
    %v2148 = vld [vmem:[%s2146 + $0x8] sm:$0xff]
    %v2149 = vld [vmem:[%s2146 + $0x10] sm:$0xff]
    %v2150 = vld [vmem:[%s2146 + $0x18] sm:$0xff]
    %v2151 = vld [vmem:[%s2146 + $0x20] sm:$0xff]
    %v2152 = vld [vmem:[%s2146 + $0x28] sm:$0xff]
    %v2153 = vld [vmem:[%s2146 + $0x30] sm:$0xff]
    %v2154 = vld [vmem:[%s2146 + $0x38] sm:$0xff]
    %s2155 = scalar_lea.vmem [#allocation8], 128
    %v2156 = vld [vmem:[%s2155] sm:$0xff]
    %v2157 = vld [vmem:[%s2155 + $0x8] sm:$0xff]
    %v2158 = vld [vmem:[%s2155 + $0x10] sm:$0xff]
    %v2159 = vld [vmem:[%s2155 + $0x18] sm:$0xff]
    %v2160 = vld [vmem:[%s2155 + $0x20] sm:$0xff]
    %v2161 = vld [vmem:[%s2155 + $0x28] sm:$0xff]
    %v2162 = vld [vmem:[%s2155 + $0x30] sm:$0xff]
    %v2163 = vld [vmem:[%s2155 + $0x38] sm:$0xff]
    %s2164 = scalar_lea.vmem %s7, 16
    %v2165 = vld [vmem:[%s2164] sm:$0xff]
    %vm2166 = vcmp.lt.s32.totalorder %v122, 4
    %vm2167 = vmand %vm156, %vm2166
    %v2168 = vsel %vm2167, 1, 0
    %v2169 = vcvt.s32.f32 %v2168
    %vm2170 = vcmp.ge.s32.totalorder %v122, 4
    %vm2171 = vmand %vm2170, %vm1051
    %v2172 = vsel %vm2171, 1, 0
    %v2173 = vcvt.s32.f32 %v2172
    %vm2174 = vcmp.lt.s32.totalorder %v122, 12
    %vm2175 = vmand %vm1055, %vm2174
    %v2176 = vsel %vm2175, 1, 0
    %v2177 = vcvt.s32.f32 %v2176
    %vm2178 = vcmp.ge.s32.totalorder %v122, 12
    %vm2179 = vmand %vm2178, %vm157
    %v2180 = vsel %vm2179, 1, 0
    %v2181 = vcvt.s32.f32 %v2180
    %vm2182 = vcmp.lt.s32.totalorder %v122, 20
    %vm2183 = vmand %vm161, %vm2182
    %v2184 = vsel %vm2183, 1, 0
    %v2185 = vcvt.s32.f32 %v2184
    %vm2186 = vcmp.ge.s32.totalorder %v122, 20
    %vm2187 = vmand %vm2186, %vm1059
    %v2188 = vsel %vm2187, 1, 0
    %v2189 = vcvt.s32.f32 %v2188
    %vm2190 = vcmp.lt.s32.totalorder %v122, 28
    %vm2191 = vmand %vm1063, %vm2190
    %v2192 = vsel %vm2191, 1, 0
    %v2193 = vcvt.s32.f32 %v2192
    %vm2194 = vcmp.ge.s32.totalorder %v122, 28
    %vm2195 = vmand %vm2194, %vm162
    %v2196 = vsel %vm2195, 1, 0
    %v2197 = vcvt.s32.f32 %v2196
    %vm2198 = vcmp.lt.s32.totalorder %v122, 36
    %vm2199 = vmand %vm166, %vm2198
    %v2200 = vsel %vm2199, 1, 0
    %v2201 = vcvt.s32.f32 %v2200
    %vm2202 = vcmp.ge.s32.totalorder %v122, 36
    %vm2203 = vmand %vm2202, %vm1067
    %v2204 = vsel %vm2203, 1, 0
    %v2205 = vcvt.s32.f32 %v2204
    %vm2206 = vcmp.lt.s32.totalorder %v122, 44
    %vm2207 = vmand %vm1071, %vm2206
    %v2208 = vsel %vm2207, 1, 0
    %v2209 = vcvt.s32.f32 %v2208
    %vm2210 = vcmp.ge.s32.totalorder %v122, 44
    %vm2211 = vmand %vm2210, %vm167
    %v2212 = vsel %vm2211, 1, 0
    %v2213 = vcvt.s32.f32 %v2212
    %vm2214 = vcmp.lt.s32.totalorder %v122, 52
    %vm2215 = vmand %vm171, %vm2214
    %v2216 = vsel %vm2215, 1, 0
    %v2217 = vcvt.s32.f32 %v2216
    %vm2218 = vcmp.ge.s32.totalorder %v122, 52
    %vm2219 = vmand %vm2218, %vm1075
    %v2220 = vsel %vm2219, 1, 0
    %v2221 = vcvt.s32.f32 %v2220
    %vm2222 = vcmp.lt.s32.totalorder %v122, 60
    %vm2223 = vmand %vm1079, %vm2222
    %v2224 = vsel %vm2223, 1, 0
    %v2225 = vcvt.s32.f32 %v2224
    %vm2226 = vcmp.ge.s32.totalorder %v122, 60
    %vm2227 = vmand %vm2226, %vm172
    %v2228 = vsel %vm2227, 1, 0
    %v2229 = vcvt.s32.f32 %v2228
    %v2230 = vperm.slane %v2165, 0
    %v2232 = vsel %vm206, %v2129, 0
    %v2235 = vsel %vm206, %v2130, 0
    %v2238 = vsel %vm206, %v2131, 0
    %v2241 = vsel %vm206, %v2132, 0
    %v2244 = vsel %vm206, %v2133, 0
    %v2247 = vsel %vm206, %v2134, 0
    %v2250 = vsel %vm206, %v2135, 0
    %v2253 = vsel %vm206, %v2136, 0
    %2255 = vmatpush.xpose.msra.mxu0 0.0
    %2256 = vmatpush.xpose.msra.mxu0 0.0
    %2257 = vmatpush.xpose.msra.mxu0 0.0
    %2258 = vmatpush.xpose.msra.mxu0 0.0
    %2259 = vmatpush.xpose.msra.mxu0 0.0
    %2260 = vmatpush.xpose.msra.mxu0 0.0
    %2261 = vmatpush.xpose.msra.mxu0 0.0
    %2262 = vmatpush.xpose.msra.mxu0 0.0
    %2263 = vmatpush.xpose.msra.mxu0 %v2253
    %2264 = vmatpush.xpose.msra.mxu0 %v2250
    %2265 = vmatpush.xpose.msra.mxu0 %v2247
    %2266 = vmatpush.xpose.msra.mxu0 %v2244
    %2267 = vmatpush.xpose.msra.mxu0 %v2241
    %2268 = vmatpush.xpose.msra.mxu0 %v2238
    %2269 = vmatpush.xpose.msra.mxu0 %v2235
    %2270 = vmatpush.xpose.msra.mxu0 %v2232
    %2271 = vmatmul.f32.gmra.mxu0 %v207
    %v2272 = vpop.f32.mrf.mxu0
    %v2273 = vadd.f32 %v2230, %v2272
    %2274 = vdwg.mxu0
    %v2275 = vperm.slane %v2165, 1
    %v2277 = vsel %vm206, %v2138, 0
    %v2280 = vsel %vm206, %v2139, 0
    %v2283 = vsel %vm206, %v2140, 0
    %v2286 = vsel %vm206, %v2141, 0
    %v2289 = vsel %vm206, %v2142, 0
    %v2292 = vsel %vm206, %v2143, 0
    %v2295 = vsel %vm206, %v2144, 0
    %v2298 = vsel %vm206, %v2145, 0
    %2300 = vmatpush.xpose.msra.mxu0 0.0
    %2301 = vmatpush.xpose.msra.mxu0 0.0
    %2302 = vmatpush.xpose.msra.mxu0 0.0
    %2303 = vmatpush.xpose.msra.mxu0 0.0
    %2304 = vmatpush.xpose.msra.mxu0 0.0
    %2305 = vmatpush.xpose.msra.mxu0 0.0
    %2306 = vmatpush.xpose.msra.mxu0 0.0
    %2307 = vmatpush.xpose.msra.mxu0 0.0
    %2308 = vmatpush.xpose.msra.mxu0 %v2298
    %2309 = vmatpush.xpose.msra.mxu0 %v2295
    %2310 = vmatpush.xpose.msra.mxu0 %v2292
    %2311 = vmatpush.xpose.msra.mxu0 %v2289
    %2312 = vmatpush.xpose.msra.mxu0 %v2286
    %2313 = vmatpush.xpose.msra.mxu0 %v2283
    %2314 = vmatpush.xpose.msra.mxu0 %v2280
    %2315 = vmatpush.xpose.msra.mxu0 %v2277
    %2316 = vmatmul.f32.gmra.mxu0 %v270
    %v2317 = vpop.f32.mrf.mxu0
    %v2318 = vadd.f32 %v2275, %v2317
    %2319 = vdwg.mxu0
    %v2320 = vperm.slane %v2165, 2
    %v2322 = vsel %vm206, %v2147, 0
    %v2325 = vsel %vm206, %v2148, 0
    %v2328 = vsel %vm206, %v2149, 0
    %v2331 = vsel %vm206, %v2150, 0
    %v2334 = vsel %vm206, %v2151, 0
    %v2337 = vsel %vm206, %v2152, 0
    %v2340 = vsel %vm206, %v2153, 0
    %v2343 = vsel %vm206, %v2154, 0
    %2345 = vmatpush.xpose.msra.mxu0 0.0
    %2346 = vmatpush.xpose.msra.mxu0 0.0
    %2347 = vmatpush.xpose.msra.mxu0 0.0
    %2348 = vmatpush.xpose.msra.mxu0 0.0
    %2349 = vmatpush.xpose.msra.mxu0 0.0
    %2350 = vmatpush.xpose.msra.mxu0 0.0
    %2351 = vmatpush.xpose.msra.mxu0 0.0
    %2352 = vmatpush.xpose.msra.mxu0 0.0
    %2353 = vmatpush.xpose.msra.mxu0 %v2343
    %2354 = vmatpush.xpose.msra.mxu0 %v2340
    %2355 = vmatpush.xpose.msra.mxu0 %v2337
    %2356 = vmatpush.xpose.msra.mxu0 %v2334
    %2357 = vmatpush.xpose.msra.mxu0 %v2331
    %2358 = vmatpush.xpose.msra.mxu0 %v2328
    %2359 = vmatpush.xpose.msra.mxu0 %v2325
    %2360 = vmatpush.xpose.msra.mxu0 %v2322
    %2361 = vmatmul.f32.gmra.mxu0 %v333
    %v2362 = vpop.f32.mrf.mxu0
    %v2363 = vadd.f32 %v2320, %v2362
    %2364 = vdwg.mxu0
    %v2366 = vrot.slane %v2165, 6
    %v2368 = vsel %vm536, %v2318, %v2366
    %v2369 = vrot.slane %v2165, 7
    %v2371 = vsel %vm536, %v2363, %v2369
    %vm2372 = vcmask 1046528
    %v2373 = vsel %vm2372, %v2368, 0.0
    %v2374 = vsel %vm2372, %v2371, 0.0
    %v2375 = vmul.f32 %v2273, %v2169
    %v2376 = vmul.f32 %v2273, %v2173
    %v2377 = vmul.f32 %v2273, %v2177
    %v2378 = vmul.f32 %v2273, %v2181
    %v2379 = vmul.f32 %v2273, %v2185
    %v2380 = vmul.f32 %v2273, %v2189
    %v2381 = vmul.f32 %v2273, %v2193
    %v2382 = vmul.f32 %v2273, %v2197
    %v2383 = vmul.f32 %v2273, %v2201
    %v2384 = vmul.f32 %v2273, %v2205
    %v2385 = vmul.f32 %v2273, %v2209
    %v2386 = vmul.f32 %v2273, %v2213
    %v2387 = vmul.f32 %v2273, %v2217
    %v2388 = vmul.f32 %v2273, %v2221
    %v2389 = vmul.f32 %v2273, %v2225
    %v2390 = vmul.f32 %v2273, %v2229
    %v2392 = vsel %vm206, %v2375, 0
    %v2395 = vsel %vm206, %v2376, 0
    %v2398 = vsel %vm206, %v2377, 0
    %v2401 = vsel %vm206, %v2378, 0
    %v2404 = vsel %vm206, %v2379, 0
    %v2407 = vsel %vm206, %v2380, 0
    %v2410 = vsel %vm206, %v2381, 0
    %v2413 = vsel %vm206, %v2382, 0
    %v2416 = vsel %vm206, %v2383, 0
    %v2419 = vsel %vm206, %v2384, 0
    %v2422 = vsel %vm206, %v2385, 0
    %v2425 = vsel %vm206, %v2386, 0
    %v2428 = vsel %vm206, %v2387, 0
    %v2431 = vsel %vm206, %v2388, 0
    %v2434 = vsel %vm206, %v2389, 0
    %v2437 = vsel %vm206, %v2390, 0
    %v2440 = vsel %vm206, %v2373, 0
    %2442 = vmatpush.xpose.msra.mxu0 0.0
    %2443 = vmatpush.xpose.msra.mxu0 0.0
    %2444 = vmatpush.xpose.msra.mxu0 0.0
    %2445 = vmatpush.xpose.msra.mxu0 0.0
    %2446 = vmatpush.xpose.msra.mxu0 0.0
    %2447 = vmatpush.xpose.msra.mxu0 0.0
    %2448 = vmatpush.xpose.msra.mxu0 0.0
    %2449 = vmatpush.xpose.msra.mxu0 0.0
    %2450 = vmatpush.xpose.msra.mxu0 0.0
    %2451 = vmatpush.xpose.msra.mxu0 0.0
    %2452 = vmatpush.xpose.msra.mxu0 0.0
    %2453 = vmatpush.xpose.msra.mxu0 0.0
    %2454 = vmatpush.xpose.msra.mxu0 0.0
    %2455 = vmatpush.xpose.msra.mxu0 0.0
    %2456 = vmatpush.xpose.msra.mxu0 0.0
    %2457 = vmatpush.xpose.msra.mxu0 %v2440
    %2458 = vmatmul.f32.gmra.mxu0 %v2392
    %v2459 = vpop.f32.mrf.mxu0
    %v2460 = vadd.f32 0.0, %v2459
    %2461 = vmatmul.f32.gmra.mxu0 %v2395
    %v2462 = vpop.f32.mrf.mxu0
    %v2463 = vadd.f32 0.0, %v2462
    %2464 = vmatmul.f32.gmra.mxu0 %v2398
    %v2465 = vpop.f32.mrf.mxu0
    %v2466 = vadd.f32 0.0, %v2465
    %2467 = vmatmul.f32.gmra.mxu0 %v2401
    %v2468 = vpop.f32.mrf.mxu0
    %v2469 = vadd.f32 0.0, %v2468
    %2470 = vmatmul.f32.gmra.mxu0 %v2404
    %v2471 = vpop.f32.mrf.mxu0
    %v2472 = vadd.f32 0.0, %v2471
    %2473 = vmatmul.f32.gmra.mxu0 %v2407
    %v2474 = vpop.f32.mrf.mxu0
    %v2475 = vadd.f32 0.0, %v2474
    %2476 = vmatmul.f32.gmra.mxu0 %v2410
    %v2477 = vpop.f32.mrf.mxu0
    %v2478 = vadd.f32 0.0, %v2477
    %2479 = vmatmul.f32.gmra.mxu0 %v2413
    %v2480 = vpop.f32.mrf.mxu0
    %v2481 = vadd.f32 0.0, %v2480
    %2482 = vmatmul.f32.gmra.mxu0 %v2416
    %v2483 = vpop.f32.mrf.mxu0
    %v2484 = vadd.f32 0.0, %v2483
    %2485 = vmatmul.f32.gmra.mxu0 %v2419
    %v2486 = vpop.f32.mrf.mxu0
    %v2487 = vadd.f32 0.0, %v2486
    %2488 = vmatmul.f32.gmra.mxu0 %v2422
    %v2489 = vpop.f32.mrf.mxu0
    %v2490 = vadd.f32 0.0, %v2489
    %2491 = vmatmul.f32.gmra.mxu0 %v2425
    %v2492 = vpop.f32.mrf.mxu0
    %v2493 = vadd.f32 0.0, %v2492
    %2494 = vmatmul.f32.gmra.mxu0 %v2428
    %v2495 = vpop.f32.mrf.mxu0
    %v2496 = vadd.f32 0.0, %v2495
    %2497 = vmatmul.f32.gmra.mxu0 %v2431
    %v2498 = vpop.f32.mrf.mxu0
    %v2499 = vadd.f32 0.0, %v2498
    %2500 = vmatmul.f32.gmra.mxu0 %v2434
    %v2501 = vpop.f32.mrf.mxu0
    %v2502 = vadd.f32 0.0, %v2501
    %2503 = vmatmul.f32.gmra.mxu0 %v2437
    %v2504 = vpop.f32.mrf.mxu0
    %v2505 = vadd.f32 0.0, %v2504
    %2506 = vdwg.mxu0
    %vm2507 = vcmask 64512
    %v2508 = vsel %vm2507, %v2460, -inf
    %2509 = vmax.xlane.f32.xlu0 %v2508
    %v2510 = vpop.xlane.xlu0 %2509
    %v2511 = vsel %vm2507, %v2463, -inf
    %2512 = vmax.xlane.f32.xlu0 %v2511
    %v2513 = vpop.xlane.xlu0 %2512
    %v2514 = vsel %vm2507, %v2466, -inf
    %2515 = vmax.xlane.f32.xlu0 %v2514
    %v2516 = vpop.xlane.xlu0 %2515
    %v2517 = vsel %vm2507, %v2469, -inf
    %2518 = vmax.xlane.f32.xlu0 %v2517
    %v2519 = vpop.xlane.xlu0 %2518
    %v2520 = vsel %vm2507, %v2472, -inf
    %2521 = vmax.xlane.f32.xlu0 %v2520
    %v2522 = vpop.xlane.xlu0 %2521
    %v2523 = vsel %vm2507, %v2475, -inf
    %2524 = vmax.xlane.f32.xlu0 %v2523
    %v2525 = vpop.xlane.xlu0 %2524
    %v2526 = vsel %vm2507, %v2478, -inf
    %2527 = vmax.xlane.f32.xlu0 %v2526
    %v2528 = vpop.xlane.xlu0 %2527
    %v2529 = vsel %vm2507, %v2481, -inf
    %2530 = vmax.xlane.f32.xlu0 %v2529
    %v2531 = vpop.xlane.xlu0 %2530
    %v2532 = vsel %vm2507, %v2484, -inf
    %2533 = vmax.xlane.f32.xlu0 %v2532
    %v2534 = vpop.xlane.xlu0 %2533
    %v2535 = vsel %vm2507, %v2487, -inf
    %2536 = vmax.xlane.f32.xlu0 %v2535
    %v2537 = vpop.xlane.xlu0 %2536
    %v2538 = vsel %vm2507, %v2490, -inf
    %2539 = vmax.xlane.f32.xlu0 %v2538
    %v2540 = vpop.xlane.xlu0 %2539
    %v2541 = vsel %vm2507, %v2493, -inf
    %2542 = vmax.xlane.f32.xlu0 %v2541
    %v2543 = vpop.xlane.xlu0 %2542
    %v2544 = vsel %vm2507, %v2496, -inf
    %2545 = vmax.xlane.f32.xlu0 %v2544
    %v2546 = vpop.xlane.xlu0 %2545
    %v2547 = vsel %vm2507, %v2499, -inf
    %2548 = vmax.xlane.f32.xlu0 %v2547
    %v2549 = vpop.xlane.xlu0 %2548
    %v2550 = vsel %vm2507, %v2502, -inf
    %2551 = vmax.xlane.f32.xlu0 %v2550
    %v2552 = vpop.xlane.xlu0 %2551
    %v2553 = vsel %vm2507, %v2505, -inf
    %2554 = vmax.xlane.f32.xlu0 %v2553
    %v2555 = vpop.xlane.xlu0 %2554
    %v2556 = vsub.f32 %v2460, %v2510
    %v2557 = vsub.f32 %v2463, %v2513
    %v2558 = vsub.f32 %v2466, %v2516
    %v2559 = vsub.f32 %v2469, %v2519
    %v2560 = vsub.f32 %v2472, %v2522
    %v2561 = vsub.f32 %v2475, %v2525
    %v2562 = vsub.f32 %v2478, %v2528
    %v2563 = vsub.f32 %v2481, %v2531
    %v2564 = vsub.f32 %v2484, %v2534
    %v2565 = vsub.f32 %v2487, %v2537
    %v2566 = vsub.f32 %v2490, %v2540
    %v2567 = vsub.f32 %v2493, %v2543
    %v2568 = vsub.f32 %v2496, %v2546
    %v2569 = vsub.f32 %v2499, %v2549
    %v2570 = vsub.f32 %v2502, %v2552
    %v2571 = vsub.f32 %v2505, %v2555
    %v2572 = vmul.f32 %v2556, 1.442695
    %v2573 = vpow.pop %v2572
    %v2574 = vmul.f32 %v2557, 1.442695
    %v2575 = vpow.pop %v2574
    %v2576 = vmul.f32 %v2558, 1.442695
    %v2577 = vpow.pop %v2576
    %v2578 = vmul.f32 %v2559, 1.442695
    %v2579 = vpow.pop %v2578
    %v2580 = vmul.f32 %v2560, 1.442695
    %v2581 = vpow.pop %v2580
    %v2582 = vmul.f32 %v2561, 1.442695
    %v2583 = vpow.pop %v2582
    %v2584 = vmul.f32 %v2562, 1.442695
    %v2585 = vpow.pop %v2584
    %v2586 = vmul.f32 %v2563, 1.442695
    %v2587 = vpow.pop %v2586
    %v2588 = vmul.f32 %v2564, 1.442695
    %v2589 = vpow.pop %v2588
    %v2590 = vmul.f32 %v2565, 1.442695
    %v2591 = vpow.pop %v2590
    %v2592 = vmul.f32 %v2566, 1.442695
    %v2593 = vpow.pop %v2592
    %v2594 = vmul.f32 %v2567, 1.442695
    %v2595 = vpow.pop %v2594
    %v2596 = vmul.f32 %v2568, 1.442695
    %v2597 = vpow.pop %v2596
    %v2598 = vmul.f32 %v2569, 1.442695
    %v2599 = vpow.pop %v2598
    %v2600 = vmul.f32 %v2570, 1.442695
    %v2601 = vpow.pop %v2600
    %v2602 = vmul.f32 %v2571, 1.442695
    %v2603 = vpow.pop %v2602
    %v2604 = vsel %vm2507, %v2573, 0.0
    %2605 = vadd.xlane.f32.xlu0 %v2604
    %v2606 = vpop.xlane.xlu0 %2605
    %v2607 = vsel %vm2507, %v2575, 0.0
    %2608 = vadd.xlane.f32.xlu0 %v2607
    %v2609 = vpop.xlane.xlu0 %2608
    %v2610 = vsel %vm2507, %v2577, 0.0
    %2611 = vadd.xlane.f32.xlu0 %v2610
    %v2612 = vpop.xlane.xlu0 %2611
    %v2613 = vsel %vm2507, %v2579, 0.0
    %2614 = vadd.xlane.f32.xlu0 %v2613
    %v2615 = vpop.xlane.xlu0 %2614
    %v2616 = vsel %vm2507, %v2581, 0.0
    %2617 = vadd.xlane.f32.xlu0 %v2616
    %v2618 = vpop.xlane.xlu0 %2617
    %v2619 = vsel %vm2507, %v2583, 0.0
    %2620 = vadd.xlane.f32.xlu0 %v2619
    %v2621 = vpop.xlane.xlu0 %2620
    %v2622 = vsel %vm2507, %v2585, 0.0
    %2623 = vadd.xlane.f32.xlu0 %v2622
    %v2624 = vpop.xlane.xlu0 %2623
    %v2625 = vsel %vm2507, %v2587, 0.0
    %2626 = vadd.xlane.f32.xlu0 %v2625
    %v2627 = vpop.xlane.xlu0 %2626
    %v2628 = vsel %vm2507, %v2589, 0.0
    %2629 = vadd.xlane.f32.xlu0 %v2628
    %v2630 = vpop.xlane.xlu0 %2629
    %v2631 = vsel %vm2507, %v2591, 0.0
    %2632 = vadd.xlane.f32.xlu0 %v2631
    %v2633 = vpop.xlane.xlu0 %2632
    %v2634 = vsel %vm2507, %v2593, 0.0
    %2635 = vadd.xlane.f32.xlu0 %v2634
    %v2636 = vpop.xlane.xlu0 %2635
    %v2637 = vsel %vm2507, %v2595, 0.0
    %2638 = vadd.xlane.f32.xlu0 %v2637
    %v2639 = vpop.xlane.xlu0 %2638
    %v2640 = vsel %vm2507, %v2597, 0.0
    %2641 = vadd.xlane.f32.xlu0 %v2640
    %v2642 = vpop.xlane.xlu0 %2641
    %v2643 = vsel %vm2507, %v2599, 0.0
    %2644 = vadd.xlane.f32.xlu0 %v2643
    %v2645 = vpop.xlane.xlu0 %2644
    %v2646 = vsel %vm2507, %v2601, 0.0
    %2647 = vadd.xlane.f32.xlu0 %v2646
    %v2648 = vpop.xlane.xlu0 %2647
    %v2649 = vsel %vm2507, %v2603, 0.0
    %2650 = vadd.xlane.f32.xlu0 %v2649
    %v2651 = vpop.xlane.xlu0 %2650
    %v2652 = vrcp.pop %v2606
    %v2653 = vmul.f32 %v2606, %v2652
    %v2654 = vsub.f32 1.0, %v2653
    %v2655 = vmul.f32 %v2652, %v2654
    %v2656 = vadd.f32 %v2652, %v2655
    %vm2657 = vweird.f32 %v2606
    %vm2658 = vweird.f32 %v2652
    %vm2659 = vmor %vm2657, %vm2658
    %v2660 = vsel %vm2659, %v2652, %v2656
    %v2661 = vand.u32 2147483647, %v2606
    %vm2662 = vcmp.eq.f32.partialorder %v2661, 8.507059e+37
    %v2663 = vand.u32 %v2606, 2147483648
    %v2664 = vor.u32 1.1754944e-38, %v2663
    %v2665 = vsel %vm2662, %v2664, %v2660
    %v2666 = vmul.f32 %v2573, %v2665
    %v2667 = vrcp.pop %v2609
    %v2668 = vmul.f32 %v2609, %v2667
    %v2669 = vsub.f32 1.0, %v2668
    %v2670 = vmul.f32 %v2667, %v2669
    %v2671 = vadd.f32 %v2667, %v2670
    %vm2672 = vweird.f32 %v2609
    %vm2673 = vweird.f32 %v2667
    %vm2674 = vmor %vm2672, %vm2673
    %v2675 = vsel %vm2674, %v2667, %v2671
    %v2676 = vand.u32 2147483647, %v2609
    %vm2677 = vcmp.eq.f32.partialorder %v2676, 8.507059e+37
    %v2678 = vand.u32 %v2609, 2147483648
    %v2679 = vor.u32 1.1754944e-38, %v2678
    %v2680 = vsel %vm2677, %v2679, %v2675
    %v2681 = vmul.f32 %v2575, %v2680
    %v2682 = vrcp.pop %v2612
    %v2683 = vmul.f32 %v2612, %v2682
    %v2684 = vsub.f32 1.0, %v2683
    %v2685 = vmul.f32 %v2682, %v2684
    %v2686 = vadd.f32 %v2682, %v2685
    %vm2687 = vweird.f32 %v2612
    %vm2688 = vweird.f32 %v2682
    %vm2689 = vmor %vm2687, %vm2688
    %v2690 = vsel %vm2689, %v2682, %v2686
    %v2691 = vand.u32 2147483647, %v2612
    %vm2692 = vcmp.eq.f32.partialorder %v2691, 8.507059e+37
    %v2693 = vand.u32 %v2612, 2147483648
    %v2694 = vor.u32 1.1754944e-38, %v2693
    %v2695 = vsel %vm2692, %v2694, %v2690
    %v2696 = vmul.f32 %v2577, %v2695
    %v2697 = vrcp.pop %v2615
    %v2698 = vmul.f32 %v2615, %v2697
    %v2699 = vsub.f32 1.0, %v2698
    %v2700 = vmul.f32 %v2697, %v2699
    %v2701 = vadd.f32 %v2697, %v2700
    %vm2702 = vweird.f32 %v2615
    %vm2703 = vweird.f32 %v2697
    %vm2704 = vmor %vm2702, %vm2703
    %v2705 = vsel %vm2704, %v2697, %v2701
    %v2706 = vand.u32 2147483647, %v2615
    %vm2707 = vcmp.eq.f32.partialorder %v2706, 8.507059e+37
    %v2708 = vand.u32 %v2615, 2147483648
    %v2709 = vor.u32 1.1754944e-38, %v2708
    %v2710 = vsel %vm2707, %v2709, %v2705
    %v2711 = vmul.f32 %v2579, %v2710
    %v2712 = vrcp.pop %v2618
    %v2713 = vmul.f32 %v2618, %v2712
    %v2714 = vsub.f32 1.0, %v2713
    %v2715 = vmul.f32 %v2712, %v2714
    %v2716 = vadd.f32 %v2712, %v2715
    %vm2717 = vweird.f32 %v2618
    %vm2718 = vweird.f32 %v2712
    %vm2719 = vmor %vm2717, %vm2718
    %v2720 = vsel %vm2719, %v2712, %v2716
    %v2721 = vand.u32 2147483647, %v2618
    %vm2722 = vcmp.eq.f32.partialorder %v2721, 8.507059e+37
    %v2723 = vand.u32 %v2618, 2147483648
    %v2724 = vor.u32 1.1754944e-38, %v2723
    %v2725 = vsel %vm2722, %v2724, %v2720
    %v2726 = vmul.f32 %v2581, %v2725
    %v2727 = vrcp.pop %v2621
    %v2728 = vmul.f32 %v2621, %v2727
    %v2729 = vsub.f32 1.0, %v2728
    %v2730 = vmul.f32 %v2727, %v2729
    %v2731 = vadd.f32 %v2727, %v2730
    %vm2732 = vweird.f32 %v2621
    %vm2733 = vweird.f32 %v2727
    %vm2734 = vmor %vm2732, %vm2733
    %v2735 = vsel %vm2734, %v2727, %v2731
    %v2736 = vand.u32 2147483647, %v2621
    %vm2737 = vcmp.eq.f32.partialorder %v2736, 8.507059e+37
    %v2738 = vand.u32 %v2621, 2147483648
    %v2739 = vor.u32 1.1754944e-38, %v2738
    %v2740 = vsel %vm2737, %v2739, %v2735
    %v2741 = vmul.f32 %v2583, %v2740
    %v2742 = vrcp.pop %v2624
    %v2743 = vmul.f32 %v2624, %v2742
    %v2744 = vsub.f32 1.0, %v2743
    %v2745 = vmul.f32 %v2742, %v2744
    %v2746 = vadd.f32 %v2742, %v2745
    %vm2747 = vweird.f32 %v2624
    %vm2748 = vweird.f32 %v2742
    %vm2749 = vmor %vm2747, %vm2748
    %v2750 = vsel %vm2749, %v2742, %v2746
    %v2751 = vand.u32 2147483647, %v2624
    %vm2752 = vcmp.eq.f32.partialorder %v2751, 8.507059e+37
    %v2753 = vand.u32 %v2624, 2147483648
    %v2754 = vor.u32 1.1754944e-38, %v2753
    %v2755 = vsel %vm2752, %v2754, %v2750
    %v2756 = vmul.f32 %v2585, %v2755
    %v2757 = vrcp.pop %v2627
    %v2758 = vmul.f32 %v2627, %v2757
    %v2759 = vsub.f32 1.0, %v2758
    %v2760 = vmul.f32 %v2757, %v2759
    %v2761 = vadd.f32 %v2757, %v2760
    %vm2762 = vweird.f32 %v2627
    %vm2763 = vweird.f32 %v2757
    %vm2764 = vmor %vm2762, %vm2763
    %v2765 = vsel %vm2764, %v2757, %v2761
    %v2766 = vand.u32 2147483647, %v2627
    %vm2767 = vcmp.eq.f32.partialorder %v2766, 8.507059e+37
    %v2768 = vand.u32 %v2627, 2147483648
    %v2769 = vor.u32 1.1754944e-38, %v2768
    %v2770 = vsel %vm2767, %v2769, %v2765
    %v2771 = vmul.f32 %v2587, %v2770
    %v2772 = vrcp.pop %v2630
    %v2773 = vmul.f32 %v2630, %v2772
    %v2774 = vsub.f32 1.0, %v2773
    %v2775 = vmul.f32 %v2772, %v2774
    %v2776 = vadd.f32 %v2772, %v2775
    %vm2777 = vweird.f32 %v2630
    %vm2778 = vweird.f32 %v2772
    %vm2779 = vmor %vm2777, %vm2778
    %v2780 = vsel %vm2779, %v2772, %v2776
    %v2781 = vand.u32 2147483647, %v2630
    %vm2782 = vcmp.eq.f32.partialorder %v2781, 8.507059e+37
    %v2783 = vand.u32 %v2630, 2147483648
    %v2784 = vor.u32 1.1754944e-38, %v2783
    %v2785 = vsel %vm2782, %v2784, %v2780
    %v2786 = vmul.f32 %v2589, %v2785
    %v2787 = vrcp.pop %v2633
    %v2788 = vmul.f32 %v2633, %v2787
    %v2789 = vsub.f32 1.0, %v2788
    %v2790 = vmul.f32 %v2787, %v2789
    %v2791 = vadd.f32 %v2787, %v2790
    %vm2792 = vweird.f32 %v2633
    %vm2793 = vweird.f32 %v2787
    %vm2794 = vmor %vm2792, %vm2793
    %v2795 = vsel %vm2794, %v2787, %v2791
    %v2796 = vand.u32 2147483647, %v2633
    %vm2797 = vcmp.eq.f32.partialorder %v2796, 8.507059e+37
    %v2798 = vand.u32 %v2633, 2147483648
    %v2799 = vor.u32 1.1754944e-38, %v2798
    %v2800 = vsel %vm2797, %v2799, %v2795
    %v2801 = vmul.f32 %v2591, %v2800
    %v2802 = vrcp.pop %v2636
    %v2803 = vmul.f32 %v2636, %v2802
    %v2804 = vsub.f32 1.0, %v2803
    %v2805 = vmul.f32 %v2802, %v2804
    %v2806 = vadd.f32 %v2802, %v2805
    %vm2807 = vweird.f32 %v2636
    %vm2808 = vweird.f32 %v2802
    %vm2809 = vmor %vm2807, %vm2808
    %v2810 = vsel %vm2809, %v2802, %v2806
    %v2811 = vand.u32 2147483647, %v2636
    %vm2812 = vcmp.eq.f32.partialorder %v2811, 8.507059e+37
    %v2813 = vand.u32 %v2636, 2147483648
    %v2814 = vor.u32 1.1754944e-38, %v2813
    %v2815 = vsel %vm2812, %v2814, %v2810
    %v2816 = vmul.f32 %v2593, %v2815
    %v2817 = vrcp.pop %v2639
    %v2818 = vmul.f32 %v2639, %v2817
    %v2819 = vsub.f32 1.0, %v2818
    %v2820 = vmul.f32 %v2817, %v2819
    %v2821 = vadd.f32 %v2817, %v2820
    %vm2822 = vweird.f32 %v2639
    %vm2823 = vweird.f32 %v2817
    %vm2824 = vmor %vm2822, %vm2823
    %v2825 = vsel %vm2824, %v2817, %v2821
    %v2826 = vand.u32 2147483647, %v2639
    %vm2827 = vcmp.eq.f32.partialorder %v2826, 8.507059e+37
    %v2828 = vand.u32 %v2639, 2147483648
    %v2829 = vor.u32 1.1754944e-38, %v2828
    %v2830 = vsel %vm2827, %v2829, %v2825
    %v2831 = vmul.f32 %v2595, %v2830
    %v2832 = vrcp.pop %v2642
    %v2833 = vmul.f32 %v2642, %v2832
    %v2834 = vsub.f32 1.0, %v2833
    %v2835 = vmul.f32 %v2832, %v2834
    %v2836 = vadd.f32 %v2832, %v2835
    %vm2837 = vweird.f32 %v2642
    %vm2838 = vweird.f32 %v2832
    %vm2839 = vmor %vm2837, %vm2838
    %v2840 = vsel %vm2839, %v2832, %v2836
    %v2841 = vand.u32 2147483647, %v2642
    %vm2842 = vcmp.eq.f32.partialorder %v2841, 8.507059e+37
    %v2843 = vand.u32 %v2642, 2147483648
    %v2844 = vor.u32 1.1754944e-38, %v2843
    %v2845 = vsel %vm2842, %v2844, %v2840
    %v2846 = vmul.f32 %v2597, %v2845
    %v2847 = vrcp.pop %v2645
    %v2848 = vmul.f32 %v2645, %v2847
    %v2849 = vsub.f32 1.0, %v2848
    %v2850 = vmul.f32 %v2847, %v2849
    %v2851 = vadd.f32 %v2847, %v2850
    %vm2852 = vweird.f32 %v2645
    %vm2853 = vweird.f32 %v2847
    %vm2854 = vmor %vm2852, %vm2853
    %v2855 = vsel %vm2854, %v2847, %v2851
    %v2856 = vand.u32 2147483647, %v2645
    %vm2857 = vcmp.eq.f32.partialorder %v2856, 8.507059e+37
    %v2858 = vand.u32 %v2645, 2147483648
    %v2859 = vor.u32 1.1754944e-38, %v2858
    %v2860 = vsel %vm2857, %v2859, %v2855
    %v2861 = vmul.f32 %v2599, %v2860
    %v2862 = vrcp.pop %v2648
    %v2863 = vmul.f32 %v2648, %v2862
    %v2864 = vsub.f32 1.0, %v2863
    %v2865 = vmul.f32 %v2862, %v2864
    %v2866 = vadd.f32 %v2862, %v2865
    %vm2867 = vweird.f32 %v2648
    %vm2868 = vweird.f32 %v2862
    %vm2869 = vmor %vm2867, %vm2868
    %v2870 = vsel %vm2869, %v2862, %v2866
    %v2871 = vand.u32 2147483647, %v2648
    %vm2872 = vcmp.eq.f32.partialorder %v2871, 8.507059e+37
    %v2873 = vand.u32 %v2648, 2147483648
    %v2874 = vor.u32 1.1754944e-38, %v2873
    %v2875 = vsel %vm2872, %v2874, %v2870
    %v2876 = vmul.f32 %v2601, %v2875
    %v2877 = vrcp.pop %v2651
    %v2878 = vmul.f32 %v2651, %v2877
    %v2879 = vsub.f32 1.0, %v2878
    %v2880 = vmul.f32 %v2877, %v2879
    %v2881 = vadd.f32 %v2877, %v2880
    %vm2882 = vweird.f32 %v2651
    %vm2883 = vweird.f32 %v2877
    %vm2884 = vmor %vm2882, %vm2883
    %v2885 = vsel %vm2884, %v2877, %v2881
    %v2886 = vand.u32 2147483647, %v2651
    %vm2887 = vcmp.eq.f32.partialorder %v2886, 8.507059e+37
    %v2888 = vand.u32 %v2651, 2147483648
    %v2889 = vor.u32 1.1754944e-38, %v2888
    %v2890 = vsel %vm2887, %v2889, %v2885
    %v2891 = vmul.f32 %v2603, %v2890
    %v2893 = vsel %vm2507, %v2666, 0
    %v2896 = vsel %vm2507, %v2681, 0
    %v2899 = vsel %vm2507, %v2696, 0
    %v2902 = vsel %vm2507, %v2711, 0
    %v2905 = vsel %vm2507, %v2726, 0
    %v2908 = vsel %vm2507, %v2741, 0
    %v2911 = vsel %vm2507, %v2756, 0
    %v2914 = vsel %vm2507, %v2771, 0
    %v2917 = vsel %vm2507, %v2786, 0
    %v2920 = vsel %vm2507, %v2801, 0
    %v2923 = vsel %vm2507, %v2816, 0
    %v2926 = vsel %vm2507, %v2831, 0
    %v2929 = vsel %vm2507, %v2846, 0
    %v2932 = vsel %vm2507, %v2861, 0
    %v2935 = vsel %vm2507, %v2876, 0
    %v2938 = vsel %vm2507, %v2891, 0
    %2940 = vmatpush.msra.mxu0 0.0
    %2941 = vmatpush.msra.mxu0 0.0
    %2942 = vmatpush.msra.mxu0 0.0
    %2943 = vmatpush.msra.mxu0 0.0
    %2944 = vmatpush.msra.mxu0 0.0
    %2945 = vmatpush.msra.mxu0 0.0
    %2946 = vmatpush.msra.mxu0 0.0
    %2947 = vmatpush.msra.mxu0 0.0
    %2948 = vmatpush.msra.mxu0 0.0
    %2949 = vmatpush.msra.mxu0 0.0
    %2950 = vmatpush.msra.mxu0 0.0
    %2951 = vmatpush.msra.mxu0 0.0
    %2952 = vmatpush.msra.mxu0 0.0
    %2953 = vmatpush.msra.mxu0 0.0
    %2954 = vmatpush.msra.mxu0 0.0
    %2955 = vmatpush.msra.mxu0 %v2374
    %2956 = vmatmul.f32.gmra.mxu0 %v2893
    %v2957 = vpop.f32.mrf.mxu0
    %v2958 = vadd.f32 0.0, %v2957
    %2959 = vmatmul.f32.gmra.mxu0 %v2896
    %v2960 = vpop.f32.mrf.mxu0
    %v2961 = vadd.f32 0.0, %v2960
    %2962 = vmatmul.f32.gmra.mxu0 %v2899
    %v2963 = vpop.f32.mrf.mxu0
    %v2964 = vadd.f32 0.0, %v2963
    %2965 = vmatmul.f32.gmra.mxu0 %v2902
    %v2966 = vpop.f32.mrf.mxu0
    %v2967 = vadd.f32 0.0, %v2966
    %2968 = vmatmul.f32.gmra.mxu0 %v2905
    %v2969 = vpop.f32.mrf.mxu0
    %v2970 = vadd.f32 0.0, %v2969
    %2971 = vmatmul.f32.gmra.mxu0 %v2908
    %v2972 = vpop.f32.mrf.mxu0
    %v2973 = vadd.f32 0.0, %v2972
    %2974 = vmatmul.f32.gmra.mxu0 %v2911
    %v2975 = vpop.f32.mrf.mxu0
    %v2976 = vadd.f32 0.0, %v2975
    %2977 = vmatmul.f32.gmra.mxu0 %v2914
    %v2978 = vpop.f32.mrf.mxu0
    %v2979 = vadd.f32 0.0, %v2978
    %2980 = vmatmul.f32.gmra.mxu0 %v2917
    %v2981 = vpop.f32.mrf.mxu0
    %v2982 = vadd.f32 0.0, %v2981
    %2983 = vmatmul.f32.gmra.mxu0 %v2920
    %v2984 = vpop.f32.mrf.mxu0
    %v2985 = vadd.f32 0.0, %v2984
    %2986 = vmatmul.f32.gmra.mxu0 %v2923
    %v2987 = vpop.f32.mrf.mxu0
    %v2988 = vadd.f32 0.0, %v2987
    %2989 = vmatmul.f32.gmra.mxu0 %v2926
    %v2990 = vpop.f32.mrf.mxu0
    %v2991 = vadd.f32 0.0, %v2990
    %2992 = vmatmul.f32.gmra.mxu0 %v2929
    %v2993 = vpop.f32.mrf.mxu0
    %v2994 = vadd.f32 0.0, %v2993
    %2995 = vmatmul.f32.gmra.mxu0 %v2932
    %v2996 = vpop.f32.mrf.mxu0
    %v2997 = vadd.f32 0.0, %v2996
    %2998 = vmatmul.f32.gmra.mxu0 %v2935
    %v2999 = vpop.f32.mrf.mxu0
    %v3000 = vadd.f32 0.0, %v2999
    %3001 = vmatmul.f32.gmra.mxu0 %v2938
    %v3002 = vpop.f32.mrf.mxu0
    %v3003 = vadd.f32 0.0, %v3002
    %3004 = vdwg.mxu0
    %v3005 = vmul.f32 %v2958, %v2169
    %v3006 = vadd.f32 %v3005, 0.0
    %v3007 = vadd.f32 %v2666, 0.0
    %v3008 = vmul.f32 %v2961, %v2173
    %v3009 = vadd.f32 %v3006, %v3008
    %v3010 = vadd.f32 %v3007, %v2681
    %v3011 = vmul.f32 %v2964, %v2177
    %v3012 = vadd.f32 %v3009, %v3011
    %v3013 = vadd.f32 %v3010, %v2696
    %v3014 = vmul.f32 %v2967, %v2181
    %v3015 = vadd.f32 %v3012, %v3014
    %v3016 = vadd.f32 %v3013, %v2711
    %v3017 = vmul.f32 %v2970, %v2185
    %v3018 = vadd.f32 %v3015, %v3017
    %v3019 = vadd.f32 %v3016, %v2726
    %v3020 = vmul.f32 %v2973, %v2189
    %v3021 = vadd.f32 %v3018, %v3020
    %v3022 = vadd.f32 %v3019, %v2741
    %v3023 = vmul.f32 %v2976, %v2193
    %v3024 = vadd.f32 %v3021, %v3023
    %v3025 = vadd.f32 %v3022, %v2756
    %v3026 = vmul.f32 %v2979, %v2197
    %v3027 = vadd.f32 %v3024, %v3026
    %v3028 = vadd.f32 %v3025, %v2771
    %v3029 = vmul.f32 %v2982, %v2201
    %v3030 = vadd.f32 %v3027, %v3029
    %v3031 = vadd.f32 %v3028, %v2786
    %v3032 = vmul.f32 %v2985, %v2205
    %v3033 = vadd.f32 %v3030, %v3032
    %v3034 = vadd.f32 %v3031, %v2801
    %v3035 = vmul.f32 %v2988, %v2209
    %v3036 = vadd.f32 %v3033, %v3035
    %v3037 = vadd.f32 %v3034, %v2816
    %v3038 = vmul.f32 %v2991, %v2213
    %v3039 = vadd.f32 %v3036, %v3038
    %v3040 = vadd.f32 %v3037, %v2831
    %v3041 = vmul.f32 %v2994, %v2217
    %v3042 = vadd.f32 %v3039, %v3041
    %v3043 = vadd.f32 %v3040, %v2846
    %v3044 = vmul.f32 %v2997, %v2221
    %v3045 = vadd.f32 %v3042, %v3044
    %v3046 = vadd.f32 %v3043, %v2861
    %v3047 = vmul.f32 %v3000, %v2225
    %v3048 = vadd.f32 %v3045, %v3047
    %v3049 = vadd.f32 %v3046, %v2876
    %v3050 = vmul.f32 %v3003, %v2229
    %v3051 = vadd.f32 %v3048, %v3050
    %v3052 = vadd.f32 %v3049, %v2891
    %v3053 = vperm.slane %v2165, 3
    %v3055 = vsel %vm206, %v3051, 0
    %v3058 = vsel %vm206, %v2156, 0
    %v3061 = vsel %vm206, %v2157, 0
    %v3064 = vsel %vm206, %v2158, 0
    %v3067 = vsel %vm206, %v2159, 0
    %v3070 = vsel %vm206, %v2160, 0
    %v3073 = vsel %vm206, %v2161, 0
    %v3076 = vsel %vm206, %v2162, 0
    %v3079 = vsel %vm206, %v2163, 0
    %3081 = vmatpush.xpose.msra.mxu0 0.0
    %3082 = vmatpush.xpose.msra.mxu0 0.0
    %3083 = vmatpush.xpose.msra.mxu0 0.0
    %3084 = vmatpush.xpose.msra.mxu0 0.0
    %3085 = vmatpush.xpose.msra.mxu0 0.0
    %3086 = vmatpush.xpose.msra.mxu0 0.0
    %3087 = vmatpush.xpose.msra.mxu0 0.0
    %3088 = vmatpush.xpose.msra.mxu0 0.0
    %3089 = vmatpush.xpose.msra.mxu0 %v3079
    %3090 = vmatpush.xpose.msra.mxu0 %v3076
    %3091 = vmatpush.xpose.msra.mxu0 %v3073
    %3092 = vmatpush.xpose.msra.mxu0 %v3070
    %3093 = vmatpush.xpose.msra.mxu0 %v3067
    %3094 = vmatpush.xpose.msra.mxu0 %v3064
    %3095 = vmatpush.xpose.msra.mxu0 %v3061
    %3096 = vmatpush.xpose.msra.mxu0 %v3058
    %3097 = vmatmul.f32.gmra.mxu0 %v3055
    %v3098 = vpop.f32.mrf.mxu0
    %v3099 = vadd.f32 %v3053, %v3098
    %3100 = vdwg.mxu0
    %v3101 = vmul.f32 %v3052, 0.0625
    %3102 = vmatpush.xpose.msra.mxu0 0.0
    %3103 = vmatpush.xpose.msra.mxu0 0.0
    %3104 = vmatpush.xpose.msra.mxu0 0.0
    %3105 = vmatpush.xpose.msra.mxu0 0.0
    %3106 = vmatpush.xpose.msra.mxu0 0.0
    %3107 = vmatpush.xpose.msra.mxu0 0.0
    %3108 = vmatpush.xpose.msra.mxu0 0.0
    %3109 = vmatpush.xpose.msra.mxu0 0.0
    %3110 = vmatpush.xpose.msra.mxu0 %v2253
    %3111 = vmatpush.xpose.msra.mxu0 %v2250
    %3112 = vmatpush.xpose.msra.mxu0 %v2247
    %3113 = vmatpush.xpose.msra.mxu0 %v2244
    %3114 = vmatpush.xpose.msra.mxu0 %v2241
    %3115 = vmatpush.xpose.msra.mxu0 %v2238
    %3116 = vmatpush.xpose.msra.mxu0 %v2235
    %3117 = vmatpush.xpose.msra.mxu0 %v2232
    %3118 = vmatmul.f32.gmra.mxu0 %v644
    %v3119 = vpop.f32.mrf.mxu0
    %v3120 = vadd.f32 %v2230, %v3119
    %3121 = vdwg.mxu0
    %3122 = vmatpush.xpose.msra.mxu0 0.0
    %3123 = vmatpush.xpose.msra.mxu0 0.0
    %3124 = vmatpush.xpose.msra.mxu0 0.0
    %3125 = vmatpush.xpose.msra.mxu0 0.0
    %3126 = vmatpush.xpose.msra.mxu0 0.0
    %3127 = vmatpush.xpose.msra.mxu0 0.0
    %3128 = vmatpush.xpose.msra.mxu0 0.0
    %3129 = vmatpush.xpose.msra.mxu0 0.0
    %3130 = vmatpush.xpose.msra.mxu0 %v2298
    %3131 = vmatpush.xpose.msra.mxu0 %v2295
    %3132 = vmatpush.xpose.msra.mxu0 %v2292
    %3133 = vmatpush.xpose.msra.mxu0 %v2289
    %3134 = vmatpush.xpose.msra.mxu0 %v2286
    %3135 = vmatpush.xpose.msra.mxu0 %v2283
    %3136 = vmatpush.xpose.msra.mxu0 %v2280
    %3137 = vmatpush.xpose.msra.mxu0 %v2277
    %3138 = vmatmul.f32.gmra.mxu0 %v676
    %v3139 = vpop.f32.mrf.mxu0
    %v3140 = vadd.f32 %v2275, %v3139
    %3141 = vdwg.mxu0
    %3142 = vmatpush.xpose.msra.mxu0 0.0
    %3143 = vmatpush.xpose.msra.mxu0 0.0
    %3144 = vmatpush.xpose.msra.mxu0 0.0
    %3145 = vmatpush.xpose.msra.mxu0 0.0
    %3146 = vmatpush.xpose.msra.mxu0 0.0
    %3147 = vmatpush.xpose.msra.mxu0 0.0
    %3148 = vmatpush.xpose.msra.mxu0 0.0
    %3149 = vmatpush.xpose.msra.mxu0 0.0
    %3150 = vmatpush.xpose.msra.mxu0 %v2343
    %3151 = vmatpush.xpose.msra.mxu0 %v2340
    %3152 = vmatpush.xpose.msra.mxu0 %v2337
    %3153 = vmatpush.xpose.msra.mxu0 %v2334
    %3154 = vmatpush.xpose.msra.mxu0 %v2331
    %3155 = vmatpush.xpose.msra.mxu0 %v2328
    %3156 = vmatpush.xpose.msra.mxu0 %v2325
    %3157 = vmatpush.xpose.msra.mxu0 %v2322
    %3158 = vmatmul.f32.gmra.mxu0 %v708
    %v3159 = vpop.f32.mrf.mxu0
    %v3160 = vadd.f32 %v2320, %v3159
    %3161 = vdwg.mxu0
    %v3162 = vsel %vm536, %v3140, %v2366
    %v3163 = vsel %vm536, %v3160, %v2369
    %v3164 = vsel %vm2372, %v3162, 0.0
    %v3165 = vsel %vm2372, %v3163, 0.0
    %v3166 = vmul.f32 %v3120, %v2169
    %v3167 = vmul.f32 %v3120, %v2173
    %v3168 = vmul.f32 %v3120, %v2177
    %v3169 = vmul.f32 %v3120, %v2181
    %v3170 = vmul.f32 %v3120, %v2185
    %v3171 = vmul.f32 %v3120, %v2189
    %v3172 = vmul.f32 %v3120, %v2193
    %v3173 = vmul.f32 %v3120, %v2197
    %v3174 = vmul.f32 %v3120, %v2201
    %v3175 = vmul.f32 %v3120, %v2205
    %v3176 = vmul.f32 %v3120, %v2209
    %v3177 = vmul.f32 %v3120, %v2213
    %v3178 = vmul.f32 %v3120, %v2217
    %v3179 = vmul.f32 %v3120, %v2221
    %v3180 = vmul.f32 %v3120, %v2225
    %v3181 = vmul.f32 %v3120, %v2229
    %v3183 = vsel %vm206, %v3166, 0
    %v3186 = vsel %vm206, %v3167, 0
    %v3189 = vsel %vm206, %v3168, 0
    %v3192 = vsel %vm206, %v3169, 0
    %v3195 = vsel %vm206, %v3170, 0
    %v3198 = vsel %vm206, %v3171, 0
    %v3201 = vsel %vm206, %v3172, 0
    %v3204 = vsel %vm206, %v3173, 0
    %v3207 = vsel %vm206, %v3174, 0
    %v3210 = vsel %vm206, %v3175, 0
    %v3213 = vsel %vm206, %v3176, 0
    %v3216 = vsel %vm206, %v3177, 0
    %v3219 = vsel %vm206, %v3178, 0
    %v3222 = vsel %vm206, %v3179, 0
    %v3225 = vsel %vm206, %v3180, 0
    %v3228 = vsel %vm206, %v3181, 0
    %v3231 = vsel %vm206, %v3164, 0
    %3233 = vmatpush.xpose.msra.mxu0 0.0
    %3234 = vmatpush.xpose.msra.mxu0 0.0
    %3235 = vmatpush.xpose.msra.mxu0 0.0
    %3236 = vmatpush.xpose.msra.mxu0 0.0
    %3237 = vmatpush.xpose.msra.mxu0 0.0
    %3238 = vmatpush.xpose.msra.mxu0 0.0
    %3239 = vmatpush.xpose.msra.mxu0 0.0
    %3240 = vmatpush.xpose.msra.mxu0 0.0
    %3241 = vmatpush.xpose.msra.mxu0 0.0
    %3242 = vmatpush.xpose.msra.mxu0 0.0
    %3243 = vmatpush.xpose.msra.mxu0 0.0
    %3244 = vmatpush.xpose.msra.mxu0 0.0
    %3245 = vmatpush.xpose.msra.mxu0 0.0
    %3246 = vmatpush.xpose.msra.mxu0 0.0
    %3247 = vmatpush.xpose.msra.mxu0 0.0
    %3248 = vmatpush.xpose.msra.mxu0 %v3231
    %3249 = vmatmul.f32.gmra.mxu0 %v3183
    %v3250 = vpop.f32.mrf.mxu0
    %v3251 = vadd.f32 0.0, %v3250
    %3252 = vmatmul.f32.gmra.mxu0 %v3186
    %v3253 = vpop.f32.mrf.mxu0
    %v3254 = vadd.f32 0.0, %v3253
    %3255 = vmatmul.f32.gmra.mxu0 %v3189
    %v3256 = vpop.f32.mrf.mxu0
    %v3257 = vadd.f32 0.0, %v3256
    %3258 = vmatmul.f32.gmra.mxu0 %v3192
    %v3259 = vpop.f32.mrf.mxu0
    %v3260 = vadd.f32 0.0, %v3259
    %3261 = vmatmul.f32.gmra.mxu0 %v3195
    %v3262 = vpop.f32.mrf.mxu0
    %v3263 = vadd.f32 0.0, %v3262
    %3264 = vmatmul.f32.gmra.mxu0 %v3198
    %v3265 = vpop.f32.mrf.mxu0
    %v3266 = vadd.f32 0.0, %v3265
    %3267 = vmatmul.f32.gmra.mxu0 %v3201
    %v3268 = vpop.f32.mrf.mxu0
    %v3269 = vadd.f32 0.0, %v3268
    %3270 = vmatmul.f32.gmra.mxu0 %v3204
    %v3271 = vpop.f32.mrf.mxu0
    %v3272 = vadd.f32 0.0, %v3271
    %3273 = vmatmul.f32.gmra.mxu0 %v3207
    %v3274 = vpop.f32.mrf.mxu0
    %v3275 = vadd.f32 0.0, %v3274
    %3276 = vmatmul.f32.gmra.mxu0 %v3210
    %v3277 = vpop.f32.mrf.mxu0
    %v3278 = vadd.f32 0.0, %v3277
    %3279 = vmatmul.f32.gmra.mxu0 %v3213
    %v3280 = vpop.f32.mrf.mxu0
    %v3281 = vadd.f32 0.0, %v3280
    %3282 = vmatmul.f32.gmra.mxu0 %v3216
    %v3283 = vpop.f32.mrf.mxu0
    %v3284 = vadd.f32 0.0, %v3283
    %3285 = vmatmul.f32.gmra.mxu0 %v3219
    %v3286 = vpop.f32.mrf.mxu0
    %v3287 = vadd.f32 0.0, %v3286
    %3288 = vmatmul.f32.gmra.mxu0 %v3222
    %v3289 = vpop.f32.mrf.mxu0
    %v3290 = vadd.f32 0.0, %v3289
    %3291 = vmatmul.f32.gmra.mxu0 %v3225
    %v3292 = vpop.f32.mrf.mxu0
    %v3293 = vadd.f32 0.0, %v3292
    %3294 = vmatmul.f32.gmra.mxu0 %v3228
    %v3295 = vpop.f32.mrf.mxu0
    %v3296 = vadd.f32 0.0, %v3295
    %3297 = vdwg.mxu0
    %v3298 = vsel %vm2507, %v3251, -inf
    %3299 = vmax.xlane.f32.xlu0 %v3298
    %v3300 = vpop.xlane.xlu0 %3299
    %v3301 = vsel %vm2507, %v3254, -inf
    %3302 = vmax.xlane.f32.xlu0 %v3301
    %v3303 = vpop.xlane.xlu0 %3302
    %v3304 = vsel %vm2507, %v3257, -inf
    %3305 = vmax.xlane.f32.xlu0 %v3304
    %v3306 = vpop.xlane.xlu0 %3305
    %v3307 = vsel %vm2507, %v3260, -inf
    %3308 = vmax.xlane.f32.xlu0 %v3307
    %v3309 = vpop.xlane.xlu0 %3308
    %v3310 = vsel %vm2507, %v3263, -inf
    %3311 = vmax.xlane.f32.xlu0 %v3310
    %v3312 = vpop.xlane.xlu0 %3311
    %v3313 = vsel %vm2507, %v3266, -inf
    %3314 = vmax.xlane.f32.xlu0 %v3313
    %v3315 = vpop.xlane.xlu0 %3314
    %v3316 = vsel %vm2507, %v3269, -inf
    %3317 = vmax.xlane.f32.xlu0 %v3316
    %v3318 = vpop.xlane.xlu0 %3317
    %v3319 = vsel %vm2507, %v3272, -inf
    %3320 = vmax.xlane.f32.xlu0 %v3319
    %v3321 = vpop.xlane.xlu0 %3320
    %v3322 = vsel %vm2507, %v3275, -inf
    %3323 = vmax.xlane.f32.xlu0 %v3322
    %v3324 = vpop.xlane.xlu0 %3323
    %v3325 = vsel %vm2507, %v3278, -inf
    %3326 = vmax.xlane.f32.xlu0 %v3325
    %v3327 = vpop.xlane.xlu0 %3326
    %v3328 = vsel %vm2507, %v3281, -inf
    %3329 = vmax.xlane.f32.xlu0 %v3328
    %v3330 = vpop.xlane.xlu0 %3329
    %v3331 = vsel %vm2507, %v3284, -inf
    %3332 = vmax.xlane.f32.xlu0 %v3331
    %v3333 = vpop.xlane.xlu0 %3332
    %v3334 = vsel %vm2507, %v3287, -inf
    %3335 = vmax.xlane.f32.xlu0 %v3334
    %v3336 = vpop.xlane.xlu0 %3335
    %v3337 = vsel %vm2507, %v3290, -inf
    %3338 = vmax.xlane.f32.xlu0 %v3337
    %v3339 = vpop.xlane.xlu0 %3338
    %v3340 = vsel %vm2507, %v3293, -inf
    %3341 = vmax.xlane.f32.xlu0 %v3340
    %v3342 = vpop.xlane.xlu0 %3341
    %v3343 = vsel %vm2507, %v3296, -inf
    %3344 = vmax.xlane.f32.xlu0 %v3343
    %v3345 = vpop.xlane.xlu0 %3344
    %v3346 = vsub.f32 %v3251, %v3300
    %v3347 = vsub.f32 %v3254, %v3303
    %v3348 = vsub.f32 %v3257, %v3306
    %v3349 = vsub.f32 %v3260, %v3309
    %v3350 = vsub.f32 %v3263, %v3312
    %v3351 = vsub.f32 %v3266, %v3315
    %v3352 = vsub.f32 %v3269, %v3318
    %v3353 = vsub.f32 %v3272, %v3321
    %v3354 = vsub.f32 %v3275, %v3324
    %v3355 = vsub.f32 %v3278, %v3327
    %v3356 = vsub.f32 %v3281, %v3330
    %v3357 = vsub.f32 %v3284, %v3333
    %v3358 = vsub.f32 %v3287, %v3336
    %v3359 = vsub.f32 %v3290, %v3339
    %v3360 = vsub.f32 %v3293, %v3342
    %v3361 = vsub.f32 %v3296, %v3345
    %v3362 = vmul.f32 %v3346, 1.442695
    %v3363 = vpow.pop %v3362
    %v3364 = vmul.f32 %v3347, 1.442695
    %v3365 = vpow.pop %v3364
    %v3366 = vmul.f32 %v3348, 1.442695
    %v3367 = vpow.pop %v3366
    %v3368 = vmul.f32 %v3349, 1.442695
    %v3369 = vpow.pop %v3368
    %v3370 = vmul.f32 %v3350, 1.442695
    %v3371 = vpow.pop %v3370
    %v3372 = vmul.f32 %v3351, 1.442695
    %v3373 = vpow.pop %v3372
    %v3374 = vmul.f32 %v3352, 1.442695
    %v3375 = vpow.pop %v3374
    %v3376 = vmul.f32 %v3353, 1.442695
    %v3377 = vpow.pop %v3376
    %v3378 = vmul.f32 %v3354, 1.442695
    %v3379 = vpow.pop %v3378
    %v3380 = vmul.f32 %v3355, 1.442695
    %v3381 = vpow.pop %v3380
    %v3382 = vmul.f32 %v3356, 1.442695
    %v3383 = vpow.pop %v3382
    %v3384 = vmul.f32 %v3357, 1.442695
    %v3385 = vpow.pop %v3384
    %v3386 = vmul.f32 %v3358, 1.442695
    %v3387 = vpow.pop %v3386
    %v3388 = vmul.f32 %v3359, 1.442695
    %v3389 = vpow.pop %v3388
    %v3390 = vmul.f32 %v3360, 1.442695
    %v3391 = vpow.pop %v3390
    %v3392 = vmul.f32 %v3361, 1.442695
    %v3393 = vpow.pop %v3392
    %v3394 = vsel %vm2507, %v3363, 0.0
    %3395 = vadd.xlane.f32.xlu0 %v3394
    %v3396 = vpop.xlane.xlu0 %3395
    %v3397 = vsel %vm2507, %v3365, 0.0
    %3398 = vadd.xlane.f32.xlu0 %v3397
    %v3399 = vpop.xlane.xlu0 %3398
    %v3400 = vsel %vm2507, %v3367, 0.0
    %3401 = vadd.xlane.f32.xlu0 %v3400
    %v3402 = vpop.xlane.xlu0 %3401
    %v3403 = vsel %vm2507, %v3369, 0.0
    %3404 = vadd.xlane.f32.xlu0 %v3403
    %v3405 = vpop.xlane.xlu0 %3404
    %v3406 = vsel %vm2507, %v3371, 0.0
    %3407 = vadd.xlane.f32.xlu0 %v3406
    %v3408 = vpop.xlane.xlu0 %3407
    %v3409 = vsel %vm2507, %v3373, 0.0
    %3410 = vadd.xlane.f32.xlu0 %v3409
    %v3411 = vpop.xlane.xlu0 %3410
    %v3412 = vsel %vm2507, %v3375, 0.0
    %3413 = vadd.xlane.f32.xlu0 %v3412
    %v3414 = vpop.xlane.xlu0 %3413
    %v3415 = vsel %vm2507, %v3377, 0.0
    %3416 = vadd.xlane.f32.xlu0 %v3415
    %v3417 = vpop.xlane.xlu0 %3416
    %v3418 = vsel %vm2507, %v3379, 0.0
    %3419 = vadd.xlane.f32.xlu0 %v3418
    %v3420 = vpop.xlane.xlu0 %3419
    %v3421 = vsel %vm2507, %v3381, 0.0
    %3422 = vadd.xlane.f32.xlu0 %v3421
    %v3423 = vpop.xlane.xlu0 %3422
    %v3424 = vsel %vm2507, %v3383, 0.0
    %3425 = vadd.xlane.f32.xlu0 %v3424
    %v3426 = vpop.xlane.xlu0 %3425
    %v3427 = vsel %vm2507, %v3385, 0.0
    %3428 = vadd.xlane.f32.xlu0 %v3427
    %v3429 = vpop.xlane.xlu0 %3428
    %v3430 = vsel %vm2507, %v3387, 0.0
    %3431 = vadd.xlane.f32.xlu0 %v3430
    %v3432 = vpop.xlane.xlu0 %3431
    %v3433 = vsel %vm2507, %v3389, 0.0
    %3434 = vadd.xlane.f32.xlu0 %v3433
    %v3435 = vpop.xlane.xlu0 %3434
    %v3436 = vsel %vm2507, %v3391, 0.0
    %3437 = vadd.xlane.f32.xlu0 %v3436
    %v3438 = vpop.xlane.xlu0 %3437
    %v3439 = vsel %vm2507, %v3393, 0.0
    %3440 = vadd.xlane.f32.xlu0 %v3439
    %v3441 = vpop.xlane.xlu0 %3440
    %v3442 = vrcp.pop %v3396
    %v3443 = vmul.f32 %v3396, %v3442
    %v3444 = vsub.f32 1.0, %v3443
    %v3445 = vmul.f32 %v3442, %v3444
    %v3446 = vadd.f32 %v3442, %v3445
    %vm3447 = vweird.f32 %v3396
    %vm3448 = vweird.f32 %v3442
    %vm3449 = vmor %vm3447, %vm3448
    %v3450 = vsel %vm3449, %v3442, %v3446
    %v3451 = vand.u32 2147483647, %v3396
    %vm3452 = vcmp.eq.f32.partialorder %v3451, 8.507059e+37
    %v3453 = vand.u32 %v3396, 2147483648
    %v3454 = vor.u32 1.1754944e-38, %v3453
    %v3455 = vsel %vm3452, %v3454, %v3450
    %v3456 = vmul.f32 %v3363, %v3455
    %v3457 = vrcp.pop %v3399
    %v3458 = vmul.f32 %v3399, %v3457
    %v3459 = vsub.f32 1.0, %v3458
    %v3460 = vmul.f32 %v3457, %v3459
    %v3461 = vadd.f32 %v3457, %v3460
    %vm3462 = vweird.f32 %v3399
    %vm3463 = vweird.f32 %v3457
    %vm3464 = vmor %vm3462, %vm3463
    %v3465 = vsel %vm3464, %v3457, %v3461
    %v3466 = vand.u32 2147483647, %v3399
    %vm3467 = vcmp.eq.f32.partialorder %v3466, 8.507059e+37
    %v3468 = vand.u32 %v3399, 2147483648
    %v3469 = vor.u32 1.1754944e-38, %v3468
    %v3470 = vsel %vm3467, %v3469, %v3465
    %v3471 = vmul.f32 %v3365, %v3470
    %v3472 = vrcp.pop %v3402
    %v3473 = vmul.f32 %v3402, %v3472
    %v3474 = vsub.f32 1.0, %v3473
    %v3475 = vmul.f32 %v3472, %v3474
    %v3476 = vadd.f32 %v3472, %v3475
    %vm3477 = vweird.f32 %v3402
    %vm3478 = vweird.f32 %v3472
    %vm3479 = vmor %vm3477, %vm3478
    %v3480 = vsel %vm3479, %v3472, %v3476
    %v3481 = vand.u32 2147483647, %v3402
    %vm3482 = vcmp.eq.f32.partialorder %v3481, 8.507059e+37
    %v3483 = vand.u32 %v3402, 2147483648
    %v3484 = vor.u32 1.1754944e-38, %v3483
    %v3485 = vsel %vm3482, %v3484, %v3480
    %v3486 = vmul.f32 %v3367, %v3485
    %v3487 = vrcp.pop %v3405
    %v3488 = vmul.f32 %v3405, %v3487
    %v3489 = vsub.f32 1.0, %v3488
    %v3490 = vmul.f32 %v3487, %v3489
    %v3491 = vadd.f32 %v3487, %v3490
    %vm3492 = vweird.f32 %v3405
    %vm3493 = vweird.f32 %v3487
    %vm3494 = vmor %vm3492, %vm3493
    %v3495 = vsel %vm3494, %v3487, %v3491
    %v3496 = vand.u32 2147483647, %v3405
    %vm3497 = vcmp.eq.f32.partialorder %v3496, 8.507059e+37
    %v3498 = vand.u32 %v3405, 2147483648
    %v3499 = vor.u32 1.1754944e-38, %v3498
    %v3500 = vsel %vm3497, %v3499, %v3495
    %v3501 = vmul.f32 %v3369, %v3500
    %v3502 = vrcp.pop %v3408
    %v3503 = vmul.f32 %v3408, %v3502
    %v3504 = vsub.f32 1.0, %v3503
    %v3505 = vmul.f32 %v3502, %v3504
    %v3506 = vadd.f32 %v3502, %v3505
    %vm3507 = vweird.f32 %v3408
    %vm3508 = vweird.f32 %v3502
    %vm3509 = vmor %vm3507, %vm3508
    %v3510 = vsel %vm3509, %v3502, %v3506
    %v3511 = vand.u32 2147483647, %v3408
    %vm3512 = vcmp.eq.f32.partialorder %v3511, 8.507059e+37
    %v3513 = vand.u32 %v3408, 2147483648
    %v3514 = vor.u32 1.1754944e-38, %v3513
    %v3515 = vsel %vm3512, %v3514, %v3510
    %v3516 = vmul.f32 %v3371, %v3515
    %v3517 = vrcp.pop %v3411
    %v3518 = vmul.f32 %v3411, %v3517
    %v3519 = vsub.f32 1.0, %v3518
    %v3520 = vmul.f32 %v3517, %v3519
    %v3521 = vadd.f32 %v3517, %v3520
    %vm3522 = vweird.f32 %v3411
    %vm3523 = vweird.f32 %v3517
    %vm3524 = vmor %vm3522, %vm3523
    %v3525 = vsel %vm3524, %v3517, %v3521
    %v3526 = vand.u32 2147483647, %v3411
    %vm3527 = vcmp.eq.f32.partialorder %v3526, 8.507059e+37
    %v3528 = vand.u32 %v3411, 2147483648
    %v3529 = vor.u32 1.1754944e-38, %v3528
    %v3530 = vsel %vm3527, %v3529, %v3525
    %v3531 = vmul.f32 %v3373, %v3530
    %v3532 = vrcp.pop %v3414
    %v3533 = vmul.f32 %v3414, %v3532
    %v3534 = vsub.f32 1.0, %v3533
    %v3535 = vmul.f32 %v3532, %v3534
    %v3536 = vadd.f32 %v3532, %v3535
    %vm3537 = vweird.f32 %v3414
    %vm3538 = vweird.f32 %v3532
    %vm3539 = vmor %vm3537, %vm3538
    %v3540 = vsel %vm3539, %v3532, %v3536
    %v3541 = vand.u32 2147483647, %v3414
    %vm3542 = vcmp.eq.f32.partialorder %v3541, 8.507059e+37
    %v3543 = vand.u32 %v3414, 2147483648
    %v3544 = vor.u32 1.1754944e-38, %v3543
    %v3545 = vsel %vm3542, %v3544, %v3540
    %v3546 = vmul.f32 %v3375, %v3545
    %v3547 = vrcp.pop %v3417
    %v3548 = vmul.f32 %v3417, %v3547
    %v3549 = vsub.f32 1.0, %v3548
    %v3550 = vmul.f32 %v3547, %v3549
    %v3551 = vadd.f32 %v3547, %v3550
    %vm3552 = vweird.f32 %v3417
    %vm3553 = vweird.f32 %v3547
    %vm3554 = vmor %vm3552, %vm3553
    %v3555 = vsel %vm3554, %v3547, %v3551
    %v3556 = vand.u32 2147483647, %v3417
    %vm3557 = vcmp.eq.f32.partialorder %v3556, 8.507059e+37
    %v3558 = vand.u32 %v3417, 2147483648
    %v3559 = vor.u32 1.1754944e-38, %v3558
    %v3560 = vsel %vm3557, %v3559, %v3555
    %v3561 = vmul.f32 %v3377, %v3560
    %v3562 = vrcp.pop %v3420
    %v3563 = vmul.f32 %v3420, %v3562
    %v3564 = vsub.f32 1.0, %v3563
    %v3565 = vmul.f32 %v3562, %v3564
    %v3566 = vadd.f32 %v3562, %v3565
    %vm3567 = vweird.f32 %v3420
    %vm3568 = vweird.f32 %v3562
    %vm3569 = vmor %vm3567, %vm3568
    %v3570 = vsel %vm3569, %v3562, %v3566
    %v3571 = vand.u32 2147483647, %v3420
    %vm3572 = vcmp.eq.f32.partialorder %v3571, 8.507059e+37
    %v3573 = vand.u32 %v3420, 2147483648
    %v3574 = vor.u32 1.1754944e-38, %v3573
    %v3575 = vsel %vm3572, %v3574, %v3570
    %v3576 = vmul.f32 %v3379, %v3575
    %v3577 = vrcp.pop %v3423
    %v3578 = vmul.f32 %v3423, %v3577
    %v3579 = vsub.f32 1.0, %v3578
    %v3580 = vmul.f32 %v3577, %v3579
    %v3581 = vadd.f32 %v3577, %v3580
    %vm3582 = vweird.f32 %v3423
    %vm3583 = vweird.f32 %v3577
    %vm3584 = vmor %vm3582, %vm3583
    %v3585 = vsel %vm3584, %v3577, %v3581
    %v3586 = vand.u32 2147483647, %v3423
    %vm3587 = vcmp.eq.f32.partialorder %v3586, 8.507059e+37
    %v3588 = vand.u32 %v3423, 2147483648
    %v3589 = vor.u32 1.1754944e-38, %v3588
    %v3590 = vsel %vm3587, %v3589, %v3585
    %v3591 = vmul.f32 %v3381, %v3590
    %v3592 = vrcp.pop %v3426
    %v3593 = vmul.f32 %v3426, %v3592
    %v3594 = vsub.f32 1.0, %v3593
    %v3595 = vmul.f32 %v3592, %v3594
    %v3596 = vadd.f32 %v3592, %v3595
    %vm3597 = vweird.f32 %v3426
    %vm3598 = vweird.f32 %v3592
    %vm3599 = vmor %vm3597, %vm3598
    %v3600 = vsel %vm3599, %v3592, %v3596
    %v3601 = vand.u32 2147483647, %v3426
    %vm3602 = vcmp.eq.f32.partialorder %v3601, 8.507059e+37
    %v3603 = vand.u32 %v3426, 2147483648
    %v3604 = vor.u32 1.1754944e-38, %v3603
    %v3605 = vsel %vm3602, %v3604, %v3600
    %v3606 = vmul.f32 %v3383, %v3605
    %v3607 = vrcp.pop %v3429
    %v3608 = vmul.f32 %v3429, %v3607
    %v3609 = vsub.f32 1.0, %v3608
    %v3610 = vmul.f32 %v3607, %v3609
    %v3611 = vadd.f32 %v3607, %v3610
    %vm3612 = vweird.f32 %v3429
    %vm3613 = vweird.f32 %v3607
    %vm3614 = vmor %vm3612, %vm3613
    %v3615 = vsel %vm3614, %v3607, %v3611
    %v3616 = vand.u32 2147483647, %v3429
    %vm3617 = vcmp.eq.f32.partialorder %v3616, 8.507059e+37
    %v3618 = vand.u32 %v3429, 2147483648
    %v3619 = vor.u32 1.1754944e-38, %v3618
    %v3620 = vsel %vm3617, %v3619, %v3615
    %v3621 = vmul.f32 %v3385, %v3620
    %v3622 = vrcp.pop %v3432
    %v3623 = vmul.f32 %v3432, %v3622
    %v3624 = vsub.f32 1.0, %v3623
    %v3625 = vmul.f32 %v3622, %v3624
    %v3626 = vadd.f32 %v3622, %v3625
    %vm3627 = vweird.f32 %v3432
    %vm3628 = vweird.f32 %v3622
    %vm3629 = vmor %vm3627, %vm3628
    %v3630 = vsel %vm3629, %v3622, %v3626
    %v3631 = vand.u32 2147483647, %v3432
    %vm3632 = vcmp.eq.f32.partialorder %v3631, 8.507059e+37
    %v3633 = vand.u32 %v3432, 2147483648
    %v3634 = vor.u32 1.1754944e-38, %v3633
    %v3635 = vsel %vm3632, %v3634, %v3630
    %v3636 = vmul.f32 %v3387, %v3635
    %v3637 = vrcp.pop %v3435
    %v3638 = vmul.f32 %v3435, %v3637
    %v3639 = vsub.f32 1.0, %v3638
    %v3640 = vmul.f32 %v3637, %v3639
    %v3641 = vadd.f32 %v3637, %v3640
    %vm3642 = vweird.f32 %v3435
    %vm3643 = vweird.f32 %v3637
    %vm3644 = vmor %vm3642, %vm3643
    %v3645 = vsel %vm3644, %v3637, %v3641
    %v3646 = vand.u32 2147483647, %v3435
    %vm3647 = vcmp.eq.f32.partialorder %v3646, 8.507059e+37
    %v3648 = vand.u32 %v3435, 2147483648
    %v3649 = vor.u32 1.1754944e-38, %v3648
    %v3650 = vsel %vm3647, %v3649, %v3645
    %v3651 = vmul.f32 %v3389, %v3650
    %v3652 = vrcp.pop %v3438
    %v3653 = vmul.f32 %v3438, %v3652
    %v3654 = vsub.f32 1.0, %v3653
    %v3655 = vmul.f32 %v3652, %v3654
    %v3656 = vadd.f32 %v3652, %v3655
    %vm3657 = vweird.f32 %v3438
    %vm3658 = vweird.f32 %v3652
    %vm3659 = vmor %vm3657, %vm3658
    %v3660 = vsel %vm3659, %v3652, %v3656
    %v3661 = vand.u32 2147483647, %v3438
    %vm3662 = vcmp.eq.f32.partialorder %v3661, 8.507059e+37
    %v3663 = vand.u32 %v3438, 2147483648
    %v3664 = vor.u32 1.1754944e-38, %v3663
    %v3665 = vsel %vm3662, %v3664, %v3660
    %v3666 = vmul.f32 %v3391, %v3665
    %v3667 = vrcp.pop %v3441
    %v3668 = vmul.f32 %v3441, %v3667
    %v3669 = vsub.f32 1.0, %v3668
    %v3670 = vmul.f32 %v3667, %v3669
    %v3671 = vadd.f32 %v3667, %v3670
    %vm3672 = vweird.f32 %v3441
    %vm3673 = vweird.f32 %v3667
    %vm3674 = vmor %vm3672, %vm3673
    %v3675 = vsel %vm3674, %v3667, %v3671
    %v3676 = vand.u32 2147483647, %v3441
    %vm3677 = vcmp.eq.f32.partialorder %v3676, 8.507059e+37
    %v3678 = vand.u32 %v3441, 2147483648
    %v3679 = vor.u32 1.1754944e-38, %v3678
    %v3680 = vsel %vm3677, %v3679, %v3675
    %v3681 = vmul.f32 %v3393, %v3680
    %v3683 = vsel %vm2507, %v3456, 0
    %v3686 = vsel %vm2507, %v3471, 0
    %v3689 = vsel %vm2507, %v3486, 0
    %v3692 = vsel %vm2507, %v3501, 0
    %v3695 = vsel %vm2507, %v3516, 0
    %v3698 = vsel %vm2507, %v3531, 0
    %v3701 = vsel %vm2507, %v3546, 0
    %v3704 = vsel %vm2507, %v3561, 0
    %v3707 = vsel %vm2507, %v3576, 0
    %v3710 = vsel %vm2507, %v3591, 0
    %v3713 = vsel %vm2507, %v3606, 0
    %v3716 = vsel %vm2507, %v3621, 0
    %v3719 = vsel %vm2507, %v3636, 0
    %v3722 = vsel %vm2507, %v3651, 0
    %v3725 = vsel %vm2507, %v3666, 0
    %v3728 = vsel %vm2507, %v3681, 0
    %3730 = vmatpush.msra.mxu0 0.0
    %3731 = vmatpush.msra.mxu0 0.0
    %3732 = vmatpush.msra.mxu0 0.0
    %3733 = vmatpush.msra.mxu0 0.0
    %3734 = vmatpush.msra.mxu0 0.0
    %3735 = vmatpush.msra.mxu0 0.0
    %3736 = vmatpush.msra.mxu0 0.0
    %3737 = vmatpush.msra.mxu0 0.0
    %3738 = vmatpush.msra.mxu0 0.0
    %3739 = vmatpush.msra.mxu0 0.0
    %3740 = vmatpush.msra.mxu0 0.0
    %3741 = vmatpush.msra.mxu0 0.0
    %3742 = vmatpush.msra.mxu0 0.0
    %3743 = vmatpush.msra.mxu0 0.0
    %3744 = vmatpush.msra.mxu0 0.0
    %3745 = vmatpush.msra.mxu0 %v3165
    %3746 = vmatmul.f32.gmra.mxu0 %v3683
    %v3747 = vpop.f32.mrf.mxu0
    %v3748 = vadd.f32 0.0, %v3747
    %3749 = vmatmul.f32.gmra.mxu0 %v3686
    %v3750 = vpop.f32.mrf.mxu0
    %v3751 = vadd.f32 0.0, %v3750
    %3752 = vmatmul.f32.gmra.mxu0 %v3689
    %v3753 = vpop.f32.mrf.mxu0
    %v3754 = vadd.f32 0.0, %v3753
    %3755 = vmatmul.f32.gmra.mxu0 %v3692
    %v3756 = vpop.f32.mrf.mxu0
    %v3757 = vadd.f32 0.0, %v3756
    %3758 = vmatmul.f32.gmra.mxu0 %v3695
    %v3759 = vpop.f32.mrf.mxu0
    %v3760 = vadd.f32 0.0, %v3759
    %3761 = vmatmul.f32.gmra.mxu0 %v3698
    %v3762 = vpop.f32.mrf.mxu0
    %v3763 = vadd.f32 0.0, %v3762
    %3764 = vmatmul.f32.gmra.mxu0 %v3701
    %v3765 = vpop.f32.mrf.mxu0
    %v3766 = vadd.f32 0.0, %v3765
    %3767 = vmatmul.f32.gmra.mxu0 %v3704
    %v3768 = vpop.f32.mrf.mxu0
    %v3769 = vadd.f32 0.0, %v3768
    %3770 = vmatmul.f32.gmra.mxu0 %v3707
    %v3771 = vpop.f32.mrf.mxu0
    %v3772 = vadd.f32 0.0, %v3771
    %3773 = vmatmul.f32.gmra.mxu0 %v3710
    %v3774 = vpop.f32.mrf.mxu0
    %v3775 = vadd.f32 0.0, %v3774
    %3776 = vmatmul.f32.gmra.mxu0 %v3713
    %v3777 = vpop.f32.mrf.mxu0
    %v3778 = vadd.f32 0.0, %v3777
    %3779 = vmatmul.f32.gmra.mxu0 %v3716
    %v3780 = vpop.f32.mrf.mxu0
    %v3781 = vadd.f32 0.0, %v3780
    %3782 = vmatmul.f32.gmra.mxu0 %v3719
    %v3783 = vpop.f32.mrf.mxu0
    %v3784 = vadd.f32 0.0, %v3783
    %3785 = vmatmul.f32.gmra.mxu0 %v3722
    %v3786 = vpop.f32.mrf.mxu0
    %v3787 = vadd.f32 0.0, %v3786
    %3788 = vmatmul.f32.gmra.mxu0 %v3725
    %v3789 = vpop.f32.mrf.mxu0
    %v3790 = vadd.f32 0.0, %v3789
    %3791 = vmatmul.f32.gmra.mxu0 %v3728
    %v3792 = vpop.f32.mrf.mxu0
    %v3793 = vadd.f32 0.0, %v3792
    %3794 = vdwg.mxu0
    %v3795 = vmul.f32 %v3748, %v2169
    %v3796 = vadd.f32 %v3795, 0.0
    %v3797 = vadd.f32 %v3456, 0.0
    %v3798 = vmul.f32 %v3751, %v2173
    %v3799 = vadd.f32 %v3796, %v3798
    %v3800 = vadd.f32 %v3797, %v3471
    %v3801 = vmul.f32 %v3754, %v2177
    %v3802 = vadd.f32 %v3799, %v3801
    %v3803 = vadd.f32 %v3800, %v3486
    %v3804 = vmul.f32 %v3757, %v2181
    %v3805 = vadd.f32 %v3802, %v3804
    %v3806 = vadd.f32 %v3803, %v3501
    %v3807 = vmul.f32 %v3760, %v2185
    %v3808 = vadd.f32 %v3805, %v3807
    %v3809 = vadd.f32 %v3806, %v3516
    %v3810 = vmul.f32 %v3763, %v2189
    %v3811 = vadd.f32 %v3808, %v3810
    %v3812 = vadd.f32 %v3809, %v3531
    %v3813 = vmul.f32 %v3766, %v2193
    %v3814 = vadd.f32 %v3811, %v3813
    %v3815 = vadd.f32 %v3812, %v3546
    %v3816 = vmul.f32 %v3769, %v2197
    %v3817 = vadd.f32 %v3814, %v3816
    %v3818 = vadd.f32 %v3815, %v3561
    %v3819 = vmul.f32 %v3772, %v2201
    %v3820 = vadd.f32 %v3817, %v3819
    %v3821 = vadd.f32 %v3818, %v3576
    %v3822 = vmul.f32 %v3775, %v2205
    %v3823 = vadd.f32 %v3820, %v3822
    %v3824 = vadd.f32 %v3821, %v3591
    %v3825 = vmul.f32 %v3778, %v2209
    %v3826 = vadd.f32 %v3823, %v3825
    %v3827 = vadd.f32 %v3824, %v3606
    %v3828 = vmul.f32 %v3781, %v2213
    %v3829 = vadd.f32 %v3826, %v3828
    %v3830 = vadd.f32 %v3827, %v3621
    %v3831 = vmul.f32 %v3784, %v2217
    %v3832 = vadd.f32 %v3829, %v3831
    %v3833 = vadd.f32 %v3830, %v3636
    %v3834 = vmul.f32 %v3787, %v2221
    %v3835 = vadd.f32 %v3832, %v3834
    %v3836 = vadd.f32 %v3833, %v3651
    %v3837 = vmul.f32 %v3790, %v2225
    %v3838 = vadd.f32 %v3835, %v3837
    %v3839 = vadd.f32 %v3836, %v3666
    %v3840 = vmul.f32 %v3793, %v2229
    %v3841 = vadd.f32 %v3838, %v3840
    %v3842 = vadd.f32 %v3839, %v3681
    %v3844 = vsel %vm206, %v3841, 0
    %3846 = vmatpush.xpose.msra.mxu0 0.0
    %3847 = vmatpush.xpose.msra.mxu0 0.0
    %3848 = vmatpush.xpose.msra.mxu0 0.0
    %3849 = vmatpush.xpose.msra.mxu0 0.0
    %3850 = vmatpush.xpose.msra.mxu0 0.0
    %3851 = vmatpush.xpose.msra.mxu0 0.0
    %3852 = vmatpush.xpose.msra.mxu0 0.0
    %3853 = vmatpush.xpose.msra.mxu0 0.0
    %3854 = vmatpush.xpose.msra.mxu0 %v3079
    %3855 = vmatpush.xpose.msra.mxu0 %v3076
    %3856 = vmatpush.xpose.msra.mxu0 %v3073
    %3857 = vmatpush.xpose.msra.mxu0 %v3070
    %3858 = vmatpush.xpose.msra.mxu0 %v3067
    %3859 = vmatpush.xpose.msra.mxu0 %v3064
    %3860 = vmatpush.xpose.msra.mxu0 %v3061
    %3861 = vmatpush.xpose.msra.mxu0 %v3058
    %3862 = vmatmul.f32.gmra.mxu0 %v3844
    %v3863 = vpop.f32.mrf.mxu0
    %v3864 = vadd.f32 %v3053, %v3863
    %3865 = vdwg.mxu0
    %v3866 = vmul.f32 %v3842, 0.0625
    %v3868 = vrot.slane %v3099, 1
    %v3869 = vrot.slane %v3099, 2
    %v3870 = vrot.slane %v3099, 3
    %v3871 = vrot.slane %v3099, 4
    %v3872 = vrot.slane %v3099, 5
    %v3873 = vrot.slane %v3099, 6
    %v3874 = vrot.slane %v3099, 7
    %v3883 = vrot.slane %v3864, 1
    %v3884 = vrot.slane %v3864, 2
    %v3885 = vrot.slane %v3864, 3
    %v3886 = vrot.slane %v3864, 4
    %v3887 = vrot.slane %v3864, 5
    %v3888 = vrot.slane %v3864, 6
    %v3889 = vrot.slane %v3864, 7
    %v3890 = vperm.slane %v3864, 0
    %v3891 = vperm.slane %v3883, 0
    %v3892 = vperm.slane %v3884, 0
    %v3893 = vperm.slane %v3885, 0
    %v3894 = vperm.slane %v3886, 0
    %v3895 = vperm.slane %v3887, 0
    %v3896 = vperm.slane %v3888, 0
    %v3897 = vperm.slane %v3889, 0
    %v3906 = vsel %vm993, %v3099, %v3890
    %v3907 = vsel %vm993, %v3868, %v3891
    %v3908 = vsel %vm993, %v3869, %v3892
    %v3909 = vsel %vm993, %v3870, %v3893
    %v3910 = vsel %vm993, %v3871, %v3894
    %v3911 = vsel %vm993, %v3872, %v3895
    %v3912 = vsel %vm993, %v3873, %v3896
    %v3913 = vsel %vm993, %v3874, %v3897
    %3914 = vst.msk [vmem:[#allocation13] sm:$0x3] %vm1002, %v3906
    %3915 = vst.msk [vmem:[#allocation13 + $0x2] sm:$0x3] %vm1002, %v3907
    %3916 = vst.msk [vmem:[#allocation13 + $0x4] sm:$0x3] %vm1002, %v3908
    %3917 = vst.msk [vmem:[#allocation13 + $0x6] sm:$0x3] %vm1002, %v3909
    %3918 = vst.msk [vmem:[#allocation13 + $0x8] sm:$0x3] %vm1002, %v3910
    %3919 = vst.msk [vmem:[#allocation13 + $0xa] sm:$0x3] %vm1002, %v3911
    %3920 = vst.msk [vmem:[#allocation13 + $0xc] sm:$0x3] %vm1002, %v3912
    %3921 = vst.msk [vmem:[#allocation13 + $0xe] sm:$0x3] %vm1002, %v3913
    %3922 = vst.msk [vmem:[#allocation14] sm:$0xff] %vm2507, %v3101
    %3923 = vst.msk [vmem:[#allocation14 + $0x8] sm:$0xff] %vm2507, %v3866
    // Predicated region
    $region50: #{_lambda_.2} parent=1 // pred_check
      _
    $region51: #{_lambda_.2} parent=1 // pred_check_branch
      %3925 = sbr.rel (0) target = $region53
    $region52: #{_lambda_.2} parent=1 // pred_region
      %3927 = vsyncadd [#allocation4], 0
      %s3928 = sshll.u32 [#allocation10], 4
      %s3929 = int_to_ptr.vmem [resolvable:$true] %s3928
      %s3930 = sshll.u32 %s8, 4
      %s3931 = int_to_ptr.hbm [resolvable:$true] %s3930
      %3936 = dma.vmem_to_hbm [thread:$0]  %s3929, 256, %s3931, [#allocation4], 32, 32, 2
    $region53: #{_lambda_.2} parent=1 // pred_fallthru
      _
    // Predicated region
    $region54: #{_lambda_.2} parent=1 // pred_check
      _
    $region55: #{_lambda_.2} parent=1 // pred_check_branch
      %3938 = sbr.rel (0) target = $region57
    $region56: #{_lambda_.2} parent=1 // pred_region
      _
    $region57: #{_lambda_.2} parent=1 // pred_fallthru
      _
    // Predicated region
    $region58: #{_lambda_.2} parent=1 // pred_check
      _
    $region59: #{_lambda_.2} parent=1 // pred_check_branch
      %3940 = sbr.rel (0) target = $region61
    $region60: #{_lambda_.2} parent=1 // pred_region
      %3942 = vsyncadd [#allocation12], 0
      %s3943 = sshll.u32 [#allocation11], 4
      %s3944 = int_to_ptr.vmem [resolvable:$true] %s3943
      %s3945 = sshll.u32 %s10, 4
      %s3946 = int_to_ptr.hbm [resolvable:$true] %s3945
      %3951 = dma.vmem_to_hbm [thread:$0]  %s3944, 256, %s3946, [#allocation12], 32, 32, 2
    $region61: #{_lambda_.2} parent=1 // pred_fallthru
      _
    // Predicated region
    $region62: #{_lambda_.2} parent=1 // pred_check
      _
    $region63: #{_lambda_.2} parent=1 // pred_check_branch
      %3953 = sbr.rel (0) target = $region65
    $region64: #{_lambda_.2} parent=1 // pred_region
      _
    $region65: #{_lambda_.2} parent=1 // pred_fallthru
      _
    // Predicated region
    $region66: #{_lambda_.2} parent=1 // pred_check
      _
    $region67: #{_lambda_.2} parent=1 // pred_check_branch
      %3955 = sbr.rel (0) target = $region69
    $region68: #{_lambda_.2} parent=1 // pred_region
      %3957 = vsyncadd [#allocation12], 0
      %s3958 = sshll.u32 [#allocation13], 4
      %s3959 = int_to_ptr.vmem [resolvable:$true] %s3958
      %s3960 = sshll.u32 %s12, 4
      %s3961 = int_to_ptr.hbm [resolvable:$true] %s3960
      %3966 = dma.vmem_to_hbm [thread:$0]  %s3959, 256, %s3961, [#allocation12], 32, 32, 2
    $region69: #{_lambda_.2} parent=1 // pred_fallthru
      _
    // Predicated region
    $region70: #{_lambda_.2} parent=1 // pred_check
      _
    $region71: #{_lambda_.2} parent=1 // pred_check_branch
      %3968 = sbr.rel (0) target = $region73
    $region72: #{_lambda_.2} parent=1 // pred_region
      %3970 = vsyncadd [#allocation15], 0
      %s3971 = sshll.u32 [#allocation14], 4
      %s3972 = int_to_ptr.vmem [resolvable:$true] %s3971
      %s3973 = sshll.u32 %s13, 4
      %s3974 = int_to_ptr.hbm [resolvable:$true] %s3973
      %3979 = dma.vmem_to_hbm [thread:$0]  %s3972, 256, %s3974, [#allocation15], 128, 128, 8
    $region73: #{_lambda_.2} parent=1 // pred_fallthru
      _
    // Predicated region
    $region74: #{_lambda_.2} parent=1 // pred_check
      _
    $region75: #{_lambda_.2} parent=1 // pred_check_branch
      %3981 = sbr.rel (0) target = $region77
    $region76: #{_lambda_.2} parent=1 // pred_region
      %3983 = dma.done [#allocation4], 256
    $region77: #{_lambda_.2} parent=1 // pred_fallthru
      _
    // Predicated region
    $region78: #{_lambda_.2} parent=1 // pred_check
      _
    $region79: #{_lambda_.2} parent=1 // pred_check_branch
      %3985 = sbr.rel (0) target = $region81
    $region80: #{_lambda_.2} parent=1 // pred_region
      _
    $region81: #{_lambda_.2} parent=1 // pred_fallthru
      _
    // Predicated region
    $region82: #{_lambda_.2} parent=1 // pred_check
      _
    $region83: #{_lambda_.2} parent=1 // pred_check_branch
      %3987 = sbr.rel (0) target = $region85
    $region84: #{_lambda_.2} parent=1 // pred_region
      %3989 = dma.done [#allocation12], 256
    $region85: #{_lambda_.2} parent=1 // pred_fallthru
      _
    // Predicated region
    $region86: #{_lambda_.2} parent=1 // pred_check
      _
    $region87: #{_lambda_.2} parent=1 // pred_check_branch
      %3991 = sbr.rel (0) target = $region89
    $region88: #{_lambda_.2} parent=1 // pred_region
      _
    $region89: #{_lambda_.2} parent=1 // pred_fallthru
      _
    // Predicated region
    $region90: #{_lambda_.2} parent=1 // pred_check
      _
    $region91: #{_lambda_.2} parent=1 // pred_check_branch
      %3993 = sbr.rel (0) target = $region93
    $region92: #{_lambda_.2} parent=1 // pred_region
      %3995 = dma.done [#allocation12], 256
    $region93: #{_lambda_.2} parent=1 // pred_fallthru
      _
    // Predicated region
    $region94: #{_lambda_.2} parent=1 // pred_check
      _
    $region95: #{_lambda_.2} parent=1 // pred_check_branch
      %3997 = sbr.rel (0) target = $region97
    $region96: #{_lambda_.2} parent=1 // pred_region
      %3999 = dma.done [#allocation15], 256
    $region97: #{_lambda_.2} parent=1 // pred_fallthru
      _
    %4000 = vsyncpa [#allocation3], 1
    %4001 = vsyncpa [#allocation6], 1
    %4002 = vsyncpa [#allocation9], 1
    %4003 = vsyncpa [#allocation4], 1
    %4004 = vsyncpa [#allocation12], 1
    %4005 = vsyncpa [#allocation15], 1

</llo_original>
